<compile_context>
chip_gen: v7x
topology: tpu7x:2x2x1
jax: 0.10.0
libtpu: 0.0.40
codegen_flags: <defaults>
</compile_context>

<pallas_src>
import numpy as np

import jax
import jax.numpy as jnp
from jax.experimental import pallas as pl
from jax.experimental.pallas import tpu as pltpu


_BN_EPS = 1e-5


# --------------------------------------------------------------------------
#  Precomputed tap-gather / tap-scatter selection matrices (spatial only).
# --------------------------------------------------------------------------


def _make_down_gather(h, w):
    """Conv2d(k=3, s=2, p=1): G[t, ih*W+iw, oh*OW+ow] = 1 iff tap t of output
    (oh, ow) reads input (ih, iw); out-of-bounds taps are simply absent (== 0
    padding)."""
    oh, ow = (h + 1) // 2, (w + 1) // 2
    g = np.zeros((9, h * w, oh * ow), np.float32)
    for kh in range(3):
        for kw in range(3):
            t = kh * 3 + kw
            for o_h in range(oh):
                ih = 2 * o_h + kh - 1
                if ih < 0 or ih >= h:
                    continue
                for o_w in range(ow):
                    iw = 2 * o_w + kw - 1
                    if iw < 0 or iw >= w:
                        continue
                    g[t, ih * w + iw, o_h * ow + o_w] = 1.0
    return g


def _make_up_scatter(h, w):
    """ConvTranspose2d(k=3, s=2, p=1, output_padding=1): S[t, i, o] = 1 iff
    input position i contributes to output position o under tap t
    (o = 2*i + k - 1).  Output is (2H, 2W); depth-to-space is folded in."""
    oh, ow = 2 * h, 2 * w
    g = np.zeros((9, h * w, oh * ow), np.float32)
    for kh in range(3):
        for kw in range(3):
            t = kh * 3 + kw
            for ih in range(h):
                o_h = 2 * ih + kh - 1
                if o_h < 0 or o_h >= oh:
                    continue
                for iw in range(w):
                    o_w = 2 * iw + kw - 1
                    if o_w < 0 or o_w >= ow:
                        continue
                    g[t, ih * w + iw, o_h * ow + o_w] = 1.0
    return g


# --------------------------------------------------------------------------
#  Tap-packed, batch-Kronecker-expanded GEMM weights (built once, off-path).
#  Activation rows are (channel, batch) -> row = c*N + n, except the raw
#  network input (natural NCHW reshape -> rows (n, c)) and the final output
#  (rows (n, c) so the wrapper only needs a reshape).
# --------------------------------------------------------------------------


def _pack_down_weight(w, n_batch, in_nc_major=False):
    """Conv2d weight (Cout, Cin, 3, 3) -> (Cout*N, 9*Cin*N)."""
    w = np.asarray(w, np.float32)
    cout, cin = w.shape[:2]
    out = np.zeros((cout * n_batch, 9, cin * n_batch), np.float32)
    for t in range(9):
        kh, kw = divmod(t, 3)
        for n in range(n_batch):
            for co in range(cout):
                for ci in range(cin):
                    col = (n * cin + ci) if in_nc_major else (ci * n_batch + n)
                    out[co * n_batch + n, t, col] = w[co, ci, kh, kw]
    return out.reshape(cout * n_batch, 9 * cin * n_batch)


def _pack_up_weight(w, n_batch, out_nc_major=False):
    """ConvTranspose2d weight (Cin, Cout, 3, 3) -> (Cout*N, 9*Cin*N)."""
    w = np.asarray(w, np.float32)
    cin, cout = w.shape[:2]
    out = np.zeros((cout * n_batch, 9, cin * n_batch), np.float32)
    for t in range(9):
        kh, kw = divmod(t, 3)
        for n in range(n_batch):
            for co in range(cout):
                ro = (n * cout + co) if out_nc_major else (co * n_batch + n)
                for ci in range(cin):
                    out[ro, t, ci * n_batch + n] = w[ci, co, kh, kw]
    return out.reshape(cout * n_batch, 9 * cin * n_batch)


def _bn_pool(c, n_batch):
    """(C*N, C*N) matrix averaging rows within each channel's batch block."""
    return np.kron(np.eye(c, dtype=np.float32),
                   np.full((n_batch, n_batch), 1.0 / n_batch, np.float32))


def _bn_gb(gb, n_batch):
    """(C, 2) [gamma, beta] -> per-row (C*N, 2)."""
    return np.repeat(np.asarray(gb, np.float32), n_batch, axis=0)


# --------------------------------------------------------------------------
#  Single fused Pallas kernel for the whole 3-level SegV7Block stack.
# --------------------------------------------------------------------------


def _make_fused_kernel(out_act):
    def kernel(x_ref,
               w0_ref, g0_ref,                              # outer down
               w1_ref, g1_ref, pool1_ref, gb1_ref,          # mid down + BN
               w2_ref, g2_ref,                              # inner down
               w3_ref, g3_ref, pool3_ref, gb3_ref,          # inner up + BN
               w4_ref, g4_ref, pool4_ref, gb4_ref,          # mid up + BN
               w5_ref, g5_ref, b5_ref,                      # outer up + bias
               o_ref):

        def tap_conv(a_bf, w_ref, g_ref):
            # a_bf: (Rin, Min) bf16; g_ref: (9, Min, Mout) bf16 0/1 selection;
            # w_ref: (Rout, 9*Rin) bf16 tap-packed weight.  Pure-selection
            # gathers are exact in bf16; the single weight GEMM accumulates
            # over all 9 taps and all input channels in f32 on the MXU.
            patches = jnp.concatenate(
                [jnp.dot(a_bf, g_ref[t],
                         preferred_element_type=jnp.float32).astype(jnp.bfloat16)
                 for t in range(9)],
                axis=0)                                       # (9*Rin, Mout)
            return jnp.dot(w_ref[...], patches,
                           preferred_element_type=jnp.float32)  # (Rout, Mout)

        def batchnorm(y, pool_ref, gb_ref):
            # Training-mode BatchNorm2d: stats over (batch, H, W) per channel.
            pool = pool_ref[...]                              # (R, R) f32
            mean = jnp.mean(jnp.dot(pool, y, preferred_element_type=jnp.float32),
                            axis=1, keepdims=True)            # per-channel mean
            d = y - mean
            var = jnp.mean(jnp.dot(pool, d * d,
                                   preferred_element_type=jnp.float32),
                           axis=1, keepdims=True)             # biased variance
            scale = gb_ref[:, 0:1] * jax.lax.rsqrt(var + _BN_EPS)
            return d * scale + gb_ref[:, 1:2]

        def relu_bf(v):
            return jnp.maximum(v, 0.0).astype(jnp.bfloat16)

        x = x_ref[...].astype(jnp.bfloat16)                   # rows (n, c)

        # outermost: down = [downconv]                         -> d0 (8ch, 8x8)
        d0 = tap_conv(x, w0_ref, g0_ref)
        # middle:    down = [relu, conv, BN]                   -> d1 (16ch, 4x4)
        d1 = batchnorm(tap_conv(relu_bf(d0), w1_ref, g1_ref), pool1_ref, gb1_ref)
        # innermost: down = [relu, conv]                       -> d2 (16ch, 2x2)
        d2 = tap_conv(relu_bf(d1), w2_ref, g2_ref)
        # innermost: up   = [relu, convT, BN]                  -> u2 (16ch, 4x4)
        u2 = batchnorm(tap_conv(relu_bf(d2), w3_ref, g3_ref), pool3_ref, gb3_ref)
        # innermost skip:  cat([d1, u2], channel)              -> c2 (32ch, 4x4)
        c2 = jnp.concatenate([d1, u2], axis=0)
        # middle:    up   = [relu, convT, BN]                  -> u1 (8ch, 8x8)
        u1 = batchnorm(tap_conv(relu_bf(c2), w4_ref, g4_ref), pool4_ref, gb4_ref)
        # TODO(synk): nn.Dropout(0.5) (use_dropout=True, middle blocks) is
        # train-time stochastic and is not modeled.
        # middle skip:     cat([d0, u1], channel)              -> c1 (16ch, 8x8)
        c1 = jnp.concatenate([d0, u1], axis=0)
        # outermost: up   = [relu, convT(+bias), tanh/sigmoid] -> (4ch, 16x16)
        y = tap_conv(relu_bf(c1), w5_ref, g5_ref) + b5_ref[...]
        if out_act == "sigmoid":
            y = jax.nn.sigmoid(y)
        else:
            y = jnp.tanh(y)
        o_ref[...] = y                                        # rows (n, c)

    return kernel


def seg_v7_forward_3level(x_nchw, params, *, is_sigmoid=False):
    """Full 3-level SegV7Block forward: outermost(middle(innermost)).
    Public layout is NCHW like PyTorch; only two boundary reshapes in XLA."""
    n, c, h, w = x_nchw.shape
    p = params
    out_c = p["w5"].shape[0] // n
    x2 = x_nchw.reshape(n * c, h * w)
    out = pl.pallas_call(
        _make_fused_kernel("sigmoid" if is_sigmoid else "tanh"),
        out_shape=jax.ShapeDtypeStruct((n * out_c, h * w), jnp.float32),
        compiler_params=pltpu.CompilerParams(
            vmem_limit_bytes=32 * 1024 * 1024),
    )(x2,
      p["w0"], p["g0"],
      p["w1"], p["g1"], p["pool1"], p["gb1"],
      p["w2"], p["g2"],
      p["w3"], p["g3"], p["pool3"], p["gb3"],
      p["w4"], p["g4"], p["pool4"], p["gb4"],
      p["w5"], p["g5"], p["b5"])
    return out.reshape(n, out_c, h, w)


# --------------------------------------------------------------------------
#  Parameters (PyTorch layout) and one-time GEMM-ready preparation.
# --------------------------------------------------------------------------


def init_raw_params(key):
    """PyTorch-layout parameters for a 3-level SegV7Block stack:
         outer: outer_nc=4, inner_nc=8  (outermost downconv takes input_nc*2 = 8 ch)
         mid:   outer_nc=8, inner_nc=16
         inner: outer_nc=16, inner_nc=16
    """
    ks = jax.random.split(key, 7)

    def conv_w(k, cout, cin):            # nn.Conv2d weight (Cout, Cin, 3, 3)
        return ((jax.random.uniform(k, (cout, cin, 3, 3), jnp.float32) - 0.5)
                * 2.0 / jnp.sqrt(cin * 9.0))

    def convt_w(k, cin, cout):           # nn.ConvTranspose2d weight (Cin, Cout, 3, 3)
        return ((jax.random.uniform(k, (cin, cout, 3, 3), jnp.float32) - 0.5)
                * 2.0 / jnp.sqrt(cin * 9.0))

    def bn(c):                           # fresh nn.BatchNorm2d affine: gamma=1, beta=0
        return jnp.stack([jnp.ones((c,), jnp.float32),
                          jnp.zeros((c,), jnp.float32)], axis=1)

    return {
        "outer": {"down_w": conv_w(ks[0], 8, 8),     # Conv2d(8 -> 8), bias=False
                  "up_w": convt_w(ks[1], 16, 4),     # ConvT(16 -> 4), bias=True
                  "up_b": 0.05 * jax.random.normal(ks[2], (4,), jnp.float32)},
        "mid": {"down_w": conv_w(ks[3], 16, 8),      # Conv2d(8 -> 16), bias=False
                "down_bn": bn(16),
                "up_w": convt_w(ks[4], 32, 8),       # ConvT(32 -> 8), bias=False
                "up_bn": bn(8)},
        "inner": {"down_w": conv_w(ks[5], 16, 16),   # Conv2d(16 -> 16), bias=False
                  "up_w": convt_w(ks[6], 16, 16),    # ConvT(16 -> 16), bias=False
                  "up_bn": bn(16)},
    }


def prepare_params(raw, *, batch, height, width):
    """One-time conversion into kernel-ready tensors (hoisted off the forward
    path).  Weights are Kronecker-expanded over the (small) batch, so the
    prepared params are specialized to `batch`."""
    n = batch
    h0, w0 = height, width
    h1, w1 = h0 // 2, w0 // 2
    h2, w2 = h1 // 2, w1 // 2
    h3, w3 = h2 // 2, w2 // 2
    bf, f32 = jnp.bfloat16, jnp.float32

    p = {}
    # outer down (input rows are natural NCHW order (n, c); output rows (c, n))
    p["w0"] = jnp.asarray(_pack_down_weight(raw["outer"]["down_w"], n,
                                            in_nc_major=True), bf)
    p["g0"] = jnp.asarray(_make_down_gather(h0, w0), bf)
    # mid down + BN
    p["w1"] = jnp.asarray(_pack_down_weight(raw["mid"]["down_w"], n), bf)
    p["g1"] = jnp.asarray(_make_down_gather(h1, w1), bf)
    p["pool1"] = jnp.asarray(_bn_pool(raw["mid"]["down_w"].shape[0], n), f32)
    p["gb1"] = jnp.asarray(_bn_gb(raw["mid"]["down_bn"], n), f32)
    # inner down
    p["w2"] = jnp.asarray(_pack_down_weight(raw["inner"]["down_w"], n), bf)
    p["g2"] = jnp.asarray(_make_down_gather(h2, w2), bf)
    # inner up + BN
    p["w3"] = jnp.asarray(_pack_up_weight(raw["inner"]["up_w"], n), bf)
    p["g3"] = jnp.asarray(_make_up_scatter(h3, w3), bf)
    p["pool3"] = jnp.asarray(_bn_pool(raw["inner"]["up_w"].shape[1], n), f32)
    p["gb3"] = jnp.asarray(_bn_gb(raw["inner"]["up_bn"], n), f32)
    # mid up + BN
    p["w4"] = jnp.asarray(_pack_up_weight(raw["mid"]["up_w"], n), bf)
    p["g4"] = jnp.asarray(_make_up_scatter(h2, w2), bf)
    p["pool4"] = jnp.asarray(_bn_pool(raw["mid"]["up_w"].shape[1], n), f32)
    p["gb4"] = jnp.asarray(_bn_gb(raw["mid"]["up_bn"], n), f32)
    # outer up (+bias, output rows (n, c) so the wrapper only reshapes)
    p["w5"] = jnp.asarray(_pack_up_weight(raw["outer"]["up_w"], n,
                                          out_nc_major=True), bf)
    p["g5"] = jnp.asarray(_make_up_scatter(h1, w1), bf)
    p["b5"] = jnp.asarray(np.tile(np.asarray(raw["outer"]["up_b"], np.float32),
                                  (n,)).reshape(-1, 1), f32)
    return p


# ---------------------- XLA reference (numerical check) ----------------------


def _ref_conv_down(x, w, relu_in):
    if relu_in:
        x = jnp.maximum(x, 0)
    return jax.lax.conv_general_dilated(
        x.astype(jnp.bfloat16), w.astype(jnp.bfloat16),
        window_strides=(2, 2), padding=((1, 1), (1, 1)),
        dimension_numbers=("NCHW", "OIHW", "NCHW"),
        preferred_element_type=jnp.float32)


def _ref_conv_up(x, wt, bias=None):
    x = jnp.maximum(x, 0)
    w = jnp.flip(wt, (2, 3)).transpose(1, 0, 2, 3)       # -> (Cout, Cin, 3, 3)
    y = jax.lax.conv_general_dilated(
        x.astype(jnp.bfloat16), w.astype(jnp.bfloat16),
        window_strides=(1, 1), padding=((1, 2), (1, 2)), lhs_dilation=(2, 2),
        dimension_numbers=("NCHW", "OIHW", "NCHW"),
        preferred_element_type=jnp.float32)
    if bias is not None:
        y = y + bias.reshape(1, -1, 1, 1)
    return y


def _ref_bn(x, gb, eps=_BN_EPS):
    mean = jnp.mean(x, axis=(0, 2, 3), keepdims=True)
    var = jnp.mean(jnp.square(x - mean), axis=(0, 2, 3), keepdims=True)
    g = gb[:, 0].reshape(1, -1, 1, 1)
    b = gb[:, 1].reshape(1, -1, 1, 1)
    return (x - mean) * jax.lax.rsqrt(var + eps) * g + b


def ref_forward_3level(x, raw):
    bf = jnp.bfloat16
    x = x.astype(bf)
    d0 = _ref_conv_down(x, raw["outer"]["down_w"], relu_in=False).astype(bf)
    d1 = _ref_bn(_ref_conv_down(d0, raw["mid"]["down_w"], relu_in=True),
                 raw["mid"]["down_bn"]).astype(bf)
    d2 = _ref_conv_down(d1, raw["inner"]["down_w"], relu_in=True).astype(bf)
    u2 = _ref_bn(_ref_conv_up(d2, raw["inner"]["up_w"]),
                 raw["inner"]["up_bn"]).astype(bf)
    c2 = jnp.concatenate([d1, u2], axis=1)
    u1 = _ref_bn(_ref_conv_up(c2, raw["mid"]["up_w"]),
                 raw["mid"]["up_bn"]).astype(bf)
    c1 = jnp.concatenate([d0, u1], axis=1)
    return jnp.tanh(_ref_conv_up(c1, raw["outer"]["up_w"], raw["outer"]["up_b"]))


# ------------------------------------ main ------------------------------------


if __name__ == "__main__":
    key = jax.random.PRNGKey(0)
    kp, kx = jax.random.split(key, 2)
    raw = init_raw_params(kp)

    N, C, H, W = 2, 8, 16, 16     # outermost downconv takes input_nc*2 = 8 channels
    params = prepare_params(raw, batch=N, height=H, width=W)
    x = jax.random.normal(kx, (N, C, H, W), jnp.float32)

    fwd = jax.jit(seg_v7_forward_3level)
    out = jax.block_until_ready(fwd(x, params))
    assert out.shape == (N, 4, H, W), out.shape
    assert bool(jnp.all(jnp.isfinite(out)))

    # numeric check against an XLA conv reference with matching bf16/f32 numerics
    ref = jax.block_until_ready(jax.jit(ref_forward_3level)(x, raw))
    max_err = float(jnp.max(jnp.abs(out - ref)))
    assert max_err < 0.1, f"max |pallas - ref| = {max_err}"

    print("KERNEL_OK")
</pallas_src>

<mosaic_0001>
module attributes {stable_mosaic.version = 11 : i64} {
  func.func @kernel(%arg0: memref<16x256xf32, #tpu.memory_space<vmem>>, %arg1: memref<16x144xbf16, #tpu.memory_space<vmem>>, %arg2: memref<9x256x64xbf16, #tpu.memory_space<vmem>>, %arg3: memref<32x144xbf16, #tpu.memory_space<vmem>>, %arg4: memref<9x64x16xbf16, #tpu.memory_space<vmem>>, %arg5: memref<32x32xf32, #tpu.memory_space<vmem>>, %arg6: memref<32x2xf32, #tpu.memory_space<vmem>>, %arg7: memref<32x288xbf16, #tpu.memory_space<vmem>>, %arg8: memref<9x16x4xbf16, #tpu.memory_space<vmem>>, %arg9: memref<32x288xbf16, #tpu.memory_space<vmem>>, %arg10: memref<9x4x16xbf16, #tpu.memory_space<vmem>>, %arg11: memref<32x32xf32, #tpu.memory_space<vmem>>, %arg12: memref<32x2xf32, #tpu.memory_space<vmem>>, %arg13: memref<16x576xbf16, #tpu.memory_space<vmem>>, %arg14: memref<9x16x64xbf16, #tpu.memory_space<vmem>>, %arg15: memref<16x16xf32, #tpu.memory_space<vmem>>, %arg16: memref<16x2xf32, #tpu.memory_space<vmem>>, %arg17: memref<8x288xbf16, #tpu.memory_space<vmem>>, %arg18: memref<9x64x256xbf16, #tpu.memory_space<vmem>>, %arg19: memref<8x1xf32, #tpu.memory_space<vmem>>, %arg20: memref<8x256xf32, #tpu.memory_space<vmem>>) attributes {dimension_semantics = [], scalar_prefetch = 0 : i64, scratch_operands = 0 : i64, tpu.core_type = #tpu.core_type<tc>} {
    %c0 = arith.constant 0 : index
    %c0_0 = arith.constant 0 : index
    %0 = vector.load %arg0[%c0, %c0_0] : memref<16x256xf32, #tpu.memory_space<vmem>>, vector<16x256xf32>
    %1 = arith.truncf %0 : vector<16x256xf32> to vector<16x256xbf16>
    %c0_1 = arith.constant 0 : index
    %c0_2 = arith.constant 0 : index
    %c0_3 = arith.constant 0 : index
    %2 = vector.load %arg2[%c0_1, %c0_2, %c0_3] : memref<9x256x64xbf16, #tpu.memory_space<vmem>>, vector<1x256x64xbf16>
    %3 = vector.shape_cast %2 : vector<1x256x64xbf16> to vector<256x64xbf16>
    %cst = arith.constant dense<0.000000e+00> : vector<16x64xf32>
    %4 = tpu.matmul %1, %3, %cst {dimension_numbers = #tpu.dot_dimension_numbers<[1], [0], [0], [1], [0, 0, 1, 1], [], []>} : vector<16x256xbf16>, vector<256x64xbf16>, vector<16x64xf32> -> vector<16x64xf32>
    %5 = arith.truncf %4 : vector<16x64xf32> to vector<16x64xbf16>
    %c1 = arith.constant 1 : index
    %c0_4 = arith.constant 0 : index
    %c0_5 = arith.constant 0 : index
    %6 = vector.load %arg2[%c1, %c0_4, %c0_5] : memref<9x256x64xbf16, #tpu.memory_space<vmem>>, vector<1x256x64xbf16>
    %7 = vector.shape_cast %6 : vector<1x256x64xbf16> to vector<256x64xbf16>
    %cst_6 = arith.constant dense<0.000000e+00> : vector<16x64xf32>
    %8 = tpu.matmul %1, %7, %cst_6 {dimension_numbers = #tpu.dot_dimension_numbers<[1], [0], [0], [1], [0, 0, 1, 1], [], []>} : vector<16x256xbf16>, vector<256x64xbf16>, vector<16x64xf32> -> vector<16x64xf32>
    %9 = arith.truncf %8 : vector<16x64xf32> to vector<16x64xbf16>
    %c2 = arith.constant 2 : index
    %c0_7 = arith.constant 0 : index
    %c0_8 = arith.constant 0 : index
    %10 = vector.load %arg2[%c2, %c0_7, %c0_8] : memref<9x256x64xbf16, #tpu.memory_space<vmem>>, vector<1x256x64xbf16>
    %11 = vector.shape_cast %10 : vector<1x256x64xbf16> to vector<256x64xbf16>
    %cst_9 = arith.constant dense<0.000000e+00> : vector<16x64xf32>
    %12 = tpu.matmul %1, %11, %cst_9 {dimension_numbers = #tpu.dot_dimension_numbers<[1], [0], [0], [1], [0, 0, 1, 1], [], []>} : vector<16x256xbf16>, vector<256x64xbf16>, vector<16x64xf32> -> vector<16x64xf32>
    %13 = arith.truncf %12 : vector<16x64xf32> to vector<16x64xbf16>
    %c3 = arith.constant 3 : index
    %c0_10 = arith.constant 0 : index
    %c0_11 = arith.constant 0 : index
    %14 = vector.load %arg2[%c3, %c0_10, %c0_11] : memref<9x256x64xbf16, #tpu.memory_space<vmem>>, vector<1x256x64xbf16>
    %15 = vector.shape_cast %14 : vector<1x256x64xbf16> to vector<256x64xbf16>
    %cst_12 = arith.constant dense<0.000000e+00> : vector<16x64xf32>
    %16 = tpu.matmul %1, %15, %cst_12 {dimension_numbers = #tpu.dot_dimension_numbers<[1], [0], [0], [1], [0, 0, 1, 1], [], []>} : vector<16x256xbf16>, vector<256x64xbf16>, vector<16x64xf32> -> vector<16x64xf32>
    %17 = arith.truncf %16 : vector<16x64xf32> to vector<16x64xbf16>
    %c4 = arith.constant 4 : index
    %c0_13 = arith.constant 0 : index
    %c0_14 = arith.constant 0 : index
    %18 = vector.load %arg2[%c4, %c0_13, %c0_14] : memref<9x256x64xbf16, #tpu.memory_space<vmem>>, vector<1x256x64xbf16>
    %19 = vector.shape_cast %18 : vector<1x256x64xbf16> to vector<256x64xbf16>
    %cst_15 = arith.constant dense<0.000000e+00> : vector<16x64xf32>
    %20 = tpu.matmul %1, %19, %cst_15 {dimension_numbers = #tpu.dot_dimension_numbers<[1], [0], [0], [1], [0, 0, 1, 1], [], []>} : vector<16x256xbf16>, vector<256x64xbf16>, vector<16x64xf32> -> vector<16x64xf32>
    %21 = arith.truncf %20 : vector<16x64xf32> to vector<16x64xbf16>
    %c5 = arith.constant 5 : index
    %c0_16 = arith.constant 0 : index
    %c0_17 = arith.constant 0 : index
    %22 = vector.load %arg2[%c5, %c0_16, %c0_17] : memref<9x256x64xbf16, #tpu.memory_space<vmem>>, vector<1x256x64xbf16>
    %23 = vector.shape_cast %22 : vector<1x256x64xbf16> to vector<256x64xbf16>
    %cst_18 = arith.constant dense<0.000000e+00> : vector<16x64xf32>
    %24 = tpu.matmul %1, %23, %cst_18 {dimension_numbers = #tpu.dot_dimension_numbers<[1], [0], [0], [1], [0, 0, 1, 1], [], []>} : vector<16x256xbf16>, vector<256x64xbf16>, vector<16x64xf32> -> vector<16x64xf32>
    %25 = arith.truncf %24 : vector<16x64xf32> to vector<16x64xbf16>
    %c6 = arith.constant 6 : index
    %c0_19 = arith.constant 0 : index
    %c0_20 = arith.constant 0 : index
    %26 = vector.load %arg2[%c6, %c0_19, %c0_20] : memref<9x256x64xbf16, #tpu.memory_space<vmem>>, vector<1x256x64xbf16>
    %27 = vector.shape_cast %26 : vector<1x256x64xbf16> to vector<256x64xbf16>
    %cst_21 = arith.constant dense<0.000000e+00> : vector<16x64xf32>
    %28 = tpu.matmul %1, %27, %cst_21 {dimension_numbers = #tpu.dot_dimension_numbers<[1], [0], [0], [1], [0, 0, 1, 1], [], []>} : vector<16x256xbf16>, vector<256x64xbf16>, vector<16x64xf32> -> vector<16x64xf32>
    %29 = arith.truncf %28 : vector<16x64xf32> to vector<16x64xbf16>
    %c7 = arith.constant 7 : index
    %c0_22 = arith.constant 0 : index
    %c0_23 = arith.constant 0 : index
    %30 = vector.load %arg2[%c7, %c0_22, %c0_23] : memref<9x256x64xbf16, #tpu.memory_space<vmem>>, vector<1x256x64xbf16>
    %31 = vector.shape_cast %30 : vector<1x256x64xbf16> to vector<256x64xbf16>
    %cst_24 = arith.constant dense<0.000000e+00> : vector<16x64xf32>
    %32 = tpu.matmul %1, %31, %cst_24 {dimension_numbers = #tpu.dot_dimension_numbers<[1], [0], [0], [1], [0, 0, 1, 1], [], []>} : vector<16x256xbf16>, vector<256x64xbf16>, vector<16x64xf32> -> vector<16x64xf32>
    %33 = arith.truncf %32 : vector<16x64xf32> to vector<16x64xbf16>
    %c8 = arith.constant 8 : index
    %c0_25 = arith.constant 0 : index
    %c0_26 = arith.constant 0 : index
    %34 = vector.load %arg2[%c8, %c0_25, %c0_26] : memref<9x256x64xbf16, #tpu.memory_space<vmem>>, vector<1x256x64xbf16>
    %35 = vector.shape_cast %34 : vector<1x256x64xbf16> to vector<256x64xbf16>
    %cst_27 = arith.constant dense<0.000000e+00> : vector<16x64xf32>
    %36 = tpu.matmul %1, %35, %cst_27 {dimension_numbers = #tpu.dot_dimension_numbers<[1], [0], [0], [1], [0, 0, 1, 1], [], []>} : vector<16x256xbf16>, vector<256x64xbf16>, vector<16x64xf32> -> vector<16x64xf32>
    %37 = arith.truncf %36 : vector<16x64xf32> to vector<16x64xbf16>
    %38 = tpu.concatenate %5, %9, %13, %17, %21, %25, %29, %33, %37 in 0 : vector<16x64xbf16>, vector<16x64xbf16>, vector<16x64xbf16>, vector<16x64xbf16>, vector<16x64xbf16>, vector<16x64xbf16>, vector<16x64xbf16>, vector<16x64xbf16>, vector<16x64xbf16> -> vector<144x64xbf16>
    %c0_28 = arith.constant 0 : index
    %c0_29 = arith.constant 0 : index
    %39 = vector.load %arg1[%c0_28, %c0_29] : memref<16x144xbf16, #tpu.memory_space<vmem>>, vector<16x144xbf16>
    %cst_30 = arith.constant dense<0.000000e+00> : vector<16x64xf32>
    %40 = tpu.matmul %39, %38, %cst_30 {dimension_numbers = #tpu.dot_dimension_numbers<[1], [0], [0], [1], [0, 0, 1, 1], [], []>} : vector<16x144xbf16>, vector<144x64xbf16>, vector<16x64xf32> -> vector<16x64xf32>
    %cst_31 = arith.constant 0.000000e+00 : f32
    %41 = vector.broadcast %cst_31 : f32 to vector<16x64xf32>
    %42 = arith.maximumf %40, %41 : vector<16x64xf32>
    %43 = arith.truncf %42 : vector<16x64xf32> to vector<16x64xbf16>
    %c0_32 = arith.constant 0 : index
    %c0_33 = arith.constant 0 : index
    %c0_34 = arith.constant 0 : index
    %44 = vector.load %arg4[%c0_32, %c0_33, %c0_34] : memref<9x64x16xbf16, #tpu.memory_space<vmem>>, vector<1x64x16xbf16>
    %45 = vector.shape_cast %44 : vector<1x64x16xbf16> to vector<64x16xbf16>
    %cst_35 = arith.constant dense<0.000000e+00> : vector<16x16xf32>
    %46 = tpu.matmul %43, %45, %cst_35 {dimension_numbers = #tpu.dot_dimension_numbers<[1], [0], [0], [1], [0, 0, 1, 1], [], []>} : vector<16x64xbf16>, vector<64x16xbf16>, vector<16x16xf32> -> vector<16x16xf32>
    %47 = arith.truncf %46 : vector<16x16xf32> to vector<16x16xbf16>
    %c1_36 = arith.constant 1 : index
    %c0_37 = arith.constant 0 : index
    %c0_38 = arith.constant 0 : index
    %48 = vector.load %arg4[%c1_36, %c0_37, %c0_38] : memref<9x64x16xbf16, #tpu.memory_space<vmem>>, vector<1x64x16xbf16>
    %49 = vector.shape_cast %48 : vector<1x64x16xbf16> to vector<64x16xbf16>
    %cst_39 = arith.constant dense<0.000000e+00> : vector<16x16xf32>
    %50 = tpu.matmul %43, %49, %cst_39 {dimension_numbers = #tpu.dot_dimension_numbers<[1], [0], [0], [1], [0, 0, 1, 1], [], []>} : vector<16x64xbf16>, vector<64x16xbf16>, vector<16x16xf32> -> vector<16x16xf32>
    %51 = arith.truncf %50 : vector<16x16xf32> to vector<16x16xbf16>
    %c2_40 = arith.constant 2 : index
    %c0_41 = arith.constant 0 : index
    %c0_42 = arith.constant 0 : index
    %52 = vector.load %arg4[%c2_40, %c0_41, %c0_42] : memref<9x64x16xbf16, #tpu.memory_space<vmem>>, vector<1x64x16xbf16>
    %53 = vector.shape_cast %52 : vector<1x64x16xbf16> to vector<64x16xbf16>
    %cst_43 = arith.constant dense<0.000000e+00> : vector<16x16xf32>
    %54 = tpu.matmul %43, %53, %cst_43 {dimension_numbers = #tpu.dot_dimension_numbers<[1], [0], [0], [1], [0, 0, 1, 1], [], []>} : vector<16x64xbf16>, vector<64x16xbf16>, vector<16x16xf32> -> vector<16x16xf32>
    %55 = arith.truncf %54 : vector<16x16xf32> to vector<16x16xbf16>
    %c3_44 = arith.constant 3 : index
    %c0_45 = arith.constant 0 : index
    %c0_46 = arith.constant 0 : index
    %56 = vector.load %arg4[%c3_44, %c0_45, %c0_46] : memref<9x64x16xbf16, #tpu.memory_space<vmem>>, vector<1x64x16xbf16>
    %57 = vector.shape_cast %56 : vector<1x64x16xbf16> to vector<64x16xbf16>
    %cst_47 = arith.constant dense<0.000000e+00> : vector<16x16xf32>
    %58 = tpu.matmul %43, %57, %cst_47 {dimension_numbers = #tpu.dot_dimension_numbers<[1], [0], [0], [1], [0, 0, 1, 1], [], []>} : vector<16x64xbf16>, vector<64x16xbf16>, vector<16x16xf32> -> vector<16x16xf32>
    %59 = arith.truncf %58 : vector<16x16xf32> to vector<16x16xbf16>
    %c4_48 = arith.constant 4 : index
    %c0_49 = arith.constant 0 : index
    %c0_50 = arith.constant 0 : index
    %60 = vector.load %arg4[%c4_48, %c0_49, %c0_50] : memref<9x64x16xbf16, #tpu.memory_space<vmem>>, vector<1x64x16xbf16>
    %61 = vector.shape_cast %60 : vector<1x64x16xbf16> to vector<64x16xbf16>
    %cst_51 = arith.constant dense<0.000000e+00> : vector<16x16xf32>
    %62 = tpu.matmul %43, %61, %cst_51 {dimension_numbers = #tpu.dot_dimension_numbers<[1], [0], [0], [1], [0, 0, 1, 1], [], []>} : vector<16x64xbf16>, vector<64x16xbf16>, vector<16x16xf32> -> vector<16x16xf32>
    %63 = arith.truncf %62 : vector<16x16xf32> to vector<16x16xbf16>
    %c5_52 = arith.constant 5 : index
    %c0_53 = arith.constant 0 : index
    %c0_54 = arith.constant 0 : index
    %64 = vector.load %arg4[%c5_52, %c0_53, %c0_54] : memref<9x64x16xbf16, #tpu.memory_space<vmem>>, vector<1x64x16xbf16>
    %65 = vector.shape_cast %64 : vector<1x64x16xbf16> to vector<64x16xbf16>
    %cst_55 = arith.constant dense<0.000000e+00> : vector<16x16xf32>
    %66 = tpu.matmul %43, %65, %cst_55 {dimension_numbers = #tpu.dot_dimension_numbers<[1], [0], [0], [1], [0, 0, 1, 1], [], []>} : vector<16x64xbf16>, vector<64x16xbf16>, vector<16x16xf32> -> vector<16x16xf32>
    %67 = arith.truncf %66 : vector<16x16xf32> to vector<16x16xbf16>
    %c6_56 = arith.constant 6 : index
    %c0_57 = arith.constant 0 : index
    %c0_58 = arith.constant 0 : index
    %68 = vector.load %arg4[%c6_56, %c0_57, %c0_58] : memref<9x64x16xbf16, #tpu.memory_space<vmem>>, vector<1x64x16xbf16>
    %69 = vector.shape_cast %68 : vector<1x64x16xbf16> to vector<64x16xbf16>
    %cst_59 = arith.constant dense<0.000000e+00> : vector<16x16xf32>
    %70 = tpu.matmul %43, %69, %cst_59 {dimension_numbers = #tpu.dot_dimension_numbers<[1], [0], [0], [1], [0, 0, 1, 1], [], []>} : vector<16x64xbf16>, vector<64x16xbf16>, vector<16x16xf32> -> vector<16x16xf32>
    %71 = arith.truncf %70 : vector<16x16xf32> to vector<16x16xbf16>
    %c7_60 = arith.constant 7 : index
    %c0_61 = arith.constant 0 : index
    %c0_62 = arith.constant 0 : index
    %72 = vector.load %arg4[%c7_60, %c0_61, %c0_62] : memref<9x64x16xbf16, #tpu.memory_space<vmem>>, vector<1x64x16xbf16>
    %73 = vector.shape_cast %72 : vector<1x64x16xbf16> to vector<64x16xbf16>
    %cst_63 = arith.constant dense<0.000000e+00> : vector<16x16xf32>
    %74 = tpu.matmul %43, %73, %cst_63 {dimension_numbers = #tpu.dot_dimension_numbers<[1], [0], [0], [1], [0, 0, 1, 1], [], []>} : vector<16x64xbf16>, vector<64x16xbf16>, vector<16x16xf32> -> vector<16x16xf32>
    %75 = arith.truncf %74 : vector<16x16xf32> to vector<16x16xbf16>
    %c8_64 = arith.constant 8 : index
    %c0_65 = arith.constant 0 : index
    %c0_66 = arith.constant 0 : index
    %76 = vector.load %arg4[%c8_64, %c0_65, %c0_66] : memref<9x64x16xbf16, #tpu.memory_space<vmem>>, vector<1x64x16xbf16>
    %77 = vector.shape_cast %76 : vector<1x64x16xbf16> to vector<64x16xbf16>
    %cst_67 = arith.constant dense<0.000000e+00> : vector<16x16xf32>
    %78 = tpu.matmul %43, %77, %cst_67 {dimension_numbers = #tpu.dot_dimension_numbers<[1], [0], [0], [1], [0, 0, 1, 1], [], []>} : vector<16x64xbf16>, vector<64x16xbf16>, vector<16x16xf32> -> vector<16x16xf32>
    %79 = arith.truncf %78 : vector<16x16xf32> to vector<16x16xbf16>
    %80 = tpu.concatenate %47, %51, %55, %59, %63, %67, %71, %75, %79 in 0 : vector<16x16xbf16>, vector<16x16xbf16>, vector<16x16xbf16>, vector<16x16xbf16>, vector<16x16xbf16>, vector<16x16xbf16>, vector<16x16xbf16>, vector<16x16xbf16>, vector<16x16xbf16> -> vector<144x16xbf16>
    %c0_68 = arith.constant 0 : index
    %c0_69 = arith.constant 0 : index
    %81 = vector.load %arg3[%c0_68, %c0_69] : memref<32x144xbf16, #tpu.memory_space<vmem>>, vector<32x144xbf16>
    %cst_70 = arith.constant dense<0.000000e+00> : vector<32x16xf32>
    %82 = tpu.matmul %81, %80, %cst_70 {dimension_numbers = #tpu.dot_dimension_numbers<[1], [0], [0], [1], [0, 0, 1, 1], [], []>} : vector<32x144xbf16>, vector<144x16xbf16>, vector<32x16xf32> -> vector<32x16xf32>
    %c0_71 = arith.constant 0 : index
    %c0_72 = arith.constant 0 : index
    %83 = vector.load %arg5[%c0_71, %c0_72] : memref<32x32xf32, #tpu.memory_space<vmem>>, vector<32x32xf32>
    %cst_73 = arith.constant dense<0.000000e+00> : vector<32x16xf32>
    %84 = tpu.matmul %83, %82, %cst_73 {dimension_numbers = #tpu.dot_dimension_numbers<[1], [0], [0], [1], [0, 0, 1, 1], [], []>} : vector<32x32xf32>, vector<32x16xf32>, vector<32x16xf32> -> vector<32x16xf32>
    %cst_74 = arith.constant dense<0.000000e+00> : vector<32xf32>
    %85 = vector.multi_reduction <add>, %84, %cst_74 [1] : vector<32x16xf32> to vector<32xf32>
    %86 = vector.shape_cast %85 : vector<32xf32> to vector<32x1xf32>
    %cst_75 = arith.constant 1.600000e+01 : f32
    %87 = vector.broadcast %cst_75 : f32 to vector<32x1xf32>
    %88 = arith.divf %86, %87 : vector<32x1xf32>
    %89 = vector.broadcast %88 : vector<32x1xf32> to vector<32x16xf32>
    %90 = arith.subf %82, %89 : vector<32x16xf32>
    %91 = arith.mulf %90, %90 : vector<32x16xf32>
    %cst_76 = arith.constant dense<0.000000e+00> : vector<32x16xf32>
    %92 = tpu.matmul %83, %91, %cst_76 {dimension_numbers = #tpu.dot_dimension_numbers<[1], [0], [0], [1], [0, 0, 1, 1], [], []>} : vector<32x32xf32>, vector<32x16xf32>, vector<32x16xf32> -> vector<32x16xf32>
    %cst_77 = arith.constant dense<0.000000e+00> : vector<32xf32>
    %93 = vector.multi_reduction <add>, %92, %cst_77 [1] : vector<32x16xf32> to vector<32xf32>
    %94 = vector.shape_cast %93 : vector<32xf32> to vector<32x1xf32>
    %cst_78 = arith.constant 1.600000e+01 : f32
    %95 = vector.broadcast %cst_78 : f32 to vector<32x1xf32>
    %96 = arith.divf %94, %95 : vector<32x1xf32>
    %c0_79 = arith.constant 0 : index
    %c0_80 = arith.constant 0 : index
    %97 = vector.load %arg6[%c0_79, %c0_80] : memref<32x2xf32, #tpu.memory_space<vmem>>, vector<32x1xf32>
    %cst_81 = arith.constant 9.99999974E-6 : f32
    %98 = vector.broadcast %cst_81 : f32 to vector<32x1xf32>
    %99 = arith.addf %96, %98 : vector<32x1xf32>
    %100 = math.rsqrt %99 : vector<32x1xf32>
    %101 = arith.mulf %97, %100 : vector<32x1xf32>
    %102 = vector.broadcast %101 : vector<32x1xf32> to vector<32x16xf32>
    %103 = arith.mulf %90, %102 : vector<32x16xf32>
    %c0_82 = arith.constant 0 : index
    %c1_83 = arith.constant 1 : index
    %104 = vector.load %arg6[%c0_82, %c1_83] : memref<32x2xf32, #tpu.memory_space<vmem>>, vector<32x1xf32>
    %105 = vector.broadcast %104 : vector<32x1xf32> to vector<32x16xf32>
    %106 = arith.addf %103, %105 : vector<32x16xf32>
    %cst_84 = arith.constant 0.000000e+00 : f32
    %107 = vector.broadcast %cst_84 : f32 to vector<32x16xf32>
    %108 = arith.maximumf %106, %107 : vector<32x16xf32>
    %109 = arith.truncf %108 : vector<32x16xf32> to vector<32x16xbf16>
    %c0_85 = arith.constant 0 : index
    %c0_86 = arith.constant 0 : index
    %c0_87 = arith.constant 0 : index
    %110 = vector.load %arg8[%c0_85, %c0_86, %c0_87] : memref<9x16x4xbf16, #tpu.memory_space<vmem>>, vector<1x16x4xbf16>
    %111 = vector.shape_cast %110 : vector<1x16x4xbf16> to vector<16x4xbf16>
    %cst_88 = arith.constant dense<0.000000e+00> : vector<32x4xf32>
    %112 = tpu.matmul %109, %111, %cst_88 {dimension_numbers = #tpu.dot_dimension_numbers<[1], [0], [0], [1], [0, 0, 1, 1], [], []>} : vector<32x16xbf16>, vector<16x4xbf16>, vector<32x4xf32> -> vector<32x4xf32>
    %113 = arith.truncf %112 : vector<32x4xf32> to vector<32x4xbf16>
    %c1_89 = arith.constant 1 : index
    %c0_90 = arith.constant 0 : index
    %c0_91 = arith.constant 0 : index
    %114 = vector.load %arg8[%c1_89, %c0_90, %c0_91] : memref<9x16x4xbf16, #tpu.memory_space<vmem>>, vector<1x16x4xbf16>
    %115 = vector.shape_cast %114 : vector<1x16x4xbf16> to vector<16x4xbf16>
    %cst_92 = arith.constant dense<0.000000e+00> : vector<32x4xf32>
    %116 = tpu.matmul %109, %115, %cst_92 {dimension_numbers = #tpu.dot_dimension_numbers<[1], [0], [0], [1], [0, 0, 1, 1], [], []>} : vector<32x16xbf16>, vector<16x4xbf16>, vector<32x4xf32> -> vector<32x4xf32>
    %117 = arith.truncf %116 : vector<32x4xf32> to vector<32x4xbf16>
    %c2_93 = arith.constant 2 : index
    %c0_94 = arith.constant 0 : index
    %c0_95 = arith.constant 0 : index
    %118 = vector.load %arg8[%c2_93, %c0_94, %c0_95] : memref<9x16x4xbf16, #tpu.memory_space<vmem>>, vector<1x16x4xbf16>
    %119 = vector.shape_cast %118 : vector<1x16x4xbf16> to vector<16x4xbf16>
    %cst_96 = arith.constant dense<0.000000e+00> : vector<32x4xf32>
    %120 = tpu.matmul %109, %119, %cst_96 {dimension_numbers = #tpu.dot_dimension_numbers<[1], [0], [0], [1], [0, 0, 1, 1], [], []>} : vector<32x16xbf16>, vector<16x4xbf16>, vector<32x4xf32> -> vector<32x4xf32>
    %121 = arith.truncf %120 : vector<32x4xf32> to vector<32x4xbf16>
    %c3_97 = arith.constant 3 : index
    %c0_98 = arith.constant 0 : index
    %c0_99 = arith.constant 0 : index
    %122 = vector.load %arg8[%c3_97, %c0_98, %c0_99] : memref<9x16x4xbf16, #tpu.memory_space<vmem>>, vector<1x16x4xbf16>
    %123 = vector.shape_cast %122 : vector<1x16x4xbf16> to vector<16x4xbf16>
    %cst_100 = arith.constant dense<0.000000e+00> : vector<32x4xf32>
    %124 = tpu.matmul %109, %123, %cst_100 {dimension_numbers = #tpu.dot_dimension_numbers<[1], [0], [0], [1], [0, 0, 1, 1], [], []>} : vector<32x16xbf16>, vector<16x4xbf16>, vector<32x4xf32> -> vector<32x4xf32>
    %125 = arith.truncf %124 : vector<32x4xf32> to vector<32x4xbf16>
    %c4_101 = arith.constant 4 : index
    %c0_102 = arith.constant 0 : index
    %c0_103 = arith.constant 0 : index
    %126 = vector.load %arg8[%c4_101, %c0_102, %c0_103] : memref<9x16x4xbf16, #tpu.memory_space<vmem>>, vector<1x16x4xbf16>
    %127 = vector.shape_cast %126 : vector<1x16x4xbf16> to vector<16x4xbf16>
    %cst_104 = arith.constant dense<0.000000e+00> : vector<32x4xf32>
    %128 = tpu.matmul %109, %127, %cst_104 {dimension_numbers = #tpu.dot_dimension_numbers<[1], [0], [0], [1], [0, 0, 1, 1], [], []>} : vector<32x16xbf16>, vector<16x4xbf16>, vector<32x4xf32> -> vector<32x4xf32>
    %129 = arith.truncf %128 : vector<32x4xf32> to vector<32x4xbf16>
    %c5_105 = arith.constant 5 : index
    %c0_106 = arith.constant 0 : index
    %c0_107 = arith.constant 0 : index
    %130 = vector.load %arg8[%c5_105, %c0_106, %c0_107] : memref<9x16x4xbf16, #tpu.memory_space<vmem>>, vector<1x16x4xbf16>
    %131 = vector.shape_cast %130 : vector<1x16x4xbf16> to vector<16x4xbf16>
    %cst_108 = arith.constant dense<0.000000e+00> : vector<32x4xf32>
    %132 = tpu.matmul %109, %131, %cst_108 {dimension_numbers = #tpu.dot_dimension_numbers<[1], [0], [0], [1], [0, 0, 1, 1], [], []>} : vector<32x16xbf16>, vector<16x4xbf16>, vector<32x4xf32> -> vector<32x4xf32>
    %133 = arith.truncf %132 : vector<32x4xf32> to vector<32x4xbf16>
    %c6_109 = arith.constant 6 : index
    %c0_110 = arith.constant 0 : index
    %c0_111 = arith.constant 0 : index
    %134 = vector.load %arg8[%c6_109, %c0_110, %c0_111] : memref<9x16x4xbf16, #tpu.memory_space<vmem>>, vector<1x16x4xbf16>
    %135 = vector.shape_cast %134 : vector<1x16x4xbf16> to vector<16x4xbf16>
    %cst_112 = arith.constant dense<0.000000e+00> : vector<32x4xf32>
    %136 = tpu.matmul %109, %135, %cst_112 {dimension_numbers = #tpu.dot_dimension_numbers<[1], [0], [0], [1], [0, 0, 1, 1], [], []>} : vector<32x16xbf16>, vector<16x4xbf16>, vector<32x4xf32> -> vector<32x4xf32>
    %137 = arith.truncf %136 : vector<32x4xf32> to vector<32x4xbf16>
    %c7_113 = arith.constant 7 : index
    %c0_114 = arith.constant 0 : index
    %c0_115 = arith.constant 0 : index
    %138 = vector.load %arg8[%c7_113, %c0_114, %c0_115] : memref<9x16x4xbf16, #tpu.memory_space<vmem>>, vector<1x16x4xbf16>
    %139 = vector.shape_cast %138 : vector<1x16x4xbf16> to vector<16x4xbf16>
    %cst_116 = arith.constant dense<0.000000e+00> : vector<32x4xf32>
    %140 = tpu.matmul %109, %139, %cst_116 {dimension_numbers = #tpu.dot_dimension_numbers<[1], [0], [0], [1], [0, 0, 1, 1], [], []>} : vector<32x16xbf16>, vector<16x4xbf16>, vector<32x4xf32> -> vector<32x4xf32>
    %141 = arith.truncf %140 : vector<32x4xf32> to vector<32x4xbf16>
    %c8_117 = arith.constant 8 : index
    %c0_118 = arith.constant 0 : index
    %c0_119 = arith.constant 0 : index
    %142 = vector.load %arg8[%c8_117, %c0_118, %c0_119] : memref<9x16x4xbf16, #tpu.memory_space<vmem>>, vector<1x16x4xbf16>
    %143 = vector.shape_cast %142 : vector<1x16x4xbf16> to vector<16x4xbf16>
    %cst_120 = arith.constant dense<0.000000e+00> : vector<32x4xf32>
    %144 = tpu.matmul %109, %143, %cst_120 {dimension_numbers = #tpu.dot_dimension_numbers<[1], [0], [0], [1], [0, 0, 1, 1], [], []>} : vector<32x16xbf16>, vector<16x4xbf16>, vector<32x4xf32> -> vector<32x4xf32>
    %145 = arith.truncf %144 : vector<32x4xf32> to vector<32x4xbf16>
    %146 = tpu.concatenate %113, %117, %121, %125, %129, %133, %137, %141, %145 in 0 : vector<32x4xbf16>, vector<32x4xbf16>, vector<32x4xbf16>, vector<32x4xbf16>, vector<32x4xbf16>, vector<32x4xbf16>, vector<32x4xbf16>, vector<32x4xbf16>, vector<32x4xbf16> -> vector<288x4xbf16>
    %c0_121 = arith.constant 0 : index
    %c0_122 = arith.constant 0 : index
    %147 = vector.load %arg7[%c0_121, %c0_122] : memref<32x288xbf16, #tpu.memory_space<vmem>>, vector<32x288xbf16>
    %cst_123 = arith.constant dense<0.000000e+00> : vector<32x4xf32>
    %148 = tpu.matmul %147, %146, %cst_123 {dimension_numbers = #tpu.dot_dimension_numbers<[1], [0], [0], [1], [0, 0, 1, 1], [], []>} : vector<32x288xbf16>, vector<288x4xbf16>, vector<32x4xf32> -> vector<32x4xf32>
    %cst_124 = arith.constant 0.000000e+00 : f32
    %149 = vector.broadcast %cst_124 : f32 to vector<32x4xf32>
    %150 = arith.maximumf %148, %149 : vector<32x4xf32>
    %151 = arith.truncf %150 : vector<32x4xf32> to vector<32x4xbf16>
    %c0_125 = arith.constant 0 : index
    %c0_126 = arith.constant 0 : index
    %c0_127 = arith.constant 0 : index
    %152 = vector.load %arg10[%c0_125, %c0_126, %c0_127] : memref<9x4x16xbf16, #tpu.memory_space<vmem>>, vector<1x4x16xbf16>
    %153 = vector.shape_cast %152 : vector<1x4x16xbf16> to vector<4x16xbf16>
    %cst_128 = arith.constant dense<0.000000e+00> : vector<32x16xf32>
    %154 = tpu.matmul %151, %153, %cst_128 {dimension_numbers = #tpu.dot_dimension_numbers<[1], [0], [0], [1], [0, 0, 1, 1], [], []>} : vector<32x4xbf16>, vector<4x16xbf16>, vector<32x16xf32> -> vector<32x16xf32>
    %155 = arith.truncf %154 : vector<32x16xf32> to vector<32x16xbf16>
    %c1_129 = arith.constant 1 : index
    %c0_130 = arith.constant 0 : index
    %c0_131 = arith.constant 0 : index
    %156 = vector.load %arg10[%c1_129, %c0_130, %c0_131] : memref<9x4x16xbf16, #tpu.memory_space<vmem>>, vector<1x4x16xbf16>
    %157 = vector.shape_cast %156 : vector<1x4x16xbf16> to vector<4x16xbf16>
    %cst_132 = arith.constant dense<0.000000e+00> : vector<32x16xf32>
    %158 = tpu.matmul %151, %157, %cst_132 {dimension_numbers = #tpu.dot_dimension_numbers<[1], [0], [0], [1], [0, 0, 1, 1], [], []>} : vector<32x4xbf16>, vector<4x16xbf16>, vector<32x16xf32> -> vector<32x16xf32>
    %159 = arith.truncf %158 : vector<32x16xf32> to vector<32x16xbf16>
    %c2_133 = arith.constant 2 : index
    %c0_134 = arith.constant 0 : index
    %c0_135 = arith.constant 0 : index
    %160 = vector.load %arg10[%c2_133, %c0_134, %c0_135] : memref<9x4x16xbf16, #tpu.memory_space<vmem>>, vector<1x4x16xbf16>
    %161 = vector.shape_cast %160 : vector<1x4x16xbf16> to vector<4x16xbf16>
    %cst_136 = arith.constant dense<0.000000e+00> : vector<32x16xf32>
    %162 = tpu.matmul %151, %161, %cst_136 {dimension_numbers = #tpu.dot_dimension_numbers<[1], [0], [0], [1], [0, 0, 1, 1], [], []>} : vector<32x4xbf16>, vector<4x16xbf16>, vector<32x16xf32> -> vector<32x16xf32>
    %163 = arith.truncf %162 : vector<32x16xf32> to vector<32x16xbf16>
    %c3_137 = arith.constant 3 : index
    %c0_138 = arith.constant 0 : index
    %c0_139 = arith.constant 0 : index
    %164 = vector.load %arg10[%c3_137, %c0_138, %c0_139] : memref<9x4x16xbf16, #tpu.memory_space<vmem>>, vector<1x4x16xbf16>
    %165 = vector.shape_cast %164 : vector<1x4x16xbf16> to vector<4x16xbf16>
    %cst_140 = arith.constant dense<0.000000e+00> : vector<32x16xf32>
    %166 = tpu.matmul %151, %165, %cst_140 {dimension_numbers = #tpu.dot_dimension_numbers<[1], [0], [0], [1], [0, 0, 1, 1], [], []>} : vector<32x4xbf16>, vector<4x16xbf16>, vector<32x16xf32> -> vector<32x16xf32>
    %167 = arith.truncf %166 : vector<32x16xf32> to vector<32x16xbf16>
    %c4_141 = arith.constant 4 : index
    %c0_142 = arith.constant 0 : index
    %c0_143 = arith.constant 0 : index
    %168 = vector.load %arg10[%c4_141, %c0_142, %c0_143] : memref<9x4x16xbf16, #tpu.memory_space<vmem>>, vector<1x4x16xbf16>
    %169 = vector.shape_cast %168 : vector<1x4x16xbf16> to vector<4x16xbf16>
    %cst_144 = arith.constant dense<0.000000e+00> : vector<32x16xf32>
    %170 = tpu.matmul %151, %169, %cst_144 {dimension_numbers = #tpu.dot_dimension_numbers<[1], [0], [0], [1], [0, 0, 1, 1], [], []>} : vector<32x4xbf16>, vector<4x16xbf16>, vector<32x16xf32> -> vector<32x16xf32>
    %171 = arith.truncf %170 : vector<32x16xf32> to vector<32x16xbf16>
    %c5_145 = arith.constant 5 : index
    %c0_146 = arith.constant 0 : index
    %c0_147 = arith.constant 0 : index
    %172 = vector.load %arg10[%c5_145, %c0_146, %c0_147] : memref<9x4x16xbf16, #tpu.memory_space<vmem>>, vector<1x4x16xbf16>
    %173 = vector.shape_cast %172 : vector<1x4x16xbf16> to vector<4x16xbf16>
    %cst_148 = arith.constant dense<0.000000e+00> : vector<32x16xf32>
    %174 = tpu.matmul %151, %173, %cst_148 {dimension_numbers = #tpu.dot_dimension_numbers<[1], [0], [0], [1], [0, 0, 1, 1], [], []>} : vector<32x4xbf16>, vector<4x16xbf16>, vector<32x16xf32> -> vector<32x16xf32>
    %175 = arith.truncf %174 : vector<32x16xf32> to vector<32x16xbf16>
    %c6_149 = arith.constant 6 : index
    %c0_150 = arith.constant 0 : index
    %c0_151 = arith.constant 0 : index
    %176 = vector.load %arg10[%c6_149, %c0_150, %c0_151] : memref<9x4x16xbf16, #tpu.memory_space<vmem>>, vector<1x4x16xbf16>
    %177 = vector.shape_cast %176 : vector<1x4x16xbf16> to vector<4x16xbf16>
    %cst_152 = arith.constant dense<0.000000e+00> : vector<32x16xf32>
    %178 = tpu.matmul %151, %177, %cst_152 {dimension_numbers = #tpu.dot_dimension_numbers<[1], [0], [0], [1], [0, 0, 1, 1], [], []>} : vector<32x4xbf16>, vector<4x16xbf16>, vector<32x16xf32> -> vector<32x16xf32>
    %179 = arith.truncf %178 : vector<32x16xf32> to vector<32x16xbf16>
    %c7_153 = arith.constant 7 : index
    %c0_154 = arith.constant 0 : index
    %c0_155 = arith.constant 0 : index
    %180 = vector.load %arg10[%c7_153, %c0_154, %c0_155] : memref<9x4x16xbf16, #tpu.memory_space<vmem>>, vector<1x4x16xbf16>
    %181 = vector.shape_cast %180 : vector<1x4x16xbf16> to vector<4x16xbf16>
    %cst_156 = arith.constant dense<0.000000e+00> : vector<32x16xf32>
    %182 = tpu.matmul %151, %181, %cst_156 {dimension_numbers = #tpu.dot_dimension_numbers<[1], [0], [0], [1], [0, 0, 1, 1], [], []>} : vector<32x4xbf16>, vector<4x16xbf16>, vector<32x16xf32> -> vector<32x16xf32>
    %183 = arith.truncf %182 : vector<32x16xf32> to vector<32x16xbf16>
    %c8_157 = arith.constant 8 : index
    %c0_158 = arith.constant 0 : index
    %c0_159 = arith.constant 0 : index
    %184 = vector.load %arg10[%c8_157, %c0_158, %c0_159] : memref<9x4x16xbf16, #tpu.memory_space<vmem>>, vector<1x4x16xbf16>
    %185 = vector.shape_cast %184 : vector<1x4x16xbf16> to vector<4x16xbf16>
    %cst_160 = arith.constant dense<0.000000e+00> : vector<32x16xf32>
    %186 = tpu.matmul %151, %185, %cst_160 {dimension_numbers = #tpu.dot_dimension_numbers<[1], [0], [0], [1], [0, 0, 1, 1], [], []>} : vector<32x4xbf16>, vector<4x16xbf16>, vector<32x16xf32> -> vector<32x16xf32>
    %187 = arith.truncf %186 : vector<32x16xf32> to vector<32x16xbf16>
    %188 = tpu.concatenate %155, %159, %163, %167, %171, %175, %179, %183, %187 in 0 : vector<32x16xbf16>, vector<32x16xbf16>, vector<32x16xbf16>, vector<32x16xbf16>, vector<32x16xbf16>, vector<32x16xbf16>, vector<32x16xbf16>, vector<32x16xbf16>, vector<32x16xbf16> -> vector<288x16xbf16>
    %c0_161 = arith.constant 0 : index
    %c0_162 = arith.constant 0 : index
    %189 = vector.load %arg9[%c0_161, %c0_162] : memref<32x288xbf16, #tpu.memory_space<vmem>>, vector<32x288xbf16>
    %cst_163 = arith.constant dense<0.000000e+00> : vector<32x16xf32>
    %190 = tpu.matmul %189, %188, %cst_163 {dimension_numbers = #tpu.dot_dimension_numbers<[1], [0], [0], [1], [0, 0, 1, 1], [], []>} : vector<32x288xbf16>, vector<288x16xbf16>, vector<32x16xf32> -> vector<32x16xf32>
    %c0_164 = arith.constant 0 : index
    %c0_165 = arith.constant 0 : index
    %191 = vector.load %arg11[%c0_164, %c0_165] : memref<32x32xf32, #tpu.memory_space<vmem>>, vector<32x32xf32>
    %cst_166 = arith.constant dense<0.000000e+00> : vector<32x16xf32>
    %192 = tpu.matmul %191, %190, %cst_166 {dimension_numbers = #tpu.dot_dimension_numbers<[1], [0], [0], [1], [0, 0, 1, 1], [], []>} : vector<32x32xf32>, vector<32x16xf32>, vector<32x16xf32> -> vector<32x16xf32>
    %cst_167 = arith.constant dense<0.000000e+00> : vector<32xf32>
    %193 = vector.multi_reduction <add>, %192, %cst_167 [1] : vector<32x16xf32> to vector<32xf32>
    %194 = vector.shape_cast %193 : vector<32xf32> to vector<32x1xf32>
    %cst_168 = arith.constant 1.600000e+01 : f32
    %195 = vector.broadcast %cst_168 : f32 to vector<32x1xf32>
    %196 = arith.divf %194, %195 : vector<32x1xf32>
    %197 = vector.broadcast %196 : vector<32x1xf32> to vector<32x16xf32>
    %198 = arith.subf %190, %197 : vector<32x16xf32>
    %199 = arith.mulf %198, %198 : vector<32x16xf32>
    %cst_169 = arith.constant dense<0.000000e+00> : vector<32x16xf32>
    %200 = tpu.matmul %191, %199, %cst_169 {dimension_numbers = #tpu.dot_dimension_numbers<[1], [0], [0], [1], [0, 0, 1, 1], [], []>} : vector<32x32xf32>, vector<32x16xf32>, vector<32x16xf32> -> vector<32x16xf32>
    %cst_170 = arith.constant dense<0.000000e+00> : vector<32xf32>
    %201 = vector.multi_reduction <add>, %200, %cst_170 [1] : vector<32x16xf32> to vector<32xf32>
    %202 = vector.shape_cast %201 : vector<32xf32> to vector<32x1xf32>
    %cst_171 = arith.constant 1.600000e+01 : f32
    %203 = vector.broadcast %cst_171 : f32 to vector<32x1xf32>
    %204 = arith.divf %202, %203 : vector<32x1xf32>
    %c0_172 = arith.constant 0 : index
    %c0_173 = arith.constant 0 : index
    %205 = vector.load %arg12[%c0_172, %c0_173] : memref<32x2xf32, #tpu.memory_space<vmem>>, vector<32x1xf32>
    %cst_174 = arith.constant 9.99999974E-6 : f32
    %206 = vector.broadcast %cst_174 : f32 to vector<32x1xf32>
    %207 = arith.addf %204, %206 : vector<32x1xf32>
    %208 = math.rsqrt %207 : vector<32x1xf32>
    %209 = arith.mulf %205, %208 : vector<32x1xf32>
    %210 = vector.broadcast %209 : vector<32x1xf32> to vector<32x16xf32>
    %211 = arith.mulf %198, %210 : vector<32x16xf32>
    %c0_175 = arith.constant 0 : index
    %c1_176 = arith.constant 1 : index
    %212 = vector.load %arg12[%c0_175, %c1_176] : memref<32x2xf32, #tpu.memory_space<vmem>>, vector<32x1xf32>
    %213 = vector.broadcast %212 : vector<32x1xf32> to vector<32x16xf32>
    %214 = arith.addf %211, %213 : vector<32x16xf32>
    %215 = tpu.concatenate %106, %214 in 0 : vector<32x16xf32>, vector<32x16xf32> -> vector<64x16xf32>
    %cst_177 = arith.constant 0.000000e+00 : f32
    %216 = vector.broadcast %cst_177 : f32 to vector<64x16xf32>
    %217 = arith.maximumf %215, %216 : vector<64x16xf32>
    %218 = arith.truncf %217 : vector<64x16xf32> to vector<64x16xbf16>
    %c0_178 = arith.constant 0 : index
    %c0_179 = arith.constant 0 : index
    %c0_180 = arith.constant 0 : index
    %219 = vector.load %arg14[%c0_178, %c0_179, %c0_180] : memref<9x16x64xbf16, #tpu.memory_space<vmem>>, vector<1x16x64xbf16>
    %220 = vector.shape_cast %219 : vector<1x16x64xbf16> to vector<16x64xbf16>
    %cst_181 = arith.constant dense<0.000000e+00> : vector<64x64xf32>
    %221 = tpu.matmul %218, %220, %cst_181 {dimension_numbers = #tpu.dot_dimension_numbers<[1], [0], [0], [1], [0, 0, 1, 1], [], []>} : vector<64x16xbf16>, vector<16x64xbf16>, vector<64x64xf32> -> vector<64x64xf32>
    %222 = arith.truncf %221 : vector<64x64xf32> to vector<64x64xbf16>
    %c1_182 = arith.constant 1 : index
    %c0_183 = arith.constant 0 : index
    %c0_184 = arith.constant 0 : index
    %223 = vector.load %arg14[%c1_182, %c0_183, %c0_184] : memref<9x16x64xbf16, #tpu.memory_space<vmem>>, vector<1x16x64xbf16>
    %224 = vector.shape_cast %223 : vector<1x16x64xbf16> to vector<16x64xbf16>
    %cst_185 = arith.constant dense<0.000000e+00> : vector<64x64xf32>
    %225 = tpu.matmul %218, %224, %cst_185 {dimension_numbers = #tpu.dot_dimension_numbers<[1], [0], [0], [1], [0, 0, 1, 1], [], []>} : vector<64x16xbf16>, vector<16x64xbf16>, vector<64x64xf32> -> vector<64x64xf32>
    %226 = arith.truncf %225 : vector<64x64xf32> to vector<64x64xbf16>
    %c2_186 = arith.constant 2 : index
    %c0_187 = arith.constant 0 : index
    %c0_188 = arith.constant 0 : index
    %227 = vector.load %arg14[%c2_186, %c0_187, %c0_188] : memref<9x16x64xbf16, #tpu.memory_space<vmem>>, vector<1x16x64xbf16>
    %228 = vector.shape_cast %227 : vector<1x16x64xbf16> to vector<16x64xbf16>
    %cst_189 = arith.constant dense<0.000000e+00> : vector<64x64xf32>
    %229 = tpu.matmul %218, %228, %cst_189 {dimension_numbers = #tpu.dot_dimension_numbers<[1], [0], [0], [1], [0, 0, 1, 1], [], []>} : vector<64x16xbf16>, vector<16x64xbf16>, vector<64x64xf32> -> vector<64x64xf32>
    %230 = arith.truncf %229 : vector<64x64xf32> to vector<64x64xbf16>
    %c3_190 = arith.constant 3 : index
    %c0_191 = arith.constant 0 : index
    %c0_192 = arith.constant 0 : index
    %231 = vector.load %arg14[%c3_190, %c0_191, %c0_192] : memref<9x16x64xbf16, #tpu.memory_space<vmem>>, vector<1x16x64xbf16>
    %232 = vector.shape_cast %231 : vector<1x16x64xbf16> to vector<16x64xbf16>
    %cst_193 = arith.constant dense<0.000000e+00> : vector<64x64xf32>
    %233 = tpu.matmul %218, %232, %cst_193 {dimension_numbers = #tpu.dot_dimension_numbers<[1], [0], [0], [1], [0, 0, 1, 1], [], []>} : vector<64x16xbf16>, vector<16x64xbf16>, vector<64x64xf32> -> vector<64x64xf32>
    %234 = arith.truncf %233 : vector<64x64xf32> to vector<64x64xbf16>
    %c4_194 = arith.constant 4 : index
    %c0_195 = arith.constant 0 : index
    %c0_196 = arith.constant 0 : index
    %235 = vector.load %arg14[%c4_194, %c0_195, %c0_196] : memref<9x16x64xbf16, #tpu.memory_space<vmem>>, vector<1x16x64xbf16>
    %236 = vector.shape_cast %235 : vector<1x16x64xbf16> to vector<16x64xbf16>
    %cst_197 = arith.constant dense<0.000000e+00> : vector<64x64xf32>
    %237 = tpu.matmul %218, %236, %cst_197 {dimension_numbers = #tpu.dot_dimension_numbers<[1], [0], [0], [1], [0, 0, 1, 1], [], []>} : vector<64x16xbf16>, vector<16x64xbf16>, vector<64x64xf32> -> vector<64x64xf32>
    %238 = arith.truncf %237 : vector<64x64xf32> to vector<64x64xbf16>
    %c5_198 = arith.constant 5 : index
    %c0_199 = arith.constant 0 : index
    %c0_200 = arith.constant 0 : index
    %239 = vector.load %arg14[%c5_198, %c0_199, %c0_200] : memref<9x16x64xbf16, #tpu.memory_space<vmem>>, vector<1x16x64xbf16>
    %240 = vector.shape_cast %239 : vector<1x16x64xbf16> to vector<16x64xbf16>
    %cst_201 = arith.constant dense<0.000000e+00> : vector<64x64xf32>
    %241 = tpu.matmul %218, %240, %cst_201 {dimension_numbers = #tpu.dot_dimension_numbers<[1], [0], [0], [1], [0, 0, 1, 1], [], []>} : vector<64x16xbf16>, vector<16x64xbf16>, vector<64x64xf32> -> vector<64x64xf32>
    %242 = arith.truncf %241 : vector<64x64xf32> to vector<64x64xbf16>
    %c6_202 = arith.constant 6 : index
    %c0_203 = arith.constant 0 : index
    %c0_204 = arith.constant 0 : index
    %243 = vector.load %arg14[%c6_202, %c0_203, %c0_204] : memref<9x16x64xbf16, #tpu.memory_space<vmem>>, vector<1x16x64xbf16>
    %244 = vector.shape_cast %243 : vector<1x16x64xbf16> to vector<16x64xbf16>
    %cst_205 = arith.constant dense<0.000000e+00> : vector<64x64xf32>
    %245 = tpu.matmul %218, %244, %cst_205 {dimension_numbers = #tpu.dot_dimension_numbers<[1], [0], [0], [1], [0, 0, 1, 1], [], []>} : vector<64x16xbf16>, vector<16x64xbf16>, vector<64x64xf32> -> vector<64x64xf32>
    %246 = arith.truncf %245 : vector<64x64xf32> to vector<64x64xbf16>
    %c7_206 = arith.constant 7 : index
    %c0_207 = arith.constant 0 : index
    %c0_208 = arith.constant 0 : index
    %247 = vector.load %arg14[%c7_206, %c0_207, %c0_208] : memref<9x16x64xbf16, #tpu.memory_space<vmem>>, vector<1x16x64xbf16>
    %248 = vector.shape_cast %247 : vector<1x16x64xbf16> to vector<16x64xbf16>
    %cst_209 = arith.constant dense<0.000000e+00> : vector<64x64xf32>
    %249 = tpu.matmul %218, %248, %cst_209 {dimension_numbers = #tpu.dot_dimension_numbers<[1], [0], [0], [1], [0, 0, 1, 1], [], []>} : vector<64x16xbf16>, vector<16x64xbf16>, vector<64x64xf32> -> vector<64x64xf32>
    %250 = arith.truncf %249 : vector<64x64xf32> to vector<64x64xbf16>
    %c8_210 = arith.constant 8 : index
    %c0_211 = arith.constant 0 : index
    %c0_212 = arith.constant 0 : index
    %251 = vector.load %arg14[%c8_210, %c0_211, %c0_212] : memref<9x16x64xbf16, #tpu.memory_space<vmem>>, vector<1x16x64xbf16>
    %252 = vector.shape_cast %251 : vector<1x16x64xbf16> to vector<16x64xbf16>
    %cst_213 = arith.constant dense<0.000000e+00> : vector<64x64xf32>
    %253 = tpu.matmul %218, %252, %cst_213 {dimension_numbers = #tpu.dot_dimension_numbers<[1], [0], [0], [1], [0, 0, 1, 1], [], []>} : vector<64x16xbf16>, vector<16x64xbf16>, vector<64x64xf32> -> vector<64x64xf32>
    %254 = arith.truncf %253 : vector<64x64xf32> to vector<64x64xbf16>
    %255 = tpu.concatenate %222, %226, %230, %234, %238, %242, %246, %250, %254 in 0 : vector<64x64xbf16>, vector<64x64xbf16>, vector<64x64xbf16>, vector<64x64xbf16>, vector<64x64xbf16>, vector<64x64xbf16>, vector<64x64xbf16>, vector<64x64xbf16>, vector<64x64xbf16> -> vector<576x64xbf16>
    %c0_214 = arith.constant 0 : index
    %c0_215 = arith.constant 0 : index
    %256 = vector.load %arg13[%c0_214, %c0_215] : memref<16x576xbf16, #tpu.memory_space<vmem>>, vector<16x576xbf16>
    %cst_216 = arith.constant dense<0.000000e+00> : vector<16x64xf32>
    %257 = tpu.matmul %256, %255, %cst_216 {dimension_numbers = #tpu.dot_dimension_numbers<[1], [0], [0], [1], [0, 0, 1, 1], [], []>} : vector<16x576xbf16>, vector<576x64xbf16>, vector<16x64xf32> -> vector<16x64xf32>
    %c0_217 = arith.constant 0 : index
    %c0_218 = arith.constant 0 : index
    %258 = vector.load %arg15[%c0_217, %c0_218] : memref<16x16xf32, #tpu.memory_space<vmem>>, vector<16x16xf32>
    %cst_219 = arith.constant dense<0.000000e+00> : vector<16x64xf32>
    %259 = tpu.matmul %258, %257, %cst_219 {dimension_numbers = #tpu.dot_dimension_numbers<[1], [0], [0], [1], [0, 0, 1, 1], [], []>} : vector<16x16xf32>, vector<16x64xf32>, vector<16x64xf32> -> vector<16x64xf32>
    %cst_220 = arith.constant dense<0.000000e+00> : vector<16xf32>
    %260 = vector.multi_reduction <add>, %259, %cst_220 [1] : vector<16x64xf32> to vector<16xf32>
    %261 = vector.shape_cast %260 : vector<16xf32> to vector<16x1xf32>
    %cst_221 = arith.constant 6.400000e+01 : f32
    %262 = vector.broadcast %cst_221 : f32 to vector<16x1xf32>
    %263 = arith.divf %261, %262 : vector<16x1xf32>
    %264 = vector.broadcast %263 : vector<16x1xf32> to vector<16x64xf32>
    %265 = arith.subf %257, %264 : vector<16x64xf32>
    %266 = arith.mulf %265, %265 : vector<16x64xf32>
    %cst_222 = arith.constant dense<0.000000e+00> : vector<16x64xf32>
    %267 = tpu.matmul %258, %266, %cst_222 {dimension_numbers = #tpu.dot_dimension_numbers<[1], [0], [0], [1], [0, 0, 1, 1], [], []>} : vector<16x16xf32>, vector<16x64xf32>, vector<16x64xf32> -> vector<16x64xf32>
    %cst_223 = arith.constant dense<0.000000e+00> : vector<16xf32>
    %268 = vector.multi_reduction <add>, %267, %cst_223 [1] : vector<16x64xf32> to vector<16xf32>
    %269 = vector.shape_cast %268 : vector<16xf32> to vector<16x1xf32>
    %cst_224 = arith.constant 6.400000e+01 : f32
    %270 = vector.broadcast %cst_224 : f32 to vector<16x1xf32>
    %271 = arith.divf %269, %270 : vector<16x1xf32>
    %c0_225 = arith.constant 0 : index
    %c0_226 = arith.constant 0 : index
    %272 = vector.load %arg16[%c0_225, %c0_226] : memref<16x2xf32, #tpu.memory_space<vmem>>, vector<16x1xf32>
    %cst_227 = arith.constant 9.99999974E-6 : f32
    %273 = vector.broadcast %cst_227 : f32 to vector<16x1xf32>
    %274 = arith.addf %271, %273 : vector<16x1xf32>
    %275 = math.rsqrt %274 : vector<16x1xf32>
    %276 = arith.mulf %272, %275 : vector<16x1xf32>
    %277 = vector.broadcast %276 : vector<16x1xf32> to vector<16x64xf32>
    %278 = arith.mulf %265, %277 : vector<16x64xf32>
    %c0_228 = arith.constant 0 : index
    %c1_229 = arith.constant 1 : index
    %279 = vector.load %arg16[%c0_228, %c1_229] : memref<16x2xf32, #tpu.memory_space<vmem>>, vector<16x1xf32>
    %280 = vector.broadcast %279 : vector<16x1xf32> to vector<16x64xf32>
    %281 = arith.addf %278, %280 : vector<16x64xf32>
    %282 = tpu.concatenate %40, %281 in 0 : vector<16x64xf32>, vector<16x64xf32> -> vector<32x64xf32>
    %cst_230 = arith.constant 0.000000e+00 : f32
    %283 = vector.broadcast %cst_230 : f32 to vector<32x64xf32>
    %284 = arith.maximumf %282, %283 : vector<32x64xf32>
    %285 = arith.truncf %284 : vector<32x64xf32> to vector<32x64xbf16>
    %c0_231 = arith.constant 0 : index
    %c0_232 = arith.constant 0 : index
    %c0_233 = arith.constant 0 : index
    %286 = vector.load %arg18[%c0_231, %c0_232, %c0_233] : memref<9x64x256xbf16, #tpu.memory_space<vmem>>, vector<1x64x256xbf16>
    %287 = vector.shape_cast %286 : vector<1x64x256xbf16> to vector<64x256xbf16>
    %cst_234 = arith.constant dense<0.000000e+00> : vector<32x256xf32>
    %288 = tpu.matmul %285, %287, %cst_234 {dimension_numbers = #tpu.dot_dimension_numbers<[1], [0], [0], [1], [0, 0, 1, 1], [], []>} : vector<32x64xbf16>, vector<64x256xbf16>, vector<32x256xf32> -> vector<32x256xf32>
    %289 = arith.truncf %288 : vector<32x256xf32> to vector<32x256xbf16>
    %c1_235 = arith.constant 1 : index
    %c0_236 = arith.constant 0 : index
    %c0_237 = arith.constant 0 : index
    %290 = vector.load %arg18[%c1_235, %c0_236, %c0_237] : memref<9x64x256xbf16, #tpu.memory_space<vmem>>, vector<1x64x256xbf16>
    %291 = vector.shape_cast %290 : vector<1x64x256xbf16> to vector<64x256xbf16>
    %cst_238 = arith.constant dense<0.000000e+00> : vector<32x256xf32>
    %292 = tpu.matmul %285, %291, %cst_238 {dimension_numbers = #tpu.dot_dimension_numbers<[1], [0], [0], [1], [0, 0, 1, 1], [], []>} : vector<32x64xbf16>, vector<64x256xbf16>, vector<32x256xf32> -> vector<32x256xf32>
    %293 = arith.truncf %292 : vector<32x256xf32> to vector<32x256xbf16>
    %c2_239 = arith.constant 2 : index
    %c0_240 = arith.constant 0 : index
    %c0_241 = arith.constant 0 : index
    %294 = vector.load %arg18[%c2_239, %c0_240, %c0_241] : memref<9x64x256xbf16, #tpu.memory_space<vmem>>, vector<1x64x256xbf16>
    %295 = vector.shape_cast %294 : vector<1x64x256xbf16> to vector<64x256xbf16>
    %cst_242 = arith.constant dense<0.000000e+00> : vector<32x256xf32>
    %296 = tpu.matmul %285, %295, %cst_242 {dimension_numbers = #tpu.dot_dimension_numbers<[1], [0], [0], [1], [0, 0, 1, 1], [], []>} : vector<32x64xbf16>, vector<64x256xbf16>, vector<32x256xf32> -> vector<32x256xf32>
    %297 = arith.truncf %296 : vector<32x256xf32> to vector<32x256xbf16>
    %c3_243 = arith.constant 3 : index
    %c0_244 = arith.constant 0 : index
    %c0_245 = arith.constant 0 : index
    %298 = vector.load %arg18[%c3_243, %c0_244, %c0_245] : memref<9x64x256xbf16, #tpu.memory_space<vmem>>, vector<1x64x256xbf16>
    %299 = vector.shape_cast %298 : vector<1x64x256xbf16> to vector<64x256xbf16>
    %cst_246 = arith.constant dense<0.000000e+00> : vector<32x256xf32>
    %300 = tpu.matmul %285, %299, %cst_246 {dimension_numbers = #tpu.dot_dimension_numbers<[1], [0], [0], [1], [0, 0, 1, 1], [], []>} : vector<32x64xbf16>, vector<64x256xbf16>, vector<32x256xf32> -> vector<32x256xf32>
    %301 = arith.truncf %300 : vector<32x256xf32> to vector<32x256xbf16>
    %c4_247 = arith.constant 4 : index
    %c0_248 = arith.constant 0 : index
    %c0_249 = arith.constant 0 : index
    %302 = vector.load %arg18[%c4_247, %c0_248, %c0_249] : memref<9x64x256xbf16, #tpu.memory_space<vmem>>, vector<1x64x256xbf16>
    %303 = vector.shape_cast %302 : vector<1x64x256xbf16> to vector<64x256xbf16>
    %cst_250 = arith.constant dense<0.000000e+00> : vector<32x256xf32>
    %304 = tpu.matmul %285, %303, %cst_250 {dimension_numbers = #tpu.dot_dimension_numbers<[1], [0], [0], [1], [0, 0, 1, 1], [], []>} : vector<32x64xbf16>, vector<64x256xbf16>, vector<32x256xf32> -> vector<32x256xf32>
    %305 = arith.truncf %304 : vector<32x256xf32> to vector<32x256xbf16>
    %c5_251 = arith.constant 5 : index
    %c0_252 = arith.constant 0 : index
    %c0_253 = arith.constant 0 : index
    %306 = vector.load %arg18[%c5_251, %c0_252, %c0_253] : memref<9x64x256xbf16, #tpu.memory_space<vmem>>, vector<1x64x256xbf16>
    %307 = vector.shape_cast %306 : vector<1x64x256xbf16> to vector<64x256xbf16>
    %cst_254 = arith.constant dense<0.000000e+00> : vector<32x256xf32>
    %308 = tpu.matmul %285, %307, %cst_254 {dimension_numbers = #tpu.dot_dimension_numbers<[1], [0], [0], [1], [0, 0, 1, 1], [], []>} : vector<32x64xbf16>, vector<64x256xbf16>, vector<32x256xf32> -> vector<32x256xf32>
    %309 = arith.truncf %308 : vector<32x256xf32> to vector<32x256xbf16>
    %c6_255 = arith.constant 6 : index
    %c0_256 = arith.constant 0 : index
    %c0_257 = arith.constant 0 : index
    %310 = vector.load %arg18[%c6_255, %c0_256, %c0_257] : memref<9x64x256xbf16, #tpu.memory_space<vmem>>, vector<1x64x256xbf16>
    %311 = vector.shape_cast %310 : vector<1x64x256xbf16> to vector<64x256xbf16>
    %cst_258 = arith.constant dense<0.000000e+00> : vector<32x256xf32>
    %312 = tpu.matmul %285, %311, %cst_258 {dimension_numbers = #tpu.dot_dimension_numbers<[1], [0], [0], [1], [0, 0, 1, 1], [], []>} : vector<32x64xbf16>, vector<64x256xbf16>, vector<32x256xf32> -> vector<32x256xf32>
    %313 = arith.truncf %312 : vector<32x256xf32> to vector<32x256xbf16>
    %c7_259 = arith.constant 7 : index
    %c0_260 = arith.constant 0 : index
    %c0_261 = arith.constant 0 : index
    %314 = vector.load %arg18[%c7_259, %c0_260, %c0_261] : memref<9x64x256xbf16, #tpu.memory_space<vmem>>, vector<1x64x256xbf16>
    %315 = vector.shape_cast %314 : vector<1x64x256xbf16> to vector<64x256xbf16>
    %cst_262 = arith.constant dense<0.000000e+00> : vector<32x256xf32>
    %316 = tpu.matmul %285, %315, %cst_262 {dimension_numbers = #tpu.dot_dimension_numbers<[1], [0], [0], [1], [0, 0, 1, 1], [], []>} : vector<32x64xbf16>, vector<64x256xbf16>, vector<32x256xf32> -> vector<32x256xf32>
    %317 = arith.truncf %316 : vector<32x256xf32> to vector<32x256xbf16>
    %c8_263 = arith.constant 8 : index
    %c0_264 = arith.constant 0 : index
    %c0_265 = arith.constant 0 : index
    %318 = vector.load %arg18[%c8_263, %c0_264, %c0_265] : memref<9x64x256xbf16, #tpu.memory_space<vmem>>, vector<1x64x256xbf16>
    %319 = vector.shape_cast %318 : vector<1x64x256xbf16> to vector<64x256xbf16>
    %cst_266 = arith.constant dense<0.000000e+00> : vector<32x256xf32>
    %320 = tpu.matmul %285, %319, %cst_266 {dimension_numbers = #tpu.dot_dimension_numbers<[1], [0], [0], [1], [0, 0, 1, 1], [], []>} : vector<32x64xbf16>, vector<64x256xbf16>, vector<32x256xf32> -> vector<32x256xf32>
    %321 = arith.truncf %320 : vector<32x256xf32> to vector<32x256xbf16>
    %322 = tpu.concatenate %289, %293, %297, %301, %305, %309, %313, %317, %321 in 0 : vector<32x256xbf16>, vector<32x256xbf16>, vector<32x256xbf16>, vector<32x256xbf16>, vector<32x256xbf16>, vector<32x256xbf16>, vector<32x256xbf16>, vector<32x256xbf16>, vector<32x256xbf16> -> vector<288x256xbf16>
    %c0_267 = arith.constant 0 : index
    %c0_268 = arith.constant 0 : index
    %323 = vector.load %arg17[%c0_267, %c0_268] : memref<8x288xbf16, #tpu.memory_space<vmem>>, vector<8x288xbf16>
    %cst_269 = arith.constant dense<0.000000e+00> : vector<8x256xf32>
    %324 = tpu.matmul %323, %322, %cst_269 {dimension_numbers = #tpu.dot_dimension_numbers<[1], [0], [0], [1], [0, 0, 1, 1], [], []>} : vector<8x288xbf16>, vector<288x256xbf16>, vector<8x256xf32> -> vector<8x256xf32>
    %c0_270 = arith.constant 0 : index
    %c0_271 = arith.constant 0 : index
    %325 = vector.load %arg19[%c0_270, %c0_271] : memref<8x1xf32, #tpu.memory_space<vmem>>, vector<8x1xf32>
    %326 = vector.broadcast %325 : vector<8x1xf32> to vector<8x256xf32>
    %327 = arith.addf %324, %326 : vector<8x256xf32>
    %328 = math.tanh %327 : vector<8x256xf32>
    %c0_272 = arith.constant 0 : index
    %c0_273 = arith.constant 0 : index
    %329 = vector.load %arg20[%c0_272, %c0_273] : memref<8x256xf32, #tpu.memory_space<vmem>>, vector<8x256xf32>
    tpu.vector_store %arg20[%c0_272, %c0_273], %328 {strides = array<i32>} : memref<8x256xf32, #tpu.memory_space<vmem>>, vector<8x256xf32>,
    return
  }
}

</mosaic_0001>

<llo_original>
// kernel: seg_v7_forward_3level.1
$region0: #{seg_v7_forward_3level.1}
  #allocation0 [shape = 'u32[]', space=smem, size = 0x4, offset = 0x4, fixed_abs, tag = 'smem constant byte address 0x4 - core index']
  #allocation1 [shape = 'u32[144,128]{1,0:T(1,128)}', space=vmem, size = 0x12000, scoped, tag = 'internal scratch']
  %s0 = inlined_call_operand.vmem [shape: f32[16,256], index: 0, kind: input, shape index: {}]
  %s1 = inlined_call_operand.vmem [shape: bf16[16,144], index: 1, kind: input, shape index: {}]
  %s2 = inlined_call_operand.vmem [shape: bf16[9,256,64], index: 2, kind: input, shape index: {}]
  %s3 = inlined_call_operand.vmem [shape: bf16[32,144], index: 3, kind: input, shape index: {}]
  %s4 = inlined_call_operand.vmem [shape: bf16[9,64,16], index: 4, kind: input, shape index: {}]
  %s5 = inlined_call_operand.vmem [shape: f32[32,32], index: 5, kind: input, shape index: {}]
  %s6 = inlined_call_operand.vmem [shape: f32[32,2], index: 6, kind: input, shape index: {}]
  %s7 = inlined_call_operand.vmem [shape: bf16[32,288], index: 7, kind: input, shape index: {}]
  %s8 = inlined_call_operand.vmem [shape: bf16[9,16,4], index: 8, kind: input, shape index: {}]
  %s9 = inlined_call_operand.vmem [shape: bf16[32,288], index: 9, kind: input, shape index: {}]
  %s10 = inlined_call_operand.vmem [shape: bf16[9,4,16], index: 10, kind: input, shape index: {}]
  %s11 = inlined_call_operand.vmem [shape: f32[32,32], index: 11, kind: input, shape index: {}]
  %s12 = inlined_call_operand.vmem [shape: f32[32,2], index: 12, kind: input, shape index: {}]
  %s13 = inlined_call_operand.vmem [shape: bf16[16,576], index: 13, kind: input, shape index: {}]
  %s14 = inlined_call_operand.vmem [shape: bf16[9,16,64], index: 14, kind: input, shape index: {}]
  %s15 = inlined_call_operand.vmem [shape: f32[16,16], index: 15, kind: input, shape index: {}]
  %s16 = inlined_call_operand.vmem [shape: f32[16,2], index: 16, kind: input, shape index: {}]
  %s17 = inlined_call_operand.vmem [shape: bf16[8,288], index: 17, kind: input, shape index: {}]
  %s18 = inlined_call_operand.vmem [shape: bf16[9,64,256], index: 18, kind: input, shape index: {}]
  %s19 = inlined_call_operand.vmem [shape: f32[8,1], index: 19, kind: input, shape index: {}]
  %s20 = inlined_call_operand.vmem [shape: f32[8,256], index: 20, kind: output, shape index: {}]
  %s21 = sld [smem:[#allocation0]]
  $region90: #{seg_v7_forward_3level.1} parent=0
    _
  %s23 = ssub.s32 1, %s21
  %s24 = scalar_select 0, %s23, %s21
  // Predicated region
  $region2: #{seg_v7_forward_3level.1} parent=0 // pred_check
    _
  $region3: #{seg_v7_forward_3level.1} parent=0 // pred_check_branch
    %26 = sbr.rel (0) target = $region5
  $region4: #{seg_v7_forward_3level.1} parent=0 // pred_region
    _
  $region5: #{seg_v7_forward_3level.1} parent=0 // pred_fallthru
    _
  // Predicated region
  $region6: #{seg_v7_forward_3level.1} parent=0 // pred_check
    _
  $region7: #{seg_v7_forward_3level.1} parent=0 // pred_check_branch
    %28 = sbr.rel (0) target = $region9
  $region8: #{seg_v7_forward_3level.1} parent=0 // pred_region
    _
  $region9: #{seg_v7_forward_3level.1} parent=0 // pred_fallthru
    _
  // Predicated region
  $region10: #{seg_v7_forward_3level.1} parent=0 // pred_check
    _
  $region11: #{seg_v7_forward_3level.1} parent=0 // pred_check_branch
    %30 = sbr.rel (0) target = $region13
  $region12: #{seg_v7_forward_3level.1} parent=0 // pred_region
    _
  $region13: #{seg_v7_forward_3level.1} parent=0 // pred_fallthru
    _
  // Predicated region
  $region14: #{seg_v7_forward_3level.1} parent=0 // pred_check
    _
  $region15: #{seg_v7_forward_3level.1} parent=0 // pred_check_branch
    %32 = sbr.rel (0) target = $region17
  $region16: #{seg_v7_forward_3level.1} parent=0 // pred_region
    _
  $region17: #{seg_v7_forward_3level.1} parent=0 // pred_fallthru
    _
  // Predicated region
  $region18: #{seg_v7_forward_3level.1} parent=0 // pred_check
    _
  $region19: #{seg_v7_forward_3level.1} parent=0 // pred_check_branch
    %34 = sbr.rel (0) target = $region21
  $region20: #{seg_v7_forward_3level.1} parent=0 // pred_region
    _
  $region21: #{seg_v7_forward_3level.1} parent=0 // pred_fallthru
    _
  // Predicated region
  $region22: #{seg_v7_forward_3level.1} parent=0 // pred_check
    _
  $region23: #{seg_v7_forward_3level.1} parent=0 // pred_check_branch
    %36 = sbr.rel (0) target = $region25
  $region24: #{seg_v7_forward_3level.1} parent=0 // pred_region
    _
  $region25: #{seg_v7_forward_3level.1} parent=0 // pred_fallthru
    _
  // Predicated region
  $region26: #{seg_v7_forward_3level.1} parent=0 // pred_check
    _
  $region27: #{seg_v7_forward_3level.1} parent=0 // pred_check_branch
    %38 = sbr.rel (0) target = $region29
  $region28: #{seg_v7_forward_3level.1} parent=0 // pred_region
    _
  $region29: #{seg_v7_forward_3level.1} parent=0 // pred_fallthru
    _
  // Predicated region
  $region30: #{seg_v7_forward_3level.1} parent=0 // pred_check
    _
  $region31: #{seg_v7_forward_3level.1} parent=0 // pred_check_branch
    %40 = sbr.rel (0) target = $region33
  $region32: #{seg_v7_forward_3level.1} parent=0 // pred_region
    _
  $region33: #{seg_v7_forward_3level.1} parent=0 // pred_fallthru
    _
  // Predicated region
  $region34: #{seg_v7_forward_3level.1} parent=0 // pred_check
    _
  $region35: #{seg_v7_forward_3level.1} parent=0 // pred_check_branch
    %42 = sbr.rel (0) target = $region37
  $region36: #{seg_v7_forward_3level.1} parent=0 // pred_region
    _
  $region37: #{seg_v7_forward_3level.1} parent=0 // pred_fallthru
    _
  // Predicated region
  $region38: #{seg_v7_forward_3level.1} parent=0 // pred_check
    _
  $region39: #{seg_v7_forward_3level.1} parent=0 // pred_check_branch
    %44 = sbr.rel (0) target = $region41
  $region40: #{seg_v7_forward_3level.1} parent=0 // pred_region
    _
  $region41: #{seg_v7_forward_3level.1} parent=0 // pred_fallthru
    _
  // Predicated region
  $region42: #{seg_v7_forward_3level.1} parent=0 // pred_check
    _
  $region43: #{seg_v7_forward_3level.1} parent=0 // pred_check_branch
    %46 = sbr.rel (0) target = $region45
  $region44: #{seg_v7_forward_3level.1} parent=0 // pred_region
    _
  $region45: #{seg_v7_forward_3level.1} parent=0 // pred_fallthru
    _
  // Predicated region
  $region46: #{seg_v7_forward_3level.1} parent=0 // pred_check
    _
  $region47: #{seg_v7_forward_3level.1} parent=0 // pred_check_branch
    %48 = sbr.rel (0) target = $region49
  $region48: #{seg_v7_forward_3level.1} parent=0 // pred_region
    _
  $region49: #{seg_v7_forward_3level.1} parent=0 // pred_fallthru
    _
  // Predicated region
  $region50: #{seg_v7_forward_3level.1} parent=0 // pred_check
    _
  $region51: #{seg_v7_forward_3level.1} parent=0 // pred_check_branch
    %50 = sbr.rel (0) target = $region53
  $region52: #{seg_v7_forward_3level.1} parent=0 // pred_region
    _
  $region53: #{seg_v7_forward_3level.1} parent=0 // pred_fallthru
    _
  // Predicated region
  $region54: #{seg_v7_forward_3level.1} parent=0 // pred_check
    _
  $region55: #{seg_v7_forward_3level.1} parent=0 // pred_check_branch
    %52 = sbr.rel (0) target = $region57
  $region56: #{seg_v7_forward_3level.1} parent=0 // pred_region
    _
  $region57: #{seg_v7_forward_3level.1} parent=0 // pred_fallthru
    _
  // Predicated region
  $region58: #{seg_v7_forward_3level.1} parent=0 // pred_check
    _
  $region59: #{seg_v7_forward_3level.1} parent=0 // pred_check_branch
    %54 = sbr.rel (0) target = $region61
  $region60: #{seg_v7_forward_3level.1} parent=0 // pred_region
    _
  $region61: #{seg_v7_forward_3level.1} parent=0 // pred_fallthru
    _
  // Predicated region
  $region62: #{seg_v7_forward_3level.1} parent=0 // pred_check
    _
  $region63: #{seg_v7_forward_3level.1} parent=0 // pred_check_branch
    %56 = sbr.rel (0) target = $region65
  $region64: #{seg_v7_forward_3level.1} parent=0 // pred_region
    _
  $region65: #{seg_v7_forward_3level.1} parent=0 // pred_fallthru
    _
  // Predicated region
  $region66: #{seg_v7_forward_3level.1} parent=0 // pred_check
    _
  $region67: #{seg_v7_forward_3level.1} parent=0 // pred_check_branch
    %58 = sbr.rel (0) target = $region69
  $region68: #{seg_v7_forward_3level.1} parent=0 // pred_region
    _
  $region69: #{seg_v7_forward_3level.1} parent=0 // pred_fallthru
    _
  // Predicated region
  $region70: #{seg_v7_forward_3level.1} parent=0 // pred_check
    _
  $region71: #{seg_v7_forward_3level.1} parent=0 // pred_check_branch
    %60 = sbr.rel (0) target = $region73
  $region72: #{seg_v7_forward_3level.1} parent=0 // pred_region
    _
  $region73: #{seg_v7_forward_3level.1} parent=0 // pred_fallthru
    _
  // Predicated region
  $region74: #{seg_v7_forward_3level.1} parent=0 // pred_check
    _
  $region75: #{seg_v7_forward_3level.1} parent=0 // pred_check_branch
    %62 = sbr.rel (0) target = $region77
  $region76: #{seg_v7_forward_3level.1} parent=0 // pred_region
    _
  $region77: #{seg_v7_forward_3level.1} parent=0 // pred_fallthru
    _
  // Predicated region
  $region78: #{seg_v7_forward_3level.1} parent=0 // pred_check
    _
  $region79: #{seg_v7_forward_3level.1} parent=0 // pred_check_branch
    %64 = sbr.rel (0) target = $region81
  $region80: #{seg_v7_forward_3level.1} parent=0 // pred_region
    _
  $region81: #{seg_v7_forward_3level.1} parent=0 // pred_fallthru
    _
  %v66 = vld [vmem:[%s0] sm:$0xff]
  %v67 = vld [vmem:[%s0 + $0x8] sm:$0xff]
  %v68 = vld [vmem:[%s0 + $0x10] sm:$0xff]
  %v69 = vld [vmem:[%s0 + $0x18] sm:$0xff]
  %v70 = vpack.c.bf16 %v68, %v66
  %v71 = vpack.c.bf16 %v69, %v67
  %v72 = vld [vmem:[%s2] sm:$0xf]
  %v73 = vld [vmem:[%s2 + $0x4] sm:$0xf]
  %v74 = vld [vmem:[%s2 + $0x8] sm:$0xf]
  %v75 = vld [vmem:[%s2 + $0xc] sm:$0xf]
  %v76 = vld [vmem:[%s2 + $0x10] sm:$0xf]
  %v77 = vld [vmem:[%s2 + $0x14] sm:$0xf]
  %v78 = vld [vmem:[%s2 + $0x18] sm:$0xf]
  %v79 = vld [vmem:[%s2 + $0x1c] sm:$0xf]
  %v80 = vld [vmem:[%s2 + $0x20] sm:$0xf]
  %v81 = vld [vmem:[%s2 + $0x24] sm:$0xf]
  %v82 = vld [vmem:[%s2 + $0x28] sm:$0xf]
  %v83 = vld [vmem:[%s2 + $0x2c] sm:$0xf]
  %v84 = vld [vmem:[%s2 + $0x30] sm:$0xf]
  %v85 = vld [vmem:[%s2 + $0x34] sm:$0xf]
  %v86 = vld [vmem:[%s2 + $0x38] sm:$0xf]
  %v87 = vld [vmem:[%s2 + $0x3c] sm:$0xf]
  %v88 = vld [vmem:[%s2 + $0x40] sm:$0xf]
  %v89 = vld [vmem:[%s2 + $0x44] sm:$0xf]
  %v90 = vld [vmem:[%s2 + $0x48] sm:$0xf]
  %v91 = vld [vmem:[%s2 + $0x4c] sm:$0xf]
  %v92 = vld [vmem:[%s2 + $0x50] sm:$0xf]
  %v93 = vld [vmem:[%s2 + $0x54] sm:$0xf]
  %v94 = vld [vmem:[%s2 + $0x58] sm:$0xf]
  %v95 = vld [vmem:[%s2 + $0x5c] sm:$0xf]
  %v96 = vld [vmem:[%s2 + $0x60] sm:$0xf]
  %v97 = vld [vmem:[%s2 + $0x64] sm:$0xf]
  %v98 = vld [vmem:[%s2 + $0x68] sm:$0xf]
  %v99 = vld [vmem:[%s2 + $0x6c] sm:$0xf]
  %v100 = vld [vmem:[%s2 + $0x70] sm:$0xf]
  %v101 = vld [vmem:[%s2 + $0x74] sm:$0xf]
  %v102 = vld [vmem:[%s2 + $0x78] sm:$0xf]
  %v103 = vld [vmem:[%s2 + $0x7c] sm:$0xf]
  %v136 = vunpack.c.l.b16 %v72
  %v137 = vunpack.c.l.b16 %v73
  %v138 = vunpack.c.l.b16 %v74
  %v139 = vunpack.c.l.b16 %v75
  %v140 = vunpack.c.l.b16 %v76
  %v141 = vunpack.c.l.b16 %v77
  %v142 = vunpack.c.l.b16 %v78
  %v143 = vunpack.c.l.b16 %v79
  %v144 = vunpack.c.l.b16 %v80
  %v145 = vunpack.c.l.b16 %v81
  %v146 = vunpack.c.l.b16 %v82
  %v147 = vunpack.c.l.b16 %v83
  %v148 = vunpack.c.l.b16 %v84
  %v149 = vunpack.c.l.b16 %v85
  %v150 = vunpack.c.l.b16 %v86
  %v151 = vunpack.c.l.b16 %v87
  %v152 = vunpack.c.l.b16 %v88
  %v153 = vunpack.c.l.b16 %v89
  %v154 = vunpack.c.l.b16 %v90
  %v155 = vunpack.c.l.b16 %v91
  %v156 = vunpack.c.l.b16 %v92
  %v157 = vunpack.c.l.b16 %v93
  %v158 = vunpack.c.l.b16 %v94
  %v159 = vunpack.c.l.b16 %v95
  %v160 = vunpack.c.l.b16 %v96
  %v161 = vunpack.c.l.b16 %v97
  %v162 = vunpack.c.l.b16 %v98
  %v163 = vunpack.c.l.b16 %v99
  %v164 = vunpack.c.l.b16 %v100
  %v165 = vunpack.c.l.b16 %v101
  %v166 = vunpack.c.l.b16 %v102
  %v167 = vunpack.c.l.b16 %v103
  %v168 = vpack.c.b16 %v137, %v136
  %v169 = vpack.c.b16 %v139, %v138
  %v170 = vpack.c.b16 %v141, %v140
  %v171 = vpack.c.b16 %v143, %v142
  %v172 = vpack.c.b16 %v145, %v144
  %v173 = vpack.c.b16 %v147, %v146
  %v174 = vpack.c.b16 %v149, %v148
  %v175 = vpack.c.b16 %v151, %v150
  %v176 = vpack.c.b16 %v153, %v152
  %v177 = vpack.c.b16 %v155, %v154
  %v178 = vpack.c.b16 %v157, %v156
  %v179 = vpack.c.b16 %v159, %v158
  %v180 = vpack.c.b16 %v161, %v160
  %v181 = vpack.c.b16 %v163, %v162
  %v182 = vpack.c.b16 %v165, %v164
  %v183 = vpack.c.b16 %v167, %v166
  %200 = vmatprep.subr.bf16.mxu0 0
  %201 = vmatpush1.bf16.msra.mxu0 %v168
  %202 = vmatprep.subr.bf16.mxu0 0
  %203 = vmatpush1.bf16.msra.mxu0 %v169
  %204 = vmatprep.subr.bf16.mxu0 0
  %205 = vmatpush1.bf16.msra.mxu0 %v170
  %206 = vmatprep.subr.bf16.mxu0 0
  %207 = vmatpush1.bf16.msra.mxu0 %v171
  %208 = vmatprep.subr.bf16.mxu0 0
  %209 = vmatpush1.bf16.msra.mxu0 %v172
  %210 = vmatprep.subr.bf16.mxu0 0
  %211 = vmatpush1.bf16.msra.mxu0 %v173
  %212 = vmatprep.subr.bf16.mxu0 0
  %213 = vmatpush1.bf16.msra.mxu0 %v174
  %214 = vmatprep.subr.bf16.mxu0 0
  %215 = vmatpush1.bf16.msra.mxu0 %v175
  %216 = vmatprep.subr.bf16.mxu0 0
  %217 = vmatpush1.bf16.msra.mxu0 %v176
  %218 = vmatprep.subr.bf16.mxu0 0
  %219 = vmatpush1.bf16.msra.mxu0 %v177
  %220 = vmatprep.subr.bf16.mxu0 0
  %221 = vmatpush1.bf16.msra.mxu0 %v178
  %222 = vmatprep.subr.bf16.mxu0 0
  %223 = vmatpush1.bf16.msra.mxu0 %v179
  %224 = vmatprep.subr.bf16.mxu0 0
  %225 = vmatpush1.bf16.msra.mxu0 %v180
  %226 = vmatprep.subr.bf16.mxu0 0
  %227 = vmatpush1.bf16.msra.mxu0 %v181
  %228 = vmatprep.subr.bf16.mxu0 0
  %229 = vmatpush1.bf16.msra.mxu0 %v182
  %230 = vmatprep.subr.bf16.mxu0 0
  %231 = vmatpush1.bf16.msra.mxu0 %v183
  %232 = vmatprep.mubr.bf16.mxu0 %v71
  %233 = vmatmul.mubr.bf16.gmra.mrb[0].mxu0 %v70
  %v234 = vpop.f32.mrb[0].mxu0
  %v235 = vadd.f32 0.0, %v234
  %v236 = vpop.f32.mrb[0].mxu0
  %v237 = vpop.f32.mrb[0].mxu0
  %v238 = vadd.f32 0.0, %v237
  %v239 = vpop.f32.mrb[0].mxu0
  %240 = vdwg.mxu0
  %v241 = vpack.c.bf16 %v238, %v235
  %s242 = scalar_lea.vmem %s2, 128
  %v243 = vld [vmem:[%s242] sm:$0xf]
  %v244 = vld [vmem:[%s242 + $0x4] sm:$0xf]
  %v245 = vld [vmem:[%s242 + $0x8] sm:$0xf]
  %v246 = vld [vmem:[%s242 + $0xc] sm:$0xf]
  %v247 = vld [vmem:[%s242 + $0x10] sm:$0xf]
  %v248 = vld [vmem:[%s242 + $0x14] sm:$0xf]
  %v249 = vld [vmem:[%s242 + $0x18] sm:$0xf]
  %v250 = vld [vmem:[%s242 + $0x1c] sm:$0xf]
  %v251 = vld [vmem:[%s242 + $0x20] sm:$0xf]
  %v252 = vld [vmem:[%s242 + $0x24] sm:$0xf]
  %v253 = vld [vmem:[%s242 + $0x28] sm:$0xf]
  %v254 = vld [vmem:[%s242 + $0x2c] sm:$0xf]
  %v255 = vld [vmem:[%s242 + $0x30] sm:$0xf]
  %v256 = vld [vmem:[%s242 + $0x34] sm:$0xf]
  %v257 = vld [vmem:[%s242 + $0x38] sm:$0xf]
  %v258 = vld [vmem:[%s242 + $0x3c] sm:$0xf]
  %v259 = vld [vmem:[%s242 + $0x40] sm:$0xf]
  %v260 = vld [vmem:[%s242 + $0x44] sm:$0xf]
  %v261 = vld [vmem:[%s242 + $0x48] sm:$0xf]
  %v262 = vld [vmem:[%s242 + $0x4c] sm:$0xf]
  %v263 = vld [vmem:[%s242 + $0x50] sm:$0xf]
  %v264 = vld [vmem:[%s242 + $0x54] sm:$0xf]
  %v265 = vld [vmem:[%s242 + $0x58] sm:$0xf]
  %v266 = vld [vmem:[%s242 + $0x5c] sm:$0xf]
  %v267 = vld [vmem:[%s242 + $0x60] sm:$0xf]
  %v268 = vld [vmem:[%s242 + $0x64] sm:$0xf]
  %v269 = vld [vmem:[%s242 + $0x68] sm:$0xf]
  %v270 = vld [vmem:[%s242 + $0x6c] sm:$0xf]
  %v271 = vld [vmem:[%s242 + $0x70] sm:$0xf]
  %v272 = vld [vmem:[%s242 + $0x74] sm:$0xf]
  %v273 = vld [vmem:[%s242 + $0x78] sm:$0xf]
  %v274 = vld [vmem:[%s242 + $0x7c] sm:$0xf]
  %v307 = vunpack.c.l.b16 %v243
  %v308 = vunpack.c.l.b16 %v244
  %v309 = vunpack.c.l.b16 %v245
  %v310 = vunpack.c.l.b16 %v246
  %v311 = vunpack.c.l.b16 %v247
  %v312 = vunpack.c.l.b16 %v248
  %v313 = vunpack.c.l.b16 %v249
  %v314 = vunpack.c.l.b16 %v250
  %v315 = vunpack.c.l.b16 %v251
  %v316 = vunpack.c.l.b16 %v252
  %v317 = vunpack.c.l.b16 %v253
  %v318 = vunpack.c.l.b16 %v254
  %v319 = vunpack.c.l.b16 %v255
  %v320 = vunpack.c.l.b16 %v256
  %v321 = vunpack.c.l.b16 %v257
  %v322 = vunpack.c.l.b16 %v258
  %v323 = vunpack.c.l.b16 %v259
  %v324 = vunpack.c.l.b16 %v260
  %v325 = vunpack.c.l.b16 %v261
  %v326 = vunpack.c.l.b16 %v262
  %v327 = vunpack.c.l.b16 %v263
  %v328 = vunpack.c.l.b16 %v264
  %v329 = vunpack.c.l.b16 %v265
  %v330 = vunpack.c.l.b16 %v266
  %v331 = vunpack.c.l.b16 %v267
  %v332 = vunpack.c.l.b16 %v268
  %v333 = vunpack.c.l.b16 %v269
  %v334 = vunpack.c.l.b16 %v270
  %v335 = vunpack.c.l.b16 %v271
  %v336 = vunpack.c.l.b16 %v272
  %v337 = vunpack.c.l.b16 %v273
  %v338 = vunpack.c.l.b16 %v274
  %v339 = vpack.c.b16 %v308, %v307
  %v340 = vpack.c.b16 %v310, %v309
  %v341 = vpack.c.b16 %v312, %v311
  %v342 = vpack.c.b16 %v314, %v313
  %v343 = vpack.c.b16 %v316, %v315
  %v344 = vpack.c.b16 %v318, %v317
  %v345 = vpack.c.b16 %v320, %v319
  %v346 = vpack.c.b16 %v322, %v321
  %v347 = vpack.c.b16 %v324, %v323
  %v348 = vpack.c.b16 %v326, %v325
  %v349 = vpack.c.b16 %v328, %v327
  %v350 = vpack.c.b16 %v330, %v329
  %v351 = vpack.c.b16 %v332, %v331
  %v352 = vpack.c.b16 %v334, %v333
  %v353 = vpack.c.b16 %v336, %v335
  %v354 = vpack.c.b16 %v338, %v337
  %371 = vmatprep.subr.bf16.mxu0 0
  %372 = vmatpush1.bf16.msra.mxu0 %v339
  %373 = vmatprep.subr.bf16.mxu0 0
  %374 = vmatpush1.bf16.msra.mxu0 %v340
  %375 = vmatprep.subr.bf16.mxu0 0
  %376 = vmatpush1.bf16.msra.mxu0 %v341
  %377 = vmatprep.subr.bf16.mxu0 0
  %378 = vmatpush1.bf16.msra.mxu0 %v342
  %379 = vmatprep.subr.bf16.mxu0 0
  %380 = vmatpush1.bf16.msra.mxu0 %v343
  %381 = vmatprep.subr.bf16.mxu0 0
  %382 = vmatpush1.bf16.msra.mxu0 %v344
  %383 = vmatprep.subr.bf16.mxu0 0
  %384 = vmatpush1.bf16.msra.mxu0 %v345
  %385 = vmatprep.subr.bf16.mxu0 0
  %386 = vmatpush1.bf16.msra.mxu0 %v346
  %387 = vmatprep.subr.bf16.mxu0 0
  %388 = vmatpush1.bf16.msra.mxu0 %v347
  %389 = vmatprep.subr.bf16.mxu0 0
  %390 = vmatpush1.bf16.msra.mxu0 %v348
  %391 = vmatprep.subr.bf16.mxu0 0
  %392 = vmatpush1.bf16.msra.mxu0 %v349
  %393 = vmatprep.subr.bf16.mxu0 0
  %394 = vmatpush1.bf16.msra.mxu0 %v350
  %395 = vmatprep.subr.bf16.mxu0 0
  %396 = vmatpush1.bf16.msra.mxu0 %v351
  %397 = vmatprep.subr.bf16.mxu0 0
  %398 = vmatpush1.bf16.msra.mxu0 %v352
  %399 = vmatprep.subr.bf16.mxu0 0
  %400 = vmatpush1.bf16.msra.mxu0 %v353
  %401 = vmatprep.subr.bf16.mxu0 0
  %402 = vmatpush1.bf16.msra.mxu0 %v354
  %403 = vmatprep.mubr.bf16.mxu0 %v71
  %404 = vmatmul.mubr.bf16.gmra.mrb[0].mxu0 %v70
  %v405 = vpop.f32.mrb[0].mxu0
  %v406 = vadd.f32 0.0, %v405
  %v407 = vpop.f32.mrb[0].mxu0
  %v408 = vpop.f32.mrb[0].mxu0
  %v409 = vadd.f32 0.0, %v408
  %v410 = vpop.f32.mrb[0].mxu0
  %411 = vdwg.mxu0
  %v412 = vpack.c.bf16 %v409, %v406
  %s413 = scalar_lea.vmem %s2, 256
  %v414 = vld [vmem:[%s413] sm:$0xf]
  %v415 = vld [vmem:[%s413 + $0x4] sm:$0xf]
  %v416 = vld [vmem:[%s413 + $0x8] sm:$0xf]
  %v417 = vld [vmem:[%s413 + $0xc] sm:$0xf]
  %v418 = vld [vmem:[%s413 + $0x10] sm:$0xf]
  %v419 = vld [vmem:[%s413 + $0x14] sm:$0xf]
  %v420 = vld [vmem:[%s413 + $0x18] sm:$0xf]
  %v421 = vld [vmem:[%s413 + $0x1c] sm:$0xf]
  %v422 = vld [vmem:[%s413 + $0x20] sm:$0xf]
  %v423 = vld [vmem:[%s413 + $0x24] sm:$0xf]
  %v424 = vld [vmem:[%s413 + $0x28] sm:$0xf]
  %v425 = vld [vmem:[%s413 + $0x2c] sm:$0xf]
  %v426 = vld [vmem:[%s413 + $0x30] sm:$0xf]
  %v427 = vld [vmem:[%s413 + $0x34] sm:$0xf]
  %v428 = vld [vmem:[%s413 + $0x38] sm:$0xf]
  %v429 = vld [vmem:[%s413 + $0x3c] sm:$0xf]
  %v430 = vld [vmem:[%s413 + $0x40] sm:$0xf]
  %v431 = vld [vmem:[%s413 + $0x44] sm:$0xf]
  %v432 = vld [vmem:[%s413 + $0x48] sm:$0xf]
  %v433 = vld [vmem:[%s413 + $0x4c] sm:$0xf]
  %v434 = vld [vmem:[%s413 + $0x50] sm:$0xf]
  %v435 = vld [vmem:[%s413 + $0x54] sm:$0xf]
  %v436 = vld [vmem:[%s413 + $0x58] sm:$0xf]
  %v437 = vld [vmem:[%s413 + $0x5c] sm:$0xf]
  %v438 = vld [vmem:[%s413 + $0x60] sm:$0xf]
  %v439 = vld [vmem:[%s413 + $0x64] sm:$0xf]
  %v440 = vld [vmem:[%s413 + $0x68] sm:$0xf]
  %v441 = vld [vmem:[%s413 + $0x6c] sm:$0xf]
  %v442 = vld [vmem:[%s413 + $0x70] sm:$0xf]
  %v443 = vld [vmem:[%s413 + $0x74] sm:$0xf]
  %v444 = vld [vmem:[%s413 + $0x78] sm:$0xf]
  %v445 = vld [vmem:[%s413 + $0x7c] sm:$0xf]
  %v478 = vunpack.c.l.b16 %v414
  %v479 = vunpack.c.l.b16 %v415
  %v480 = vunpack.c.l.b16 %v416
  %v481 = vunpack.c.l.b16 %v417
  %v482 = vunpack.c.l.b16 %v418
  %v483 = vunpack.c.l.b16 %v419
  %v484 = vunpack.c.l.b16 %v420
  %v485 = vunpack.c.l.b16 %v421
  %v486 = vunpack.c.l.b16 %v422
  %v487 = vunpack.c.l.b16 %v423
  %v488 = vunpack.c.l.b16 %v424
  %v489 = vunpack.c.l.b16 %v425
  %v490 = vunpack.c.l.b16 %v426
  %v491 = vunpack.c.l.b16 %v427
  %v492 = vunpack.c.l.b16 %v428
  %v493 = vunpack.c.l.b16 %v429
  %v494 = vunpack.c.l.b16 %v430
  %v495 = vunpack.c.l.b16 %v431
  %v496 = vunpack.c.l.b16 %v432
  %v497 = vunpack.c.l.b16 %v433
  %v498 = vunpack.c.l.b16 %v434
  %v499 = vunpack.c.l.b16 %v435
  %v500 = vunpack.c.l.b16 %v436
  %v501 = vunpack.c.l.b16 %v437
  %v502 = vunpack.c.l.b16 %v438
  %v503 = vunpack.c.l.b16 %v439
  %v504 = vunpack.c.l.b16 %v440
  %v505 = vunpack.c.l.b16 %v441
  %v506 = vunpack.c.l.b16 %v442
  %v507 = vunpack.c.l.b16 %v443
  %v508 = vunpack.c.l.b16 %v444
  %v509 = vunpack.c.l.b16 %v445
  %v510 = vpack.c.b16 %v479, %v478
  %v511 = vpack.c.b16 %v481, %v480
  %v512 = vpack.c.b16 %v483, %v482
  %v513 = vpack.c.b16 %v485, %v484
  %v514 = vpack.c.b16 %v487, %v486
  %v515 = vpack.c.b16 %v489, %v488
  %v516 = vpack.c.b16 %v491, %v490
  %v517 = vpack.c.b16 %v493, %v492
  %v518 = vpack.c.b16 %v495, %v494
  %v519 = vpack.c.b16 %v497, %v496
  %v520 = vpack.c.b16 %v499, %v498
  %v521 = vpack.c.b16 %v501, %v500
  %v522 = vpack.c.b16 %v503, %v502
  %v523 = vpack.c.b16 %v505, %v504
  %v524 = vpack.c.b16 %v507, %v506
  %v525 = vpack.c.b16 %v509, %v508
  %542 = vmatprep.subr.bf16.mxu0 0
  %543 = vmatpush1.bf16.msra.mxu0 %v510
  %544 = vmatprep.subr.bf16.mxu0 0
  %545 = vmatpush1.bf16.msra.mxu0 %v511
  %546 = vmatprep.subr.bf16.mxu0 0
  %547 = vmatpush1.bf16.msra.mxu0 %v512
  %548 = vmatprep.subr.bf16.mxu0 0
  %549 = vmatpush1.bf16.msra.mxu0 %v513
  %550 = vmatprep.subr.bf16.mxu0 0
  %551 = vmatpush1.bf16.msra.mxu0 %v514
  %552 = vmatprep.subr.bf16.mxu0 0
  %553 = vmatpush1.bf16.msra.mxu0 %v515
  %554 = vmatprep.subr.bf16.mxu0 0
  %555 = vmatpush1.bf16.msra.mxu0 %v516
  %556 = vmatprep.subr.bf16.mxu0 0
  %557 = vmatpush1.bf16.msra.mxu0 %v517
  %558 = vmatprep.subr.bf16.mxu0 0
  %559 = vmatpush1.bf16.msra.mxu0 %v518
  %560 = vmatprep.subr.bf16.mxu0 0
  %561 = vmatpush1.bf16.msra.mxu0 %v519
  %562 = vmatprep.subr.bf16.mxu0 0
  %563 = vmatpush1.bf16.msra.mxu0 %v520
  %564 = vmatprep.subr.bf16.mxu0 0
  %565 = vmatpush1.bf16.msra.mxu0 %v521
  %566 = vmatprep.subr.bf16.mxu0 0
  %567 = vmatpush1.bf16.msra.mxu0 %v522
  %568 = vmatprep.subr.bf16.mxu0 0
  %569 = vmatpush1.bf16.msra.mxu0 %v523
  %570 = vmatprep.subr.bf16.mxu0 0
  %571 = vmatpush1.bf16.msra.mxu0 %v524
  %572 = vmatprep.subr.bf16.mxu0 0
  %573 = vmatpush1.bf16.msra.mxu0 %v525
  %574 = vmatprep.mubr.bf16.mxu0 %v71
  %575 = vmatmul.mubr.bf16.gmra.mrb[0].mxu0 %v70
  %v576 = vpop.f32.mrb[0].mxu0
  %v577 = vadd.f32 0.0, %v576
  %v578 = vpop.f32.mrb[0].mxu0
  %v579 = vpop.f32.mrb[0].mxu0
  %v580 = vadd.f32 0.0, %v579
  %v581 = vpop.f32.mrb[0].mxu0
  %582 = vdwg.mxu0
  %v583 = vpack.c.bf16 %v580, %v577
  %s584 = scalar_lea.vmem %s2, 384
  %v585 = vld [vmem:[%s584] sm:$0xf]
  %v586 = vld [vmem:[%s584 + $0x4] sm:$0xf]
  %v587 = vld [vmem:[%s584 + $0x8] sm:$0xf]
  %v588 = vld [vmem:[%s584 + $0xc] sm:$0xf]
  %v589 = vld [vmem:[%s584 + $0x10] sm:$0xf]
  %v590 = vld [vmem:[%s584 + $0x14] sm:$0xf]
  %v591 = vld [vmem:[%s584 + $0x18] sm:$0xf]
  %v592 = vld [vmem:[%s584 + $0x1c] sm:$0xf]
  %v593 = vld [vmem:[%s584 + $0x20] sm:$0xf]
  %v594 = vld [vmem:[%s584 + $0x24] sm:$0xf]
  %v595 = vld [vmem:[%s584 + $0x28] sm:$0xf]
  %v596 = vld [vmem:[%s584 + $0x2c] sm:$0xf]
  %v597 = vld [vmem:[%s584 + $0x30] sm:$0xf]
  %v598 = vld [vmem:[%s584 + $0x34] sm:$0xf]
  %v599 = vld [vmem:[%s584 + $0x38] sm:$0xf]
  %v600 = vld [vmem:[%s584 + $0x3c] sm:$0xf]
  %v601 = vld [vmem:[%s584 + $0x40] sm:$0xf]
  %v602 = vld [vmem:[%s584 + $0x44] sm:$0xf]
  %v603 = vld [vmem:[%s584 + $0x48] sm:$0xf]
  %v604 = vld [vmem:[%s584 + $0x4c] sm:$0xf]
  %v605 = vld [vmem:[%s584 + $0x50] sm:$0xf]
  %v606 = vld [vmem:[%s584 + $0x54] sm:$0xf]
  %v607 = vld [vmem:[%s584 + $0x58] sm:$0xf]
  %v608 = vld [vmem:[%s584 + $0x5c] sm:$0xf]
  %v609 = vld [vmem:[%s584 + $0x60] sm:$0xf]
  %v610 = vld [vmem:[%s584 + $0x64] sm:$0xf]
  %v611 = vld [vmem:[%s584 + $0x68] sm:$0xf]
  %v612 = vld [vmem:[%s584 + $0x6c] sm:$0xf]
  %v613 = vld [vmem:[%s584 + $0x70] sm:$0xf]
  %v614 = vld [vmem:[%s584 + $0x74] sm:$0xf]
  %v615 = vld [vmem:[%s584 + $0x78] sm:$0xf]
  %v616 = vld [vmem:[%s584 + $0x7c] sm:$0xf]
  %v649 = vunpack.c.l.b16 %v585
  %v650 = vunpack.c.l.b16 %v586
  %v651 = vunpack.c.l.b16 %v587
  %v652 = vunpack.c.l.b16 %v588
  %v653 = vunpack.c.l.b16 %v589
  %v654 = vunpack.c.l.b16 %v590
  %v655 = vunpack.c.l.b16 %v591
  %v656 = vunpack.c.l.b16 %v592
  %v657 = vunpack.c.l.b16 %v593
  %v658 = vunpack.c.l.b16 %v594
  %v659 = vunpack.c.l.b16 %v595
  %v660 = vunpack.c.l.b16 %v596
  %v661 = vunpack.c.l.b16 %v597
  %v662 = vunpack.c.l.b16 %v598
  %v663 = vunpack.c.l.b16 %v599
  %v664 = vunpack.c.l.b16 %v600
  %v665 = vunpack.c.l.b16 %v601
  %v666 = vunpack.c.l.b16 %v602
  %v667 = vunpack.c.l.b16 %v603
  %v668 = vunpack.c.l.b16 %v604
  %v669 = vunpack.c.l.b16 %v605
  %v670 = vunpack.c.l.b16 %v606
  %v671 = vunpack.c.l.b16 %v607
  %v672 = vunpack.c.l.b16 %v608
  %v673 = vunpack.c.l.b16 %v609
  %v674 = vunpack.c.l.b16 %v610
  %v675 = vunpack.c.l.b16 %v611
  %v676 = vunpack.c.l.b16 %v612
  %v677 = vunpack.c.l.b16 %v613
  %v678 = vunpack.c.l.b16 %v614
  %v679 = vunpack.c.l.b16 %v615
  %v680 = vunpack.c.l.b16 %v616
  %v681 = vpack.c.b16 %v650, %v649
  %v682 = vpack.c.b16 %v652, %v651
  %v683 = vpack.c.b16 %v654, %v653
  %v684 = vpack.c.b16 %v656, %v655
  %v685 = vpack.c.b16 %v658, %v657
  %v686 = vpack.c.b16 %v660, %v659
  %v687 = vpack.c.b16 %v662, %v661
  %v688 = vpack.c.b16 %v664, %v663
  %v689 = vpack.c.b16 %v666, %v665
  %v690 = vpack.c.b16 %v668, %v667
  %v691 = vpack.c.b16 %v670, %v669
  %v692 = vpack.c.b16 %v672, %v671
  %v693 = vpack.c.b16 %v674, %v673
  %v694 = vpack.c.b16 %v676, %v675
  %v695 = vpack.c.b16 %v678, %v677
  %v696 = vpack.c.b16 %v680, %v679
  %713 = vmatprep.subr.bf16.mxu0 0
  %714 = vmatpush1.bf16.msra.mxu0 %v681
  %715 = vmatprep.subr.bf16.mxu0 0
  %716 = vmatpush1.bf16.msra.mxu0 %v682
  %717 = vmatprep.subr.bf16.mxu0 0
  %718 = vmatpush1.bf16.msra.mxu0 %v683
  %719 = vmatprep.subr.bf16.mxu0 0
  %720 = vmatpush1.bf16.msra.mxu0 %v684
  %721 = vmatprep.subr.bf16.mxu0 0
  %722 = vmatpush1.bf16.msra.mxu0 %v685
  %723 = vmatprep.subr.bf16.mxu0 0
  %724 = vmatpush1.bf16.msra.mxu0 %v686
  %725 = vmatprep.subr.bf16.mxu0 0
  %726 = vmatpush1.bf16.msra.mxu0 %v687
  %727 = vmatprep.subr.bf16.mxu0 0
  %728 = vmatpush1.bf16.msra.mxu0 %v688
  %729 = vmatprep.subr.bf16.mxu0 0
  %730 = vmatpush1.bf16.msra.mxu0 %v689
  %731 = vmatprep.subr.bf16.mxu0 0
  %732 = vmatpush1.bf16.msra.mxu0 %v690
  %733 = vmatprep.subr.bf16.mxu0 0
  %734 = vmatpush1.bf16.msra.mxu0 %v691
  %735 = vmatprep.subr.bf16.mxu0 0
  %736 = vmatpush1.bf16.msra.mxu0 %v692
  %737 = vmatprep.subr.bf16.mxu0 0
  %738 = vmatpush1.bf16.msra.mxu0 %v693
  %739 = vmatprep.subr.bf16.mxu0 0
  %740 = vmatpush1.bf16.msra.mxu0 %v694
  %741 = vmatprep.subr.bf16.mxu0 0
  %742 = vmatpush1.bf16.msra.mxu0 %v695
  %743 = vmatprep.subr.bf16.mxu0 0
  %744 = vmatpush1.bf16.msra.mxu0 %v696
  %745 = vmatprep.mubr.bf16.mxu0 %v71
  %746 = vmatmul.mubr.bf16.gmra.mrb[0].mxu0 %v70
  %v747 = vpop.f32.mrb[0].mxu0
  %v748 = vadd.f32 0.0, %v747
  %v749 = vpop.f32.mrb[0].mxu0
  %v750 = vpop.f32.mrb[0].mxu0
  %v751 = vadd.f32 0.0, %v750
  %v752 = vpop.f32.mrb[0].mxu0
  %753 = vdwg.mxu0
  %v754 = vpack.c.bf16 %v751, %v748
  %s755 = scalar_lea.vmem %s2, 512
  %v756 = vld [vmem:[%s755] sm:$0xf]
  %v757 = vld [vmem:[%s755 + $0x4] sm:$0xf]
  %v758 = vld [vmem:[%s755 + $0x8] sm:$0xf]
  %v759 = vld [vmem:[%s755 + $0xc] sm:$0xf]
  %v760 = vld [vmem:[%s755 + $0x10] sm:$0xf]
  %v761 = vld [vmem:[%s755 + $0x14] sm:$0xf]
  %v762 = vld [vmem:[%s755 + $0x18] sm:$0xf]
  %v763 = vld [vmem:[%s755 + $0x1c] sm:$0xf]
  %v764 = vld [vmem:[%s755 + $0x20] sm:$0xf]
  %v765 = vld [vmem:[%s755 + $0x24] sm:$0xf]
  %v766 = vld [vmem:[%s755 + $0x28] sm:$0xf]
  %v767 = vld [vmem:[%s755 + $0x2c] sm:$0xf]
  %v768 = vld [vmem:[%s755 + $0x30] sm:$0xf]
  %v769 = vld [vmem:[%s755 + $0x34] sm:$0xf]
  %v770 = vld [vmem:[%s755 + $0x38] sm:$0xf]
  %v771 = vld [vmem:[%s755 + $0x3c] sm:$0xf]
  %v772 = vld [vmem:[%s755 + $0x40] sm:$0xf]
  %v773 = vld [vmem:[%s755 + $0x44] sm:$0xf]
  %v774 = vld [vmem:[%s755 + $0x48] sm:$0xf]
  %v775 = vld [vmem:[%s755 + $0x4c] sm:$0xf]
  %v776 = vld [vmem:[%s755 + $0x50] sm:$0xf]
  %v777 = vld [vmem:[%s755 + $0x54] sm:$0xf]
  %v778 = vld [vmem:[%s755 + $0x58] sm:$0xf]
  %v779 = vld [vmem:[%s755 + $0x5c] sm:$0xf]
  %v780 = vld [vmem:[%s755 + $0x60] sm:$0xf]
  %v781 = vld [vmem:[%s755 + $0x64] sm:$0xf]
  %v782 = vld [vmem:[%s755 + $0x68] sm:$0xf]
  %v783 = vld [vmem:[%s755 + $0x6c] sm:$0xf]
  %v784 = vld [vmem:[%s755 + $0x70] sm:$0xf]
  %v785 = vld [vmem:[%s755 + $0x74] sm:$0xf]
  %v786 = vld [vmem:[%s755 + $0x78] sm:$0xf]
  %v787 = vld [vmem:[%s755 + $0x7c] sm:$0xf]
  %v820 = vunpack.c.l.b16 %v756
  %v821 = vunpack.c.l.b16 %v757
  %v822 = vunpack.c.l.b16 %v758
  %v823 = vunpack.c.l.b16 %v759
  %v824 = vunpack.c.l.b16 %v760
  %v825 = vunpack.c.l.b16 %v761
  %v826 = vunpack.c.l.b16 %v762
  %v827 = vunpack.c.l.b16 %v763
  %v828 = vunpack.c.l.b16 %v764
  %v829 = vunpack.c.l.b16 %v765
  %v830 = vunpack.c.l.b16 %v766
  %v831 = vunpack.c.l.b16 %v767
  %v832 = vunpack.c.l.b16 %v768
  %v833 = vunpack.c.l.b16 %v769
  %v834 = vunpack.c.l.b16 %v770
  %v835 = vunpack.c.l.b16 %v771
  %v836 = vunpack.c.l.b16 %v772
  %v837 = vunpack.c.l.b16 %v773
  %v838 = vunpack.c.l.b16 %v774
  %v839 = vunpack.c.l.b16 %v775
  %v840 = vunpack.c.l.b16 %v776
  %v841 = vunpack.c.l.b16 %v777
  %v842 = vunpack.c.l.b16 %v778
  %v843 = vunpack.c.l.b16 %v779
  %v844 = vunpack.c.l.b16 %v780
  %v845 = vunpack.c.l.b16 %v781
  %v846 = vunpack.c.l.b16 %v782
  %v847 = vunpack.c.l.b16 %v783
  %v848 = vunpack.c.l.b16 %v784
  %v849 = vunpack.c.l.b16 %v785
  %v850 = vunpack.c.l.b16 %v786
  %v851 = vunpack.c.l.b16 %v787
  %v852 = vpack.c.b16 %v821, %v820
  %v853 = vpack.c.b16 %v823, %v822
  %v854 = vpack.c.b16 %v825, %v824
  %v855 = vpack.c.b16 %v827, %v826
  %v856 = vpack.c.b16 %v829, %v828
  %v857 = vpack.c.b16 %v831, %v830
  %v858 = vpack.c.b16 %v833, %v832
  %v859 = vpack.c.b16 %v835, %v834
  %v860 = vpack.c.b16 %v837, %v836
  %v861 = vpack.c.b16 %v839, %v838
  %v862 = vpack.c.b16 %v841, %v840
  %v863 = vpack.c.b16 %v843, %v842
  %v864 = vpack.c.b16 %v845, %v844
  %v865 = vpack.c.b16 %v847, %v846
  %v866 = vpack.c.b16 %v849, %v848
  %v867 = vpack.c.b16 %v851, %v850
  %884 = vmatprep.subr.bf16.mxu0 0
  %885 = vmatpush1.bf16.msra.mxu0 %v852
  %886 = vmatprep.subr.bf16.mxu0 0
  %887 = vmatpush1.bf16.msra.mxu0 %v853
  %888 = vmatprep.subr.bf16.mxu0 0
  %889 = vmatpush1.bf16.msra.mxu0 %v854
  %890 = vmatprep.subr.bf16.mxu0 0
  %891 = vmatpush1.bf16.msra.mxu0 %v855
  %892 = vmatprep.subr.bf16.mxu0 0
  %893 = vmatpush1.bf16.msra.mxu0 %v856
  %894 = vmatprep.subr.bf16.mxu0 0
  %895 = vmatpush1.bf16.msra.mxu0 %v857
  %896 = vmatprep.subr.bf16.mxu0 0
  %897 = vmatpush1.bf16.msra.mxu0 %v858
  %898 = vmatprep.subr.bf16.mxu0 0
  %899 = vmatpush1.bf16.msra.mxu0 %v859
  %900 = vmatprep.subr.bf16.mxu0 0
  %901 = vmatpush1.bf16.msra.mxu0 %v860
  %902 = vmatprep.subr.bf16.mxu0 0
  %903 = vmatpush1.bf16.msra.mxu0 %v861
  %904 = vmatprep.subr.bf16.mxu0 0
  %905 = vmatpush1.bf16.msra.mxu0 %v862
  %906 = vmatprep.subr.bf16.mxu0 0
  %907 = vmatpush1.bf16.msra.mxu0 %v863
  %908 = vmatprep.subr.bf16.mxu0 0
  %909 = vmatpush1.bf16.msra.mxu0 %v864
  %910 = vmatprep.subr.bf16.mxu0 0
  %911 = vmatpush1.bf16.msra.mxu0 %v865
  %912 = vmatprep.subr.bf16.mxu0 0
  %913 = vmatpush1.bf16.msra.mxu0 %v866
  %914 = vmatprep.subr.bf16.mxu0 0
  %915 = vmatpush1.bf16.msra.mxu0 %v867
  %916 = vmatprep.mubr.bf16.mxu0 %v71
  %917 = vmatmul.mubr.bf16.gmra.mrb[0].mxu0 %v70
  %v918 = vpop.f32.mrb[0].mxu0
  %v919 = vadd.f32 0.0, %v918
  %v920 = vpop.f32.mrb[0].mxu0
  %v921 = vpop.f32.mrb[0].mxu0
  %v922 = vadd.f32 0.0, %v921
  %v923 = vpop.f32.mrb[0].mxu0
  %924 = vdwg.mxu0
  %v925 = vpack.c.bf16 %v922, %v919
  %s926 = scalar_lea.vmem %s2, 640
  %v927 = vld [vmem:[%s926] sm:$0xf]
  %v928 = vld [vmem:[%s926 + $0x4] sm:$0xf]
  %v929 = vld [vmem:[%s926 + $0x8] sm:$0xf]
  %v930 = vld [vmem:[%s926 + $0xc] sm:$0xf]
  %v931 = vld [vmem:[%s926 + $0x10] sm:$0xf]
  %v932 = vld [vmem:[%s926 + $0x14] sm:$0xf]
  %v933 = vld [vmem:[%s926 + $0x18] sm:$0xf]
  %v934 = vld [vmem:[%s926 + $0x1c] sm:$0xf]
  %v935 = vld [vmem:[%s926 + $0x20] sm:$0xf]
  %v936 = vld [vmem:[%s926 + $0x24] sm:$0xf]
  %v937 = vld [vmem:[%s926 + $0x28] sm:$0xf]
  %v938 = vld [vmem:[%s926 + $0x2c] sm:$0xf]
  %v939 = vld [vmem:[%s926 + $0x30] sm:$0xf]
  %v940 = vld [vmem:[%s926 + $0x34] sm:$0xf]
  %v941 = vld [vmem:[%s926 + $0x38] sm:$0xf]
  %v942 = vld [vmem:[%s926 + $0x3c] sm:$0xf]
  %v943 = vld [vmem:[%s926 + $0x40] sm:$0xf]
  %v944 = vld [vmem:[%s926 + $0x44] sm:$0xf]
  %v945 = vld [vmem:[%s926 + $0x48] sm:$0xf]
  %v946 = vld [vmem:[%s926 + $0x4c] sm:$0xf]
  %v947 = vld [vmem:[%s926 + $0x50] sm:$0xf]
  %v948 = vld [vmem:[%s926 + $0x54] sm:$0xf]
  %v949 = vld [vmem:[%s926 + $0x58] sm:$0xf]
  %v950 = vld [vmem:[%s926 + $0x5c] sm:$0xf]
  %v951 = vld [vmem:[%s926 + $0x60] sm:$0xf]
  %v952 = vld [vmem:[%s926 + $0x64] sm:$0xf]
  %v953 = vld [vmem:[%s926 + $0x68] sm:$0xf]
  %v954 = vld [vmem:[%s926 + $0x6c] sm:$0xf]
  %v955 = vld [vmem:[%s926 + $0x70] sm:$0xf]
  %v956 = vld [vmem:[%s926 + $0x74] sm:$0xf]
  %v957 = vld [vmem:[%s926 + $0x78] sm:$0xf]
  %v958 = vld [vmem:[%s926 + $0x7c] sm:$0xf]
  %v991 = vunpack.c.l.b16 %v927
  %v992 = vunpack.c.l.b16 %v928
  %v993 = vunpack.c.l.b16 %v929
  %v994 = vunpack.c.l.b16 %v930
  %v995 = vunpack.c.l.b16 %v931
  %v996 = vunpack.c.l.b16 %v932
  %v997 = vunpack.c.l.b16 %v933
  %v998 = vunpack.c.l.b16 %v934
  %v999 = vunpack.c.l.b16 %v935
  %v1000 = vunpack.c.l.b16 %v936
  %v1001 = vunpack.c.l.b16 %v937
  %v1002 = vunpack.c.l.b16 %v938
  %v1003 = vunpack.c.l.b16 %v939
  %v1004 = vunpack.c.l.b16 %v940
  %v1005 = vunpack.c.l.b16 %v941
  %v1006 = vunpack.c.l.b16 %v942
  %v1007 = vunpack.c.l.b16 %v943
  %v1008 = vunpack.c.l.b16 %v944
  %v1009 = vunpack.c.l.b16 %v945
  %v1010 = vunpack.c.l.b16 %v946
  %v1011 = vunpack.c.l.b16 %v947
  %v1012 = vunpack.c.l.b16 %v948
  %v1013 = vunpack.c.l.b16 %v949
  %v1014 = vunpack.c.l.b16 %v950
  %v1015 = vunpack.c.l.b16 %v951
  %v1016 = vunpack.c.l.b16 %v952
  %v1017 = vunpack.c.l.b16 %v953
  %v1018 = vunpack.c.l.b16 %v954
  %v1019 = vunpack.c.l.b16 %v955
  %v1020 = vunpack.c.l.b16 %v956
  %v1021 = vunpack.c.l.b16 %v957
  %v1022 = vunpack.c.l.b16 %v958
  %v1023 = vpack.c.b16 %v992, %v991
  %v1024 = vpack.c.b16 %v994, %v993
  %v1025 = vpack.c.b16 %v996, %v995
  %v1026 = vpack.c.b16 %v998, %v997
  %v1027 = vpack.c.b16 %v1000, %v999
  %v1028 = vpack.c.b16 %v1002, %v1001
  %v1029 = vpack.c.b16 %v1004, %v1003
  %v1030 = vpack.c.b16 %v1006, %v1005
  %v1031 = vpack.c.b16 %v1008, %v1007
  %v1032 = vpack.c.b16 %v1010, %v1009
  %v1033 = vpack.c.b16 %v1012, %v1011
  %v1034 = vpack.c.b16 %v1014, %v1013
  %v1035 = vpack.c.b16 %v1016, %v1015
  %v1036 = vpack.c.b16 %v1018, %v1017
  %v1037 = vpack.c.b16 %v1020, %v1019
  %v1038 = vpack.c.b16 %v1022, %v1021
  %1055 = vmatprep.subr.bf16.mxu0 0
  %1056 = vmatpush1.bf16.msra.mxu0 %v1023
  %1057 = vmatprep.subr.bf16.mxu0 0
  %1058 = vmatpush1.bf16.msra.mxu0 %v1024
  %1059 = vmatprep.subr.bf16.mxu0 0
  %1060 = vmatpush1.bf16.msra.mxu0 %v1025
  %1061 = vmatprep.subr.bf16.mxu0 0
  %1062 = vmatpush1.bf16.msra.mxu0 %v1026
  %1063 = vmatprep.subr.bf16.mxu0 0
  %1064 = vmatpush1.bf16.msra.mxu0 %v1027
  %1065 = vmatprep.subr.bf16.mxu0 0
  %1066 = vmatpush1.bf16.msra.mxu0 %v1028
  %1067 = vmatprep.subr.bf16.mxu0 0
  %1068 = vmatpush1.bf16.msra.mxu0 %v1029
  %1069 = vmatprep.subr.bf16.mxu0 0
  %1070 = vmatpush1.bf16.msra.mxu0 %v1030
  %1071 = vmatprep.subr.bf16.mxu0 0
  %1072 = vmatpush1.bf16.msra.mxu0 %v1031
  %1073 = vmatprep.subr.bf16.mxu0 0
  %1074 = vmatpush1.bf16.msra.mxu0 %v1032
  %1075 = vmatprep.subr.bf16.mxu0 0
  %1076 = vmatpush1.bf16.msra.mxu0 %v1033
  %1077 = vmatprep.subr.bf16.mxu0 0
  %1078 = vmatpush1.bf16.msra.mxu0 %v1034
  %1079 = vmatprep.subr.bf16.mxu0 0
  %1080 = vmatpush1.bf16.msra.mxu0 %v1035
  %1081 = vmatprep.subr.bf16.mxu0 0
  %1082 = vmatpush1.bf16.msra.mxu0 %v1036
  %1083 = vmatprep.subr.bf16.mxu0 0
  %1084 = vmatpush1.bf16.msra.mxu0 %v1037
  %1085 = vmatprep.subr.bf16.mxu0 0
  %1086 = vmatpush1.bf16.msra.mxu0 %v1038
  %1087 = vmatprep.mubr.bf16.mxu0 %v71
  %1088 = vmatmul.mubr.bf16.gmra.mrb[0].mxu0 %v70
  %v1089 = vpop.f32.mrb[0].mxu0
  %v1090 = vadd.f32 0.0, %v1089
  %v1091 = vpop.f32.mrb[0].mxu0
  %v1092 = vpop.f32.mrb[0].mxu0
  %v1093 = vadd.f32 0.0, %v1092
  %v1094 = vpop.f32.mrb[0].mxu0
  %1095 = vdwg.mxu0
  %v1096 = vpack.c.bf16 %v1093, %v1090
  %s1097 = scalar_lea.vmem %s2, 768
  %v1098 = vld [vmem:[%s1097] sm:$0xf]
  %v1099 = vld [vmem:[%s1097 + $0x4] sm:$0xf]
  %v1100 = vld [vmem:[%s1097 + $0x8] sm:$0xf]
  %v1101 = vld [vmem:[%s1097 + $0xc] sm:$0xf]
  %v1102 = vld [vmem:[%s1097 + $0x10] sm:$0xf]
  %v1103 = vld [vmem:[%s1097 + $0x14] sm:$0xf]
  %v1104 = vld [vmem:[%s1097 + $0x18] sm:$0xf]
  %v1105 = vld [vmem:[%s1097 + $0x1c] sm:$0xf]
  %v1106 = vld [vmem:[%s1097 + $0x20] sm:$0xf]
  %v1107 = vld [vmem:[%s1097 + $0x24] sm:$0xf]
  %v1108 = vld [vmem:[%s1097 + $0x28] sm:$0xf]
  %v1109 = vld [vmem:[%s1097 + $0x2c] sm:$0xf]
  %v1110 = vld [vmem:[%s1097 + $0x30] sm:$0xf]
  %v1111 = vld [vmem:[%s1097 + $0x34] sm:$0xf]
  %v1112 = vld [vmem:[%s1097 + $0x38] sm:$0xf]
  %v1113 = vld [vmem:[%s1097 + $0x3c] sm:$0xf]
  %v1114 = vld [vmem:[%s1097 + $0x40] sm:$0xf]
  %v1115 = vld [vmem:[%s1097 + $0x44] sm:$0xf]
  %v1116 = vld [vmem:[%s1097 + $0x48] sm:$0xf]
  %v1117 = vld [vmem:[%s1097 + $0x4c] sm:$0xf]
  %v1118 = vld [vmem:[%s1097 + $0x50] sm:$0xf]
  %v1119 = vld [vmem:[%s1097 + $0x54] sm:$0xf]
  %v1120 = vld [vmem:[%s1097 + $0x58] sm:$0xf]
  %v1121 = vld [vmem:[%s1097 + $0x5c] sm:$0xf]
  %v1122 = vld [vmem:[%s1097 + $0x60] sm:$0xf]
  %v1123 = vld [vmem:[%s1097 + $0x64] sm:$0xf]
  %v1124 = vld [vmem:[%s1097 + $0x68] sm:$0xf]
  %v1125 = vld [vmem:[%s1097 + $0x6c] sm:$0xf]
  %v1126 = vld [vmem:[%s1097 + $0x70] sm:$0xf]
  %v1127 = vld [vmem:[%s1097 + $0x74] sm:$0xf]
  %v1128 = vld [vmem:[%s1097 + $0x78] sm:$0xf]
  %v1129 = vld [vmem:[%s1097 + $0x7c] sm:$0xf]
  %v1162 = vunpack.c.l.b16 %v1098
  %v1163 = vunpack.c.l.b16 %v1099
  %v1164 = vunpack.c.l.b16 %v1100
  %v1165 = vunpack.c.l.b16 %v1101
  %v1166 = vunpack.c.l.b16 %v1102
  %v1167 = vunpack.c.l.b16 %v1103
  %v1168 = vunpack.c.l.b16 %v1104
  %v1169 = vunpack.c.l.b16 %v1105
  %v1170 = vunpack.c.l.b16 %v1106
  %v1171 = vunpack.c.l.b16 %v1107
  %v1172 = vunpack.c.l.b16 %v1108
  %v1173 = vunpack.c.l.b16 %v1109
  %v1174 = vunpack.c.l.b16 %v1110
  %v1175 = vunpack.c.l.b16 %v1111
  %v1176 = vunpack.c.l.b16 %v1112
  %v1177 = vunpack.c.l.b16 %v1113
  %v1178 = vunpack.c.l.b16 %v1114
  %v1179 = vunpack.c.l.b16 %v1115
  %v1180 = vunpack.c.l.b16 %v1116
  %v1181 = vunpack.c.l.b16 %v1117
  %v1182 = vunpack.c.l.b16 %v1118
  %v1183 = vunpack.c.l.b16 %v1119
  %v1184 = vunpack.c.l.b16 %v1120
  %v1185 = vunpack.c.l.b16 %v1121
  %v1186 = vunpack.c.l.b16 %v1122
  %v1187 = vunpack.c.l.b16 %v1123
  %v1188 = vunpack.c.l.b16 %v1124
  %v1189 = vunpack.c.l.b16 %v1125
  %v1190 = vunpack.c.l.b16 %v1126
  %v1191 = vunpack.c.l.b16 %v1127
  %v1192 = vunpack.c.l.b16 %v1128
  %v1193 = vunpack.c.l.b16 %v1129
  %v1194 = vpack.c.b16 %v1163, %v1162
  %v1195 = vpack.c.b16 %v1165, %v1164
  %v1196 = vpack.c.b16 %v1167, %v1166
  %v1197 = vpack.c.b16 %v1169, %v1168
  %v1198 = vpack.c.b16 %v1171, %v1170
  %v1199 = vpack.c.b16 %v1173, %v1172
  %v1200 = vpack.c.b16 %v1175, %v1174
  %v1201 = vpack.c.b16 %v1177, %v1176
  %v1202 = vpack.c.b16 %v1179, %v1178
  %v1203 = vpack.c.b16 %v1181, %v1180
  %v1204 = vpack.c.b16 %v1183, %v1182
  %v1205 = vpack.c.b16 %v1185, %v1184
  %v1206 = vpack.c.b16 %v1187, %v1186
  %v1207 = vpack.c.b16 %v1189, %v1188
  %v1208 = vpack.c.b16 %v1191, %v1190
  %v1209 = vpack.c.b16 %v1193, %v1192
  %1226 = vmatprep.subr.bf16.mxu0 0
  %1227 = vmatpush1.bf16.msra.mxu0 %v1194
  %1228 = vmatprep.subr.bf16.mxu0 0
  %1229 = vmatpush1.bf16.msra.mxu0 %v1195
  %1230 = vmatprep.subr.bf16.mxu0 0
  %1231 = vmatpush1.bf16.msra.mxu0 %v1196
  %1232 = vmatprep.subr.bf16.mxu0 0
  %1233 = vmatpush1.bf16.msra.mxu0 %v1197
  %1234 = vmatprep.subr.bf16.mxu0 0
  %1235 = vmatpush1.bf16.msra.mxu0 %v1198
  %1236 = vmatprep.subr.bf16.mxu0 0
  %1237 = vmatpush1.bf16.msra.mxu0 %v1199
  %1238 = vmatprep.subr.bf16.mxu0 0
  %1239 = vmatpush1.bf16.msra.mxu0 %v1200
  %1240 = vmatprep.subr.bf16.mxu0 0
  %1241 = vmatpush1.bf16.msra.mxu0 %v1201
  %1242 = vmatprep.subr.bf16.mxu0 0
  %1243 = vmatpush1.bf16.msra.mxu0 %v1202
  %1244 = vmatprep.subr.bf16.mxu0 0
  %1245 = vmatpush1.bf16.msra.mxu0 %v1203
  %1246 = vmatprep.subr.bf16.mxu0 0
  %1247 = vmatpush1.bf16.msra.mxu0 %v1204
  %1248 = vmatprep.subr.bf16.mxu0 0
  %1249 = vmatpush1.bf16.msra.mxu0 %v1205
  %1250 = vmatprep.subr.bf16.mxu0 0
  %1251 = vmatpush1.bf16.msra.mxu0 %v1206
  %1252 = vmatprep.subr.bf16.mxu0 0
  %1253 = vmatpush1.bf16.msra.mxu0 %v1207
  %1254 = vmatprep.subr.bf16.mxu0 0
  %1255 = vmatpush1.bf16.msra.mxu0 %v1208
  %1256 = vmatprep.subr.bf16.mxu0 0
  %1257 = vmatpush1.bf16.msra.mxu0 %v1209
  %1258 = vmatprep.mubr.bf16.mxu0 %v71
  %1259 = vmatmul.mubr.bf16.gmra.mrb[0].mxu0 %v70
  %v1260 = vpop.f32.mrb[0].mxu0
  %v1261 = vadd.f32 0.0, %v1260
  %v1262 = vpop.f32.mrb[0].mxu0
  %v1263 = vpop.f32.mrb[0].mxu0
  %v1264 = vadd.f32 0.0, %v1263
  %v1265 = vpop.f32.mrb[0].mxu0
  %1266 = vdwg.mxu0
  %v1267 = vpack.c.bf16 %v1264, %v1261
  %s1268 = scalar_lea.vmem %s2, 896
  %v1269 = vld [vmem:[%s1268] sm:$0xf]
  %v1270 = vld [vmem:[%s1268 + $0x4] sm:$0xf]
  %v1271 = vld [vmem:[%s1268 + $0x8] sm:$0xf]
  %v1272 = vld [vmem:[%s1268 + $0xc] sm:$0xf]
  %v1273 = vld [vmem:[%s1268 + $0x10] sm:$0xf]
  %v1274 = vld [vmem:[%s1268 + $0x14] sm:$0xf]
  %v1275 = vld [vmem:[%s1268 + $0x18] sm:$0xf]
  %v1276 = vld [vmem:[%s1268 + $0x1c] sm:$0xf]
  %v1277 = vld [vmem:[%s1268 + $0x20] sm:$0xf]
  %v1278 = vld [vmem:[%s1268 + $0x24] sm:$0xf]
  %v1279 = vld [vmem:[%s1268 + $0x28] sm:$0xf]
  %v1280 = vld [vmem:[%s1268 + $0x2c] sm:$0xf]
  %v1281 = vld [vmem:[%s1268 + $0x30] sm:$0xf]
  %v1282 = vld [vmem:[%s1268 + $0x34] sm:$0xf]
  %v1283 = vld [vmem:[%s1268 + $0x38] sm:$0xf]
  %v1284 = vld [vmem:[%s1268 + $0x3c] sm:$0xf]
  %v1285 = vld [vmem:[%s1268 + $0x40] sm:$0xf]
  %v1286 = vld [vmem:[%s1268 + $0x44] sm:$0xf]
  %v1287 = vld [vmem:[%s1268 + $0x48] sm:$0xf]
  %v1288 = vld [vmem:[%s1268 + $0x4c] sm:$0xf]
  %v1289 = vld [vmem:[%s1268 + $0x50] sm:$0xf]
  %v1290 = vld [vmem:[%s1268 + $0x54] sm:$0xf]
  %v1291 = vld [vmem:[%s1268 + $0x58] sm:$0xf]
  %v1292 = vld [vmem:[%s1268 + $0x5c] sm:$0xf]
  %v1293 = vld [vmem:[%s1268 + $0x60] sm:$0xf]
  %v1294 = vld [vmem:[%s1268 + $0x64] sm:$0xf]
  %v1295 = vld [vmem:[%s1268 + $0x68] sm:$0xf]
  %v1296 = vld [vmem:[%s1268 + $0x6c] sm:$0xf]
  %v1297 = vld [vmem:[%s1268 + $0x70] sm:$0xf]
  %v1298 = vld [vmem:[%s1268 + $0x74] sm:$0xf]
  %v1299 = vld [vmem:[%s1268 + $0x78] sm:$0xf]
  %v1300 = vld [vmem:[%s1268 + $0x7c] sm:$0xf]
  %v1333 = vunpack.c.l.b16 %v1269
  %v1334 = vunpack.c.l.b16 %v1270
  %v1335 = vunpack.c.l.b16 %v1271
  %v1336 = vunpack.c.l.b16 %v1272
  %v1337 = vunpack.c.l.b16 %v1273
  %v1338 = vunpack.c.l.b16 %v1274
  %v1339 = vunpack.c.l.b16 %v1275
  %v1340 = vunpack.c.l.b16 %v1276
  %v1341 = vunpack.c.l.b16 %v1277
  %v1342 = vunpack.c.l.b16 %v1278
  %v1343 = vunpack.c.l.b16 %v1279
  %v1344 = vunpack.c.l.b16 %v1280
  %v1345 = vunpack.c.l.b16 %v1281
  %v1346 = vunpack.c.l.b16 %v1282
  %v1347 = vunpack.c.l.b16 %v1283
  %v1348 = vunpack.c.l.b16 %v1284
  %v1349 = vunpack.c.l.b16 %v1285
  %v1350 = vunpack.c.l.b16 %v1286
  %v1351 = vunpack.c.l.b16 %v1287
  %v1352 = vunpack.c.l.b16 %v1288
  %v1353 = vunpack.c.l.b16 %v1289
  %v1354 = vunpack.c.l.b16 %v1290
  %v1355 = vunpack.c.l.b16 %v1291
  %v1356 = vunpack.c.l.b16 %v1292
  %v1357 = vunpack.c.l.b16 %v1293
  %v1358 = vunpack.c.l.b16 %v1294
  %v1359 = vunpack.c.l.b16 %v1295
  %v1360 = vunpack.c.l.b16 %v1296
  %v1361 = vunpack.c.l.b16 %v1297
  %v1362 = vunpack.c.l.b16 %v1298
  %v1363 = vunpack.c.l.b16 %v1299
  %v1364 = vunpack.c.l.b16 %v1300
  %v1365 = vpack.c.b16 %v1334, %v1333
  %v1366 = vpack.c.b16 %v1336, %v1335
  %v1367 = vpack.c.b16 %v1338, %v1337
  %v1368 = vpack.c.b16 %v1340, %v1339
  %v1369 = vpack.c.b16 %v1342, %v1341
  %v1370 = vpack.c.b16 %v1344, %v1343
  %v1371 = vpack.c.b16 %v1346, %v1345
  %v1372 = vpack.c.b16 %v1348, %v1347
  %v1373 = vpack.c.b16 %v1350, %v1349
  %v1374 = vpack.c.b16 %v1352, %v1351
  %v1375 = vpack.c.b16 %v1354, %v1353
  %v1376 = vpack.c.b16 %v1356, %v1355
  %v1377 = vpack.c.b16 %v1358, %v1357
  %v1378 = vpack.c.b16 %v1360, %v1359
  %v1379 = vpack.c.b16 %v1362, %v1361
  %v1380 = vpack.c.b16 %v1364, %v1363
  %1397 = vmatprep.subr.bf16.mxu0 0
  %1398 = vmatpush1.bf16.msra.mxu0 %v1365
  %1399 = vmatprep.subr.bf16.mxu0 0
  %1400 = vmatpush1.bf16.msra.mxu0 %v1366
  %1401 = vmatprep.subr.bf16.mxu0 0
  %1402 = vmatpush1.bf16.msra.mxu0 %v1367
  %1403 = vmatprep.subr.bf16.mxu0 0
  %1404 = vmatpush1.bf16.msra.mxu0 %v1368
  %1405 = vmatprep.subr.bf16.mxu0 0
  %1406 = vmatpush1.bf16.msra.mxu0 %v1369
  %1407 = vmatprep.subr.bf16.mxu0 0
  %1408 = vmatpush1.bf16.msra.mxu0 %v1370
  %1409 = vmatprep.subr.bf16.mxu0 0
  %1410 = vmatpush1.bf16.msra.mxu0 %v1371
  %1411 = vmatprep.subr.bf16.mxu0 0
  %1412 = vmatpush1.bf16.msra.mxu0 %v1372
  %1413 = vmatprep.subr.bf16.mxu0 0
  %1414 = vmatpush1.bf16.msra.mxu0 %v1373
  %1415 = vmatprep.subr.bf16.mxu0 0
  %1416 = vmatpush1.bf16.msra.mxu0 %v1374
  %1417 = vmatprep.subr.bf16.mxu0 0
  %1418 = vmatpush1.bf16.msra.mxu0 %v1375
  %1419 = vmatprep.subr.bf16.mxu0 0
  %1420 = vmatpush1.bf16.msra.mxu0 %v1376
  %1421 = vmatprep.subr.bf16.mxu0 0
  %1422 = vmatpush1.bf16.msra.mxu0 %v1377
  %1423 = vmatprep.subr.bf16.mxu0 0
  %1424 = vmatpush1.bf16.msra.mxu0 %v1378
  %1425 = vmatprep.subr.bf16.mxu0 0
  %1426 = vmatpush1.bf16.msra.mxu0 %v1379
  %1427 = vmatprep.subr.bf16.mxu0 0
  %1428 = vmatpush1.bf16.msra.mxu0 %v1380
  %1429 = vmatprep.mubr.bf16.mxu0 %v71
  %1430 = vmatmul.mubr.bf16.gmra.mrb[0].mxu0 %v70
  %v1431 = vpop.f32.mrb[0].mxu0
  %v1432 = vadd.f32 0.0, %v1431
  %v1433 = vpop.f32.mrb[0].mxu0
  %v1434 = vpop.f32.mrb[0].mxu0
  %v1435 = vadd.f32 0.0, %v1434
  %v1436 = vpop.f32.mrb[0].mxu0
  %1437 = vdwg.mxu0
  %v1438 = vpack.c.bf16 %v1435, %v1432
  %s1439 = scalar_lea.vmem %s2, 1024
  %v1440 = vld [vmem:[%s1439] sm:$0xf]
  %v1441 = vld [vmem:[%s1439 + $0x4] sm:$0xf]
  %v1442 = vld [vmem:[%s1439 + $0x8] sm:$0xf]
  %v1443 = vld [vmem:[%s1439 + $0xc] sm:$0xf]
  %v1444 = vld [vmem:[%s1439 + $0x10] sm:$0xf]
  %v1445 = vld [vmem:[%s1439 + $0x14] sm:$0xf]
  %v1446 = vld [vmem:[%s1439 + $0x18] sm:$0xf]
  %v1447 = vld [vmem:[%s1439 + $0x1c] sm:$0xf]
  %v1448 = vld [vmem:[%s1439 + $0x20] sm:$0xf]
  %v1449 = vld [vmem:[%s1439 + $0x24] sm:$0xf]
  %v1450 = vld [vmem:[%s1439 + $0x28] sm:$0xf]
  %v1451 = vld [vmem:[%s1439 + $0x2c] sm:$0xf]
  %v1452 = vld [vmem:[%s1439 + $0x30] sm:$0xf]
  %v1453 = vld [vmem:[%s1439 + $0x34] sm:$0xf]
  %v1454 = vld [vmem:[%s1439 + $0x38] sm:$0xf]
  %v1455 = vld [vmem:[%s1439 + $0x3c] sm:$0xf]
  %v1456 = vld [vmem:[%s1439 + $0x40] sm:$0xf]
  %v1457 = vld [vmem:[%s1439 + $0x44] sm:$0xf]
  %v1458 = vld [vmem:[%s1439 + $0x48] sm:$0xf]
  %v1459 = vld [vmem:[%s1439 + $0x4c] sm:$0xf]
  %v1460 = vld [vmem:[%s1439 + $0x50] sm:$0xf]
  %v1461 = vld [vmem:[%s1439 + $0x54] sm:$0xf]
  %v1462 = vld [vmem:[%s1439 + $0x58] sm:$0xf]
  %v1463 = vld [vmem:[%s1439 + $0x5c] sm:$0xf]
  %v1464 = vld [vmem:[%s1439 + $0x60] sm:$0xf]
  %v1465 = vld [vmem:[%s1439 + $0x64] sm:$0xf]
  %v1466 = vld [vmem:[%s1439 + $0x68] sm:$0xf]
  %v1467 = vld [vmem:[%s1439 + $0x6c] sm:$0xf]
  %v1468 = vld [vmem:[%s1439 + $0x70] sm:$0xf]
  %v1469 = vld [vmem:[%s1439 + $0x74] sm:$0xf]
  %v1470 = vld [vmem:[%s1439 + $0x78] sm:$0xf]
  %v1471 = vld [vmem:[%s1439 + $0x7c] sm:$0xf]
  %v1504 = vunpack.c.l.b16 %v1440
  %v1505 = vunpack.c.l.b16 %v1441
  %v1506 = vunpack.c.l.b16 %v1442
  %v1507 = vunpack.c.l.b16 %v1443
  %v1508 = vunpack.c.l.b16 %v1444
  %v1509 = vunpack.c.l.b16 %v1445
  %v1510 = vunpack.c.l.b16 %v1446
  %v1511 = vunpack.c.l.b16 %v1447
  %v1512 = vunpack.c.l.b16 %v1448
  %v1513 = vunpack.c.l.b16 %v1449
  %v1514 = vunpack.c.l.b16 %v1450
  %v1515 = vunpack.c.l.b16 %v1451
  %v1516 = vunpack.c.l.b16 %v1452
  %v1517 = vunpack.c.l.b16 %v1453
  %v1518 = vunpack.c.l.b16 %v1454
  %v1519 = vunpack.c.l.b16 %v1455
  %v1520 = vunpack.c.l.b16 %v1456
  %v1521 = vunpack.c.l.b16 %v1457
  %v1522 = vunpack.c.l.b16 %v1458
  %v1523 = vunpack.c.l.b16 %v1459
  %v1524 = vunpack.c.l.b16 %v1460
  %v1525 = vunpack.c.l.b16 %v1461
  %v1526 = vunpack.c.l.b16 %v1462
  %v1527 = vunpack.c.l.b16 %v1463
  %v1528 = vunpack.c.l.b16 %v1464
  %v1529 = vunpack.c.l.b16 %v1465
  %v1530 = vunpack.c.l.b16 %v1466
  %v1531 = vunpack.c.l.b16 %v1467
  %v1532 = vunpack.c.l.b16 %v1468
  %v1533 = vunpack.c.l.b16 %v1469
  %v1534 = vunpack.c.l.b16 %v1470
  %v1535 = vunpack.c.l.b16 %v1471
  %v1536 = vpack.c.b16 %v1505, %v1504
  %v1537 = vpack.c.b16 %v1507, %v1506
  %v1538 = vpack.c.b16 %v1509, %v1508
  %v1539 = vpack.c.b16 %v1511, %v1510
  %v1540 = vpack.c.b16 %v1513, %v1512
  %v1541 = vpack.c.b16 %v1515, %v1514
  %v1542 = vpack.c.b16 %v1517, %v1516
  %v1543 = vpack.c.b16 %v1519, %v1518
  %v1544 = vpack.c.b16 %v1521, %v1520
  %v1545 = vpack.c.b16 %v1523, %v1522
  %v1546 = vpack.c.b16 %v1525, %v1524
  %v1547 = vpack.c.b16 %v1527, %v1526
  %v1548 = vpack.c.b16 %v1529, %v1528
  %v1549 = vpack.c.b16 %v1531, %v1530
  %v1550 = vpack.c.b16 %v1533, %v1532
  %v1551 = vpack.c.b16 %v1535, %v1534
  %1568 = vmatprep.subr.bf16.mxu0 0
  %1569 = vmatpush1.bf16.msra.mxu0 %v1536
  %1570 = vmatprep.subr.bf16.mxu0 0
  %1571 = vmatpush1.bf16.msra.mxu0 %v1537
  %1572 = vmatprep.subr.bf16.mxu0 0
  %1573 = vmatpush1.bf16.msra.mxu0 %v1538
  %1574 = vmatprep.subr.bf16.mxu0 0
  %1575 = vmatpush1.bf16.msra.mxu0 %v1539
  %1576 = vmatprep.subr.bf16.mxu0 0
  %1577 = vmatpush1.bf16.msra.mxu0 %v1540
  %1578 = vmatprep.subr.bf16.mxu0 0
  %1579 = vmatpush1.bf16.msra.mxu0 %v1541
  %1580 = vmatprep.subr.bf16.mxu0 0
  %1581 = vmatpush1.bf16.msra.mxu0 %v1542
  %1582 = vmatprep.subr.bf16.mxu0 0
  %1583 = vmatpush1.bf16.msra.mxu0 %v1543
  %1584 = vmatprep.subr.bf16.mxu0 0
  %1585 = vmatpush1.bf16.msra.mxu0 %v1544
  %1586 = vmatprep.subr.bf16.mxu0 0
  %1587 = vmatpush1.bf16.msra.mxu0 %v1545
  %1588 = vmatprep.subr.bf16.mxu0 0
  %1589 = vmatpush1.bf16.msra.mxu0 %v1546
  %1590 = vmatprep.subr.bf16.mxu0 0
  %1591 = vmatpush1.bf16.msra.mxu0 %v1547
  %1592 = vmatprep.subr.bf16.mxu0 0
  %1593 = vmatpush1.bf16.msra.mxu0 %v1548
  %1594 = vmatprep.subr.bf16.mxu0 0
  %1595 = vmatpush1.bf16.msra.mxu0 %v1549
  %1596 = vmatprep.subr.bf16.mxu0 0
  %1597 = vmatpush1.bf16.msra.mxu0 %v1550
  %1598 = vmatprep.subr.bf16.mxu0 0
  %1599 = vmatpush1.bf16.msra.mxu0 %v1551
  %1600 = vmatprep.mubr.bf16.mxu0 %v71
  %1601 = vmatmul.mubr.bf16.gmra.mrb[0].mxu0 %v70
  %v1602 = vpop.f32.mrb[0].mxu0
  %v1603 = vadd.f32 0.0, %v1602
  %v1604 = vpop.f32.mrb[0].mxu0
  %v1605 = vpop.f32.mrb[0].mxu0
  %v1606 = vadd.f32 0.0, %v1605
  %v1607 = vpop.f32.mrb[0].mxu0
  %1608 = vdwg.mxu0
  %v1609 = vpack.c.bf16 %v1606, %v1603
  %v1610 = vld [vmem:[%s1] sm:$0xff]
  %v1611 = vld [vmem:[%s1 + $0x8] sm:$0xff]
  %v1614 = vunpack.c.l.b16 %v1610
  %v1615 = vunpack.c.h.b16 %v1610
  %v1616 = vunpack.c.l.b16 %v1611
  %v1617 = vunpack.c.h.b16 %v1611
  %v1618 = vpack.c.b16 %v1616, %v1614
  %v1619 = vpack.c.b16 %v1617, %v1615
  %vm1621 = vcmask 130048
  %v1623 = vsel %vm1621, %v1619, 0
  %1625 = vmatprep.subr.bf16.mxu0 0
  %1626 = vmatpush1.bf16.msra.mxu0 %v241
  %1627 = vmatprep.subr.bf16.mxu0 0
  %1628 = vmatpush1.bf16.msra.mxu0 %v412
  %1629 = vmatprep.subr.bf16.mxu0 0
  %1630 = vmatpush1.bf16.msra.mxu0 %v583
  %1631 = vmatprep.subr.bf16.mxu0 0
  %1632 = vmatpush1.bf16.msra.mxu0 %v754
  %1633 = vmatprep.subr.bf16.mxu0 0
  %1634 = vmatpush1.bf16.msra.mxu0 %v925
  %1635 = vmatprep.subr.bf16.mxu0 0
  %1636 = vmatpush1.bf16.msra.mxu0 %v1096
  %1637 = vmatprep.subr.bf16.mxu0 0
  %1638 = vmatpush1.bf16.msra.mxu0 %v1267
  %1639 = vmatprep.subr.bf16.mxu0 0
  %1640 = vmatpush1.bf16.msra.mxu0 %v1438
  %1641 = vmatprep.subr.bf16.mxu0 0
  %1642 = vmatpush1.bf16.msra.mxu0 %v1609
  %1643 = vmatprep.subr.bf16.mxu0 0
  %1644 = vmatpush1.bf16.msra.mxu0 0
  %1645 = vmatprep.subr.bf16.mxu0 0
  %1646 = vmatpush1.bf16.msra.mxu0 0
  %1647 = vmatprep.subr.bf16.mxu0 0
  %1648 = vmatpush1.bf16.msra.mxu0 0
  %1649 = vmatprep.subr.bf16.mxu0 0
  %1650 = vmatpush1.bf16.msra.mxu0 0
  %1651 = vmatprep.subr.bf16.mxu0 0
  %1652 = vmatpush1.bf16.msra.mxu0 0
  %1653 = vmatprep.subr.bf16.mxu0 0
  %1654 = vmatpush1.bf16.msra.mxu0 0
  %1655 = vmatprep.subr.bf16.mxu0 0
  %1656 = vmatpush1.bf16.msra.mxu0 0
  %1657 = vmatprep.mubr.bf16.mxu0 %v1623
  %1658 = vmatmul.mubr.bf16.gmra.mrb[0].mxu0 %v1618
  %v1659 = vpop.f32.mrb[0].mxu0
  %v1660 = vadd.f32 0.0, %v1659
  %v1661 = vpop.f32.mrb[0].mxu0
  %v1662 = vpop.f32.mrb[0].mxu0
  %v1663 = vadd.f32 0.0, %v1662
  %v1664 = vpop.f32.mrb[0].mxu0
  %1665 = vdwg.mxu0
  %v1666 = vmax.f32 %v1660, 0.0
  %v1667 = vmax.f32 %v1663, 0.0
  %v1668 = vpack.c.bf16 %v1667, %v1666
  %v1669 = vld [vmem:[%s4] sm:$0xf]
  %v1670 = vld [vmem:[%s4 + $0x4] sm:$0xf]
  %v1671 = vld [vmem:[%s4 + $0x8] sm:$0xf]
  %v1672 = vld [vmem:[%s4 + $0xc] sm:$0xf]
  %v1673 = vld [vmem:[%s4 + $0x10] sm:$0xf]
  %v1674 = vld [vmem:[%s4 + $0x14] sm:$0xf]
  %v1675 = vld [vmem:[%s4 + $0x18] sm:$0xf]
  %v1676 = vld [vmem:[%s4 + $0x1c] sm:$0xf]
  %v1685 = vunpack.c.l.b16 %v1669
  %v1686 = vunpack.c.l.b16 %v1670
  %v1687 = vunpack.c.l.b16 %v1671
  %v1688 = vunpack.c.l.b16 %v1672
  %v1689 = vunpack.c.l.b16 %v1673
  %v1690 = vunpack.c.l.b16 %v1674
  %v1691 = vunpack.c.l.b16 %v1675
  %v1692 = vunpack.c.l.b16 %v1676
  %v1693 = vpack.c.b16 %v1686, %v1685
  %v1694 = vpack.c.b16 %v1688, %v1687
  %v1695 = vpack.c.b16 %v1690, %v1689
  %v1696 = vpack.c.b16 %v1692, %v1691
  %vm1701 = vcmask 523264
  %v1703 = vsel %vm1701, %v1668, 0
  %1705 = vmatprep.subr.bf16.mxu0 0
  %1706 = vmatpush1.bf16.msra.mxu0 %v1693
  %1707 = vmatprep.subr.bf16.mxu0 0
  %1708 = vmatpush1.bf16.msra.mxu0 %v1694
  %1709 = vmatprep.subr.bf16.mxu0 0
  %1710 = vmatpush1.bf16.msra.mxu0 %v1695
  %1711 = vmatprep.subr.bf16.mxu0 0
  %1712 = vmatpush1.bf16.msra.mxu0 %v1696
  %1713 = vmatprep.subr.bf16.mxu0 0
  %1714 = vmatpush1.bf16.msra.mxu0 0
  %1715 = vmatprep.subr.bf16.mxu0 0
  %1716 = vmatpush1.bf16.msra.mxu0 0
  %1717 = vmatprep.subr.bf16.mxu0 0
  %1718 = vmatpush1.bf16.msra.mxu0 0
  %1719 = vmatprep.subr.bf16.mxu0 0
  %1720 = vmatpush1.bf16.msra.mxu0 0
  %1721 = vmatprep.subr.bf16.mxu0 0
  %1722 = vmatpush1.bf16.msra.mxu0 0
  %1723 = vmatprep.subr.bf16.mxu0 0
  %1724 = vmatpush1.bf16.msra.mxu0 0
  %1725 = vmatprep.subr.bf16.mxu0 0
  %1726 = vmatpush1.bf16.msra.mxu0 0
  %1727 = vmatprep.subr.bf16.mxu0 0
  %1728 = vmatpush1.bf16.msra.mxu0 0
  %1729 = vmatprep.subr.bf16.mxu0 0
  %1730 = vmatpush1.bf16.msra.mxu0 0
  %1731 = vmatprep.subr.bf16.mxu0 0
  %1732 = vmatpush1.bf16.msra.mxu0 0
  %1733 = vmatprep.subr.bf16.mxu0 0
  %1734 = vmatpush1.bf16.msra.mxu0 0
  %1735 = vmatprep.subr.bf16.mxu0 0
  %1736 = vmatpush1.bf16.msra.mxu0 0
  %1737 = vmatprep.mubr.bf16.mxu0 0
  %1738 = vmatmul.mubr.bf16.gmra.mrb[0].mxu0 %v1703
  %v1739 = vpop.f32.mrb[0].mxu0
  %v1740 = vadd.f32 0.0, %v1739
  %v1741 = vpop.f32.mrb[0].mxu0
  %v1742 = vpop.f32.mrb[0].mxu0
  %v1743 = vadd.f32 0.0, %v1742
  %v1744 = vpop.f32.mrb[0].mxu0
  %1745 = vdwg.mxu0
  %v1746 = vpack.c.bf16 %v1743, %v1740
  %s1747 = scalar_lea.vmem %s4, 32
  %v1748 = vld [vmem:[%s1747] sm:$0xf]
  %v1749 = vld [vmem:[%s1747 + $0x4] sm:$0xf]
  %v1750 = vld [vmem:[%s1747 + $0x8] sm:$0xf]
  %v1751 = vld [vmem:[%s1747 + $0xc] sm:$0xf]
  %v1752 = vld [vmem:[%s1747 + $0x10] sm:$0xf]
  %v1753 = vld [vmem:[%s1747 + $0x14] sm:$0xf]
  %v1754 = vld [vmem:[%s1747 + $0x18] sm:$0xf]
  %v1755 = vld [vmem:[%s1747 + $0x1c] sm:$0xf]
  %v1764 = vunpack.c.l.b16 %v1748
  %v1765 = vunpack.c.l.b16 %v1749
  %v1766 = vunpack.c.l.b16 %v1750
  %v1767 = vunpack.c.l.b16 %v1751
  %v1768 = vunpack.c.l.b16 %v1752
  %v1769 = vunpack.c.l.b16 %v1753
  %v1770 = vunpack.c.l.b16 %v1754
  %v1771 = vunpack.c.l.b16 %v1755
  %v1772 = vpack.c.b16 %v1765, %v1764
  %v1773 = vpack.c.b16 %v1767, %v1766
  %v1774 = vpack.c.b16 %v1769, %v1768
  %v1775 = vpack.c.b16 %v1771, %v1770
  %1780 = vmatprep.subr.bf16.mxu0 0
  %1781 = vmatpush1.bf16.msra.mxu0 %v1772
  %1782 = vmatprep.subr.bf16.mxu0 0
  %1783 = vmatpush1.bf16.msra.mxu0 %v1773
  %1784 = vmatprep.subr.bf16.mxu0 0
  %1785 = vmatpush1.bf16.msra.mxu0 %v1774
  %1786 = vmatprep.subr.bf16.mxu0 0
  %1787 = vmatpush1.bf16.msra.mxu0 %v1775
  %1788 = vmatprep.subr.bf16.mxu0 0
  %1789 = vmatpush1.bf16.msra.mxu0 0
  %1790 = vmatprep.subr.bf16.mxu0 0
  %1791 = vmatpush1.bf16.msra.mxu0 0
  %1792 = vmatprep.subr.bf16.mxu0 0
  %1793 = vmatpush1.bf16.msra.mxu0 0
  %1794 = vmatprep.subr.bf16.mxu0 0
  %1795 = vmatpush1.bf16.msra.mxu0 0
  %1796 = vmatprep.subr.bf16.mxu0 0
  %1797 = vmatpush1.bf16.msra.mxu0 0
  %1798 = vmatprep.subr.bf16.mxu0 0
  %1799 = vmatpush1.bf16.msra.mxu0 0
  %1800 = vmatprep.subr.bf16.mxu0 0
  %1801 = vmatpush1.bf16.msra.mxu0 0
  %1802 = vmatprep.subr.bf16.mxu0 0
  %1803 = vmatpush1.bf16.msra.mxu0 0
  %1804 = vmatprep.subr.bf16.mxu0 0
  %1805 = vmatpush1.bf16.msra.mxu0 0
  %1806 = vmatprep.subr.bf16.mxu0 0
  %1807 = vmatpush1.bf16.msra.mxu0 0
  %1808 = vmatprep.subr.bf16.mxu0 0
  %1809 = vmatpush1.bf16.msra.mxu0 0
  %1810 = vmatprep.subr.bf16.mxu0 0
  %1811 = vmatpush1.bf16.msra.mxu0 0
  %1812 = vmatprep.mubr.bf16.mxu0 0
  %1813 = vmatmul.mubr.bf16.gmra.mrb[0].mxu0 %v1703
  %v1814 = vpop.f32.mrb[0].mxu0
  %v1815 = vadd.f32 0.0, %v1814
  %v1816 = vpop.f32.mrb[0].mxu0
  %v1817 = vpop.f32.mrb[0].mxu0
  %v1818 = vadd.f32 0.0, %v1817
  %v1819 = vpop.f32.mrb[0].mxu0
  %1820 = vdwg.mxu0
  %v1821 = vpack.c.bf16 %v1818, %v1815
  %s1822 = scalar_lea.vmem %s4, 64
  %v1823 = vld [vmem:[%s1822] sm:$0xf]
  %v1824 = vld [vmem:[%s1822 + $0x4] sm:$0xf]
  %v1825 = vld [vmem:[%s1822 + $0x8] sm:$0xf]
  %v1826 = vld [vmem:[%s1822 + $0xc] sm:$0xf]
  %v1827 = vld [vmem:[%s1822 + $0x10] sm:$0xf]
  %v1828 = vld [vmem:[%s1822 + $0x14] sm:$0xf]
  %v1829 = vld [vmem:[%s1822 + $0x18] sm:$0xf]
  %v1830 = vld [vmem:[%s1822 + $0x1c] sm:$0xf]
  %v1839 = vunpack.c.l.b16 %v1823
  %v1840 = vunpack.c.l.b16 %v1824
  %v1841 = vunpack.c.l.b16 %v1825
  %v1842 = vunpack.c.l.b16 %v1826
  %v1843 = vunpack.c.l.b16 %v1827
  %v1844 = vunpack.c.l.b16 %v1828
  %v1845 = vunpack.c.l.b16 %v1829
  %v1846 = vunpack.c.l.b16 %v1830
  %v1847 = vpack.c.b16 %v1840, %v1839
  %v1848 = vpack.c.b16 %v1842, %v1841
  %v1849 = vpack.c.b16 %v1844, %v1843
  %v1850 = vpack.c.b16 %v1846, %v1845
  %1855 = vmatprep.subr.bf16.mxu0 0
  %1856 = vmatpush1.bf16.msra.mxu0 %v1847
  %1857 = vmatprep.subr.bf16.mxu0 0
  %1858 = vmatpush1.bf16.msra.mxu0 %v1848
  %1859 = vmatprep.subr.bf16.mxu0 0
  %1860 = vmatpush1.bf16.msra.mxu0 %v1849
  %1861 = vmatprep.subr.bf16.mxu0 0
  %1862 = vmatpush1.bf16.msra.mxu0 %v1850
  %1863 = vmatprep.subr.bf16.mxu0 0
  %1864 = vmatpush1.bf16.msra.mxu0 0
  %1865 = vmatprep.subr.bf16.mxu0 0
  %1866 = vmatpush1.bf16.msra.mxu0 0
  %1867 = vmatprep.subr.bf16.mxu0 0
  %1868 = vmatpush1.bf16.msra.mxu0 0
  %1869 = vmatprep.subr.bf16.mxu0 0
  %1870 = vmatpush1.bf16.msra.mxu0 0
  %1871 = vmatprep.subr.bf16.mxu0 0
  %1872 = vmatpush1.bf16.msra.mxu0 0
  %1873 = vmatprep.subr.bf16.mxu0 0
  %1874 = vmatpush1.bf16.msra.mxu0 0
  %1875 = vmatprep.subr.bf16.mxu0 0
  %1876 = vmatpush1.bf16.msra.mxu0 0
  %1877 = vmatprep.subr.bf16.mxu0 0
  %1878 = vmatpush1.bf16.msra.mxu0 0
  %1879 = vmatprep.subr.bf16.mxu0 0
  %1880 = vmatpush1.bf16.msra.mxu0 0
  %1881 = vmatprep.subr.bf16.mxu0 0
  %1882 = vmatpush1.bf16.msra.mxu0 0
  %1883 = vmatprep.subr.bf16.mxu0 0
  %1884 = vmatpush1.bf16.msra.mxu0 0
  %1885 = vmatprep.subr.bf16.mxu0 0
  %1886 = vmatpush1.bf16.msra.mxu0 0
  %1887 = vmatprep.mubr.bf16.mxu0 0
  %1888 = vmatmul.mubr.bf16.gmra.mrb[0].mxu0 %v1703
  %v1889 = vpop.f32.mrb[0].mxu0
  %v1890 = vadd.f32 0.0, %v1889
  %v1891 = vpop.f32.mrb[0].mxu0
  %v1892 = vpop.f32.mrb[0].mxu0
  %v1893 = vadd.f32 0.0, %v1892
  %v1894 = vpop.f32.mrb[0].mxu0
  %1895 = vdwg.mxu0
  %v1896 = vpack.c.bf16 %v1893, %v1890
  %s1897 = scalar_lea.vmem %s4, 96
  %v1898 = vld [vmem:[%s1897] sm:$0xf]
  %v1899 = vld [vmem:[%s1897 + $0x4] sm:$0xf]
  %v1900 = vld [vmem:[%s1897 + $0x8] sm:$0xf]
  %v1901 = vld [vmem:[%s1897 + $0xc] sm:$0xf]
  %v1902 = vld [vmem:[%s1897 + $0x10] sm:$0xf]
  %v1903 = vld [vmem:[%s1897 + $0x14] sm:$0xf]
  %v1904 = vld [vmem:[%s1897 + $0x18] sm:$0xf]
  %v1905 = vld [vmem:[%s1897 + $0x1c] sm:$0xf]
  %v1914 = vunpack.c.l.b16 %v1898
  %v1915 = vunpack.c.l.b16 %v1899
  %v1916 = vunpack.c.l.b16 %v1900
  %v1917 = vunpack.c.l.b16 %v1901
  %v1918 = vunpack.c.l.b16 %v1902
  %v1919 = vunpack.c.l.b16 %v1903
  %v1920 = vunpack.c.l.b16 %v1904
  %v1921 = vunpack.c.l.b16 %v1905
  %v1922 = vpack.c.b16 %v1915, %v1914
  %v1923 = vpack.c.b16 %v1917, %v1916
  %v1924 = vpack.c.b16 %v1919, %v1918
  %v1925 = vpack.c.b16 %v1921, %v1920
  %1930 = vmatprep.subr.bf16.mxu0 0
  %1931 = vmatpush1.bf16.msra.mxu0 %v1922
  %1932 = vmatprep.subr.bf16.mxu0 0
  %1933 = vmatpush1.bf16.msra.mxu0 %v1923
  %1934 = vmatprep.subr.bf16.mxu0 0
  %1935 = vmatpush1.bf16.msra.mxu0 %v1924
  %1936 = vmatprep.subr.bf16.mxu0 0
  %1937 = vmatpush1.bf16.msra.mxu0 %v1925
  %1938 = vmatprep.subr.bf16.mxu0 0
  %1939 = vmatpush1.bf16.msra.mxu0 0
  %1940 = vmatprep.subr.bf16.mxu0 0
  %1941 = vmatpush1.bf16.msra.mxu0 0
  %1942 = vmatprep.subr.bf16.mxu0 0
  %1943 = vmatpush1.bf16.msra.mxu0 0
  %1944 = vmatprep.subr.bf16.mxu0 0
  %1945 = vmatpush1.bf16.msra.mxu0 0
  %1946 = vmatprep.subr.bf16.mxu0 0
  %1947 = vmatpush1.bf16.msra.mxu0 0
  %1948 = vmatprep.subr.bf16.mxu0 0
  %1949 = vmatpush1.bf16.msra.mxu0 0
  %1950 = vmatprep.subr.bf16.mxu0 0
  %1951 = vmatpush1.bf16.msra.mxu0 0
  %1952 = vmatprep.subr.bf16.mxu0 0
  %1953 = vmatpush1.bf16.msra.mxu0 0
  %1954 = vmatprep.subr.bf16.mxu0 0
  %1955 = vmatpush1.bf16.msra.mxu0 0
  %1956 = vmatprep.subr.bf16.mxu0 0
  %1957 = vmatpush1.bf16.msra.mxu0 0
  %1958 = vmatprep.subr.bf16.mxu0 0
  %1959 = vmatpush1.bf16.msra.mxu0 0
  %1960 = vmatprep.subr.bf16.mxu0 0
  %1961 = vmatpush1.bf16.msra.mxu0 0
  %1962 = vmatprep.mubr.bf16.mxu0 0
  %1963 = vmatmul.mubr.bf16.gmra.mrb[0].mxu0 %v1703
  %v1964 = vpop.f32.mrb[0].mxu0
  %v1965 = vadd.f32 0.0, %v1964
  %v1966 = vpop.f32.mrb[0].mxu0
  %v1967 = vpop.f32.mrb[0].mxu0
  %v1968 = vadd.f32 0.0, %v1967
  %v1969 = vpop.f32.mrb[0].mxu0
  %1970 = vdwg.mxu0
  %v1971 = vpack.c.bf16 %v1968, %v1965
  %s1972 = scalar_lea.vmem %s4, 128
  %v1973 = vld [vmem:[%s1972] sm:$0xf]
  %v1974 = vld [vmem:[%s1972 + $0x4] sm:$0xf]
  %v1975 = vld [vmem:[%s1972 + $0x8] sm:$0xf]
  %v1976 = vld [vmem:[%s1972 + $0xc] sm:$0xf]
  %v1977 = vld [vmem:[%s1972 + $0x10] sm:$0xf]
  %v1978 = vld [vmem:[%s1972 + $0x14] sm:$0xf]
  %v1979 = vld [vmem:[%s1972 + $0x18] sm:$0xf]
  %v1980 = vld [vmem:[%s1972 + $0x1c] sm:$0xf]
  %v1989 = vunpack.c.l.b16 %v1973
  %v1990 = vunpack.c.l.b16 %v1974
  %v1991 = vunpack.c.l.b16 %v1975
  %v1992 = vunpack.c.l.b16 %v1976
  %v1993 = vunpack.c.l.b16 %v1977
  %v1994 = vunpack.c.l.b16 %v1978
  %v1995 = vunpack.c.l.b16 %v1979
  %v1996 = vunpack.c.l.b16 %v1980
  %v1997 = vpack.c.b16 %v1990, %v1989
  %v1998 = vpack.c.b16 %v1992, %v1991
  %v1999 = vpack.c.b16 %v1994, %v1993
  %v2000 = vpack.c.b16 %v1996, %v1995
  %2005 = vmatprep.subr.bf16.mxu0 0
  %2006 = vmatpush1.bf16.msra.mxu0 %v1997
  %2007 = vmatprep.subr.bf16.mxu0 0
  %2008 = vmatpush1.bf16.msra.mxu0 %v1998
  %2009 = vmatprep.subr.bf16.mxu0 0
  %2010 = vmatpush1.bf16.msra.mxu0 %v1999
  %2011 = vmatprep.subr.bf16.mxu0 0
  %2012 = vmatpush1.bf16.msra.mxu0 %v2000
  %2013 = vmatprep.subr.bf16.mxu0 0
  %2014 = vmatpush1.bf16.msra.mxu0 0
  %2015 = vmatprep.subr.bf16.mxu0 0
  %2016 = vmatpush1.bf16.msra.mxu0 0
  %2017 = vmatprep.subr.bf16.mxu0 0
  %2018 = vmatpush1.bf16.msra.mxu0 0
  %2019 = vmatprep.subr.bf16.mxu0 0
  %2020 = vmatpush1.bf16.msra.mxu0 0
  %2021 = vmatprep.subr.bf16.mxu0 0
  %2022 = vmatpush1.bf16.msra.mxu0 0
  %2023 = vmatprep.subr.bf16.mxu0 0
  %2024 = vmatpush1.bf16.msra.mxu0 0
  %2025 = vmatprep.subr.bf16.mxu0 0
  %2026 = vmatpush1.bf16.msra.mxu0 0
  %2027 = vmatprep.subr.bf16.mxu0 0
  %2028 = vmatpush1.bf16.msra.mxu0 0
  %2029 = vmatprep.subr.bf16.mxu0 0
  %2030 = vmatpush1.bf16.msra.mxu0 0
  %2031 = vmatprep.subr.bf16.mxu0 0
  %2032 = vmatpush1.bf16.msra.mxu0 0
  %2033 = vmatprep.subr.bf16.mxu0 0
  %2034 = vmatpush1.bf16.msra.mxu0 0
  %2035 = vmatprep.subr.bf16.mxu0 0
  %2036 = vmatpush1.bf16.msra.mxu0 0
  %2037 = vmatprep.mubr.bf16.mxu0 0
  %2038 = vmatmul.mubr.bf16.gmra.mrb[0].mxu0 %v1703
  %v2039 = vpop.f32.mrb[0].mxu0
  %v2040 = vadd.f32 0.0, %v2039
  %v2041 = vpop.f32.mrb[0].mxu0
  %v2042 = vpop.f32.mrb[0].mxu0
  %v2043 = vadd.f32 0.0, %v2042
  %v2044 = vpop.f32.mrb[0].mxu0
  %2045 = vdwg.mxu0
  %v2046 = vpack.c.bf16 %v2043, %v2040
  %s2047 = scalar_lea.vmem %s4, 160
  %v2048 = vld [vmem:[%s2047] sm:$0xf]
  %v2049 = vld [vmem:[%s2047 + $0x4] sm:$0xf]
  %v2050 = vld [vmem:[%s2047 + $0x8] sm:$0xf]
  %v2051 = vld [vmem:[%s2047 + $0xc] sm:$0xf]
  %v2052 = vld [vmem:[%s2047 + $0x10] sm:$0xf]
  %v2053 = vld [vmem:[%s2047 + $0x14] sm:$0xf]
  %v2054 = vld [vmem:[%s2047 + $0x18] sm:$0xf]
  %v2055 = vld [vmem:[%s2047 + $0x1c] sm:$0xf]
  %v2064 = vunpack.c.l.b16 %v2048
  %v2065 = vunpack.c.l.b16 %v2049
  %v2066 = vunpack.c.l.b16 %v2050
  %v2067 = vunpack.c.l.b16 %v2051
  %v2068 = vunpack.c.l.b16 %v2052
  %v2069 = vunpack.c.l.b16 %v2053
  %v2070 = vunpack.c.l.b16 %v2054
  %v2071 = vunpack.c.l.b16 %v2055
  %v2072 = vpack.c.b16 %v2065, %v2064
  %v2073 = vpack.c.b16 %v2067, %v2066
  %v2074 = vpack.c.b16 %v2069, %v2068
  %v2075 = vpack.c.b16 %v2071, %v2070
  %2080 = vmatprep.subr.bf16.mxu0 0
  %2081 = vmatpush1.bf16.msra.mxu0 %v2072
  %2082 = vmatprep.subr.bf16.mxu0 0
  %2083 = vmatpush1.bf16.msra.mxu0 %v2073
  %2084 = vmatprep.subr.bf16.mxu0 0
  %2085 = vmatpush1.bf16.msra.mxu0 %v2074
  %2086 = vmatprep.subr.bf16.mxu0 0
  %2087 = vmatpush1.bf16.msra.mxu0 %v2075
  %2088 = vmatprep.subr.bf16.mxu0 0
  %2089 = vmatpush1.bf16.msra.mxu0 0
  %2090 = vmatprep.subr.bf16.mxu0 0
  %2091 = vmatpush1.bf16.msra.mxu0 0
  %2092 = vmatprep.subr.bf16.mxu0 0
  %2093 = vmatpush1.bf16.msra.mxu0 0
  %2094 = vmatprep.subr.bf16.mxu0 0
  %2095 = vmatpush1.bf16.msra.mxu0 0
  %2096 = vmatprep.subr.bf16.mxu0 0
  %2097 = vmatpush1.bf16.msra.mxu0 0
  %2098 = vmatprep.subr.bf16.mxu0 0
  %2099 = vmatpush1.bf16.msra.mxu0 0
  %2100 = vmatprep.subr.bf16.mxu0 0
  %2101 = vmatpush1.bf16.msra.mxu0 0
  %2102 = vmatprep.subr.bf16.mxu0 0
  %2103 = vmatpush1.bf16.msra.mxu0 0
  %2104 = vmatprep.subr.bf16.mxu0 0
  %2105 = vmatpush1.bf16.msra.mxu0 0
  %2106 = vmatprep.subr.bf16.mxu0 0
  %2107 = vmatpush1.bf16.msra.mxu0 0
  %2108 = vmatprep.subr.bf16.mxu0 0
  %2109 = vmatpush1.bf16.msra.mxu0 0
  %2110 = vmatprep.subr.bf16.mxu0 0
  %2111 = vmatpush1.bf16.msra.mxu0 0
  %2112 = vmatprep.mubr.bf16.mxu0 0
  %2113 = vmatmul.mubr.bf16.gmra.mrb[0].mxu0 %v1703
  %v2114 = vpop.f32.mrb[0].mxu0
  %v2115 = vadd.f32 0.0, %v2114
  %v2116 = vpop.f32.mrb[0].mxu0
  %v2117 = vpop.f32.mrb[0].mxu0
  %v2118 = vadd.f32 0.0, %v2117
  %v2119 = vpop.f32.mrb[0].mxu0
  %2120 = vdwg.mxu0
  %v2121 = vpack.c.bf16 %v2118, %v2115
  %s2122 = scalar_lea.vmem %s4, 192
  %v2123 = vld [vmem:[%s2122] sm:$0xf]
  %v2124 = vld [vmem:[%s2122 + $0x4] sm:$0xf]
  %v2125 = vld [vmem:[%s2122 + $0x8] sm:$0xf]
  %v2126 = vld [vmem:[%s2122 + $0xc] sm:$0xf]
  %v2127 = vld [vmem:[%s2122 + $0x10] sm:$0xf]
  %v2128 = vld [vmem:[%s2122 + $0x14] sm:$0xf]
  %v2129 = vld [vmem:[%s2122 + $0x18] sm:$0xf]
  %v2130 = vld [vmem:[%s2122 + $0x1c] sm:$0xf]
  %v2139 = vunpack.c.l.b16 %v2123
  %v2140 = vunpack.c.l.b16 %v2124
  %v2141 = vunpack.c.l.b16 %v2125
  %v2142 = vunpack.c.l.b16 %v2126
  %v2143 = vunpack.c.l.b16 %v2127
  %v2144 = vunpack.c.l.b16 %v2128
  %v2145 = vunpack.c.l.b16 %v2129
  %v2146 = vunpack.c.l.b16 %v2130
  %v2147 = vpack.c.b16 %v2140, %v2139
  %v2148 = vpack.c.b16 %v2142, %v2141
  %v2149 = vpack.c.b16 %v2144, %v2143
  %v2150 = vpack.c.b16 %v2146, %v2145
  %2155 = vmatprep.subr.bf16.mxu0 0
  %2156 = vmatpush1.bf16.msra.mxu0 %v2147
  %2157 = vmatprep.subr.bf16.mxu0 0
  %2158 = vmatpush1.bf16.msra.mxu0 %v2148
  %2159 = vmatprep.subr.bf16.mxu0 0
  %2160 = vmatpush1.bf16.msra.mxu0 %v2149
  %2161 = vmatprep.subr.bf16.mxu0 0
  %2162 = vmatpush1.bf16.msra.mxu0 %v2150
  %2163 = vmatprep.subr.bf16.mxu0 0
  %2164 = vmatpush1.bf16.msra.mxu0 0
  %2165 = vmatprep.subr.bf16.mxu0 0
  %2166 = vmatpush1.bf16.msra.mxu0 0
  %2167 = vmatprep.subr.bf16.mxu0 0
  %2168 = vmatpush1.bf16.msra.mxu0 0
  %2169 = vmatprep.subr.bf16.mxu0 0
  %2170 = vmatpush1.bf16.msra.mxu0 0
  %2171 = vmatprep.subr.bf16.mxu0 0
  %2172 = vmatpush1.bf16.msra.mxu0 0
  %2173 = vmatprep.subr.bf16.mxu0 0
  %2174 = vmatpush1.bf16.msra.mxu0 0
  %2175 = vmatprep.subr.bf16.mxu0 0
  %2176 = vmatpush1.bf16.msra.mxu0 0
  %2177 = vmatprep.subr.bf16.mxu0 0
  %2178 = vmatpush1.bf16.msra.mxu0 0
  %2179 = vmatprep.subr.bf16.mxu0 0
  %2180 = vmatpush1.bf16.msra.mxu0 0
  %2181 = vmatprep.subr.bf16.mxu0 0
  %2182 = vmatpush1.bf16.msra.mxu0 0
  %2183 = vmatprep.subr.bf16.mxu0 0
  %2184 = vmatpush1.bf16.msra.mxu0 0
  %2185 = vmatprep.subr.bf16.mxu0 0
  %2186 = vmatpush1.bf16.msra.mxu0 0
  %2187 = vmatprep.mubr.bf16.mxu0 0
  %2188 = vmatmul.mubr.bf16.gmra.mrb[0].mxu0 %v1703
  %v2189 = vpop.f32.mrb[0].mxu0
  %v2190 = vadd.f32 0.0, %v2189
  %v2191 = vpop.f32.mrb[0].mxu0
  %v2192 = vpop.f32.mrb[0].mxu0
  %v2193 = vadd.f32 0.0, %v2192
  %v2194 = vpop.f32.mrb[0].mxu0
  %2195 = vdwg.mxu0
  %v2196 = vpack.c.bf16 %v2193, %v2190
  %s2197 = scalar_lea.vmem %s4, 224
  %v2198 = vld [vmem:[%s2197] sm:$0xf]
  %v2199 = vld [vmem:[%s2197 + $0x4] sm:$0xf]
  %v2200 = vld [vmem:[%s2197 + $0x8] sm:$0xf]
  %v2201 = vld [vmem:[%s2197 + $0xc] sm:$0xf]
  %v2202 = vld [vmem:[%s2197 + $0x10] sm:$0xf]
  %v2203 = vld [vmem:[%s2197 + $0x14] sm:$0xf]
  %v2204 = vld [vmem:[%s2197 + $0x18] sm:$0xf]
  %v2205 = vld [vmem:[%s2197 + $0x1c] sm:$0xf]
  %v2214 = vunpack.c.l.b16 %v2198
  %v2215 = vunpack.c.l.b16 %v2199
  %v2216 = vunpack.c.l.b16 %v2200
  %v2217 = vunpack.c.l.b16 %v2201
  %v2218 = vunpack.c.l.b16 %v2202
  %v2219 = vunpack.c.l.b16 %v2203
  %v2220 = vunpack.c.l.b16 %v2204
  %v2221 = vunpack.c.l.b16 %v2205
  %v2222 = vpack.c.b16 %v2215, %v2214
  %v2223 = vpack.c.b16 %v2217, %v2216
  %v2224 = vpack.c.b16 %v2219, %v2218
  %v2225 = vpack.c.b16 %v2221, %v2220
  %2230 = vmatprep.subr.bf16.mxu0 0
  %2231 = vmatpush1.bf16.msra.mxu0 %v2222
  %2232 = vmatprep.subr.bf16.mxu0 0
  %2233 = vmatpush1.bf16.msra.mxu0 %v2223
  %2234 = vmatprep.subr.bf16.mxu0 0
  %2235 = vmatpush1.bf16.msra.mxu0 %v2224
  %2236 = vmatprep.subr.bf16.mxu0 0
  %2237 = vmatpush1.bf16.msra.mxu0 %v2225
  %2238 = vmatprep.subr.bf16.mxu0 0
  %2239 = vmatpush1.bf16.msra.mxu0 0
  %2240 = vmatprep.subr.bf16.mxu0 0
  %2241 = vmatpush1.bf16.msra.mxu0 0
  %2242 = vmatprep.subr.bf16.mxu0 0
  %2243 = vmatpush1.bf16.msra.mxu0 0
  %2244 = vmatprep.subr.bf16.mxu0 0
  %2245 = vmatpush1.bf16.msra.mxu0 0
  %2246 = vmatprep.subr.bf16.mxu0 0
  %2247 = vmatpush1.bf16.msra.mxu0 0
  %2248 = vmatprep.subr.bf16.mxu0 0
  %2249 = vmatpush1.bf16.msra.mxu0 0
  %2250 = vmatprep.subr.bf16.mxu0 0
  %2251 = vmatpush1.bf16.msra.mxu0 0
  %2252 = vmatprep.subr.bf16.mxu0 0
  %2253 = vmatpush1.bf16.msra.mxu0 0
  %2254 = vmatprep.subr.bf16.mxu0 0
  %2255 = vmatpush1.bf16.msra.mxu0 0
  %2256 = vmatprep.subr.bf16.mxu0 0
  %2257 = vmatpush1.bf16.msra.mxu0 0
  %2258 = vmatprep.subr.bf16.mxu0 0
  %2259 = vmatpush1.bf16.msra.mxu0 0
  %2260 = vmatprep.subr.bf16.mxu0 0
  %2261 = vmatpush1.bf16.msra.mxu0 0
  %2262 = vmatprep.mubr.bf16.mxu0 0
  %2263 = vmatmul.mubr.bf16.gmra.mrb[0].mxu0 %v1703
  %v2264 = vpop.f32.mrb[0].mxu0
  %v2265 = vadd.f32 0.0, %v2264
  %v2266 = vpop.f32.mrb[0].mxu0
  %v2267 = vpop.f32.mrb[0].mxu0
  %v2268 = vadd.f32 0.0, %v2267
  %v2269 = vpop.f32.mrb[0].mxu0
  %2270 = vdwg.mxu0
  %v2271 = vpack.c.bf16 %v2268, %v2265
  %s2272 = scalar_lea.vmem %s4, 256
  %v2273 = vld [vmem:[%s2272] sm:$0xf]
  %v2274 = vld [vmem:[%s2272 + $0x4] sm:$0xf]
  %v2275 = vld [vmem:[%s2272 + $0x8] sm:$0xf]
  %v2276 = vld [vmem:[%s2272 + $0xc] sm:$0xf]
  %v2277 = vld [vmem:[%s2272 + $0x10] sm:$0xf]
  %v2278 = vld [vmem:[%s2272 + $0x14] sm:$0xf]
  %v2279 = vld [vmem:[%s2272 + $0x18] sm:$0xf]
  %v2280 = vld [vmem:[%s2272 + $0x1c] sm:$0xf]
  %v2289 = vunpack.c.l.b16 %v2273
  %v2290 = vunpack.c.l.b16 %v2274
  %v2291 = vunpack.c.l.b16 %v2275
  %v2292 = vunpack.c.l.b16 %v2276
  %v2293 = vunpack.c.l.b16 %v2277
  %v2294 = vunpack.c.l.b16 %v2278
  %v2295 = vunpack.c.l.b16 %v2279
  %v2296 = vunpack.c.l.b16 %v2280
  %v2297 = vpack.c.b16 %v2290, %v2289
  %v2298 = vpack.c.b16 %v2292, %v2291
  %v2299 = vpack.c.b16 %v2294, %v2293
  %v2300 = vpack.c.b16 %v2296, %v2295
  %2305 = vmatprep.subr.bf16.mxu0 0
  %2306 = vmatpush1.bf16.msra.mxu0 %v2297
  %2307 = vmatprep.subr.bf16.mxu0 0
  %2308 = vmatpush1.bf16.msra.mxu0 %v2298
  %2309 = vmatprep.subr.bf16.mxu0 0
  %2310 = vmatpush1.bf16.msra.mxu0 %v2299
  %2311 = vmatprep.subr.bf16.mxu0 0
  %2312 = vmatpush1.bf16.msra.mxu0 %v2300
  %2313 = vmatprep.subr.bf16.mxu0 0
  %2314 = vmatpush1.bf16.msra.mxu0 0
  %2315 = vmatprep.subr.bf16.mxu0 0
  %2316 = vmatpush1.bf16.msra.mxu0 0
  %2317 = vmatprep.subr.bf16.mxu0 0
  %2318 = vmatpush1.bf16.msra.mxu0 0
  %2319 = vmatprep.subr.bf16.mxu0 0
  %2320 = vmatpush1.bf16.msra.mxu0 0
  %2321 = vmatprep.subr.bf16.mxu0 0
  %2322 = vmatpush1.bf16.msra.mxu0 0
  %2323 = vmatprep.subr.bf16.mxu0 0
  %2324 = vmatpush1.bf16.msra.mxu0 0
  %2325 = vmatprep.subr.bf16.mxu0 0
  %2326 = vmatpush1.bf16.msra.mxu0 0
  %2327 = vmatprep.subr.bf16.mxu0 0
  %2328 = vmatpush1.bf16.msra.mxu0 0
  %2329 = vmatprep.subr.bf16.mxu0 0
  %2330 = vmatpush1.bf16.msra.mxu0 0
  %2331 = vmatprep.subr.bf16.mxu0 0
  %2332 = vmatpush1.bf16.msra.mxu0 0
  %2333 = vmatprep.subr.bf16.mxu0 0
  %2334 = vmatpush1.bf16.msra.mxu0 0
  %2335 = vmatprep.subr.bf16.mxu0 0
  %2336 = vmatpush1.bf16.msra.mxu0 0
  %2337 = vmatprep.mubr.bf16.mxu0 0
  %2338 = vmatmul.mubr.bf16.gmra.mrb[0].mxu0 %v1703
  %v2339 = vpop.f32.mrb[0].mxu0
  %v2340 = vadd.f32 0.0, %v2339
  %v2341 = vpop.f32.mrb[0].mxu0
  %v2342 = vpop.f32.mrb[0].mxu0
  %v2343 = vadd.f32 0.0, %v2342
  %v2344 = vpop.f32.mrb[0].mxu0
  %2345 = vdwg.mxu0
  %v2346 = vpack.c.bf16 %v2343, %v2340
  %v2347 = vld [vmem:[%s3] sm:$0xff]
  %v2348 = vld [vmem:[%s3 + $0x8] sm:$0xff]
  %v2349 = vld [vmem:[%s3 + $0x10] sm:$0xff]
  %v2350 = vld [vmem:[%s3 + $0x18] sm:$0xff]
  %v2355 = vunpack.c.l.b16 %v2347
  %v2356 = vunpack.c.h.b16 %v2347
  %v2357 = vunpack.c.l.b16 %v2348
  %v2358 = vunpack.c.h.b16 %v2348
  %v2359 = vunpack.c.l.b16 %v2349
  %v2360 = vunpack.c.h.b16 %v2349
  %v2361 = vunpack.c.l.b16 %v2350
  %v2362 = vunpack.c.h.b16 %v2350
  %v2363 = vpack.c.b16 %v2357, %v2355
  %v2364 = vpack.c.b16 %v2358, %v2356
  %v2365 = vpack.c.b16 %v2361, %v2359
  %v2366 = vpack.c.b16 %v2362, %v2360
  %v2370 = vsel %vm1621, %v2364, 0
  %v2373 = vsel %vm1621, %v2366, 0
  %2375 = vmatprep.subr.bf16.mxu0 0
  %2376 = vmatpush1.bf16.msra.mxu0 %v1746
  %2377 = vmatprep.subr.bf16.mxu0 0
  %2378 = vmatpush1.bf16.msra.mxu0 %v1821
  %2379 = vmatprep.subr.bf16.mxu0 0
  %2380 = vmatpush1.bf16.msra.mxu0 %v1896
  %2381 = vmatprep.subr.bf16.mxu0 0
  %2382 = vmatpush1.bf16.msra.mxu0 %v1971
  %2383 = vmatprep.subr.bf16.mxu0 0
  %2384 = vmatpush1.bf16.msra.mxu0 %v2046
  %2385 = vmatprep.subr.bf16.mxu0 0
  %2386 = vmatpush1.bf16.msra.mxu0 %v2121
  %2387 = vmatprep.subr.bf16.mxu0 0
  %2388 = vmatpush1.bf16.msra.mxu0 %v2196
  %2389 = vmatprep.subr.bf16.mxu0 0
  %2390 = vmatpush1.bf16.msra.mxu0 %v2271
  %2391 = vmatprep.subr.bf16.mxu0 0
  %2392 = vmatpush1.bf16.msra.mxu0 %v2346
  %2393 = vmatprep.subr.bf16.mxu0 0
  %2394 = vmatpush1.bf16.msra.mxu0 0
  %2395 = vmatprep.subr.bf16.mxu0 0
  %2396 = vmatpush1.bf16.msra.mxu0 0
  %2397 = vmatprep.subr.bf16.mxu0 0
  %2398 = vmatpush1.bf16.msra.mxu0 0
  %2399 = vmatprep.subr.bf16.mxu0 0
  %2400 = vmatpush1.bf16.msra.mxu0 0
  %2401 = vmatprep.subr.bf16.mxu0 0
  %2402 = vmatpush1.bf16.msra.mxu0 0
  %2403 = vmatprep.subr.bf16.mxu0 0
  %2404 = vmatpush1.bf16.msra.mxu0 0
  %2405 = vmatprep.subr.bf16.mxu0 0
  %2406 = vmatpush1.bf16.msra.mxu0 0
  %2407 = vmatprep.mubr.bf16.mxu0 %v2370
  %2408 = vmatmul.mubr.bf16.gmra.mrb[0].mxu0 %v2363
  %v2409 = vpop.f32.mrb[0].mxu0
  %v2410 = vadd.f32 0.0, %v2409
  %v2411 = vpop.f32.mrb[0].mxu0
  %v2412 = vpop.f32.mrb[0].mxu0
  %v2413 = vadd.f32 0.0, %v2412
  %v2414 = vpop.f32.mrb[0].mxu0
  %2415 = vmatprep.mubr.bf16.mxu0 %v2373
  %2416 = vmatmul.mubr.bf16.gmra.mrb[0].mxu0 %v2365
  %v2417 = vpop.f32.mrb[0].mxu0
  %v2418 = vadd.f32 0.0, %v2417
  %v2419 = vpop.f32.mrb[0].mxu0
  %v2420 = vpop.f32.mrb[0].mxu0
  %v2421 = vadd.f32 0.0, %v2420
  %v2422 = vpop.f32.mrb[0].mxu0
  %2423 = vdwg.mxu0
  %v2424 = vld [vmem:[%s5] sm:$0xff]
  %v2425 = vld [vmem:[%s5 + $0x8] sm:$0xff]
  %v2426 = vld [vmem:[%s5 + $0x10] sm:$0xff]
  %v2427 = vld [vmem:[%s5 + $0x18] sm:$0xff]
  %vm2428 = vcmask 261120
  %v2430 = vsel %vm2428, %v2424, 0
  %v2433 = vsel %vm2428, %v2425, 0
  %v2436 = vsel %vm2428, %v2426, 0
  %v2439 = vsel %vm2428, %v2427, 0
  %2441 = vmatprep.subr.mxu0 0.0
  %2442 = vmatpush1.msra.mxu0 %v2410
  %2443 = vmatprep.subr.mxu0 0.0
  %2444 = vmatpush1.msra.mxu0 %v2413
  %2445 = vmatprep.subr.mxu0 0.0
  %2446 = vmatpush1.msra.mxu0 %v2418
  %2447 = vmatprep.subr.mxu0 0.0
  %2448 = vmatpush1.msra.mxu0 %v2421
  %2449 = vmatprep.subr.mxu0 0.0
  %2450 = vmatpush1.msra.mxu0 0.0
  %2451 = vmatprep.subr.mxu0 0.0
  %2452 = vmatpush1.msra.mxu0 0.0
  %2453 = vmatprep.subr.mxu0 0.0
  %2454 = vmatpush1.msra.mxu0 0.0
  %2455 = vmatprep.subr.mxu0 0.0
  %2456 = vmatpush1.msra.mxu0 0.0
  %2457 = vmatprep.subr.mxu0 0.0
  %2458 = vmatpush1.msra.mxu0 0.0
  %2459 = vmatprep.subr.mxu0 0.0
  %2460 = vmatpush1.msra.mxu0 0.0
  %2461 = vmatprep.subr.mxu0 0.0
  %2462 = vmatpush1.msra.mxu0 0.0
  %2463 = vmatprep.subr.mxu0 0.0
  %2464 = vmatpush1.msra.mxu0 0.0
  %2465 = vmatprep.subr.mxu0 0.0
  %2466 = vmatpush1.msra.mxu0 0.0
  %2467 = vmatprep.subr.mxu0 0.0
  %2468 = vmatpush1.msra.mxu0 0.0
  %2469 = vmatprep.subr.mxu0 0.0
  %2470 = vmatpush1.msra.mxu0 0.0
  %2471 = vmatprep.subr.mxu0 0.0
  %2472 = vmatpush1.msra.mxu0 0.0
  %2473 = vmatprep.subr.mxu0 0.0
  %2474 = vmatpush1.msra.mxu0 0.0
  %2475 = vmatprep.subr.mxu0 0.0
  %2476 = vmatpush1.msra.mxu0 0.0
  %2477 = vmatprep.subr.mxu0 0.0
  %2478 = vmatpush1.msra.mxu0 0.0
  %2479 = vmatprep.subr.mxu0 0.0
  %2480 = vmatpush1.msra.mxu0 0.0
  %2481 = vmatprep.subr.mxu0 0.0
  %2482 = vmatpush1.msra.mxu0 0.0
  %2483 = vmatprep.subr.mxu0 0.0
  %2484 = vmatpush1.msra.mxu0 0.0
  %2485 = vmatprep.subr.mxu0 0.0
  %2486 = vmatpush1.msra.mxu0 0.0
  %2487 = vmatprep.subr.mxu0 0.0
  %2488 = vmatpush1.msra.mxu0 0.0
  %2489 = vmatprep.subr.mxu0 0.0
  %2490 = vmatpush1.msra.mxu0 0.0
  %2491 = vmatprep.subr.mxu0 0.0
  %2492 = vmatpush1.msra.mxu0 0.0
  %2493 = vmatprep.subr.mxu0 0.0
  %2494 = vmatpush1.msra.mxu0 0.0
  %2495 = vmatprep.subr.mxu0 0.0
  %2496 = vmatpush1.msra.mxu0 0.0
  %2497 = vmatprep.subr.mxu0 0.0
  %2498 = vmatpush1.msra.mxu0 0.0
  %2499 = vmatprep.subr.mxu0 0.0
  %2500 = vmatpush1.msra.mxu0 0.0
  %2501 = vmatprep.subr.mxu0 0.0
  %2502 = vmatpush1.msra.mxu0 0.0
  %2503 = vmatprep.subr.mxu0 0.0
  %2504 = vmatpush1.msra.mxu0 0.0
  %2505 = vmatprep.mubr.f32.mxu0 0.0
  %2506 = vmatmul.mubr.f32.gmra.mrb[0].mxu0 %v2430
  %v2507 = vpop.f32.mrb[0].mxu0
  %v2508 = vadd.f32 0.0, %v2507
  %v2509 = vpop.f32.mrb[0].mxu0
  %2510 = vmatprep.mubr.f32.mxu0 0.0
  %2511 = vmatmul.mubr.f32.gmra.mrb[0].mxu0 %v2433
  %v2512 = vpop.f32.mrb[0].mxu0
  %v2513 = vadd.f32 0.0, %v2512
  %v2514 = vpop.f32.mrb[0].mxu0
  %2515 = vmatprep.mubr.f32.mxu0 0.0
  %2516 = vmatmul.mubr.f32.gmra.mrb[0].mxu0 %v2436
  %v2517 = vpop.f32.mrb[0].mxu0
  %v2518 = vadd.f32 0.0, %v2517
  %v2519 = vpop.f32.mrb[0].mxu0
  %2520 = vmatprep.mubr.f32.mxu0 0.0
  %2521 = vmatmul.mubr.f32.gmra.mrb[0].mxu0 %v2439
  %v2522 = vpop.f32.mrb[0].mxu0
  %v2523 = vadd.f32 0.0, %v2522
  %v2524 = vpop.f32.mrb[0].mxu0
  %2525 = vdwg.mxu0
  %v2526 = vsel %vm1621, %v2508, 0.0
  %2527 = vadd.xlane.f32.xlu0 %v2526
  %v2528 = vpop.xlane.xlu0 %2527
  %v2529 = vsel %vm1621, %v2513, 0.0
  %2530 = vadd.xlane.f32.xlu0 %v2529
  %v2531 = vpop.xlane.xlu0 %2530
  %v2532 = vsel %vm1621, %v2518, 0.0
  %2533 = vadd.xlane.f32.xlu0 %v2532
  %v2534 = vpop.xlane.xlu0 %2533
  %v2535 = vsel %vm1621, %v2523, 0.0
  %2536 = vadd.xlane.f32.xlu0 %v2535
  %v2537 = vpop.xlane.xlu0 %2536
  %v2538 = vrcp.pop 16.0
  %v2539 = vmul.f32 %v2528, %v2538
  %v2540 = vmul.f32 %v2531, %v2538
  %v2541 = vmul.f32 %v2534, %v2538
  %v2542 = vmul.f32 %v2537, %v2538
  %v2543 = vsub.f32 %v2410, %v2539
  %v2544 = vsub.f32 %v2413, %v2540
  %v2545 = vsub.f32 %v2418, %v2541
  %v2546 = vsub.f32 %v2421, %v2542
  %v2547 = vmul.f32 %v2543, %v2543
  %v2548 = vmul.f32 %v2544, %v2544
  %v2549 = vmul.f32 %v2545, %v2545
  %v2550 = vmul.f32 %v2546, %v2546
  %2551 = vmatprep.subr.mxu0 0.0
  %2552 = vmatpush1.msra.mxu0 %v2547
  %2553 = vmatprep.subr.mxu0 0.0
  %2554 = vmatpush1.msra.mxu0 %v2548
  %2555 = vmatprep.subr.mxu0 0.0
  %2556 = vmatpush1.msra.mxu0 %v2549
  %2557 = vmatprep.subr.mxu0 0.0
  %2558 = vmatpush1.msra.mxu0 %v2550
  %2559 = vmatprep.subr.mxu0 0.0
  %2560 = vmatpush1.msra.mxu0 0.0
  %2561 = vmatprep.subr.mxu0 0.0
  %2562 = vmatpush1.msra.mxu0 0.0
  %2563 = vmatprep.subr.mxu0 0.0
  %2564 = vmatpush1.msra.mxu0 0.0
  %2565 = vmatprep.subr.mxu0 0.0
  %2566 = vmatpush1.msra.mxu0 0.0
  %2567 = vmatprep.subr.mxu0 0.0
  %2568 = vmatpush1.msra.mxu0 0.0
  %2569 = vmatprep.subr.mxu0 0.0
  %2570 = vmatpush1.msra.mxu0 0.0
  %2571 = vmatprep.subr.mxu0 0.0
  %2572 = vmatpush1.msra.mxu0 0.0
  %2573 = vmatprep.subr.mxu0 0.0
  %2574 = vmatpush1.msra.mxu0 0.0
  %2575 = vmatprep.subr.mxu0 0.0
  %2576 = vmatpush1.msra.mxu0 0.0
  %2577 = vmatprep.subr.mxu0 0.0
  %2578 = vmatpush1.msra.mxu0 0.0
  %2579 = vmatprep.subr.mxu0 0.0
  %2580 = vmatpush1.msra.mxu0 0.0
  %2581 = vmatprep.subr.mxu0 0.0
  %2582 = vmatpush1.msra.mxu0 0.0
  %2583 = vmatprep.subr.mxu0 0.0
  %2584 = vmatpush1.msra.mxu0 0.0
  %2585 = vmatprep.subr.mxu0 0.0
  %2586 = vmatpush1.msra.mxu0 0.0
  %2587 = vmatprep.subr.mxu0 0.0
  %2588 = vmatpush1.msra.mxu0 0.0
  %2589 = vmatprep.subr.mxu0 0.0
  %2590 = vmatpush1.msra.mxu0 0.0
  %2591 = vmatprep.subr.mxu0 0.0
  %2592 = vmatpush1.msra.mxu0 0.0
  %2593 = vmatprep.subr.mxu0 0.0
  %2594 = vmatpush1.msra.mxu0 0.0
  %2595 = vmatprep.subr.mxu0 0.0
  %2596 = vmatpush1.msra.mxu0 0.0
  %2597 = vmatprep.subr.mxu0 0.0
  %2598 = vmatpush1.msra.mxu0 0.0
  %2599 = vmatprep.subr.mxu0 0.0
  %2600 = vmatpush1.msra.mxu0 0.0
  %2601 = vmatprep.subr.mxu0 0.0
  %2602 = vmatpush1.msra.mxu0 0.0
  %2603 = vmatprep.subr.mxu0 0.0
  %2604 = vmatpush1.msra.mxu0 0.0
  %2605 = vmatprep.subr.mxu0 0.0
  %2606 = vmatpush1.msra.mxu0 0.0
  %2607 = vmatprep.subr.mxu0 0.0
  %2608 = vmatpush1.msra.mxu0 0.0
  %2609 = vmatprep.subr.mxu0 0.0
  %2610 = vmatpush1.msra.mxu0 0.0
  %2611 = vmatprep.subr.mxu0 0.0
  %2612 = vmatpush1.msra.mxu0 0.0
  %2613 = vmatprep.subr.mxu0 0.0
  %2614 = vmatpush1.msra.mxu0 0.0
  %2615 = vmatprep.mubr.f32.mxu0 0.0
  %2616 = vmatmul.mubr.f32.gmra.mrb[0].mxu0 %v2430
  %v2617 = vpop.f32.mrb[0].mxu0
  %v2618 = vadd.f32 0.0, %v2617
  %v2619 = vpop.f32.mrb[0].mxu0
  %2620 = vmatprep.mubr.f32.mxu0 0.0
  %2621 = vmatmul.mubr.f32.gmra.mrb[0].mxu0 %v2433
  %v2622 = vpop.f32.mrb[0].mxu0
  %v2623 = vadd.f32 0.0, %v2622
  %v2624 = vpop.f32.mrb[0].mxu0
  %2625 = vmatprep.mubr.f32.mxu0 0.0
  %2626 = vmatmul.mubr.f32.gmra.mrb[0].mxu0 %v2436
  %v2627 = vpop.f32.mrb[0].mxu0
  %v2628 = vadd.f32 0.0, %v2627
  %v2629 = vpop.f32.mrb[0].mxu0
  %2630 = vmatprep.mubr.f32.mxu0 0.0
  %2631 = vmatmul.mubr.f32.gmra.mrb[0].mxu0 %v2439
  %v2632 = vpop.f32.mrb[0].mxu0
  %v2633 = vadd.f32 0.0, %v2632
  %v2634 = vpop.f32.mrb[0].mxu0
  %2635 = vdwg.mxu0
  %v2636 = vsel %vm1621, %v2618, 0.0
  %2637 = vadd.xlane.f32.xlu0 %v2636
  %v2638 = vpop.xlane.xlu0 %2637
  %v2639 = vsel %vm1621, %v2623, 0.0
  %2640 = vadd.xlane.f32.xlu0 %v2639
  %v2641 = vpop.xlane.xlu0 %2640
  %v2642 = vsel %vm1621, %v2628, 0.0
  %2643 = vadd.xlane.f32.xlu0 %v2642
  %v2644 = vpop.xlane.xlu0 %2643
  %v2645 = vsel %vm1621, %v2633, 0.0
  %2646 = vadd.xlane.f32.xlu0 %v2645
  %v2647 = vpop.xlane.xlu0 %2646
  %v2648 = vmul.f32 %v2638, %v2538
  %v2649 = vmul.f32 %v2641, %v2538
  %v2650 = vmul.f32 %v2644, %v2538
  %v2651 = vmul.f32 %v2647, %v2538
  %v2652 = vld [vmem:[%s6] sm:$0xff]
  %v2653 = vld [vmem:[%s6 + $0x8] sm:$0xff]
  %v2654 = vld [vmem:[%s6 + $0x10] sm:$0xff]
  %v2655 = vld [vmem:[%s6 + $0x18] sm:$0xff]
  %v2656 = vadd.f32 %v2648, 1e-05
  %v2657 = vadd.f32 %v2649, 1e-05
  %v2658 = vadd.f32 %v2650, 1e-05
  %v2659 = vadd.f32 %v2651, 1e-05
  %v2660 = vrsqrt.pop %v2656
  %v2661 = vrsqrt.pop %v2657
  %v2662 = vrsqrt.pop %v2658
  %v2663 = vrsqrt.pop %v2659
  %v2664 = vmul.f32 %v2652, %v2660
  %v2665 = vmul.f32 %v2653, %v2661
  %v2666 = vmul.f32 %v2654, %v2662
  %v2667 = vmul.f32 %v2655, %v2663
  %2669 = vset.pattern.permute.xlu0 0
  %2670 = vperm.xlu0 %2669, %v2664
  %v2671 = vpop.permute.xlu0 %2670
  %2674 = vset.pattern.permute.xlu0 0
  %2675 = vperm.xlu0 %2674, %v2665
  %v2676 = vpop.permute.xlu0 %2675
  %2679 = vset.pattern.permute.xlu0 0
  %2680 = vperm.xlu0 %2679, %v2666
  %v2681 = vpop.permute.xlu0 %2680
  %2684 = vset.pattern.permute.xlu0 0
  %2685 = vperm.xlu0 %2684, %v2667
  %v2686 = vpop.permute.xlu0 %2685
  %v2688 = vmul.f32 %v2543, %v2671
  %v2689 = vmul.f32 %v2544, %v2676
  %v2690 = vmul.f32 %v2545, %v2681
  %v2691 = vmul.f32 %v2546, %v2686
  %2693 = vset.pattern.permute.xlu0 1
  %2694 = vperm.xlu0 %2693, %v2652
  %v2695 = vpop.permute.xlu0 %2694
  %2698 = vset.pattern.permute.xlu0 1
  %2699 = vperm.xlu0 %2698, %v2653
  %v2700 = vpop.permute.xlu0 %2699
  %2703 = vset.pattern.permute.xlu0 1
  %2704 = vperm.xlu0 %2703, %v2654
  %v2705 = vpop.permute.xlu0 %2704
  %2708 = vset.pattern.permute.xlu0 1
  %2709 = vperm.xlu0 %2708, %v2655
  %v2710 = vpop.permute.xlu0 %2709
  %v2712 = vadd.f32 %v2688, %v2695
  %v2713 = vadd.f32 %v2689, %v2700
  %v2714 = vadd.f32 %v2690, %v2705
  %v2715 = vadd.f32 %v2691, %v2710
  %v2716 = vmax.f32 %v2712, 0.0
  %v2717 = vmax.f32 %v2713, 0.0
  %v2718 = vmax.f32 %v2714, 0.0
  %v2719 = vmax.f32 %v2715, 0.0
  %v2720 = vpack.c.bf16 %v2717, %v2716
  %v2721 = vpack.c.bf16 %v2719, %v2718
  %v2722 = vld [vmem:[%s8] sm:$0xf]
  %v2723 = vld [vmem:[%s8 + $0x4] sm:$0xf]
  %v2726 = vunpack.c.l.b16 %v2722
  %v2727 = vunpack.c.l.b16 %v2723
  %v2728 = vpack.c.b16 %v2727, %v2726
  %v2731 = vsel %vm1621, %v2720, 0
  %v2734 = vsel %vm1621, %v2721, 0
  %2736 = vmatprep.subr.bf16.mxu0 0
  %2737 = vmatpush1.bf16.msra.mxu0 %v2728
  %2738 = vmatprep.subr.bf16.mxu0 0
  %2739 = vmatpush1.bf16.msra.mxu0 0
  %2740 = vmatprep.subr.bf16.mxu0 0
  %2741 = vmatpush1.bf16.msra.mxu0 0
  %2742 = vmatprep.subr.bf16.mxu0 0
  %2743 = vmatpush1.bf16.msra.mxu0 0
  %2744 = vmatprep.subr.bf16.mxu0 0
  %2745 = vmatpush1.bf16.msra.mxu0 0
  %2746 = vmatprep.subr.bf16.mxu0 0
  %2747 = vmatpush1.bf16.msra.mxu0 0
  %2748 = vmatprep.subr.bf16.mxu0 0
  %2749 = vmatpush1.bf16.msra.mxu0 0
  %2750 = vmatprep.subr.bf16.mxu0 0
  %2751 = vmatpush1.bf16.msra.mxu0 0
  %2752 = vmatprep.subr.bf16.mxu0 0
  %2753 = vmatpush1.bf16.msra.mxu0 0
  %2754 = vmatprep.subr.bf16.mxu0 0
  %2755 = vmatpush1.bf16.msra.mxu0 0
  %2756 = vmatprep.subr.bf16.mxu0 0
  %2757 = vmatpush1.bf16.msra.mxu0 0
  %2758 = vmatprep.subr.bf16.mxu0 0
  %2759 = vmatpush1.bf16.msra.mxu0 0
  %2760 = vmatprep.subr.bf16.mxu0 0
  %2761 = vmatpush1.bf16.msra.mxu0 0
  %2762 = vmatprep.subr.bf16.mxu0 0
  %2763 = vmatpush1.bf16.msra.mxu0 0
  %2764 = vmatprep.subr.bf16.mxu0 0
  %2765 = vmatpush1.bf16.msra.mxu0 0
  %2766 = vmatprep.subr.bf16.mxu0 0
  %2767 = vmatpush1.bf16.msra.mxu0 0
  %2768 = vmatprep.mubr.bf16.mxu0 0
  %2769 = vmatmul.mubr.bf16.gmra.mrb[0].mxu0 %v2731
  %v2770 = vpop.f32.mrb[0].mxu0
  %v2771 = vadd.f32 0.0, %v2770
  %v2772 = vpop.f32.mrb[0].mxu0
  %v2773 = vpop.f32.mrb[0].mxu0
  %v2774 = vadd.f32 0.0, %v2773
  %v2775 = vpop.f32.mrb[0].mxu0
  %2776 = vmatprep.mubr.bf16.mxu0 0
  %2777 = vmatmul.mubr.bf16.gmra.mrb[0].mxu0 %v2734
  %v2778 = vpop.f32.mrb[0].mxu0
  %v2779 = vadd.f32 0.0, %v2778
  %v2780 = vpop.f32.mrb[0].mxu0
  %v2781 = vpop.f32.mrb[0].mxu0
  %v2782 = vadd.f32 0.0, %v2781
  %v2783 = vpop.f32.mrb[0].mxu0
  %2784 = vdwg.mxu0
  %v2785 = vpack.c.bf16 %v2774, %v2771
  %v2786 = vpack.c.bf16 %v2782, %v2779
  %s2787 = scalar_lea.vmem %s8, 8
  %v2788 = vld [vmem:[%s2787] sm:$0xf]
  %v2789 = vld [vmem:[%s2787 + $0x4] sm:$0xf]
  %v2792 = vunpack.c.l.b16 %v2788
  %v2793 = vunpack.c.l.b16 %v2789
  %v2794 = vpack.c.b16 %v2793, %v2792
  %2796 = vmatprep.subr.bf16.mxu0 0
  %2797 = vmatpush1.bf16.msra.mxu0 %v2794
  %2798 = vmatprep.subr.bf16.mxu0 0
  %2799 = vmatpush1.bf16.msra.mxu0 0
  %2800 = vmatprep.subr.bf16.mxu0 0
  %2801 = vmatpush1.bf16.msra.mxu0 0
  %2802 = vmatprep.subr.bf16.mxu0 0
  %2803 = vmatpush1.bf16.msra.mxu0 0
  %2804 = vmatprep.subr.bf16.mxu0 0
  %2805 = vmatpush1.bf16.msra.mxu0 0
  %2806 = vmatprep.subr.bf16.mxu0 0
  %2807 = vmatpush1.bf16.msra.mxu0 0
  %2808 = vmatprep.subr.bf16.mxu0 0
  %2809 = vmatpush1.bf16.msra.mxu0 0
  %2810 = vmatprep.subr.bf16.mxu0 0
  %2811 = vmatpush1.bf16.msra.mxu0 0
  %2812 = vmatprep.subr.bf16.mxu0 0
  %2813 = vmatpush1.bf16.msra.mxu0 0
  %2814 = vmatprep.subr.bf16.mxu0 0
  %2815 = vmatpush1.bf16.msra.mxu0 0
  %2816 = vmatprep.subr.bf16.mxu0 0
  %2817 = vmatpush1.bf16.msra.mxu0 0
  %2818 = vmatprep.subr.bf16.mxu0 0
  %2819 = vmatpush1.bf16.msra.mxu0 0
  %2820 = vmatprep.subr.bf16.mxu0 0
  %2821 = vmatpush1.bf16.msra.mxu0 0
  %2822 = vmatprep.subr.bf16.mxu0 0
  %2823 = vmatpush1.bf16.msra.mxu0 0
  %2824 = vmatprep.subr.bf16.mxu0 0
  %2825 = vmatpush1.bf16.msra.mxu0 0
  %2826 = vmatprep.subr.bf16.mxu0 0
  %2827 = vmatpush1.bf16.msra.mxu0 0
  %2828 = vmatprep.mubr.bf16.mxu0 0
  %2829 = vmatmul.mubr.bf16.gmra.mrb[0].mxu0 %v2731
  %v2830 = vpop.f32.mrb[0].mxu0
  %v2831 = vadd.f32 0.0, %v2830
  %v2832 = vpop.f32.mrb[0].mxu0
  %v2833 = vpop.f32.mrb[0].mxu0
  %v2834 = vadd.f32 0.0, %v2833
  %v2835 = vpop.f32.mrb[0].mxu0
  %2836 = vmatprep.mubr.bf16.mxu0 0
  %2837 = vmatmul.mubr.bf16.gmra.mrb[0].mxu0 %v2734
  %v2838 = vpop.f32.mrb[0].mxu0
  %v2839 = vadd.f32 0.0, %v2838
  %v2840 = vpop.f32.mrb[0].mxu0
  %v2841 = vpop.f32.mrb[0].mxu0
  %v2842 = vadd.f32 0.0, %v2841
  %v2843 = vpop.f32.mrb[0].mxu0
  %2844 = vdwg.mxu0
  %v2845 = vpack.c.bf16 %v2834, %v2831
  %v2846 = vpack.c.bf16 %v2842, %v2839
  %s2847 = scalar_lea.vmem %s8, 16
  %v2848 = vld [vmem:[%s2847] sm:$0xf]
  %v2849 = vld [vmem:[%s2847 + $0x4] sm:$0xf]
  %v2852 = vunpack.c.l.b16 %v2848
  %v2853 = vunpack.c.l.b16 %v2849
  %v2854 = vpack.c.b16 %v2853, %v2852
  %2856 = vmatprep.subr.bf16.mxu0 0
  %2857 = vmatpush1.bf16.msra.mxu0 %v2854
  %2858 = vmatprep.subr.bf16.mxu0 0
  %2859 = vmatpush1.bf16.msra.mxu0 0
  %2860 = vmatprep.subr.bf16.mxu0 0
  %2861 = vmatpush1.bf16.msra.mxu0 0
  %2862 = vmatprep.subr.bf16.mxu0 0
  %2863 = vmatpush1.bf16.msra.mxu0 0
  %2864 = vmatprep.subr.bf16.mxu0 0
  %2865 = vmatpush1.bf16.msra.mxu0 0
  %2866 = vmatprep.subr.bf16.mxu0 0
  %2867 = vmatpush1.bf16.msra.mxu0 0
  %2868 = vmatprep.subr.bf16.mxu0 0
  %2869 = vmatpush1.bf16.msra.mxu0 0
  %2870 = vmatprep.subr.bf16.mxu0 0
  %2871 = vmatpush1.bf16.msra.mxu0 0
  %2872 = vmatprep.subr.bf16.mxu0 0
  %2873 = vmatpush1.bf16.msra.mxu0 0
  %2874 = vmatprep.subr.bf16.mxu0 0
  %2875 = vmatpush1.bf16.msra.mxu0 0
  %2876 = vmatprep.subr.bf16.mxu0 0
  %2877 = vmatpush1.bf16.msra.mxu0 0
  %2878 = vmatprep.subr.bf16.mxu0 0
  %2879 = vmatpush1.bf16.msra.mxu0 0
  %2880 = vmatprep.subr.bf16.mxu0 0
  %2881 = vmatpush1.bf16.msra.mxu0 0
  %2882 = vmatprep.subr.bf16.mxu0 0
  %2883 = vmatpush1.bf16.msra.mxu0 0
  %2884 = vmatprep.subr.bf16.mxu0 0
  %2885 = vmatpush1.bf16.msra.mxu0 0
  %2886 = vmatprep.subr.bf16.mxu0 0
  %2887 = vmatpush1.bf16.msra.mxu0 0
  %2888 = vmatprep.mubr.bf16.mxu0 0
  %2889 = vmatmul.mubr.bf16.gmra.mrb[0].mxu0 %v2731
  %v2890 = vpop.f32.mrb[0].mxu0
  %v2891 = vadd.f32 0.0, %v2890
  %v2892 = vpop.f32.mrb[0].mxu0
  %v2893 = vpop.f32.mrb[0].mxu0
  %v2894 = vadd.f32 0.0, %v2893
  %v2895 = vpop.f32.mrb[0].mxu0
  %2896 = vmatprep.mubr.bf16.mxu0 0
  %2897 = vmatmul.mubr.bf16.gmra.mrb[0].mxu0 %v2734
  %v2898 = vpop.f32.mrb[0].mxu0
  %v2899 = vadd.f32 0.0, %v2898
  %v2900 = vpop.f32.mrb[0].mxu0
  %v2901 = vpop.f32.mrb[0].mxu0
  %v2902 = vadd.f32 0.0, %v2901
  %v2903 = vpop.f32.mrb[0].mxu0
  %2904 = vdwg.mxu0
  %v2905 = vpack.c.bf16 %v2894, %v2891
  %v2906 = vpack.c.bf16 %v2902, %v2899
  %s2907 = scalar_lea.vmem %s8, 24
  %v2908 = vld [vmem:[%s2907] sm:$0xf]
  %v2909 = vld [vmem:[%s2907 + $0x4] sm:$0xf]
  %v2912 = vunpack.c.l.b16 %v2908
  %v2913 = vunpack.c.l.b16 %v2909
  %v2914 = vpack.c.b16 %v2913, %v2912
  %2916 = vmatprep.subr.bf16.mxu0 0
  %2917 = vmatpush1.bf16.msra.mxu0 %v2914
  %2918 = vmatprep.subr.bf16.mxu0 0
  %2919 = vmatpush1.bf16.msra.mxu0 0
  %2920 = vmatprep.subr.bf16.mxu0 0
  %2921 = vmatpush1.bf16.msra.mxu0 0
  %2922 = vmatprep.subr.bf16.mxu0 0
  %2923 = vmatpush1.bf16.msra.mxu0 0
  %2924 = vmatprep.subr.bf16.mxu0 0
  %2925 = vmatpush1.bf16.msra.mxu0 0
  %2926 = vmatprep.subr.bf16.mxu0 0
  %2927 = vmatpush1.bf16.msra.mxu0 0
  %2928 = vmatprep.subr.bf16.mxu0 0
  %2929 = vmatpush1.bf16.msra.mxu0 0
  %2930 = vmatprep.subr.bf16.mxu0 0
  %2931 = vmatpush1.bf16.msra.mxu0 0
  %2932 = vmatprep.subr.bf16.mxu0 0
  %2933 = vmatpush1.bf16.msra.mxu0 0
  %2934 = vmatprep.subr.bf16.mxu0 0
  %2935 = vmatpush1.bf16.msra.mxu0 0
  %2936 = vmatprep.subr.bf16.mxu0 0
  %2937 = vmatpush1.bf16.msra.mxu0 0
  %2938 = vmatprep.subr.bf16.mxu0 0
  %2939 = vmatpush1.bf16.msra.mxu0 0
  %2940 = vmatprep.subr.bf16.mxu0 0
  %2941 = vmatpush1.bf16.msra.mxu0 0
  %2942 = vmatprep.subr.bf16.mxu0 0
  %2943 = vmatpush1.bf16.msra.mxu0 0
  %2944 = vmatprep.subr.bf16.mxu0 0
  %2945 = vmatpush1.bf16.msra.mxu0 0
  %2946 = vmatprep.subr.bf16.mxu0 0
  %2947 = vmatpush1.bf16.msra.mxu0 0
  %2948 = vmatprep.mubr.bf16.mxu0 0
  %2949 = vmatmul.mubr.bf16.gmra.mrb[0].mxu0 %v2731
  %v2950 = vpop.f32.mrb[0].mxu0
  %v2951 = vadd.f32 0.0, %v2950
  %v2952 = vpop.f32.mrb[0].mxu0
  %v2953 = vpop.f32.mrb[0].mxu0
  %v2954 = vadd.f32 0.0, %v2953
  %v2955 = vpop.f32.mrb[0].mxu0
  %2956 = vmatprep.mubr.bf16.mxu0 0
  %2957 = vmatmul.mubr.bf16.gmra.mrb[0].mxu0 %v2734
  %v2958 = vpop.f32.mrb[0].mxu0
  %v2959 = vadd.f32 0.0, %v2958
  %v2960 = vpop.f32.mrb[0].mxu0
  %v2961 = vpop.f32.mrb[0].mxu0
  %v2962 = vadd.f32 0.0, %v2961
  %v2963 = vpop.f32.mrb[0].mxu0
  %2964 = vdwg.mxu0
  %v2965 = vpack.c.bf16 %v2954, %v2951
  %v2966 = vpack.c.bf16 %v2962, %v2959
  %s2967 = scalar_lea.vmem %s8, 32
  %v2968 = vld [vmem:[%s2967] sm:$0xf]
  %v2969 = vld [vmem:[%s2967 + $0x4] sm:$0xf]
  %v2972 = vunpack.c.l.b16 %v2968
  %v2973 = vunpack.c.l.b16 %v2969
  %v2974 = vpack.c.b16 %v2973, %v2972
  %2976 = vmatprep.subr.bf16.mxu0 0
  %2977 = vmatpush1.bf16.msra.mxu0 %v2974
  %2978 = vmatprep.subr.bf16.mxu0 0
  %2979 = vmatpush1.bf16.msra.mxu0 0
  %2980 = vmatprep.subr.bf16.mxu0 0
  %2981 = vmatpush1.bf16.msra.mxu0 0
  %2982 = vmatprep.subr.bf16.mxu0 0
  %2983 = vmatpush1.bf16.msra.mxu0 0
  %2984 = vmatprep.subr.bf16.mxu0 0
  %2985 = vmatpush1.bf16.msra.mxu0 0
  %2986 = vmatprep.subr.bf16.mxu0 0
  %2987 = vmatpush1.bf16.msra.mxu0 0
  %2988 = vmatprep.subr.bf16.mxu0 0
  %2989 = vmatpush1.bf16.msra.mxu0 0
  %2990 = vmatprep.subr.bf16.mxu0 0
  %2991 = vmatpush1.bf16.msra.mxu0 0
  %2992 = vmatprep.subr.bf16.mxu0 0
  %2993 = vmatpush1.bf16.msra.mxu0 0
  %2994 = vmatprep.subr.bf16.mxu0 0
  %2995 = vmatpush1.bf16.msra.mxu0 0
  %2996 = vmatprep.subr.bf16.mxu0 0
  %2997 = vmatpush1.bf16.msra.mxu0 0
  %2998 = vmatprep.subr.bf16.mxu0 0
  %2999 = vmatpush1.bf16.msra.mxu0 0
  %3000 = vmatprep.subr.bf16.mxu0 0
  %3001 = vmatpush1.bf16.msra.mxu0 0
  %3002 = vmatprep.subr.bf16.mxu0 0
  %3003 = vmatpush1.bf16.msra.mxu0 0
  %3004 = vmatprep.subr.bf16.mxu0 0
  %3005 = vmatpush1.bf16.msra.mxu0 0
  %3006 = vmatprep.subr.bf16.mxu0 0
  %3007 = vmatpush1.bf16.msra.mxu0 0
  %3008 = vmatprep.mubr.bf16.mxu0 0
  %3009 = vmatmul.mubr.bf16.gmra.mrb[0].mxu0 %v2731
  %v3010 = vpop.f32.mrb[0].mxu0
  %v3011 = vadd.f32 0.0, %v3010
  %v3012 = vpop.f32.mrb[0].mxu0
  %v3013 = vpop.f32.mrb[0].mxu0
  %v3014 = vadd.f32 0.0, %v3013
  %v3015 = vpop.f32.mrb[0].mxu0
  %3016 = vmatprep.mubr.bf16.mxu0 0
  %3017 = vmatmul.mubr.bf16.gmra.mrb[0].mxu0 %v2734
  %v3018 = vpop.f32.mrb[0].mxu0
  %v3019 = vadd.f32 0.0, %v3018
  %v3020 = vpop.f32.mrb[0].mxu0
  %v3021 = vpop.f32.mrb[0].mxu0
  %v3022 = vadd.f32 0.0, %v3021
  %v3023 = vpop.f32.mrb[0].mxu0
  %3024 = vdwg.mxu0
  %v3025 = vpack.c.bf16 %v3014, %v3011
  %v3026 = vpack.c.bf16 %v3022, %v3019
  %s3027 = scalar_lea.vmem %s8, 40
  %v3028 = vld [vmem:[%s3027] sm:$0xf]
  %v3029 = vld [vmem:[%s3027 + $0x4] sm:$0xf]
  %v3032 = vunpack.c.l.b16 %v3028
  %v3033 = vunpack.c.l.b16 %v3029
  %v3034 = vpack.c.b16 %v3033, %v3032
  %3036 = vmatprep.subr.bf16.mxu0 0
  %3037 = vmatpush1.bf16.msra.mxu0 %v3034
  %3038 = vmatprep.subr.bf16.mxu0 0
  %3039 = vmatpush1.bf16.msra.mxu0 0
  %3040 = vmatprep.subr.bf16.mxu0 0
  %3041 = vmatpush1.bf16.msra.mxu0 0
  %3042 = vmatprep.subr.bf16.mxu0 0
  %3043 = vmatpush1.bf16.msra.mxu0 0
  %3044 = vmatprep.subr.bf16.mxu0 0
  %3045 = vmatpush1.bf16.msra.mxu0 0
  %3046 = vmatprep.subr.bf16.mxu0 0
  %3047 = vmatpush1.bf16.msra.mxu0 0
  %3048 = vmatprep.subr.bf16.mxu0 0
  %3049 = vmatpush1.bf16.msra.mxu0 0
  %3050 = vmatprep.subr.bf16.mxu0 0
  %3051 = vmatpush1.bf16.msra.mxu0 0
  %3052 = vmatprep.subr.bf16.mxu0 0
  %3053 = vmatpush1.bf16.msra.mxu0 0
  %3054 = vmatprep.subr.bf16.mxu0 0
  %3055 = vmatpush1.bf16.msra.mxu0 0
  %3056 = vmatprep.subr.bf16.mxu0 0
  %3057 = vmatpush1.bf16.msra.mxu0 0
  %3058 = vmatprep.subr.bf16.mxu0 0
  %3059 = vmatpush1.bf16.msra.mxu0 0
  %3060 = vmatprep.subr.bf16.mxu0 0
  %3061 = vmatpush1.bf16.msra.mxu0 0
  %3062 = vmatprep.subr.bf16.mxu0 0
  %3063 = vmatpush1.bf16.msra.mxu0 0
  %3064 = vmatprep.subr.bf16.mxu0 0
  %3065 = vmatpush1.bf16.msra.mxu0 0
  %3066 = vmatprep.subr.bf16.mxu0 0
  %3067 = vmatpush1.bf16.msra.mxu0 0
  %3068 = vmatprep.mubr.bf16.mxu0 0
  %3069 = vmatmul.mubr.bf16.gmra.mrb[0].mxu0 %v2731
  %v3070 = vpop.f32.mrb[0].mxu0
  %v3071 = vadd.f32 0.0, %v3070
  %v3072 = vpop.f32.mrb[0].mxu0
  %v3073 = vpop.f32.mrb[0].mxu0
  %v3074 = vadd.f32 0.0, %v3073
  %v3075 = vpop.f32.mrb[0].mxu0
  %3076 = vmatprep.mubr.bf16.mxu0 0
  %3077 = vmatmul.mubr.bf16.gmra.mrb[0].mxu0 %v2734
  %v3078 = vpop.f32.mrb[0].mxu0
  %v3079 = vadd.f32 0.0, %v3078
  %v3080 = vpop.f32.mrb[0].mxu0
  %v3081 = vpop.f32.mrb[0].mxu0
  %v3082 = vadd.f32 0.0, %v3081
  %v3083 = vpop.f32.mrb[0].mxu0
  %3084 = vdwg.mxu0
  %v3085 = vpack.c.bf16 %v3074, %v3071
  %v3086 = vpack.c.bf16 %v3082, %v3079
  %s3087 = scalar_lea.vmem %s8, 48
  %v3088 = vld [vmem:[%s3087] sm:$0xf]
  %v3089 = vld [vmem:[%s3087 + $0x4] sm:$0xf]
  %v3092 = vunpack.c.l.b16 %v3088
  %v3093 = vunpack.c.l.b16 %v3089
  %v3094 = vpack.c.b16 %v3093, %v3092
  %3096 = vmatprep.subr.bf16.mxu0 0
  %3097 = vmatpush1.bf16.msra.mxu0 %v3094
  %3098 = vmatprep.subr.bf16.mxu0 0
  %3099 = vmatpush1.bf16.msra.mxu0 0
  %3100 = vmatprep.subr.bf16.mxu0 0
  %3101 = vmatpush1.bf16.msra.mxu0 0
  %3102 = vmatprep.subr.bf16.mxu0 0
  %3103 = vmatpush1.bf16.msra.mxu0 0
  %3104 = vmatprep.subr.bf16.mxu0 0
  %3105 = vmatpush1.bf16.msra.mxu0 0
  %3106 = vmatprep.subr.bf16.mxu0 0
  %3107 = vmatpush1.bf16.msra.mxu0 0
  %3108 = vmatprep.subr.bf16.mxu0 0
  %3109 = vmatpush1.bf16.msra.mxu0 0
  %3110 = vmatprep.subr.bf16.mxu0 0
  %3111 = vmatpush1.bf16.msra.mxu0 0
  %3112 = vmatprep.subr.bf16.mxu0 0
  %3113 = vmatpush1.bf16.msra.mxu0 0
  %3114 = vmatprep.subr.bf16.mxu0 0
  %3115 = vmatpush1.bf16.msra.mxu0 0
  %3116 = vmatprep.subr.bf16.mxu0 0
  %3117 = vmatpush1.bf16.msra.mxu0 0
  %3118 = vmatprep.subr.bf16.mxu0 0
  %3119 = vmatpush1.bf16.msra.mxu0 0
  %3120 = vmatprep.subr.bf16.mxu0 0
  %3121 = vmatpush1.bf16.msra.mxu0 0
  %3122 = vmatprep.subr.bf16.mxu0 0
  %3123 = vmatpush1.bf16.msra.mxu0 0
  %3124 = vmatprep.subr.bf16.mxu0 0
  %3125 = vmatpush1.bf16.msra.mxu0 0
  %3126 = vmatprep.subr.bf16.mxu0 0
  %3127 = vmatpush1.bf16.msra.mxu0 0
  %3128 = vmatprep.mubr.bf16.mxu0 0
  %3129 = vmatmul.mubr.bf16.gmra.mrb[0].mxu0 %v2731
  %v3130 = vpop.f32.mrb[0].mxu0
  %v3131 = vadd.f32 0.0, %v3130
  %v3132 = vpop.f32.mrb[0].mxu0
  %v3133 = vpop.f32.mrb[0].mxu0
  %v3134 = vadd.f32 0.0, %v3133
  %v3135 = vpop.f32.mrb[0].mxu0
  %3136 = vmatprep.mubr.bf16.mxu0 0
  %3137 = vmatmul.mubr.bf16.gmra.mrb[0].mxu0 %v2734
  %v3138 = vpop.f32.mrb[0].mxu0
  %v3139 = vadd.f32 0.0, %v3138
  %v3140 = vpop.f32.mrb[0].mxu0
  %v3141 = vpop.f32.mrb[0].mxu0
  %v3142 = vadd.f32 0.0, %v3141
  %v3143 = vpop.f32.mrb[0].mxu0
  %3144 = vdwg.mxu0
  %v3145 = vpack.c.bf16 %v3134, %v3131
  %v3146 = vpack.c.bf16 %v3142, %v3139
  %s3147 = scalar_lea.vmem %s8, 56
  %v3148 = vld [vmem:[%s3147] sm:$0xf]
  %v3149 = vld [vmem:[%s3147 + $0x4] sm:$0xf]
  %v3152 = vunpack.c.l.b16 %v3148
  %v3153 = vunpack.c.l.b16 %v3149
  %v3154 = vpack.c.b16 %v3153, %v3152
  %3156 = vmatprep.subr.bf16.mxu0 0
  %3157 = vmatpush1.bf16.msra.mxu0 %v3154
  %3158 = vmatprep.subr.bf16.mxu0 0
  %3159 = vmatpush1.bf16.msra.mxu0 0
  %3160 = vmatprep.subr.bf16.mxu0 0
  %3161 = vmatpush1.bf16.msra.mxu0 0
  %3162 = vmatprep.subr.bf16.mxu0 0
  %3163 = vmatpush1.bf16.msra.mxu0 0
  %3164 = vmatprep.subr.bf16.mxu0 0
  %3165 = vmatpush1.bf16.msra.mxu0 0
  %3166 = vmatprep.subr.bf16.mxu0 0
  %3167 = vmatpush1.bf16.msra.mxu0 0
  %3168 = vmatprep.subr.bf16.mxu0 0
  %3169 = vmatpush1.bf16.msra.mxu0 0
  %3170 = vmatprep.subr.bf16.mxu0 0
  %3171 = vmatpush1.bf16.msra.mxu0 0
  %3172 = vmatprep.subr.bf16.mxu0 0
  %3173 = vmatpush1.bf16.msra.mxu0 0
  %3174 = vmatprep.subr.bf16.mxu0 0
  %3175 = vmatpush1.bf16.msra.mxu0 0
  %3176 = vmatprep.subr.bf16.mxu0 0
  %3177 = vmatpush1.bf16.msra.mxu0 0
  %3178 = vmatprep.subr.bf16.mxu0 0
  %3179 = vmatpush1.bf16.msra.mxu0 0
  %3180 = vmatprep.subr.bf16.mxu0 0
  %3181 = vmatpush1.bf16.msra.mxu0 0
  %3182 = vmatprep.subr.bf16.mxu0 0
  %3183 = vmatpush1.bf16.msra.mxu0 0
  %3184 = vmatprep.subr.bf16.mxu0 0
  %3185 = vmatpush1.bf16.msra.mxu0 0
  %3186 = vmatprep.subr.bf16.mxu0 0
  %3187 = vmatpush1.bf16.msra.mxu0 0
  %3188 = vmatprep.mubr.bf16.mxu0 0
  %3189 = vmatmul.mubr.bf16.gmra.mrb[0].mxu0 %v2731
  %v3190 = vpop.f32.mrb[0].mxu0
  %v3191 = vadd.f32 0.0, %v3190
  %v3192 = vpop.f32.mrb[0].mxu0
  %v3193 = vpop.f32.mrb[0].mxu0
  %v3194 = vadd.f32 0.0, %v3193
  %v3195 = vpop.f32.mrb[0].mxu0
  %3196 = vmatprep.mubr.bf16.mxu0 0
  %3197 = vmatmul.mubr.bf16.gmra.mrb[0].mxu0 %v2734
  %v3198 = vpop.f32.mrb[0].mxu0
  %v3199 = vadd.f32 0.0, %v3198
  %v3200 = vpop.f32.mrb[0].mxu0
  %v3201 = vpop.f32.mrb[0].mxu0
  %v3202 = vadd.f32 0.0, %v3201
  %v3203 = vpop.f32.mrb[0].mxu0
  %3204 = vdwg.mxu0
  %v3205 = vpack.c.bf16 %v3194, %v3191
  %v3206 = vpack.c.bf16 %v3202, %v3199
  %s3207 = scalar_lea.vmem %s8, 64
  %v3208 = vld [vmem:[%s3207] sm:$0xf]
  %v3209 = vld [vmem:[%s3207 + $0x4] sm:$0xf]
  %v3212 = vunpack.c.l.b16 %v3208
  %v3213 = vunpack.c.l.b16 %v3209
  %v3214 = vpack.c.b16 %v3213, %v3212
  %3216 = vmatprep.subr.bf16.mxu0 0
  %3217 = vmatpush1.bf16.msra.mxu0 %v3214
  %3218 = vmatprep.subr.bf16.mxu0 0
  %3219 = vmatpush1.bf16.msra.mxu0 0
  %3220 = vmatprep.subr.bf16.mxu0 0
  %3221 = vmatpush1.bf16.msra.mxu0 0
  %3222 = vmatprep.subr.bf16.mxu0 0
  %3223 = vmatpush1.bf16.msra.mxu0 0
  %3224 = vmatprep.subr.bf16.mxu0 0
  %3225 = vmatpush1.bf16.msra.mxu0 0
  %3226 = vmatprep.subr.bf16.mxu0 0
  %3227 = vmatpush1.bf16.msra.mxu0 0
  %3228 = vmatprep.subr.bf16.mxu0 0
  %3229 = vmatpush1.bf16.msra.mxu0 0
  %3230 = vmatprep.subr.bf16.mxu0 0
  %3231 = vmatpush1.bf16.msra.mxu0 0
  %3232 = vmatprep.subr.bf16.mxu0 0
  %3233 = vmatpush1.bf16.msra.mxu0 0
  %3234 = vmatprep.subr.bf16.mxu0 0
  %3235 = vmatpush1.bf16.msra.mxu0 0
  %3236 = vmatprep.subr.bf16.mxu0 0
  %3237 = vmatpush1.bf16.msra.mxu0 0
  %3238 = vmatprep.subr.bf16.mxu0 0
  %3239 = vmatpush1.bf16.msra.mxu0 0
  %3240 = vmatprep.subr.bf16.mxu0 0
  %3241 = vmatpush1.bf16.msra.mxu0 0
  %3242 = vmatprep.subr.bf16.mxu0 0
  %3243 = vmatpush1.bf16.msra.mxu0 0
  %3244 = vmatprep.subr.bf16.mxu0 0
  %3245 = vmatpush1.bf16.msra.mxu0 0
  %3246 = vmatprep.subr.bf16.mxu0 0
  %3247 = vmatpush1.bf16.msra.mxu0 0
  %3248 = vmatprep.mubr.bf16.mxu0 0
  %3249 = vmatmul.mubr.bf16.gmra.mrb[0].mxu0 %v2731
  %v3250 = vpop.f32.mrb[0].mxu0
  %v3251 = vadd.f32 0.0, %v3250
  %v3252 = vpop.f32.mrb[0].mxu0
  %v3253 = vpop.f32.mrb[0].mxu0
  %v3254 = vadd.f32 0.0, %v3253
  %v3255 = vpop.f32.mrb[0].mxu0
  %3256 = vmatprep.mubr.bf16.mxu0 0
  %3257 = vmatmul.mubr.bf16.gmra.mrb[0].mxu0 %v2734
  %v3258 = vpop.f32.mrb[0].mxu0
  %v3259 = vadd.f32 0.0, %v3258
  %v3260 = vpop.f32.mrb[0].mxu0
  %v3261 = vpop.f32.mrb[0].mxu0
  %v3262 = vadd.f32 0.0, %v3261
  %v3263 = vpop.f32.mrb[0].mxu0
  %3264 = vdwg.mxu0
  %v3265 = vpack.c.bf16 %v3254, %v3251
  %v3266 = vpack.c.bf16 %v3262, %v3259
  %v3267 = vld [vmem:[%s7] sm:$0xff]
  %v3268 = vld [vmem:[%s7 + $0x8] sm:$0xf]
  %v3269 = vld [vmem:[%s7 + $0xc] sm:$0xff]
  %v3270 = vld [vmem:[%s7 + $0x14] sm:$0xf]
  %v3271 = vld [vmem:[%s7 + $0x18] sm:$0xff]
  %v3272 = vld [vmem:[%s7 + $0x20] sm:$0xf]
  %v3273 = vld [vmem:[%s7 + $0x24] sm:$0xff]
  %v3274 = vld [vmem:[%s7 + $0x2c] sm:$0xf]
  %v3283 = vunpack.c.l.b16 %v3267
  %v3284 = vunpack.c.h.b16 %v3267
  %v3285 = vunpack.c.l.b16 %v3268
  %v3286 = vunpack.c.l.b16 %v3269
  %v3287 = vunpack.c.h.b16 %v3269
  %v3288 = vunpack.c.l.b16 %v3270
  %v3289 = vunpack.c.l.b16 %v3271
  %v3290 = vunpack.c.h.b16 %v3271
  %v3291 = vunpack.c.l.b16 %v3272
  %v3292 = vunpack.c.l.b16 %v3273
  %v3293 = vunpack.c.h.b16 %v3273
  %v3294 = vunpack.c.l.b16 %v3274
  %v3295 = vpack.c.b16 %v3286, %v3283
  %v3296 = vpack.c.b16 %v3287, %v3284
  %v3297 = vpack.c.b16 %v3288, %v3285
  %v3298 = vpack.c.b16 %v3292, %v3289
  %v3299 = vpack.c.b16 %v3293, %v3290
  %v3300 = vpack.c.b16 %v3294, %v3291
  %v3306 = vsel %vm2428, %v3297, 0
  %v3309 = vsel %vm2428, %v3300, 0
  %3311 = vmatprep.subr.bf16.mxu0 0
  %3312 = vmatpush1.bf16.msra.mxu0 %v2785
  %3313 = vmatprep.subr.bf16.mxu0 0
  %3314 = vmatpush1.bf16.msra.mxu0 %v2786
  %3315 = vmatprep.subr.bf16.mxu0 0
  %3316 = vmatpush1.bf16.msra.mxu0 %v2845
  %3317 = vmatprep.subr.bf16.mxu0 0
  %3318 = vmatpush1.bf16.msra.mxu0 %v2846
  %3319 = vmatprep.subr.bf16.mxu0 0
  %3320 = vmatpush1.bf16.msra.mxu0 %v2905
  %3321 = vmatprep.subr.bf16.mxu0 0
  %3322 = vmatpush1.bf16.msra.mxu0 %v2906
  %3323 = vmatprep.subr.bf16.mxu0 0
  %3324 = vmatpush1.bf16.msra.mxu0 %v2965
  %3325 = vmatprep.subr.bf16.mxu0 0
  %3326 = vmatpush1.bf16.msra.mxu0 %v2966
  %3327 = vmatprep.subr.bf16.mxu0 0
  %3328 = vmatpush1.bf16.msra.mxu0 %v3025
  %3329 = vmatprep.subr.bf16.mxu0 0
  %3330 = vmatpush1.bf16.msra.mxu0 %v3026
  %3331 = vmatprep.subr.bf16.mxu0 0
  %3332 = vmatpush1.bf16.msra.mxu0 %v3085
  %3333 = vmatprep.subr.bf16.mxu0 0
  %3334 = vmatpush1.bf16.msra.mxu0 %v3086
  %3335 = vmatprep.subr.bf16.mxu0 0
  %3336 = vmatpush1.bf16.msra.mxu0 %v3145
  %3337 = vmatprep.subr.bf16.mxu0 0
  %3338 = vmatpush1.bf16.msra.mxu0 %v3146
  %3339 = vmatprep.subr.bf16.mxu0 0
  %3340 = vmatpush1.bf16.msra.mxu0 %v3205
  %3341 = vmatprep.subr.bf16.mxu0 0
  %3342 = vmatpush1.bf16.msra.mxu0 %v3206
  %3343 = vmatprep.mubr.bf16.mxu0 %v3296
  %3344 = vmatmul.mubr.bf16.gmra.mrb[0].mxu0 %v3295
  %v3345 = vpop.f32.mrb[0].mxu0
  %v3346 = vadd.f32 0.0, %v3345
  %v3347 = vpop.f32.mrb[0].mxu0
  %v3348 = vpop.f32.mrb[0].mxu0
  %v3349 = vadd.f32 0.0, %v3348
  %v3350 = vpop.f32.mrb[0].mxu0
  %3351 = vmatprep.mubr.bf16.mxu0 %v3299
  %3352 = vmatmul.mubr.bf16.gmra.mrb[0].mxu0 %v3298
  %v3353 = vpop.f32.mrb[0].mxu0
  %v3354 = vadd.f32 0.0, %v3353
  %v3355 = vpop.f32.mrb[0].mxu0
  %v3356 = vpop.f32.mrb[0].mxu0
  %v3357 = vadd.f32 0.0, %v3356
  %v3358 = vpop.f32.mrb[0].mxu0
  %3359 = vdwg.mxu0
  %3360 = vmatprep.subr.bf16.mxu0 0
  %3361 = vmatpush1.bf16.msra.mxu0 %v3265
  %3362 = vmatprep.subr.bf16.mxu0 0
  %3363 = vmatpush1.bf16.msra.mxu0 %v3266
  %3364 = vmatprep.subr.bf16.mxu0 0
  %3365 = vmatpush1.bf16.msra.mxu0 0
  %3366 = vmatprep.subr.bf16.mxu0 0
  %3367 = vmatpush1.bf16.msra.mxu0 0
  %3368 = vmatprep.subr.bf16.mxu0 0
  %3369 = vmatpush1.bf16.msra.mxu0 0
  %3370 = vmatprep.subr.bf16.mxu0 0
  %3371 = vmatpush1.bf16.msra.mxu0 0
  %3372 = vmatprep.subr.bf16.mxu0 0
  %3373 = vmatpush1.bf16.msra.mxu0 0
  %3374 = vmatprep.subr.bf16.mxu0 0
  %3375 = vmatpush1.bf16.msra.mxu0 0
  %3376 = vmatprep.subr.bf16.mxu0 0
  %3377 = vmatpush1.bf16.msra.mxu0 0
  %3378 = vmatprep.subr.bf16.mxu0 0
  %3379 = vmatpush1.bf16.msra.mxu0 0
  %3380 = vmatprep.subr.bf16.mxu0 0
  %3381 = vmatpush1.bf16.msra.mxu0 0
  %3382 = vmatprep.subr.bf16.mxu0 0
  %3383 = vmatpush1.bf16.msra.mxu0 0
  %3384 = vmatprep.subr.bf16.mxu0 0
  %3385 = vmatpush1.bf16.msra.mxu0 0
  %3386 = vmatprep.subr.bf16.mxu0 0
  %3387 = vmatpush1.bf16.msra.mxu0 0
  %3388 = vmatprep.subr.bf16.mxu0 0
  %3389 = vmatpush1.bf16.msra.mxu0 0
  %3390 = vmatprep.subr.bf16.mxu0 0
  %3391 = vmatpush1.bf16.msra.mxu0 0
  %3392 = vmatprep.mubr.bf16.mxu0 0
  %3393 = vmatmul.mubr.bf16.gmra.mrb[0].mxu0 %v3306
  %v3394 = vpop.f32.mrb[0].mxu0
  %v3395 = vadd.f32 %v3346, %v3394
  %v3396 = vpop.f32.mrb[0].mxu0
  %v3397 = vpop.f32.mrb[0].mxu0
  %v3398 = vadd.f32 %v3349, %v3397
  %v3399 = vpop.f32.mrb[0].mxu0
  %3400 = vmatprep.mubr.bf16.mxu0 0
  %3401 = vmatmul.mubr.bf16.gmra.mrb[0].mxu0 %v3309
  %v3402 = vpop.f32.mrb[0].mxu0
  %v3403 = vadd.f32 %v3354, %v3402
  %v3404 = vpop.f32.mrb[0].mxu0
  %v3405 = vpop.f32.mrb[0].mxu0
  %v3406 = vadd.f32 %v3357, %v3405
  %v3407 = vpop.f32.mrb[0].mxu0
  %3408 = vdwg.mxu0
  %v3409 = vmax.f32 %v3395, 0.0
  %v3410 = vmax.f32 %v3398, 0.0
  %v3411 = vmax.f32 %v3403, 0.0
  %v3412 = vmax.f32 %v3406, 0.0
  %v3413 = vpack.c.bf16 %v3410, %v3409
  %v3414 = vpack.c.bf16 %v3412, %v3411
  %v3415 = vld [vmem:[%s10] sm:$0x3]
  %vm3416 = vcmask 31744
  %v3418 = vsel %vm3416, %v3413, 0
  %v3421 = vsel %vm3416, %v3414, 0
  %vm3423 = vcmask 1041408
  %v3425 = vsel %vm3423, %v3415, 0
  %3427 = vmatprep.subr.bf16.mxu0 0
  %3428 = vmatpush1.bf16.msra.mxu0 %v3425
  %3429 = vmatprep.subr.bf16.mxu0 0
  %3430 = vmatpush1.bf16.msra.mxu0 0
  %3431 = vmatprep.subr.bf16.mxu0 0
  %3432 = vmatpush1.bf16.msra.mxu0 0
  %3433 = vmatprep.subr.bf16.mxu0 0
  %3434 = vmatpush1.bf16.msra.mxu0 0
  %3435 = vmatprep.subr.bf16.mxu0 0
  %3436 = vmatpush1.bf16.msra.mxu0 0
  %3437 = vmatprep.subr.bf16.mxu0 0
  %3438 = vmatpush1.bf16.msra.mxu0 0
  %3439 = vmatprep.subr.bf16.mxu0 0
  %3440 = vmatpush1.bf16.msra.mxu0 0
  %3441 = vmatprep.subr.bf16.mxu0 0
  %3442 = vmatpush1.bf16.msra.mxu0 0
  %3443 = vmatprep.subr.bf16.mxu0 0
  %3444 = vmatpush1.bf16.msra.mxu0 0
  %3445 = vmatprep.subr.bf16.mxu0 0
  %3446 = vmatpush1.bf16.msra.mxu0 0
  %3447 = vmatprep.subr.bf16.mxu0 0
  %3448 = vmatpush1.bf16.msra.mxu0 0
  %3449 = vmatprep.subr.bf16.mxu0 0
  %3450 = vmatpush1.bf16.msra.mxu0 0
  %3451 = vmatprep.subr.bf16.mxu0 0
  %3452 = vmatpush1.bf16.msra.mxu0 0
  %3453 = vmatprep.subr.bf16.mxu0 0
  %3454 = vmatpush1.bf16.msra.mxu0 0
  %3455 = vmatprep.subr.bf16.mxu0 0
  %3456 = vmatpush1.bf16.msra.mxu0 0
  %3457 = vmatprep.subr.bf16.mxu0 0
  %3458 = vmatpush1.bf16.msra.mxu0 0
  %3459 = vmatprep.mubr.bf16.mxu0 0
  %3460 = vmatmul.mubr.bf16.gmra.mrb[0].mxu0 %v3418
  %v3461 = vpop.f32.mrb[0].mxu0
  %v3462 = vadd.f32 0.0, %v3461
  %v3463 = vpop.f32.mrb[0].mxu0
  %v3464 = vpop.f32.mrb[0].mxu0
  %v3465 = vadd.f32 0.0, %v3464
  %v3466 = vpop.f32.mrb[0].mxu0
  %3467 = vmatprep.mubr.bf16.mxu0 0
  %3468 = vmatmul.mubr.bf16.gmra.mrb[0].mxu0 %v3421
  %v3469 = vpop.f32.mrb[0].mxu0
  %v3470 = vadd.f32 0.0, %v3469
  %v3471 = vpop.f32.mrb[0].mxu0
  %v3472 = vpop.f32.mrb[0].mxu0
  %v3473 = vadd.f32 0.0, %v3472
  %v3474 = vpop.f32.mrb[0].mxu0
  %3475 = vdwg.mxu0
  %v3476 = vpack.c.bf16 %v3465, %v3462
  %v3477 = vpack.c.bf16 %v3473, %v3470
  %s3478 = scalar_lea.vmem %s10, 2
  %v3479 = vld [vmem:[%s3478] sm:$0x3]
  %v3481 = vsel %vm3423, %v3479, 0
  %3483 = vmatprep.subr.bf16.mxu0 0
  %3484 = vmatpush1.bf16.msra.mxu0 %v3481
  %3485 = vmatprep.subr.bf16.mxu0 0
  %3486 = vmatpush1.bf16.msra.mxu0 0
  %3487 = vmatprep.subr.bf16.mxu0 0
  %3488 = vmatpush1.bf16.msra.mxu0 0
  %3489 = vmatprep.subr.bf16.mxu0 0
  %3490 = vmatpush1.bf16.msra.mxu0 0
  %3491 = vmatprep.subr.bf16.mxu0 0
  %3492 = vmatpush1.bf16.msra.mxu0 0
  %3493 = vmatprep.subr.bf16.mxu0 0
  %3494 = vmatpush1.bf16.msra.mxu0 0
  %3495 = vmatprep.subr.bf16.mxu0 0
  %3496 = vmatpush1.bf16.msra.mxu0 0
  %3497 = vmatprep.subr.bf16.mxu0 0
  %3498 = vmatpush1.bf16.msra.mxu0 0
  %3499 = vmatprep.subr.bf16.mxu0 0
  %3500 = vmatpush1.bf16.msra.mxu0 0
  %3501 = vmatprep.subr.bf16.mxu0 0
  %3502 = vmatpush1.bf16.msra.mxu0 0
  %3503 = vmatprep.subr.bf16.mxu0 0
  %3504 = vmatpush1.bf16.msra.mxu0 0
  %3505 = vmatprep.subr.bf16.mxu0 0
  %3506 = vmatpush1.bf16.msra.mxu0 0
  %3507 = vmatprep.subr.bf16.mxu0 0
  %3508 = vmatpush1.bf16.msra.mxu0 0
  %3509 = vmatprep.subr.bf16.mxu0 0
  %3510 = vmatpush1.bf16.msra.mxu0 0
  %3511 = vmatprep.subr.bf16.mxu0 0
  %3512 = vmatpush1.bf16.msra.mxu0 0
  %3513 = vmatprep.subr.bf16.mxu0 0
  %3514 = vmatpush1.bf16.msra.mxu0 0
  %3515 = vmatprep.mubr.bf16.mxu0 0
  %3516 = vmatmul.mubr.bf16.gmra.mrb[0].mxu0 %v3418
  %v3517 = vpop.f32.mrb[0].mxu0
  %v3518 = vadd.f32 0.0, %v3517
  %v3519 = vpop.f32.mrb[0].mxu0
  %v3520 = vpop.f32.mrb[0].mxu0
  %v3521 = vadd.f32 0.0, %v3520
  %v3522 = vpop.f32.mrb[0].mxu0
  %3523 = vmatprep.mubr.bf16.mxu0 0
  %3524 = vmatmul.mubr.bf16.gmra.mrb[0].mxu0 %v3421
  %v3525 = vpop.f32.mrb[0].mxu0
  %v3526 = vadd.f32 0.0, %v3525
  %v3527 = vpop.f32.mrb[0].mxu0
  %v3528 = vpop.f32.mrb[0].mxu0
  %v3529 = vadd.f32 0.0, %v3528
  %v3530 = vpop.f32.mrb[0].mxu0
  %3531 = vdwg.mxu0
  %v3532 = vpack.c.bf16 %v3521, %v3518
  %v3533 = vpack.c.bf16 %v3529, %v3526
  %s3534 = scalar_lea.vmem %s10, 4
  %v3535 = vld [vmem:[%s3534] sm:$0x3]
  %v3537 = vsel %vm3423, %v3535, 0
  %3539 = vmatprep.subr.bf16.mxu0 0
  %3540 = vmatpush1.bf16.msra.mxu0 %v3537
  %3541 = vmatprep.subr.bf16.mxu0 0
  %3542 = vmatpush1.bf16.msra.mxu0 0
  %3543 = vmatprep.subr.bf16.mxu0 0
  %3544 = vmatpush1.bf16.msra.mxu0 0
  %3545 = vmatprep.subr.bf16.mxu0 0
  %3546 = vmatpush1.bf16.msra.mxu0 0
  %3547 = vmatprep.subr.bf16.mxu0 0
  %3548 = vmatpush1.bf16.msra.mxu0 0
  %3549 = vmatprep.subr.bf16.mxu0 0
  %3550 = vmatpush1.bf16.msra.mxu0 0
  %3551 = vmatprep.subr.bf16.mxu0 0
  %3552 = vmatpush1.bf16.msra.mxu0 0
  %3553 = vmatprep.subr.bf16.mxu0 0
  %3554 = vmatpush1.bf16.msra.mxu0 0
  %3555 = vmatprep.subr.bf16.mxu0 0
  %3556 = vmatpush1.bf16.msra.mxu0 0
  %3557 = vmatprep.subr.bf16.mxu0 0
  %3558 = vmatpush1.bf16.msra.mxu0 0
  %3559 = vmatprep.subr.bf16.mxu0 0
  %3560 = vmatpush1.bf16.msra.mxu0 0
  %3561 = vmatprep.subr.bf16.mxu0 0
  %3562 = vmatpush1.bf16.msra.mxu0 0
  %3563 = vmatprep.subr.bf16.mxu0 0
  %3564 = vmatpush1.bf16.msra.mxu0 0
  %3565 = vmatprep.subr.bf16.mxu0 0
  %3566 = vmatpush1.bf16.msra.mxu0 0
  %3567 = vmatprep.subr.bf16.mxu0 0
  %3568 = vmatpush1.bf16.msra.mxu0 0
  %3569 = vmatprep.subr.bf16.mxu0 0
  %3570 = vmatpush1.bf16.msra.mxu0 0
  %3571 = vmatprep.mubr.bf16.mxu0 0
  %3572 = vmatmul.mubr.bf16.gmra.mrb[0].mxu0 %v3418
  %v3573 = vpop.f32.mrb[0].mxu0
  %v3574 = vadd.f32 0.0, %v3573
  %v3575 = vpop.f32.mrb[0].mxu0
  %v3576 = vpop.f32.mrb[0].mxu0
  %v3577 = vadd.f32 0.0, %v3576
  %v3578 = vpop.f32.mrb[0].mxu0
  %3579 = vmatprep.mubr.bf16.mxu0 0
  %3580 = vmatmul.mubr.bf16.gmra.mrb[0].mxu0 %v3421
  %v3581 = vpop.f32.mrb[0].mxu0
  %v3582 = vadd.f32 0.0, %v3581
  %v3583 = vpop.f32.mrb[0].mxu0
  %v3584 = vpop.f32.mrb[0].mxu0
  %v3585 = vadd.f32 0.0, %v3584
  %v3586 = vpop.f32.mrb[0].mxu0
  %3587 = vdwg.mxu0
  %v3588 = vpack.c.bf16 %v3577, %v3574
  %v3589 = vpack.c.bf16 %v3585, %v3582
  %s3590 = scalar_lea.vmem %s10, 6
  %v3591 = vld [vmem:[%s3590] sm:$0x3]
  %v3593 = vsel %vm3423, %v3591, 0
  %3595 = vmatprep.subr.bf16.mxu0 0
  %3596 = vmatpush1.bf16.msra.mxu0 %v3593
  %3597 = vmatprep.subr.bf16.mxu0 0
  %3598 = vmatpush1.bf16.msra.mxu0 0
  %3599 = vmatprep.subr.bf16.mxu0 0
  %3600 = vmatpush1.bf16.msra.mxu0 0
  %3601 = vmatprep.subr.bf16.mxu0 0
  %3602 = vmatpush1.bf16.msra.mxu0 0
  %3603 = vmatprep.subr.bf16.mxu0 0
  %3604 = vmatpush1.bf16.msra.mxu0 0
  %3605 = vmatprep.subr.bf16.mxu0 0
  %3606 = vmatpush1.bf16.msra.mxu0 0
  %3607 = vmatprep.subr.bf16.mxu0 0
  %3608 = vmatpush1.bf16.msra.mxu0 0
  %3609 = vmatprep.subr.bf16.mxu0 0
  %3610 = vmatpush1.bf16.msra.mxu0 0
  %3611 = vmatprep.subr.bf16.mxu0 0
  %3612 = vmatpush1.bf16.msra.mxu0 0
  %3613 = vmatprep.subr.bf16.mxu0 0
  %3614 = vmatpush1.bf16.msra.mxu0 0
  %3615 = vmatprep.subr.bf16.mxu0 0
  %3616 = vmatpush1.bf16.msra.mxu0 0
  %3617 = vmatprep.subr.bf16.mxu0 0
  %3618 = vmatpush1.bf16.msra.mxu0 0
  %3619 = vmatprep.subr.bf16.mxu0 0
  %3620 = vmatpush1.bf16.msra.mxu0 0
  %3621 = vmatprep.subr.bf16.mxu0 0
  %3622 = vmatpush1.bf16.msra.mxu0 0
  %3623 = vmatprep.subr.bf16.mxu0 0
  %3624 = vmatpush1.bf16.msra.mxu0 0
  %3625 = vmatprep.subr.bf16.mxu0 0
  %3626 = vmatpush1.bf16.msra.mxu0 0
  %3627 = vmatprep.mubr.bf16.mxu0 0
  %3628 = vmatmul.mubr.bf16.gmra.mrb[0].mxu0 %v3418
  %v3629 = vpop.f32.mrb[0].mxu0
  %v3630 = vadd.f32 0.0, %v3629
  %v3631 = vpop.f32.mrb[0].mxu0
  %v3632 = vpop.f32.mrb[0].mxu0
  %v3633 = vadd.f32 0.0, %v3632
  %v3634 = vpop.f32.mrb[0].mxu0
  %3635 = vmatprep.mubr.bf16.mxu0 0
  %3636 = vmatmul.mubr.bf16.gmra.mrb[0].mxu0 %v3421
  %v3637 = vpop.f32.mrb[0].mxu0
  %v3638 = vadd.f32 0.0, %v3637
  %v3639 = vpop.f32.mrb[0].mxu0
  %v3640 = vpop.f32.mrb[0].mxu0
  %v3641 = vadd.f32 0.0, %v3640
  %v3642 = vpop.f32.mrb[0].mxu0
  %3643 = vdwg.mxu0
  %v3644 = vpack.c.bf16 %v3633, %v3630
  %v3645 = vpack.c.bf16 %v3641, %v3638
  %s3646 = scalar_lea.vmem %s10, 8
  %v3647 = vld [vmem:[%s3646] sm:$0x3]
  %v3649 = vsel %vm3423, %v3647, 0
  %3651 = vmatprep.subr.bf16.mxu0 0
  %3652 = vmatpush1.bf16.msra.mxu0 %v3649
  %3653 = vmatprep.subr.bf16.mxu0 0
  %3654 = vmatpush1.bf16.msra.mxu0 0
  %3655 = vmatprep.subr.bf16.mxu0 0
  %3656 = vmatpush1.bf16.msra.mxu0 0
  %3657 = vmatprep.subr.bf16.mxu0 0
  %3658 = vmatpush1.bf16.msra.mxu0 0
  %3659 = vmatprep.subr.bf16.mxu0 0
  %3660 = vmatpush1.bf16.msra.mxu0 0
  %3661 = vmatprep.subr.bf16.mxu0 0
  %3662 = vmatpush1.bf16.msra.mxu0 0
  %3663 = vmatprep.subr.bf16.mxu0 0
  %3664 = vmatpush1.bf16.msra.mxu0 0
  %3665 = vmatprep.subr.bf16.mxu0 0
  %3666 = vmatpush1.bf16.msra.mxu0 0
  %3667 = vmatprep.subr.bf16.mxu0 0
  %3668 = vmatpush1.bf16.msra.mxu0 0
  %3669 = vmatprep.subr.bf16.mxu0 0
  %3670 = vmatpush1.bf16.msra.mxu0 0
  %3671 = vmatprep.subr.bf16.mxu0 0
  %3672 = vmatpush1.bf16.msra.mxu0 0
  %3673 = vmatprep.subr.bf16.mxu0 0
  %3674 = vmatpush1.bf16.msra.mxu0 0
  %3675 = vmatprep.subr.bf16.mxu0 0
  %3676 = vmatpush1.bf16.msra.mxu0 0
  %3677 = vmatprep.subr.bf16.mxu0 0
  %3678 = vmatpush1.bf16.msra.mxu0 0
  %3679 = vmatprep.subr.bf16.mxu0 0
  %3680 = vmatpush1.bf16.msra.mxu0 0
  %3681 = vmatprep.subr.bf16.mxu0 0
  %3682 = vmatpush1.bf16.msra.mxu0 0
  %3683 = vmatprep.mubr.bf16.mxu0 0
  %3684 = vmatmul.mubr.bf16.gmra.mrb[0].mxu0 %v3418
  %v3685 = vpop.f32.mrb[0].mxu0
  %v3686 = vadd.f32 0.0, %v3685
  %v3687 = vpop.f32.mrb[0].mxu0
  %v3688 = vpop.f32.mrb[0].mxu0
  %v3689 = vadd.f32 0.0, %v3688
  %v3690 = vpop.f32.mrb[0].mxu0
  %3691 = vmatprep.mubr.bf16.mxu0 0
  %3692 = vmatmul.mubr.bf16.gmra.mrb[0].mxu0 %v3421
  %v3693 = vpop.f32.mrb[0].mxu0
  %v3694 = vadd.f32 0.0, %v3693
  %v3695 = vpop.f32.mrb[0].mxu0
  %v3696 = vpop.f32.mrb[0].mxu0
  %v3697 = vadd.f32 0.0, %v3696
  %v3698 = vpop.f32.mrb[0].mxu0
  %3699 = vdwg.mxu0
  %v3700 = vpack.c.bf16 %v3689, %v3686
  %v3701 = vpack.c.bf16 %v3697, %v3694
  %s3702 = scalar_lea.vmem %s10, 10
  %v3703 = vld [vmem:[%s3702] sm:$0x3]
  %v3705 = vsel %vm3423, %v3703, 0
  %3707 = vmatprep.subr.bf16.mxu0 0
  %3708 = vmatpush1.bf16.msra.mxu0 %v3705
  %3709 = vmatprep.subr.bf16.mxu0 0
  %3710 = vmatpush1.bf16.msra.mxu0 0
  %3711 = vmatprep.subr.bf16.mxu0 0
  %3712 = vmatpush1.bf16.msra.mxu0 0
  %3713 = vmatprep.subr.bf16.mxu0 0
  %3714 = vmatpush1.bf16.msra.mxu0 0
  %3715 = vmatprep.subr.bf16.mxu0 0
  %3716 = vmatpush1.bf16.msra.mxu0 0
  %3717 = vmatprep.subr.bf16.mxu0 0
  %3718 = vmatpush1.bf16.msra.mxu0 0
  %3719 = vmatprep.subr.bf16.mxu0 0
  %3720 = vmatpush1.bf16.msra.mxu0 0
  %3721 = vmatprep.subr.bf16.mxu0 0
  %3722 = vmatpush1.bf16.msra.mxu0 0
  %3723 = vmatprep.subr.bf16.mxu0 0
  %3724 = vmatpush1.bf16.msra.mxu0 0
  %3725 = vmatprep.subr.bf16.mxu0 0
  %3726 = vmatpush1.bf16.msra.mxu0 0
  %3727 = vmatprep.subr.bf16.mxu0 0
  %3728 = vmatpush1.bf16.msra.mxu0 0
  %3729 = vmatprep.subr.bf16.mxu0 0
  %3730 = vmatpush1.bf16.msra.mxu0 0
  %3731 = vmatprep.subr.bf16.mxu0 0
  %3732 = vmatpush1.bf16.msra.mxu0 0
  %3733 = vmatprep.subr.bf16.mxu0 0
  %3734 = vmatpush1.bf16.msra.mxu0 0
  %3735 = vmatprep.subr.bf16.mxu0 0
  %3736 = vmatpush1.bf16.msra.mxu0 0
  %3737 = vmatprep.subr.bf16.mxu0 0
  %3738 = vmatpush1.bf16.msra.mxu0 0
  %3739 = vmatprep.mubr.bf16.mxu0 0
  %3740 = vmatmul.mubr.bf16.gmra.mrb[0].mxu0 %v3418
  %v3741 = vpop.f32.mrb[0].mxu0
  %v3742 = vadd.f32 0.0, %v3741
  %v3743 = vpop.f32.mrb[0].mxu0
  %v3744 = vpop.f32.mrb[0].mxu0
  %v3745 = vadd.f32 0.0, %v3744
  %v3746 = vpop.f32.mrb[0].mxu0
  %3747 = vmatprep.mubr.bf16.mxu0 0
  %3748 = vmatmul.mubr.bf16.gmra.mrb[0].mxu0 %v3421
  %v3749 = vpop.f32.mrb[0].mxu0
  %v3750 = vadd.f32 0.0, %v3749
  %v3751 = vpop.f32.mrb[0].mxu0
  %v3752 = vpop.f32.mrb[0].mxu0
  %v3753 = vadd.f32 0.0, %v3752
  %v3754 = vpop.f32.mrb[0].mxu0
  %3755 = vdwg.mxu0
  %v3756 = vpack.c.bf16 %v3745, %v3742
  %v3757 = vpack.c.bf16 %v3753, %v3750
  %s3758 = scalar_lea.vmem %s10, 12
  %v3759 = vld [vmem:[%s3758] sm:$0x3]
  %v3761 = vsel %vm3423, %v3759, 0
  %3763 = vmatprep.subr.bf16.mxu0 0
  %3764 = vmatpush1.bf16.msra.mxu0 %v3761
  %3765 = vmatprep.subr.bf16.mxu0 0
  %3766 = vmatpush1.bf16.msra.mxu0 0
  %3767 = vmatprep.subr.bf16.mxu0 0
  %3768 = vmatpush1.bf16.msra.mxu0 0
  %3769 = vmatprep.subr.bf16.mxu0 0
  %3770 = vmatpush1.bf16.msra.mxu0 0
  %3771 = vmatprep.subr.bf16.mxu0 0
  %3772 = vmatpush1.bf16.msra.mxu0 0
  %3773 = vmatprep.subr.bf16.mxu0 0
  %3774 = vmatpush1.bf16.msra.mxu0 0
  %3775 = vmatprep.subr.bf16.mxu0 0
  %3776 = vmatpush1.bf16.msra.mxu0 0
  %3777 = vmatprep.subr.bf16.mxu0 0
  %3778 = vmatpush1.bf16.msra.mxu0 0
  %3779 = vmatprep.subr.bf16.mxu0 0
  %3780 = vmatpush1.bf16.msra.mxu0 0
  %3781 = vmatprep.subr.bf16.mxu0 0
  %3782 = vmatpush1.bf16.msra.mxu0 0
  %3783 = vmatprep.subr.bf16.mxu0 0
  %3784 = vmatpush1.bf16.msra.mxu0 0
  %3785 = vmatprep.subr.bf16.mxu0 0
  %3786 = vmatpush1.bf16.msra.mxu0 0
  %3787 = vmatprep.subr.bf16.mxu0 0
  %3788 = vmatpush1.bf16.msra.mxu0 0
  %3789 = vmatprep.subr.bf16.mxu0 0
  %3790 = vmatpush1.bf16.msra.mxu0 0
  %3791 = vmatprep.subr.bf16.mxu0 0
  %3792 = vmatpush1.bf16.msra.mxu0 0
  %3793 = vmatprep.subr.bf16.mxu0 0
  %3794 = vmatpush1.bf16.msra.mxu0 0
  %3795 = vmatprep.mubr.bf16.mxu0 0
  %3796 = vmatmul.mubr.bf16.gmra.mrb[0].mxu0 %v3418
  %v3797 = vpop.f32.mrb[0].mxu0
  %v3798 = vadd.f32 0.0, %v3797
  %v3799 = vpop.f32.mrb[0].mxu0
  %v3800 = vpop.f32.mrb[0].mxu0
  %v3801 = vadd.f32 0.0, %v3800
  %v3802 = vpop.f32.mrb[0].mxu0
  %3803 = vmatprep.mubr.bf16.mxu0 0
  %3804 = vmatmul.mubr.bf16.gmra.mrb[0].mxu0 %v3421
  %v3805 = vpop.f32.mrb[0].mxu0
  %v3806 = vadd.f32 0.0, %v3805
  %v3807 = vpop.f32.mrb[0].mxu0
  %v3808 = vpop.f32.mrb[0].mxu0
  %v3809 = vadd.f32 0.0, %v3808
  %v3810 = vpop.f32.mrb[0].mxu0
  %3811 = vdwg.mxu0
  %v3812 = vpack.c.bf16 %v3801, %v3798
  %v3813 = vpack.c.bf16 %v3809, %v3806
  %s3814 = scalar_lea.vmem %s10, 14
  %v3815 = vld [vmem:[%s3814] sm:$0x3]
  %v3817 = vsel %vm3423, %v3815, 0
  %3819 = vmatprep.subr.bf16.mxu0 0
  %3820 = vmatpush1.bf16.msra.mxu0 %v3817
  %3821 = vmatprep.subr.bf16.mxu0 0
  %3822 = vmatpush1.bf16.msra.mxu0 0
  %3823 = vmatprep.subr.bf16.mxu0 0
  %3824 = vmatpush1.bf16.msra.mxu0 0
  %3825 = vmatprep.subr.bf16.mxu0 0
  %3826 = vmatpush1.bf16.msra.mxu0 0
  %3827 = vmatprep.subr.bf16.mxu0 0
  %3828 = vmatpush1.bf16.msra.mxu0 0
  %3829 = vmatprep.subr.bf16.mxu0 0
  %3830 = vmatpush1.bf16.msra.mxu0 0
  %3831 = vmatprep.subr.bf16.mxu0 0
  %3832 = vmatpush1.bf16.msra.mxu0 0
  %3833 = vmatprep.subr.bf16.mxu0 0
  %3834 = vmatpush1.bf16.msra.mxu0 0
  %3835 = vmatprep.subr.bf16.mxu0 0
  %3836 = vmatpush1.bf16.msra.mxu0 0
  %3837 = vmatprep.subr.bf16.mxu0 0
  %3838 = vmatpush1.bf16.msra.mxu0 0
  %3839 = vmatprep.subr.bf16.mxu0 0
  %3840 = vmatpush1.bf16.msra.mxu0 0
  %3841 = vmatprep.subr.bf16.mxu0 0
  %3842 = vmatpush1.bf16.msra.mxu0 0
  %3843 = vmatprep.subr.bf16.mxu0 0
  %3844 = vmatpush1.bf16.msra.mxu0 0
  %3845 = vmatprep.subr.bf16.mxu0 0
  %3846 = vmatpush1.bf16.msra.mxu0 0
  %3847 = vmatprep.subr.bf16.mxu0 0
  %3848 = vmatpush1.bf16.msra.mxu0 0
  %3849 = vmatprep.subr.bf16.mxu0 0
  %3850 = vmatpush1.bf16.msra.mxu0 0
  %3851 = vmatprep.mubr.bf16.mxu0 0
  %3852 = vmatmul.mubr.bf16.gmra.mrb[0].mxu0 %v3418
  %v3853 = vpop.f32.mrb[0].mxu0
  %v3854 = vadd.f32 0.0, %v3853
  %v3855 = vpop.f32.mrb[0].mxu0
  %v3856 = vpop.f32.mrb[0].mxu0
  %v3857 = vadd.f32 0.0, %v3856
  %v3858 = vpop.f32.mrb[0].mxu0
  %3859 = vmatprep.mubr.bf16.mxu0 0
  %3860 = vmatmul.mubr.bf16.gmra.mrb[0].mxu0 %v3421
  %v3861 = vpop.f32.mrb[0].mxu0
  %v3862 = vadd.f32 0.0, %v3861
  %v3863 = vpop.f32.mrb[0].mxu0
  %v3864 = vpop.f32.mrb[0].mxu0
  %v3865 = vadd.f32 0.0, %v3864
  %v3866 = vpop.f32.mrb[0].mxu0
  %3867 = vdwg.mxu0
  %v3868 = vpack.c.bf16 %v3857, %v3854
  %v3869 = vpack.c.bf16 %v3865, %v3862
  %s3870 = scalar_lea.vmem %s10, 16
  %v3871 = vld [vmem:[%s3870] sm:$0x3]
  %v3873 = vsel %vm3423, %v3871, 0
  %3875 = vmatprep.subr.bf16.mxu0 0
  %3876 = vmatpush1.bf16.msra.mxu0 %v3873
  %3877 = vmatprep.subr.bf16.mxu0 0
  %3878 = vmatpush1.bf16.msra.mxu0 0
  %3879 = vmatprep.subr.bf16.mxu0 0
  %3880 = vmatpush1.bf16.msra.mxu0 0
  %3881 = vmatprep.subr.bf16.mxu0 0
  %3882 = vmatpush1.bf16.msra.mxu0 0
  %3883 = vmatprep.subr.bf16.mxu0 0
  %3884 = vmatpush1.bf16.msra.mxu0 0
  %3885 = vmatprep.subr.bf16.mxu0 0
  %3886 = vmatpush1.bf16.msra.mxu0 0
  %3887 = vmatprep.subr.bf16.mxu0 0
  %3888 = vmatpush1.bf16.msra.mxu0 0
  %3889 = vmatprep.subr.bf16.mxu0 0
  %3890 = vmatpush1.bf16.msra.mxu0 0
  %3891 = vmatprep.subr.bf16.mxu0 0
  %3892 = vmatpush1.bf16.msra.mxu0 0
  %3893 = vmatprep.subr.bf16.mxu0 0
  %3894 = vmatpush1.bf16.msra.mxu0 0
  %3895 = vmatprep.subr.bf16.mxu0 0
  %3896 = vmatpush1.bf16.msra.mxu0 0
  %3897 = vmatprep.subr.bf16.mxu0 0
  %3898 = vmatpush1.bf16.msra.mxu0 0
  %3899 = vmatprep.subr.bf16.mxu0 0
  %3900 = vmatpush1.bf16.msra.mxu0 0
  %3901 = vmatprep.subr.bf16.mxu0 0
  %3902 = vmatpush1.bf16.msra.mxu0 0
  %3903 = vmatprep.subr.bf16.mxu0 0
  %3904 = vmatpush1.bf16.msra.mxu0 0
  %3905 = vmatprep.subr.bf16.mxu0 0
  %3906 = vmatpush1.bf16.msra.mxu0 0
  %3907 = vmatprep.mubr.bf16.mxu0 0
  %3908 = vmatmul.mubr.bf16.gmra.mrb[0].mxu0 %v3418
  %v3909 = vpop.f32.mrb[0].mxu0
  %v3910 = vadd.f32 0.0, %v3909
  %v3911 = vpop.f32.mrb[0].mxu0
  %v3912 = vpop.f32.mrb[0].mxu0
  %v3913 = vadd.f32 0.0, %v3912
  %v3914 = vpop.f32.mrb[0].mxu0
  %3915 = vmatprep.mubr.bf16.mxu0 0
  %3916 = vmatmul.mubr.bf16.gmra.mrb[0].mxu0 %v3421
  %v3917 = vpop.f32.mrb[0].mxu0
  %v3918 = vadd.f32 0.0, %v3917
  %v3919 = vpop.f32.mrb[0].mxu0
  %v3920 = vpop.f32.mrb[0].mxu0
  %v3921 = vadd.f32 0.0, %v3920
  %v3922 = vpop.f32.mrb[0].mxu0
  %3923 = vdwg.mxu0
  %v3924 = vpack.c.bf16 %v3913, %v3910
  %v3925 = vpack.c.bf16 %v3921, %v3918
  %v3926 = vld [vmem:[%s9] sm:$0xff]
  %v3927 = vld [vmem:[%s9 + $0x8] sm:$0xf]
  %v3928 = vld [vmem:[%s9 + $0xc] sm:$0xff]
  %v3929 = vld [vmem:[%s9 + $0x14] sm:$0xf]
  %v3930 = vld [vmem:[%s9 + $0x18] sm:$0xff]
  %v3931 = vld [vmem:[%s9 + $0x20] sm:$0xf]
  %v3932 = vld [vmem:[%s9 + $0x24] sm:$0xff]
  %v3933 = vld [vmem:[%s9 + $0x2c] sm:$0xf]
  %v3942 = vunpack.c.l.b16 %v3926
  %v3943 = vunpack.c.h.b16 %v3926
  %v3944 = vunpack.c.l.b16 %v3927
  %v3945 = vunpack.c.l.b16 %v3928
  %v3946 = vunpack.c.h.b16 %v3928
  %v3947 = vunpack.c.l.b16 %v3929
  %v3948 = vunpack.c.l.b16 %v3930
  %v3949 = vunpack.c.h.b16 %v3930
  %v3950 = vunpack.c.l.b16 %v3931
  %v3951 = vunpack.c.l.b16 %v3932
  %v3952 = vunpack.c.h.b16 %v3932
  %v3953 = vunpack.c.l.b16 %v3933
  %v3954 = vpack.c.b16 %v3945, %v3942
  %v3955 = vpack.c.b16 %v3946, %v3943
  %v3956 = vpack.c.b16 %v3947, %v3944
  %v3957 = vpack.c.b16 %v3951, %v3948
  %v3958 = vpack.c.b16 %v3952, %v3949
  %v3959 = vpack.c.b16 %v3953, %v3950
  %v3965 = vsel %vm2428, %v3956, 0
  %v3968 = vsel %vm2428, %v3959, 0
  %3970 = vmatprep.subr.bf16.mxu0 0
  %3971 = vmatpush1.bf16.msra.mxu0 %v3476
  %3972 = vmatprep.subr.bf16.mxu0 0
  %3973 = vmatpush1.bf16.msra.mxu0 %v3477
  %3974 = vmatprep.subr.bf16.mxu0 0
  %3975 = vmatpush1.bf16.msra.mxu0 %v3532
  %3976 = vmatprep.subr.bf16.mxu0 0
  %3977 = vmatpush1.bf16.msra.mxu0 %v3533
  %3978 = vmatprep.subr.bf16.mxu0 0
  %3979 = vmatpush1.bf16.msra.mxu0 %v3588
  %3980 = vmatprep.subr.bf16.mxu0 0
  %3981 = vmatpush1.bf16.msra.mxu0 %v3589
  %3982 = vmatprep.subr.bf16.mxu0 0
  %3983 = vmatpush1.bf16.msra.mxu0 %v3644
  %3984 = vmatprep.subr.bf16.mxu0 0
  %3985 = vmatpush1.bf16.msra.mxu0 %v3645
  %3986 = vmatprep.subr.bf16.mxu0 0
  %3987 = vmatpush1.bf16.msra.mxu0 %v3700
  %3988 = vmatprep.subr.bf16.mxu0 0
  %3989 = vmatpush1.bf16.msra.mxu0 %v3701
  %3990 = vmatprep.subr.bf16.mxu0 0
  %3991 = vmatpush1.bf16.msra.mxu0 %v3756
  %3992 = vmatprep.subr.bf16.mxu0 0
  %3993 = vmatpush1.bf16.msra.mxu0 %v3757
  %3994 = vmatprep.subr.bf16.mxu0 0
  %3995 = vmatpush1.bf16.msra.mxu0 %v3812
  %3996 = vmatprep.subr.bf16.mxu0 0
  %3997 = vmatpush1.bf16.msra.mxu0 %v3813
  %3998 = vmatprep.subr.bf16.mxu0 0
  %3999 = vmatpush1.bf16.msra.mxu0 %v3868
  %4000 = vmatprep.subr.bf16.mxu0 0
  %4001 = vmatpush1.bf16.msra.mxu0 %v3869
  %4002 = vmatprep.mubr.bf16.mxu0 %v3955
  %4003 = vmatmul.mubr.bf16.gmra.mrb[0].mxu0 %v3954
  %v4004 = vpop.f32.mrb[0].mxu0
  %v4005 = vadd.f32 0.0, %v4004
  %v4006 = vpop.f32.mrb[0].mxu0
  %v4007 = vpop.f32.mrb[0].mxu0
  %v4008 = vadd.f32 0.0, %v4007
  %v4009 = vpop.f32.mrb[0].mxu0
  %4010 = vmatprep.mubr.bf16.mxu0 %v3958
  %4011 = vmatmul.mubr.bf16.gmra.mrb[0].mxu0 %v3957
  %v4012 = vpop.f32.mrb[0].mxu0
  %v4013 = vadd.f32 0.0, %v4012
  %v4014 = vpop.f32.mrb[0].mxu0
  %v4015 = vpop.f32.mrb[0].mxu0
  %v4016 = vadd.f32 0.0, %v4015
  %v4017 = vpop.f32.mrb[0].mxu0
  %4018 = vdwg.mxu0
  %4019 = vmatprep.subr.bf16.mxu0 0
  %4020 = vmatpush1.bf16.msra.mxu0 %v3924
  %4021 = vmatprep.subr.bf16.mxu0 0
  %4022 = vmatpush1.bf16.msra.mxu0 %v3925
  %4023 = vmatprep.subr.bf16.mxu0 0
  %4024 = vmatpush1.bf16.msra.mxu0 0
  %4025 = vmatprep.subr.bf16.mxu0 0
  %4026 = vmatpush1.bf16.msra.mxu0 0
  %4027 = vmatprep.subr.bf16.mxu0 0
  %4028 = vmatpush1.bf16.msra.mxu0 0
  %4029 = vmatprep.subr.bf16.mxu0 0
  %4030 = vmatpush1.bf16.msra.mxu0 0
  %4031 = vmatprep.subr.bf16.mxu0 0
  %4032 = vmatpush1.bf16.msra.mxu0 0
  %4033 = vmatprep.subr.bf16.mxu0 0
  %4034 = vmatpush1.bf16.msra.mxu0 0
  %4035 = vmatprep.subr.bf16.mxu0 0
  %4036 = vmatpush1.bf16.msra.mxu0 0
  %4037 = vmatprep.subr.bf16.mxu0 0
  %4038 = vmatpush1.bf16.msra.mxu0 0
  %4039 = vmatprep.subr.bf16.mxu0 0
  %4040 = vmatpush1.bf16.msra.mxu0 0
  %4041 = vmatprep.subr.bf16.mxu0 0
  %4042 = vmatpush1.bf16.msra.mxu0 0
  %4043 = vmatprep.subr.bf16.mxu0 0
  %4044 = vmatpush1.bf16.msra.mxu0 0
  %4045 = vmatprep.subr.bf16.mxu0 0
  %4046 = vmatpush1.bf16.msra.mxu0 0
  %4047 = vmatprep.subr.bf16.mxu0 0
  %4048 = vmatpush1.bf16.msra.mxu0 0
  %4049 = vmatprep.subr.bf16.mxu0 0
  %4050 = vmatpush1.bf16.msra.mxu0 0
  %4051 = vmatprep.mubr.bf16.mxu0 0
  %4052 = vmatmul.mubr.bf16.gmra.mrb[0].mxu0 %v3965
  %v4053 = vpop.f32.mrb[0].mxu0
  %v4054 = vadd.f32 %v4005, %v4053
  %v4055 = vpop.f32.mrb[0].mxu0
  %v4056 = vpop.f32.mrb[0].mxu0
  %v4057 = vadd.f32 %v4008, %v4056
  %v4058 = vpop.f32.mrb[0].mxu0
  %4059 = vmatprep.mubr.bf16.mxu0 0
  %4060 = vmatmul.mubr.bf16.gmra.mrb[0].mxu0 %v3968
  %v4061 = vpop.f32.mrb[0].mxu0
  %v4062 = vadd.f32 %v4013, %v4061
  %v4063 = vpop.f32.mrb[0].mxu0
  %v4064 = vpop.f32.mrb[0].mxu0
  %v4065 = vadd.f32 %v4016, %v4064
  %v4066 = vpop.f32.mrb[0].mxu0
  %4067 = vdwg.mxu0
  %v4068 = vld [vmem:[%s11] sm:$0xff]
  %v4069 = vld [vmem:[%s11 + $0x8] sm:$0xff]
  %v4070 = vld [vmem:[%s11 + $0x10] sm:$0xff]
  %v4071 = vld [vmem:[%s11 + $0x18] sm:$0xff]
  %v4073 = vsel %vm2428, %v4068, 0
  %v4076 = vsel %vm2428, %v4069, 0
  %v4079 = vsel %vm2428, %v4070, 0
  %v4082 = vsel %vm2428, %v4071, 0
  %4084 = vmatprep.subr.mxu0 0.0
  %4085 = vmatpush1.msra.mxu0 %v4054
  %4086 = vmatprep.subr.mxu0 0.0
  %4087 = vmatpush1.msra.mxu0 %v4057
  %4088 = vmatprep.subr.mxu0 0.0
  %4089 = vmatpush1.msra.mxu0 %v4062
  %4090 = vmatprep.subr.mxu0 0.0
  %4091 = vmatpush1.msra.mxu0 %v4065
  %4092 = vmatprep.subr.mxu0 0.0
  %4093 = vmatpush1.msra.mxu0 0.0
  %4094 = vmatprep.subr.mxu0 0.0
  %4095 = vmatpush1.msra.mxu0 0.0
  %4096 = vmatprep.subr.mxu0 0.0
  %4097 = vmatpush1.msra.mxu0 0.0
  %4098 = vmatprep.subr.mxu0 0.0
  %4099 = vmatpush1.msra.mxu0 0.0
  %4100 = vmatprep.subr.mxu0 0.0
  %4101 = vmatpush1.msra.mxu0 0.0
  %4102 = vmatprep.subr.mxu0 0.0
  %4103 = vmatpush1.msra.mxu0 0.0
  %4104 = vmatprep.subr.mxu0 0.0
  %4105 = vmatpush1.msra.mxu0 0.0
  %4106 = vmatprep.subr.mxu0 0.0
  %4107 = vmatpush1.msra.mxu0 0.0
  %4108 = vmatprep.subr.mxu0 0.0
  %4109 = vmatpush1.msra.mxu0 0.0
  %4110 = vmatprep.subr.mxu0 0.0
  %4111 = vmatpush1.msra.mxu0 0.0
  %4112 = vmatprep.subr.mxu0 0.0
  %4113 = vmatpush1.msra.mxu0 0.0
  %4114 = vmatprep.subr.mxu0 0.0
  %4115 = vmatpush1.msra.mxu0 0.0
  %4116 = vmatprep.subr.mxu0 0.0
  %4117 = vmatpush1.msra.mxu0 0.0
  %4118 = vmatprep.subr.mxu0 0.0
  %4119 = vmatpush1.msra.mxu0 0.0
  %4120 = vmatprep.subr.mxu0 0.0
  %4121 = vmatpush1.msra.mxu0 0.0
  %4122 = vmatprep.subr.mxu0 0.0
  %4123 = vmatpush1.msra.mxu0 0.0
  %4124 = vmatprep.subr.mxu0 0.0
  %4125 = vmatpush1.msra.mxu0 0.0
  %4126 = vmatprep.subr.mxu0 0.0
  %4127 = vmatpush1.msra.mxu0 0.0
  %4128 = vmatprep.subr.mxu0 0.0
  %4129 = vmatpush1.msra.mxu0 0.0
  %4130 = vmatprep.subr.mxu0 0.0
  %4131 = vmatpush1.msra.mxu0 0.0
  %4132 = vmatprep.subr.mxu0 0.0
  %4133 = vmatpush1.msra.mxu0 0.0
  %4134 = vmatprep.subr.mxu0 0.0
  %4135 = vmatpush1.msra.mxu0 0.0
  %4136 = vmatprep.subr.mxu0 0.0
  %4137 = vmatpush1.msra.mxu0 0.0
  %4138 = vmatprep.subr.mxu0 0.0
  %4139 = vmatpush1.msra.mxu0 0.0
  %4140 = vmatprep.subr.mxu0 0.0
  %4141 = vmatpush1.msra.mxu0 0.0
  %4142 = vmatprep.subr.mxu0 0.0
  %4143 = vmatpush1.msra.mxu0 0.0
  %4144 = vmatprep.subr.mxu0 0.0
  %4145 = vmatpush1.msra.mxu0 0.0
  %4146 = vmatprep.subr.mxu0 0.0
  %4147 = vmatpush1.msra.mxu0 0.0
  %4148 = vmatprep.mubr.f32.mxu0 0.0
  %4149 = vmatmul.mubr.f32.gmra.mrb[0].mxu0 %v4073
  %v4150 = vpop.f32.mrb[0].mxu0
  %v4151 = vadd.f32 0.0, %v4150
  %v4152 = vpop.f32.mrb[0].mxu0
  %4153 = vmatprep.mubr.f32.mxu0 0.0
  %4154 = vmatmul.mubr.f32.gmra.mrb[0].mxu0 %v4076
  %v4155 = vpop.f32.mrb[0].mxu0
  %v4156 = vadd.f32 0.0, %v4155
  %v4157 = vpop.f32.mrb[0].mxu0
  %4158 = vmatprep.mubr.f32.mxu0 0.0
  %4159 = vmatmul.mubr.f32.gmra.mrb[0].mxu0 %v4079
  %v4160 = vpop.f32.mrb[0].mxu0
  %v4161 = vadd.f32 0.0, %v4160
  %v4162 = vpop.f32.mrb[0].mxu0
  %4163 = vmatprep.mubr.f32.mxu0 0.0
  %4164 = vmatmul.mubr.f32.gmra.mrb[0].mxu0 %v4082
  %v4165 = vpop.f32.mrb[0].mxu0
  %v4166 = vadd.f32 0.0, %v4165
  %v4167 = vpop.f32.mrb[0].mxu0
  %4168 = vdwg.mxu0
  %v4169 = vsel %vm1621, %v4151, 0.0
  %4170 = vadd.xlane.f32.xlu0 %v4169
  %v4171 = vpop.xlane.xlu0 %4170
  %v4172 = vsel %vm1621, %v4156, 0.0
  %4173 = vadd.xlane.f32.xlu0 %v4172
  %v4174 = vpop.xlane.xlu0 %4173
  %v4175 = vsel %vm1621, %v4161, 0.0
  %4176 = vadd.xlane.f32.xlu0 %v4175
  %v4177 = vpop.xlane.xlu0 %4176
  %v4178 = vsel %vm1621, %v4166, 0.0
  %4179 = vadd.xlane.f32.xlu0 %v4178
  %v4180 = vpop.xlane.xlu0 %4179
  %v4181 = vmul.f32 %v4171, %v2538
  %v4182 = vmul.f32 %v4174, %v2538
  %v4183 = vmul.f32 %v4177, %v2538
  %v4184 = vmul.f32 %v4180, %v2538
  %v4185 = vsub.f32 %v4054, %v4181
  %v4186 = vsub.f32 %v4057, %v4182
  %v4187 = vsub.f32 %v4062, %v4183
  %v4188 = vsub.f32 %v4065, %v4184
  %v4189 = vmul.f32 %v4185, %v4185
  %v4190 = vmul.f32 %v4186, %v4186
  %v4191 = vmul.f32 %v4187, %v4187
  %v4192 = vmul.f32 %v4188, %v4188
  %4193 = vmatprep.subr.mxu0 0.0
  %4194 = vmatpush1.msra.mxu0 %v4189
  %4195 = vmatprep.subr.mxu0 0.0
  %4196 = vmatpush1.msra.mxu0 %v4190
  %4197 = vmatprep.subr.mxu0 0.0
  %4198 = vmatpush1.msra.mxu0 %v4191
  %4199 = vmatprep.subr.mxu0 0.0
  %4200 = vmatpush1.msra.mxu0 %v4192
  %4201 = vmatprep.subr.mxu0 0.0
  %4202 = vmatpush1.msra.mxu0 0.0
  %4203 = vmatprep.subr.mxu0 0.0
  %4204 = vmatpush1.msra.mxu0 0.0
  %4205 = vmatprep.subr.mxu0 0.0
  %4206 = vmatpush1.msra.mxu0 0.0
  %4207 = vmatprep.subr.mxu0 0.0
  %4208 = vmatpush1.msra.mxu0 0.0
  %4209 = vmatprep.subr.mxu0 0.0
  %4210 = vmatpush1.msra.mxu0 0.0
  %4211 = vmatprep.subr.mxu0 0.0
  %4212 = vmatpush1.msra.mxu0 0.0
  %4213 = vmatprep.subr.mxu0 0.0
  %4214 = vmatpush1.msra.mxu0 0.0
  %4215 = vmatprep.subr.mxu0 0.0
  %4216 = vmatpush1.msra.mxu0 0.0
  %4217 = vmatprep.subr.mxu0 0.0
  %4218 = vmatpush1.msra.mxu0 0.0
  %4219 = vmatprep.subr.mxu0 0.0
  %4220 = vmatpush1.msra.mxu0 0.0
  %4221 = vmatprep.subr.mxu0 0.0
  %4222 = vmatpush1.msra.mxu0 0.0
  %4223 = vmatprep.subr.mxu0 0.0
  %4224 = vmatpush1.msra.mxu0 0.0
  %4225 = vmatprep.subr.mxu0 0.0
  %4226 = vmatpush1.msra.mxu0 0.0
  %4227 = vmatprep.subr.mxu0 0.0
  %4228 = vmatpush1.msra.mxu0 0.0
  %4229 = vmatprep.subr.mxu0 0.0
  %4230 = vmatpush1.msra.mxu0 0.0
  %4231 = vmatprep.subr.mxu0 0.0
  %4232 = vmatpush1.msra.mxu0 0.0
  %4233 = vmatprep.subr.mxu0 0.0
  %4234 = vmatpush1.msra.mxu0 0.0
  %4235 = vmatprep.subr.mxu0 0.0
  %4236 = vmatpush1.msra.mxu0 0.0
  %4237 = vmatprep.subr.mxu0 0.0
  %4238 = vmatpush1.msra.mxu0 0.0
  %4239 = vmatprep.subr.mxu0 0.0
  %4240 = vmatpush1.msra.mxu0 0.0
  %4241 = vmatprep.subr.mxu0 0.0
  %4242 = vmatpush1.msra.mxu0 0.0
  %4243 = vmatprep.subr.mxu0 0.0
  %4244 = vmatpush1.msra.mxu0 0.0
  %4245 = vmatprep.subr.mxu0 0.0
  %4246 = vmatpush1.msra.mxu0 0.0
  %4247 = vmatprep.subr.mxu0 0.0
  %4248 = vmatpush1.msra.mxu0 0.0
  %4249 = vmatprep.subr.mxu0 0.0
  %4250 = vmatpush1.msra.mxu0 0.0
  %4251 = vmatprep.subr.mxu0 0.0
  %4252 = vmatpush1.msra.mxu0 0.0
  %4253 = vmatprep.subr.mxu0 0.0
  %4254 = vmatpush1.msra.mxu0 0.0
  %4255 = vmatprep.subr.mxu0 0.0
  %4256 = vmatpush1.msra.mxu0 0.0
  %4257 = vmatprep.mubr.f32.mxu0 0.0
  %4258 = vmatmul.mubr.f32.gmra.mrb[0].mxu0 %v4073
  %v4259 = vpop.f32.mrb[0].mxu0
  %v4260 = vadd.f32 0.0, %v4259
  %v4261 = vpop.f32.mrb[0].mxu0
  %4262 = vmatprep.mubr.f32.mxu0 0.0
  %4263 = vmatmul.mubr.f32.gmra.mrb[0].mxu0 %v4076
  %v4264 = vpop.f32.mrb[0].mxu0
  %v4265 = vadd.f32 0.0, %v4264
  %v4266 = vpop.f32.mrb[0].mxu0
  %4267 = vmatprep.mubr.f32.mxu0 0.0
  %4268 = vmatmul.mubr.f32.gmra.mrb[0].mxu0 %v4079
  %v4269 = vpop.f32.mrb[0].mxu0
  %v4270 = vadd.f32 0.0, %v4269
  %v4271 = vpop.f32.mrb[0].mxu0
  %4272 = vmatprep.mubr.f32.mxu0 0.0
  %4273 = vmatmul.mubr.f32.gmra.mrb[0].mxu0 %v4082
  %v4274 = vpop.f32.mrb[0].mxu0
  %v4275 = vadd.f32 0.0, %v4274
  %v4276 = vpop.f32.mrb[0].mxu0
  %4277 = vdwg.mxu0
  %v4278 = vsel %vm1621, %v4260, 0.0
  %4279 = vadd.xlane.f32.xlu0 %v4278
  %v4280 = vpop.xlane.xlu0 %4279
  %v4281 = vsel %vm1621, %v4265, 0.0
  %4282 = vadd.xlane.f32.xlu0 %v4281
  %v4283 = vpop.xlane.xlu0 %4282
  %v4284 = vsel %vm1621, %v4270, 0.0
  %4285 = vadd.xlane.f32.xlu0 %v4284
  %v4286 = vpop.xlane.xlu0 %4285
  %v4287 = vsel %vm1621, %v4275, 0.0
  %4288 = vadd.xlane.f32.xlu0 %v4287
  %v4289 = vpop.xlane.xlu0 %4288
  %v4290 = vmul.f32 %v4280, %v2538
  %v4291 = vmul.f32 %v4283, %v2538
  %v4292 = vmul.f32 %v4286, %v2538
  %v4293 = vmul.f32 %v4289, %v2538
  %v4294 = vld [vmem:[%s12] sm:$0xff]
  %v4295 = vld [vmem:[%s12 + $0x8] sm:$0xff]
  %v4296 = vld [vmem:[%s12 + $0x10] sm:$0xff]
  %v4297 = vld [vmem:[%s12 + $0x18] sm:$0xff]
  %v4298 = vadd.f32 %v4290, 1e-05
  %v4299 = vadd.f32 %v4291, 1e-05
  %v4300 = vadd.f32 %v4292, 1e-05
  %v4301 = vadd.f32 %v4293, 1e-05
  %v4302 = vrsqrt.pop %v4298
  %v4303 = vrsqrt.pop %v4299
  %v4304 = vrsqrt.pop %v4300
  %v4305 = vrsqrt.pop %v4301
  %v4306 = vmul.f32 %v4294, %v4302
  %v4307 = vmul.f32 %v4295, %v4303
  %v4308 = vmul.f32 %v4296, %v4304
  %v4309 = vmul.f32 %v4297, %v4305
  %4311 = vset.pattern.permute.xlu0 0
  %4312 = vperm.xlu0 %4311, %v4306
  %v4313 = vpop.permute.xlu0 %4312
  %4316 = vset.pattern.permute.xlu0 0
  %4317 = vperm.xlu0 %4316, %v4307
  %v4318 = vpop.permute.xlu0 %4317
  %4321 = vset.pattern.permute.xlu0 0
  %4322 = vperm.xlu0 %4321, %v4308
  %v4323 = vpop.permute.xlu0 %4322
  %4326 = vset.pattern.permute.xlu0 0
  %4327 = vperm.xlu0 %4326, %v4309
  %v4328 = vpop.permute.xlu0 %4327
  %v4330 = vmul.f32 %v4185, %v4313
  %v4331 = vmul.f32 %v4186, %v4318
  %v4332 = vmul.f32 %v4187, %v4323
  %v4333 = vmul.f32 %v4188, %v4328
  %4335 = vset.pattern.permute.xlu0 1
  %4336 = vperm.xlu0 %4335, %v4294
  %v4337 = vpop.permute.xlu0 %4336
  %4340 = vset.pattern.permute.xlu0 1
  %4341 = vperm.xlu0 %4340, %v4295
  %v4342 = vpop.permute.xlu0 %4341
  %4345 = vset.pattern.permute.xlu0 1
  %4346 = vperm.xlu0 %4345, %v4296
  %v4347 = vpop.permute.xlu0 %4346
  %4350 = vset.pattern.permute.xlu0 1
  %4351 = vperm.xlu0 %4350, %v4297
  %v4352 = vpop.permute.xlu0 %4351
  %v4354 = vadd.f32 %v4330, %v4337
  %v4355 = vadd.f32 %v4331, %v4342
  %v4356 = vadd.f32 %v4332, %v4347
  %v4357 = vadd.f32 %v4333, %v4352
  %v4358 = vmax.f32 %v4354, 0.0
  %v4359 = vmax.f32 %v4355, 0.0
  %v4360 = vmax.f32 %v4356, 0.0
  %v4361 = vmax.f32 %v4357, 0.0
  %v4362 = vpack.c.bf16 %v4359, %v4358
  %v4363 = vpack.c.bf16 %v4361, %v4360
  %v4364 = vld [vmem:[%s14] sm:$0xf]
  %v4365 = vld [vmem:[%s14 + $0x4] sm:$0xf]
  %v4368 = vunpack.c.l.b16 %v4364
  %v4369 = vunpack.c.l.b16 %v4365
  %v4370 = vpack.c.b16 %v4369, %v4368
  %v4373 = vsel %vm1621, %v4362, 0
  %v4376 = vsel %vm1621, %v4363, 0
  %4378 = vmatprep.subr.bf16.mxu0 0
  %4379 = vmatpush1.bf16.msra.mxu0 %v4370
  %4380 = vmatprep.subr.bf16.mxu0 0
  %4381 = vmatpush1.bf16.msra.mxu0 0
  %4382 = vmatprep.subr.bf16.mxu0 0
  %4383 = vmatpush1.bf16.msra.mxu0 0
  %4384 = vmatprep.subr.bf16.mxu0 0
  %4385 = vmatpush1.bf16.msra.mxu0 0
  %4386 = vmatprep.subr.bf16.mxu0 0
  %4387 = vmatpush1.bf16.msra.mxu0 0
  %4388 = vmatprep.subr.bf16.mxu0 0
  %4389 = vmatpush1.bf16.msra.mxu0 0
  %4390 = vmatprep.subr.bf16.mxu0 0
  %4391 = vmatpush1.bf16.msra.mxu0 0
  %4392 = vmatprep.subr.bf16.mxu0 0
  %4393 = vmatpush1.bf16.msra.mxu0 0
  %4394 = vmatprep.subr.bf16.mxu0 0
  %4395 = vmatpush1.bf16.msra.mxu0 0
  %4396 = vmatprep.subr.bf16.mxu0 0
  %4397 = vmatpush1.bf16.msra.mxu0 0
  %4398 = vmatprep.subr.bf16.mxu0 0
  %4399 = vmatpush1.bf16.msra.mxu0 0
  %4400 = vmatprep.subr.bf16.mxu0 0
  %4401 = vmatpush1.bf16.msra.mxu0 0
  %4402 = vmatprep.subr.bf16.mxu0 0
  %4403 = vmatpush1.bf16.msra.mxu0 0
  %4404 = vmatprep.subr.bf16.mxu0 0
  %4405 = vmatpush1.bf16.msra.mxu0 0
  %4406 = vmatprep.subr.bf16.mxu0 0
  %4407 = vmatpush1.bf16.msra.mxu0 0
  %4408 = vmatprep.subr.bf16.mxu0 0
  %4409 = vmatpush1.bf16.msra.mxu0 0
  %4410 = vmatprep.mubr.bf16.mxu0 0
  %4411 = vmatmul.mubr.bf16.gmra.mrb[0].mxu0 %v2731
  %v4412 = vpop.f32.mrb[0].mxu0
  %v4413 = vadd.f32 0.0, %v4412
  %v4414 = vpop.f32.mrb[0].mxu0
  %v4415 = vpop.f32.mrb[0].mxu0
  %v4416 = vadd.f32 0.0, %v4415
  %v4417 = vpop.f32.mrb[0].mxu0
  %4418 = vmatprep.mubr.bf16.mxu0 0
  %4419 = vmatmul.mubr.bf16.gmra.mrb[0].mxu0 %v2734
  %v4420 = vpop.f32.mrb[0].mxu0
  %v4421 = vadd.f32 0.0, %v4420
  %v4422 = vpop.f32.mrb[0].mxu0
  %v4423 = vpop.f32.mrb[0].mxu0
  %v4424 = vadd.f32 0.0, %v4423
  %v4425 = vpop.f32.mrb[0].mxu0
  %4426 = vmatprep.mubr.bf16.mxu0 0
  %4427 = vmatmul.mubr.bf16.gmra.mrb[0].mxu0 %v4373
  %v4428 = vpop.f32.mrb[0].mxu0
  %v4429 = vadd.f32 0.0, %v4428
  %v4430 = vpop.f32.mrb[0].mxu0
  %v4431 = vpop.f32.mrb[0].mxu0
  %v4432 = vadd.f32 0.0, %v4431
  %v4433 = vpop.f32.mrb[0].mxu0
  %4434 = vmatprep.mubr.bf16.mxu0 0
  %4435 = vmatmul.mubr.bf16.gmra.mrb[0].mxu0 %v4376
  %v4436 = vpop.f32.mrb[0].mxu0
  %v4437 = vadd.f32 0.0, %v4436
  %v4438 = vpop.f32.mrb[0].mxu0
  %v4439 = vpop.f32.mrb[0].mxu0
  %v4440 = vadd.f32 0.0, %v4439
  %v4441 = vpop.f32.mrb[0].mxu0
  %4442 = vdwg.mxu0
  %v4443 = vpack.c.bf16 %v4416, %v4413
  %v4444 = vpack.c.bf16 %v4424, %v4421
  %v4445 = vpack.c.bf16 %v4432, %v4429
  %v4446 = vpack.c.bf16 %v4440, %v4437
  %s4447 = scalar_lea.vmem %s14, 8
  %v4448 = vld [vmem:[%s4447] sm:$0xf]
  %v4449 = vld [vmem:[%s4447 + $0x4] sm:$0xf]
  %v4452 = vunpack.c.l.b16 %v4448
  %v4453 = vunpack.c.l.b16 %v4449
  %v4454 = vpack.c.b16 %v4453, %v4452
  %4456 = vmatprep.subr.bf16.mxu0 0
  %4457 = vmatpush1.bf16.msra.mxu0 %v4454
  %4458 = vmatprep.subr.bf16.mxu0 0
  %4459 = vmatpush1.bf16.msra.mxu0 0
  %4460 = vmatprep.subr.bf16.mxu0 0
  %4461 = vmatpush1.bf16.msra.mxu0 0
  %4462 = vmatprep.subr.bf16.mxu0 0
  %4463 = vmatpush1.bf16.msra.mxu0 0
  %4464 = vmatprep.subr.bf16.mxu0 0
  %4465 = vmatpush1.bf16.msra.mxu0 0
  %4466 = vmatprep.subr.bf16.mxu0 0
  %4467 = vmatpush1.bf16.msra.mxu0 0
  %4468 = vmatprep.subr.bf16.mxu0 0
  %4469 = vmatpush1.bf16.msra.mxu0 0
  %4470 = vmatprep.subr.bf16.mxu0 0
  %4471 = vmatpush1.bf16.msra.mxu0 0
  %4472 = vmatprep.subr.bf16.mxu0 0
  %4473 = vmatpush1.bf16.msra.mxu0 0
  %4474 = vmatprep.subr.bf16.mxu0 0
  %4475 = vmatpush1.bf16.msra.mxu0 0
  %4476 = vmatprep.subr.bf16.mxu0 0
  %4477 = vmatpush1.bf16.msra.mxu0 0
  %4478 = vmatprep.subr.bf16.mxu0 0
  %4479 = vmatpush1.bf16.msra.mxu0 0
  %4480 = vmatprep.subr.bf16.mxu0 0
  %4481 = vmatpush1.bf16.msra.mxu0 0
  %4482 = vmatprep.subr.bf16.mxu0 0
  %4483 = vmatpush1.bf16.msra.mxu0 0
  %4484 = vmatprep.subr.bf16.mxu0 0
  %4485 = vmatpush1.bf16.msra.mxu0 0
  %4486 = vmatprep.subr.bf16.mxu0 0
  %4487 = vmatpush1.bf16.msra.mxu0 0
  %4488 = vmatprep.mubr.bf16.mxu0 0
  %4489 = vmatmul.mubr.bf16.gmra.mrb[0].mxu0 %v2731
  %v4490 = vpop.f32.mrb[0].mxu0
  %v4491 = vadd.f32 0.0, %v4490
  %v4492 = vpop.f32.mrb[0].mxu0
  %v4493 = vpop.f32.mrb[0].mxu0
  %v4494 = vadd.f32 0.0, %v4493
  %v4495 = vpop.f32.mrb[0].mxu0
  %4496 = vmatprep.mubr.bf16.mxu0 0
  %4497 = vmatmul.mubr.bf16.gmra.mrb[0].mxu0 %v2734
  %v4498 = vpop.f32.mrb[0].mxu0
  %v4499 = vadd.f32 0.0, %v4498
  %v4500 = vpop.f32.mrb[0].mxu0
  %v4501 = vpop.f32.mrb[0].mxu0
  %v4502 = vadd.f32 0.0, %v4501
  %v4503 = vpop.f32.mrb[0].mxu0
  %4504 = vmatprep.mubr.bf16.mxu0 0
  %4505 = vmatmul.mubr.bf16.gmra.mrb[0].mxu0 %v4373
  %v4506 = vpop.f32.mrb[0].mxu0
  %v4507 = vadd.f32 0.0, %v4506
  %v4508 = vpop.f32.mrb[0].mxu0
  %v4509 = vpop.f32.mrb[0].mxu0
  %v4510 = vadd.f32 0.0, %v4509
  %v4511 = vpop.f32.mrb[0].mxu0
  %4512 = vmatprep.mubr.bf16.mxu0 0
  %4513 = vmatmul.mubr.bf16.gmra.mrb[0].mxu0 %v4376
  %v4514 = vpop.f32.mrb[0].mxu0
  %v4515 = vadd.f32 0.0, %v4514
  %v4516 = vpop.f32.mrb[0].mxu0
  %v4517 = vpop.f32.mrb[0].mxu0
  %v4518 = vadd.f32 0.0, %v4517
  %v4519 = vpop.f32.mrb[0].mxu0
  %4520 = vdwg.mxu0
  %v4521 = vpack.c.bf16 %v4494, %v4491
  %v4522 = vpack.c.bf16 %v4502, %v4499
  %v4523 = vpack.c.bf16 %v4510, %v4507
  %v4524 = vpack.c.bf16 %v4518, %v4515
  %s4525 = scalar_lea.vmem %s14, 16
  %v4526 = vld [vmem:[%s4525] sm:$0xf]
  %v4527 = vld [vmem:[%s4525 + $0x4] sm:$0xf]
  %v4530 = vunpack.c.l.b16 %v4526
  %v4531 = vunpack.c.l.b16 %v4527
  %v4532 = vpack.c.b16 %v4531, %v4530
  %4534 = vmatprep.subr.bf16.mxu0 0
  %4535 = vmatpush1.bf16.msra.mxu0 %v4532
  %4536 = vmatprep.subr.bf16.mxu0 0
  %4537 = vmatpush1.bf16.msra.mxu0 0
  %4538 = vmatprep.subr.bf16.mxu0 0
  %4539 = vmatpush1.bf16.msra.mxu0 0
  %4540 = vmatprep.subr.bf16.mxu0 0
  %4541 = vmatpush1.bf16.msra.mxu0 0
  %4542 = vmatprep.subr.bf16.mxu0 0
  %4543 = vmatpush1.bf16.msra.mxu0 0
  %4544 = vmatprep.subr.bf16.mxu0 0
  %4545 = vmatpush1.bf16.msra.mxu0 0
  %4546 = vmatprep.subr.bf16.mxu0 0
  %4547 = vmatpush1.bf16.msra.mxu0 0
  %4548 = vmatprep.subr.bf16.mxu0 0
  %4549 = vmatpush1.bf16.msra.mxu0 0
  %4550 = vmatprep.subr.bf16.mxu0 0
  %4551 = vmatpush1.bf16.msra.mxu0 0
  %4552 = vmatprep.subr.bf16.mxu0 0
  %4553 = vmatpush1.bf16.msra.mxu0 0
  %4554 = vmatprep.subr.bf16.mxu0 0
  %4555 = vmatpush1.bf16.msra.mxu0 0
  %4556 = vmatprep.subr.bf16.mxu0 0
  %4557 = vmatpush1.bf16.msra.mxu0 0
  %4558 = vmatprep.subr.bf16.mxu0 0
  %4559 = vmatpush1.bf16.msra.mxu0 0
  %4560 = vmatprep.subr.bf16.mxu0 0
  %4561 = vmatpush1.bf16.msra.mxu0 0
  %4562 = vmatprep.subr.bf16.mxu0 0
  %4563 = vmatpush1.bf16.msra.mxu0 0
  %4564 = vmatprep.subr.bf16.mxu0 0
  %4565 = vmatpush1.bf16.msra.mxu0 0
  %4566 = vmatprep.mubr.bf16.mxu0 0
  %4567 = vmatmul.mubr.bf16.gmra.mrb[0].mxu0 %v2731
  %v4568 = vpop.f32.mrb[0].mxu0
  %v4569 = vadd.f32 0.0, %v4568
  %v4570 = vpop.f32.mrb[0].mxu0
  %v4571 = vpop.f32.mrb[0].mxu0
  %v4572 = vadd.f32 0.0, %v4571
  %v4573 = vpop.f32.mrb[0].mxu0
  %4574 = vmatprep.mubr.bf16.mxu0 0
  %4575 = vmatmul.mubr.bf16.gmra.mrb[0].mxu0 %v2734
  %v4576 = vpop.f32.mrb[0].mxu0
  %v4577 = vadd.f32 0.0, %v4576
  %v4578 = vpop.f32.mrb[0].mxu0
  %v4579 = vpop.f32.mrb[0].mxu0
  %v4580 = vadd.f32 0.0, %v4579
  %v4581 = vpop.f32.mrb[0].mxu0
  %4582 = vmatprep.mubr.bf16.mxu0 0
  %4583 = vmatmul.mubr.bf16.gmra.mrb[0].mxu0 %v4373
  %v4584 = vpop.f32.mrb[0].mxu0
  %v4585 = vadd.f32 0.0, %v4584
  %v4586 = vpop.f32.mrb[0].mxu0
  %v4587 = vpop.f32.mrb[0].mxu0
  %v4588 = vadd.f32 0.0, %v4587
  %v4589 = vpop.f32.mrb[0].mxu0
  %4590 = vmatprep.mubr.bf16.mxu0 0
  %4591 = vmatmul.mubr.bf16.gmra.mrb[0].mxu0 %v4376
  %v4592 = vpop.f32.mrb[0].mxu0
  %v4593 = vadd.f32 0.0, %v4592
  %v4594 = vpop.f32.mrb[0].mxu0
  %v4595 = vpop.f32.mrb[0].mxu0
  %v4596 = vadd.f32 0.0, %v4595
  %v4597 = vpop.f32.mrb[0].mxu0
  %4598 = vdwg.mxu0
  %v4599 = vpack.c.bf16 %v4572, %v4569
  %v4600 = vpack.c.bf16 %v4580, %v4577
  %v4601 = vpack.c.bf16 %v4588, %v4585
  %v4602 = vpack.c.bf16 %v4596, %v4593
  %s4603 = scalar_lea.vmem %s14, 24
  %v4604 = vld [vmem:[%s4603] sm:$0xf]
  %v4605 = vld [vmem:[%s4603 + $0x4] sm:$0xf]
  %v4608 = vunpack.c.l.b16 %v4604
  %v4609 = vunpack.c.l.b16 %v4605
  %v4610 = vpack.c.b16 %v4609, %v4608
  %4612 = vmatprep.subr.bf16.mxu0 0
  %4613 = vmatpush1.bf16.msra.mxu0 %v4610
  %4614 = vmatprep.subr.bf16.mxu0 0
  %4615 = vmatpush1.bf16.msra.mxu0 0
  %4616 = vmatprep.subr.bf16.mxu0 0
  %4617 = vmatpush1.bf16.msra.mxu0 0
  %4618 = vmatprep.subr.bf16.mxu0 0
  %4619 = vmatpush1.bf16.msra.mxu0 0
  %4620 = vmatprep.subr.bf16.mxu0 0
  %4621 = vmatpush1.bf16.msra.mxu0 0
  %4622 = vmatprep.subr.bf16.mxu0 0
  %4623 = vmatpush1.bf16.msra.mxu0 0
  %4624 = vmatprep.subr.bf16.mxu0 0
  %4625 = vmatpush1.bf16.msra.mxu0 0
  %4626 = vmatprep.subr.bf16.mxu0 0
  %4627 = vmatpush1.bf16.msra.mxu0 0
  %4628 = vmatprep.subr.bf16.mxu0 0
  %4629 = vmatpush1.bf16.msra.mxu0 0
  %4630 = vmatprep.subr.bf16.mxu0 0
  %4631 = vmatpush1.bf16.msra.mxu0 0
  %4632 = vmatprep.subr.bf16.mxu0 0
  %4633 = vmatpush1.bf16.msra.mxu0 0
  %4634 = vmatprep.subr.bf16.mxu0 0
  %4635 = vmatpush1.bf16.msra.mxu0 0
  %4636 = vmatprep.subr.bf16.mxu0 0
  %4637 = vmatpush1.bf16.msra.mxu0 0
  %4638 = vmatprep.subr.bf16.mxu0 0
  %4639 = vmatpush1.bf16.msra.mxu0 0
  %4640 = vmatprep.subr.bf16.mxu0 0
  %4641 = vmatpush1.bf16.msra.mxu0 0
  %4642 = vmatprep.subr.bf16.mxu0 0
  %4643 = vmatpush1.bf16.msra.mxu0 0
  %4644 = vmatprep.mubr.bf16.mxu0 0
  %4645 = vmatmul.mubr.bf16.gmra.mrb[0].mxu0 %v2731
  %v4646 = vpop.f32.mrb[0].mxu0
  %v4647 = vadd.f32 0.0, %v4646
  %v4648 = vpop.f32.mrb[0].mxu0
  %v4649 = vpop.f32.mrb[0].mxu0
  %v4650 = vadd.f32 0.0, %v4649
  %v4651 = vpop.f32.mrb[0].mxu0
  %4652 = vmatprep.mubr.bf16.mxu0 0
  %4653 = vmatmul.mubr.bf16.gmra.mrb[0].mxu0 %v2734
  %v4654 = vpop.f32.mrb[0].mxu0
  %v4655 = vadd.f32 0.0, %v4654
  %v4656 = vpop.f32.mrb[0].mxu0
  %v4657 = vpop.f32.mrb[0].mxu0
  %v4658 = vadd.f32 0.0, %v4657
  %v4659 = vpop.f32.mrb[0].mxu0
  %4660 = vmatprep.mubr.bf16.mxu0 0
  %4661 = vmatmul.mubr.bf16.gmra.mrb[0].mxu0 %v4373
  %v4662 = vpop.f32.mrb[0].mxu0
  %v4663 = vadd.f32 0.0, %v4662
  %v4664 = vpop.f32.mrb[0].mxu0
  %v4665 = vpop.f32.mrb[0].mxu0
  %v4666 = vadd.f32 0.0, %v4665
  %v4667 = vpop.f32.mrb[0].mxu0
  %4668 = vmatprep.mubr.bf16.mxu0 0
  %4669 = vmatmul.mubr.bf16.gmra.mrb[0].mxu0 %v4376
  %v4670 = vpop.f32.mrb[0].mxu0
  %v4671 = vadd.f32 0.0, %v4670
  %v4672 = vpop.f32.mrb[0].mxu0
  %v4673 = vpop.f32.mrb[0].mxu0
  %v4674 = vadd.f32 0.0, %v4673
  %v4675 = vpop.f32.mrb[0].mxu0
  %4676 = vdwg.mxu0
  %v4677 = vpack.c.bf16 %v4650, %v4647
  %v4678 = vpack.c.bf16 %v4658, %v4655
  %v4679 = vpack.c.bf16 %v4666, %v4663
  %v4680 = vpack.c.bf16 %v4674, %v4671
  %s4681 = scalar_lea.vmem %s14, 32
  %v4682 = vld [vmem:[%s4681] sm:$0xf]
  %v4683 = vld [vmem:[%s4681 + $0x4] sm:$0xf]
  %v4686 = vunpack.c.l.b16 %v4682
  %v4687 = vunpack.c.l.b16 %v4683
  %v4688 = vpack.c.b16 %v4687, %v4686
  %4690 = vmatprep.subr.bf16.mxu0 0
  %4691 = vmatpush1.bf16.msra.mxu0 %v4688
  %4692 = vmatprep.subr.bf16.mxu0 0
  %4693 = vmatpush1.bf16.msra.mxu0 0
  %4694 = vmatprep.subr.bf16.mxu0 0
  %4695 = vmatpush1.bf16.msra.mxu0 0
  %4696 = vmatprep.subr.bf16.mxu0 0
  %4697 = vmatpush1.bf16.msra.mxu0 0
  %4698 = vmatprep.subr.bf16.mxu0 0
  %4699 = vmatpush1.bf16.msra.mxu0 0
  %4700 = vmatprep.subr.bf16.mxu0 0
  %4701 = vmatpush1.bf16.msra.mxu0 0
  %4702 = vmatprep.subr.bf16.mxu0 0
  %4703 = vmatpush1.bf16.msra.mxu0 0
  %4704 = vmatprep.subr.bf16.mxu0 0
  %4705 = vmatpush1.bf16.msra.mxu0 0
  %4706 = vmatprep.subr.bf16.mxu0 0
  %4707 = vmatpush1.bf16.msra.mxu0 0
  %4708 = vmatprep.subr.bf16.mxu0 0
  %4709 = vmatpush1.bf16.msra.mxu0 0
  %4710 = vmatprep.subr.bf16.mxu0 0
  %4711 = vmatpush1.bf16.msra.mxu0 0
  %4712 = vmatprep.subr.bf16.mxu0 0
  %4713 = vmatpush1.bf16.msra.mxu0 0
  %4714 = vmatprep.subr.bf16.mxu0 0
  %4715 = vmatpush1.bf16.msra.mxu0 0
  %4716 = vmatprep.subr.bf16.mxu0 0
  %4717 = vmatpush1.bf16.msra.mxu0 0
  %4718 = vmatprep.subr.bf16.mxu0 0
  %4719 = vmatpush1.bf16.msra.mxu0 0
  %4720 = vmatprep.subr.bf16.mxu0 0
  %4721 = vmatpush1.bf16.msra.mxu0 0
  %4722 = vmatprep.mubr.bf16.mxu0 0
  %4723 = vmatmul.mubr.bf16.gmra.mrb[0].mxu0 %v2731
  %v4724 = vpop.f32.mrb[0].mxu0
  %v4725 = vadd.f32 0.0, %v4724
  %v4726 = vpop.f32.mrb[0].mxu0
  %v4727 = vpop.f32.mrb[0].mxu0
  %v4728 = vadd.f32 0.0, %v4727
  %v4729 = vpop.f32.mrb[0].mxu0
  %4730 = vmatprep.mubr.bf16.mxu0 0
  %4731 = vmatmul.mubr.bf16.gmra.mrb[0].mxu0 %v2734
  %v4732 = vpop.f32.mrb[0].mxu0
  %v4733 = vadd.f32 0.0, %v4732
  %v4734 = vpop.f32.mrb[0].mxu0
  %v4735 = vpop.f32.mrb[0].mxu0
  %v4736 = vadd.f32 0.0, %v4735
  %v4737 = vpop.f32.mrb[0].mxu0
  %4738 = vmatprep.mubr.bf16.mxu0 0
  %4739 = vmatmul.mubr.bf16.gmra.mrb[0].mxu0 %v4373
  %v4740 = vpop.f32.mrb[0].mxu0
  %v4741 = vadd.f32 0.0, %v4740
  %v4742 = vpop.f32.mrb[0].mxu0
  %v4743 = vpop.f32.mrb[0].mxu0
  %v4744 = vadd.f32 0.0, %v4743
  %v4745 = vpop.f32.mrb[0].mxu0
  %4746 = vmatprep.mubr.bf16.mxu0 0
  %4747 = vmatmul.mubr.bf16.gmra.mrb[0].mxu0 %v4376
  %v4748 = vpop.f32.mrb[0].mxu0
  %v4749 = vadd.f32 0.0, %v4748
  %v4750 = vpop.f32.mrb[0].mxu0
  %v4751 = vpop.f32.mrb[0].mxu0
  %v4752 = vadd.f32 0.0, %v4751
  %v4753 = vpop.f32.mrb[0].mxu0
  %4754 = vdwg.mxu0
  %v4755 = vpack.c.bf16 %v4728, %v4725
  %v4756 = vpack.c.bf16 %v4736, %v4733
  %v4757 = vpack.c.bf16 %v4744, %v4741
  %v4758 = vpack.c.bf16 %v4752, %v4749
  %s4759 = scalar_lea.vmem %s14, 40
  %v4760 = vld [vmem:[%s4759] sm:$0xf]
  %v4761 = vld [vmem:[%s4759 + $0x4] sm:$0xf]
  %v4764 = vunpack.c.l.b16 %v4760
  %v4765 = vunpack.c.l.b16 %v4761
  %v4766 = vpack.c.b16 %v4765, %v4764
  %4768 = vmatprep.subr.bf16.mxu0 0
  %4769 = vmatpush1.bf16.msra.mxu0 %v4766
  %4770 = vmatprep.subr.bf16.mxu0 0
  %4771 = vmatpush1.bf16.msra.mxu0 0
  %4772 = vmatprep.subr.bf16.mxu0 0
  %4773 = vmatpush1.bf16.msra.mxu0 0
  %4774 = vmatprep.subr.bf16.mxu0 0
  %4775 = vmatpush1.bf16.msra.mxu0 0
  %4776 = vmatprep.subr.bf16.mxu0 0
  %4777 = vmatpush1.bf16.msra.mxu0 0
  %4778 = vmatprep.subr.bf16.mxu0 0
  %4779 = vmatpush1.bf16.msra.mxu0 0
  %4780 = vmatprep.subr.bf16.mxu0 0
  %4781 = vmatpush1.bf16.msra.mxu0 0
  %4782 = vmatprep.subr.bf16.mxu0 0
  %4783 = vmatpush1.bf16.msra.mxu0 0
  %4784 = vmatprep.subr.bf16.mxu0 0
  %4785 = vmatpush1.bf16.msra.mxu0 0
  %4786 = vmatprep.subr.bf16.mxu0 0
  %4787 = vmatpush1.bf16.msra.mxu0 0
  %4788 = vmatprep.subr.bf16.mxu0 0
  %4789 = vmatpush1.bf16.msra.mxu0 0
  %4790 = vmatprep.subr.bf16.mxu0 0
  %4791 = vmatpush1.bf16.msra.mxu0 0
  %4792 = vmatprep.subr.bf16.mxu0 0
  %4793 = vmatpush1.bf16.msra.mxu0 0
  %4794 = vmatprep.subr.bf16.mxu0 0
  %4795 = vmatpush1.bf16.msra.mxu0 0
  %4796 = vmatprep.subr.bf16.mxu0 0
  %4797 = vmatpush1.bf16.msra.mxu0 0
  %4798 = vmatprep.subr.bf16.mxu0 0
  %4799 = vmatpush1.bf16.msra.mxu0 0
  %4800 = vmatprep.mubr.bf16.mxu0 0
  %4801 = vmatmul.mubr.bf16.gmra.mrb[0].mxu0 %v2731
  %v4802 = vpop.f32.mrb[0].mxu0
  %v4803 = vadd.f32 0.0, %v4802
  %v4804 = vpop.f32.mrb[0].mxu0
  %v4805 = vpop.f32.mrb[0].mxu0
  %v4806 = vadd.f32 0.0, %v4805
  %v4807 = vpop.f32.mrb[0].mxu0
  %4808 = vmatprep.mubr.bf16.mxu0 0
  %4809 = vmatmul.mubr.bf16.gmra.mrb[0].mxu0 %v2734
  %v4810 = vpop.f32.mrb[0].mxu0
  %v4811 = vadd.f32 0.0, %v4810
  %v4812 = vpop.f32.mrb[0].mxu0
  %v4813 = vpop.f32.mrb[0].mxu0
  %v4814 = vadd.f32 0.0, %v4813
  %v4815 = vpop.f32.mrb[0].mxu0
  %4816 = vmatprep.mubr.bf16.mxu0 0
  %4817 = vmatmul.mubr.bf16.gmra.mrb[0].mxu0 %v4373
  %v4818 = vpop.f32.mrb[0].mxu0
  %v4819 = vadd.f32 0.0, %v4818
  %v4820 = vpop.f32.mrb[0].mxu0
  %v4821 = vpop.f32.mrb[0].mxu0
  %v4822 = vadd.f32 0.0, %v4821
  %v4823 = vpop.f32.mrb[0].mxu0
  %4824 = vmatprep.mubr.bf16.mxu0 0
  %4825 = vmatmul.mubr.bf16.gmra.mrb[0].mxu0 %v4376
  %v4826 = vpop.f32.mrb[0].mxu0
  %v4827 = vadd.f32 0.0, %v4826
  %v4828 = vpop.f32.mrb[0].mxu0
  %v4829 = vpop.f32.mrb[0].mxu0
  %v4830 = vadd.f32 0.0, %v4829
  %v4831 = vpop.f32.mrb[0].mxu0
  %4832 = vdwg.mxu0
  %v4833 = vpack.c.bf16 %v4806, %v4803
  %v4834 = vpack.c.bf16 %v4814, %v4811
  %v4835 = vpack.c.bf16 %v4822, %v4819
  %v4836 = vpack.c.bf16 %v4830, %v4827
  %s4837 = scalar_lea.vmem %s14, 48
  %v4838 = vld [vmem:[%s4837] sm:$0xf]
  %v4839 = vld [vmem:[%s4837 + $0x4] sm:$0xf]
  %v4842 = vunpack.c.l.b16 %v4838
  %v4843 = vunpack.c.l.b16 %v4839
  %v4844 = vpack.c.b16 %v4843, %v4842
  %4846 = vmatprep.subr.bf16.mxu0 0
  %4847 = vmatpush1.bf16.msra.mxu0 %v4844
  %4848 = vmatprep.subr.bf16.mxu0 0
  %4849 = vmatpush1.bf16.msra.mxu0 0
  %4850 = vmatprep.subr.bf16.mxu0 0
  %4851 = vmatpush1.bf16.msra.mxu0 0
  %4852 = vmatprep.subr.bf16.mxu0 0
  %4853 = vmatpush1.bf16.msra.mxu0 0
  %4854 = vmatprep.subr.bf16.mxu0 0
  %4855 = vmatpush1.bf16.msra.mxu0 0
  %4856 = vmatprep.subr.bf16.mxu0 0
  %4857 = vmatpush1.bf16.msra.mxu0 0
  %4858 = vmatprep.subr.bf16.mxu0 0
  %4859 = vmatpush1.bf16.msra.mxu0 0
  %4860 = vmatprep.subr.bf16.mxu0 0
  %4861 = vmatpush1.bf16.msra.mxu0 0
  %4862 = vmatprep.subr.bf16.mxu0 0
  %4863 = vmatpush1.bf16.msra.mxu0 0
  %4864 = vmatprep.subr.bf16.mxu0 0
  %4865 = vmatpush1.bf16.msra.mxu0 0
  %4866 = vmatprep.subr.bf16.mxu0 0
  %4867 = vmatpush1.bf16.msra.mxu0 0
  %4868 = vmatprep.subr.bf16.mxu0 0
  %4869 = vmatpush1.bf16.msra.mxu0 0
  %4870 = vmatprep.subr.bf16.mxu0 0
  %4871 = vmatpush1.bf16.msra.mxu0 0
  %4872 = vmatprep.subr.bf16.mxu0 0
  %4873 = vmatpush1.bf16.msra.mxu0 0
  %4874 = vmatprep.subr.bf16.mxu0 0
  %4875 = vmatpush1.bf16.msra.mxu0 0
  %4876 = vmatprep.subr.bf16.mxu0 0
  %4877 = vmatpush1.bf16.msra.mxu0 0
  %4878 = vmatprep.mubr.bf16.mxu0 0
  %4879 = vmatmul.mubr.bf16.gmra.mrb[0].mxu0 %v2731
  %v4880 = vpop.f32.mrb[0].mxu0
  %v4881 = vadd.f32 0.0, %v4880
  %v4882 = vpop.f32.mrb[0].mxu0
  %v4883 = vpop.f32.mrb[0].mxu0
  %v4884 = vadd.f32 0.0, %v4883
  %v4885 = vpop.f32.mrb[0].mxu0
  %4886 = vmatprep.mubr.bf16.mxu0 0
  %4887 = vmatmul.mubr.bf16.gmra.mrb[0].mxu0 %v2734
  %v4888 = vpop.f32.mrb[0].mxu0
  %v4889 = vadd.f32 0.0, %v4888
  %v4890 = vpop.f32.mrb[0].mxu0
  %v4891 = vpop.f32.mrb[0].mxu0
  %v4892 = vadd.f32 0.0, %v4891
  %v4893 = vpop.f32.mrb[0].mxu0
  %4894 = vmatprep.mubr.bf16.mxu0 0
  %4895 = vmatmul.mubr.bf16.gmra.mrb[0].mxu0 %v4373
  %v4896 = vpop.f32.mrb[0].mxu0
  %v4897 = vadd.f32 0.0, %v4896
  %v4898 = vpop.f32.mrb[0].mxu0
  %v4899 = vpop.f32.mrb[0].mxu0
  %v4900 = vadd.f32 0.0, %v4899
  %v4901 = vpop.f32.mrb[0].mxu0
  %4902 = vmatprep.mubr.bf16.mxu0 0
  %4903 = vmatmul.mubr.bf16.gmra.mrb[0].mxu0 %v4376
  %v4904 = vpop.f32.mrb[0].mxu0
  %v4905 = vadd.f32 0.0, %v4904
  %v4906 = vpop.f32.mrb[0].mxu0
  %v4907 = vpop.f32.mrb[0].mxu0
  %v4908 = vadd.f32 0.0, %v4907
  %v4909 = vpop.f32.mrb[0].mxu0
  %4910 = vdwg.mxu0
  %v4911 = vpack.c.bf16 %v4884, %v4881
  %v4912 = vpack.c.bf16 %v4892, %v4889
  %v4913 = vpack.c.bf16 %v4900, %v4897
  %v4914 = vpack.c.bf16 %v4908, %v4905
  %s4915 = scalar_lea.vmem %s14, 56
  %v4916 = vld [vmem:[%s4915] sm:$0xf]
  %v4917 = vld [vmem:[%s4915 + $0x4] sm:$0xf]
  %v4920 = vunpack.c.l.b16 %v4916
  %v4921 = vunpack.c.l.b16 %v4917
  %v4922 = vpack.c.b16 %v4921, %v4920
  %4924 = vmatprep.subr.bf16.mxu0 0
  %4925 = vmatpush1.bf16.msra.mxu0 %v4922
  %4926 = vmatprep.subr.bf16.mxu0 0
  %4927 = vmatpush1.bf16.msra.mxu0 0
  %4928 = vmatprep.subr.bf16.mxu0 0
  %4929 = vmatpush1.bf16.msra.mxu0 0
  %4930 = vmatprep.subr.bf16.mxu0 0
  %4931 = vmatpush1.bf16.msra.mxu0 0
  %4932 = vmatprep.subr.bf16.mxu0 0
  %4933 = vmatpush1.bf16.msra.mxu0 0
  %4934 = vmatprep.subr.bf16.mxu0 0
  %4935 = vmatpush1.bf16.msra.mxu0 0
  %4936 = vmatprep.subr.bf16.mxu0 0
  %4937 = vmatpush1.bf16.msra.mxu0 0
  %4938 = vmatprep.subr.bf16.mxu0 0
  %4939 = vmatpush1.bf16.msra.mxu0 0
  %4940 = vmatprep.subr.bf16.mxu0 0
  %4941 = vmatpush1.bf16.msra.mxu0 0
  %4942 = vmatprep.subr.bf16.mxu0 0
  %4943 = vmatpush1.bf16.msra.mxu0 0
  %4944 = vmatprep.subr.bf16.mxu0 0
  %4945 = vmatpush1.bf16.msra.mxu0 0
  %4946 = vmatprep.subr.bf16.mxu0 0
  %4947 = vmatpush1.bf16.msra.mxu0 0
  %4948 = vmatprep.subr.bf16.mxu0 0
  %4949 = vmatpush1.bf16.msra.mxu0 0
  %4950 = vmatprep.subr.bf16.mxu0 0
  %4951 = vmatpush1.bf16.msra.mxu0 0
  %4952 = vmatprep.subr.bf16.mxu0 0
  %4953 = vmatpush1.bf16.msra.mxu0 0
  %4954 = vmatprep.subr.bf16.mxu0 0
  %4955 = vmatpush1.bf16.msra.mxu0 0
  %4956 = vmatprep.mubr.bf16.mxu0 0
  %4957 = vmatmul.mubr.bf16.gmra.mrb[0].mxu0 %v2731
  %v4958 = vpop.f32.mrb[0].mxu0
  %v4959 = vadd.f32 0.0, %v4958
  %v4960 = vpop.f32.mrb[0].mxu0
  %v4961 = vpop.f32.mrb[0].mxu0
  %v4962 = vadd.f32 0.0, %v4961
  %v4963 = vpop.f32.mrb[0].mxu0
  %4964 = vmatprep.mubr.bf16.mxu0 0
  %4965 = vmatmul.mubr.bf16.gmra.mrb[0].mxu0 %v2734
  %v4966 = vpop.f32.mrb[0].mxu0
  %v4967 = vadd.f32 0.0, %v4966
  %v4968 = vpop.f32.mrb[0].mxu0
  %v4969 = vpop.f32.mrb[0].mxu0
  %v4970 = vadd.f32 0.0, %v4969
  %v4971 = vpop.f32.mrb[0].mxu0
  %4972 = vmatprep.mubr.bf16.mxu0 0
  %4973 = vmatmul.mubr.bf16.gmra.mrb[0].mxu0 %v4373
  %v4974 = vpop.f32.mrb[0].mxu0
  %v4975 = vadd.f32 0.0, %v4974
  %v4976 = vpop.f32.mrb[0].mxu0
  %v4977 = vpop.f32.mrb[0].mxu0
  %v4978 = vadd.f32 0.0, %v4977
  %v4979 = vpop.f32.mrb[0].mxu0
  %4980 = vmatprep.mubr.bf16.mxu0 0
  %4981 = vmatmul.mubr.bf16.gmra.mrb[0].mxu0 %v4376
  %v4982 = vpop.f32.mrb[0].mxu0
  %v4983 = vadd.f32 0.0, %v4982
  %v4984 = vpop.f32.mrb[0].mxu0
  %v4985 = vpop.f32.mrb[0].mxu0
  %v4986 = vadd.f32 0.0, %v4985
  %v4987 = vpop.f32.mrb[0].mxu0
  %4988 = vdwg.mxu0
  %v4989 = vpack.c.bf16 %v4962, %v4959
  %v4990 = vpack.c.bf16 %v4970, %v4967
  %v4991 = vpack.c.bf16 %v4978, %v4975
  %v4992 = vpack.c.bf16 %v4986, %v4983
  %s4993 = scalar_lea.vmem %s14, 64
  %v4994 = vld [vmem:[%s4993] sm:$0xf]
  %v4995 = vld [vmem:[%s4993 + $0x4] sm:$0xf]
  %v4998 = vunpack.c.l.b16 %v4994
  %v4999 = vunpack.c.l.b16 %v4995
  %v5000 = vpack.c.b16 %v4999, %v4998
  %5002 = vmatprep.subr.bf16.mxu0 0
  %5003 = vmatpush1.bf16.msra.mxu0 %v5000
  %5004 = vmatprep.subr.bf16.mxu0 0
  %5005 = vmatpush1.bf16.msra.mxu0 0
  %5006 = vmatprep.subr.bf16.mxu0 0
  %5007 = vmatpush1.bf16.msra.mxu0 0
  %5008 = vmatprep.subr.bf16.mxu0 0
  %5009 = vmatpush1.bf16.msra.mxu0 0
  %5010 = vmatprep.subr.bf16.mxu0 0
  %5011 = vmatpush1.bf16.msra.mxu0 0
  %5012 = vmatprep.subr.bf16.mxu0 0
  %5013 = vmatpush1.bf16.msra.mxu0 0
  %5014 = vmatprep.subr.bf16.mxu0 0
  %5015 = vmatpush1.bf16.msra.mxu0 0
  %5016 = vmatprep.subr.bf16.mxu0 0
  %5017 = vmatpush1.bf16.msra.mxu0 0
  %5018 = vmatprep.subr.bf16.mxu0 0
  %5019 = vmatpush1.bf16.msra.mxu0 0
  %5020 = vmatprep.subr.bf16.mxu0 0
  %5021 = vmatpush1.bf16.msra.mxu0 0
  %5022 = vmatprep.subr.bf16.mxu0 0
  %5023 = vmatpush1.bf16.msra.mxu0 0
  %5024 = vmatprep.subr.bf16.mxu0 0
  %5025 = vmatpush1.bf16.msra.mxu0 0
  %5026 = vmatprep.subr.bf16.mxu0 0
  %5027 = vmatpush1.bf16.msra.mxu0 0
  %5028 = vmatprep.subr.bf16.mxu0 0
  %5029 = vmatpush1.bf16.msra.mxu0 0
  %5030 = vmatprep.subr.bf16.mxu0 0
  %5031 = vmatpush1.bf16.msra.mxu0 0
  %5032 = vmatprep.subr.bf16.mxu0 0
  %5033 = vmatpush1.bf16.msra.mxu0 0
  %5034 = vmatprep.mubr.bf16.mxu0 0
  %5035 = vmatmul.mubr.bf16.gmra.mrb[0].mxu0 %v2731
  %v5036 = vpop.f32.mrb[0].mxu0
  %v5037 = vadd.f32 0.0, %v5036
  %v5038 = vpop.f32.mrb[0].mxu0
  %v5039 = vpop.f32.mrb[0].mxu0
  %v5040 = vadd.f32 0.0, %v5039
  %v5041 = vpop.f32.mrb[0].mxu0
  %5042 = vmatprep.mubr.bf16.mxu0 0
  %5043 = vmatmul.mubr.bf16.gmra.mrb[0].mxu0 %v2734
  %v5044 = vpop.f32.mrb[0].mxu0
  %v5045 = vadd.f32 0.0, %v5044
  %v5046 = vpop.f32.mrb[0].mxu0
  %v5047 = vpop.f32.mrb[0].mxu0
  %v5048 = vadd.f32 0.0, %v5047
  %v5049 = vpop.f32.mrb[0].mxu0
  %5050 = vmatprep.mubr.bf16.mxu0 0
  %5051 = vmatmul.mubr.bf16.gmra.mrb[0].mxu0 %v4373
  %v5052 = vpop.f32.mrb[0].mxu0
  %v5053 = vadd.f32 0.0, %v5052
  %v5054 = vpop.f32.mrb[0].mxu0
  %v5055 = vpop.f32.mrb[0].mxu0
  %v5056 = vadd.f32 0.0, %v5055
  %v5057 = vpop.f32.mrb[0].mxu0
  %5058 = vmatprep.mubr.bf16.mxu0 0
  %5059 = vmatmul.mubr.bf16.gmra.mrb[0].mxu0 %v4376
  %v5060 = vpop.f32.mrb[0].mxu0
  %v5061 = vadd.f32 0.0, %v5060
  %v5062 = vpop.f32.mrb[0].mxu0
  %v5063 = vpop.f32.mrb[0].mxu0
  %v5064 = vadd.f32 0.0, %v5063
  %v5065 = vpop.f32.mrb[0].mxu0
  %5066 = vdwg.mxu0
  %v5067 = vpack.c.bf16 %v5040, %v5037
  %v5068 = vpack.c.bf16 %v5048, %v5045
  %v5069 = vpack.c.bf16 %v5056, %v5053
  %v5070 = vpack.c.bf16 %v5064, %v5061
  %v5071 = vld [vmem:[%s13] sm:$0xff]
  %v5072 = vld [vmem:[%s13 + $0x8] sm:$0xff]
  %v5073 = vld [vmem:[%s13 + $0x10] sm:$0xf]
  %v5074 = vld [vmem:[%s13 + $0x14] sm:$0xff]
  %v5075 = vld [vmem:[%s13 + $0x1c] sm:$0xff]
  %v5076 = vld [vmem:[%s13 + $0x24] sm:$0xf]
  %v5083 = vunpack.c.l.b16 %v5071
  %v5084 = vunpack.c.h.b16 %v5071
  %v5085 = vunpack.c.l.b16 %v5072
  %v5086 = vunpack.c.h.b16 %v5072
  %v5087 = vunpack.c.l.b16 %v5073
  %v5088 = vunpack.c.l.b16 %v5074
  %v5089 = vunpack.c.h.b16 %v5074
  %v5090 = vunpack.c.l.b16 %v5075
  %v5091 = vunpack.c.h.b16 %v5075
  %v5092 = vunpack.c.l.b16 %v5076
  %v5093 = vpack.c.b16 %v5088, %v5083
  %v5094 = vpack.c.b16 %v5089, %v5084
  %v5095 = vpack.c.b16 %v5090, %v5085
  %v5096 = vpack.c.b16 %v5091, %v5086
  %v5097 = vpack.c.b16 %v5092, %v5087
  %v5103 = vsel %vm1701, %v5097, 0
  %5105 = vmatprep.subr.bf16.mxu0 0
  %5106 = vmatpush1.bf16.msra.mxu0 %v4443
  %5107 = vmatprep.subr.bf16.mxu0 0
  %5108 = vmatpush1.bf16.msra.mxu0 %v4444
  %5109 = vmatprep.subr.bf16.mxu0 0
  %5110 = vmatpush1.bf16.msra.mxu0 %v4445
  %5111 = vmatprep.subr.bf16.mxu0 0
  %5112 = vmatpush1.bf16.msra.mxu0 %v4446
  %5113 = vmatprep.subr.bf16.mxu0 0
  %5114 = vmatpush1.bf16.msra.mxu0 %v4521
  %5115 = vmatprep.subr.bf16.mxu0 0
  %5116 = vmatpush1.bf16.msra.mxu0 %v4522
  %5117 = vmatprep.subr.bf16.mxu0 0
  %5118 = vmatpush1.bf16.msra.mxu0 %v4523
  %5119 = vmatprep.subr.bf16.mxu0 0
  %5120 = vmatpush1.bf16.msra.mxu0 %v4524
  %5121 = vmatprep.subr.bf16.mxu0 0
  %5122 = vmatpush1.bf16.msra.mxu0 %v4599
  %5123 = vmatprep.subr.bf16.mxu0 0
  %5124 = vmatpush1.bf16.msra.mxu0 %v4600
  %5125 = vmatprep.subr.bf16.mxu0 0
  %5126 = vmatpush1.bf16.msra.mxu0 %v4601
  %5127 = vmatprep.subr.bf16.mxu0 0
  %5128 = vmatpush1.bf16.msra.mxu0 %v4602
  %5129 = vmatprep.subr.bf16.mxu0 0
  %5130 = vmatpush1.bf16.msra.mxu0 %v4677
  %5131 = vmatprep.subr.bf16.mxu0 0
  %5132 = vmatpush1.bf16.msra.mxu0 %v4678
  %5133 = vmatprep.subr.bf16.mxu0 0
  %5134 = vmatpush1.bf16.msra.mxu0 %v4679
  %5135 = vmatprep.subr.bf16.mxu0 0
  %5136 = vmatpush1.bf16.msra.mxu0 %v4680
  %5137 = vmatprep.mubr.bf16.mxu0 %v5094
  %5138 = vmatmul.mubr.bf16.gmra.mrb[0].mxu0 %v5093
  %v5139 = vpop.f32.mrb[0].mxu0
  %v5140 = vadd.f32 0.0, %v5139
  %v5141 = vpop.f32.mrb[0].mxu0
  %v5142 = vpop.f32.mrb[0].mxu0
  %v5143 = vadd.f32 0.0, %v5142
  %v5144 = vpop.f32.mrb[0].mxu0
  %5145 = vdwg.mxu0
  %5146 = vmatprep.subr.bf16.mxu0 0
  %5147 = vmatpush1.bf16.msra.mxu0 %v4755
  %5148 = vmatprep.subr.bf16.mxu0 0
  %5149 = vmatpush1.bf16.msra.mxu0 %v4756
  %5150 = vmatprep.subr.bf16.mxu0 0
  %5151 = vmatpush1.bf16.msra.mxu0 %v4757
  %5152 = vmatprep.subr.bf16.mxu0 0
  %5153 = vmatpush1.bf16.msra.mxu0 %v4758
  %5154 = vmatprep.subr.bf16.mxu0 0
  %5155 = vmatpush1.bf16.msra.mxu0 %v4833
  %5156 = vmatprep.subr.bf16.mxu0 0
  %5157 = vmatpush1.bf16.msra.mxu0 %v4834
  %5158 = vmatprep.subr.bf16.mxu0 0
  %5159 = vmatpush1.bf16.msra.mxu0 %v4835
  %5160 = vmatprep.subr.bf16.mxu0 0
  %5161 = vmatpush1.bf16.msra.mxu0 %v4836
  %5162 = vmatprep.subr.bf16.mxu0 0
  %5163 = vmatpush1.bf16.msra.mxu0 %v4911
  %5164 = vmatprep.subr.bf16.mxu0 0
  %5165 = vmatpush1.bf16.msra.mxu0 %v4912
  %5166 = vmatprep.subr.bf16.mxu0 0
  %5167 = vmatpush1.bf16.msra.mxu0 %v4913
  %5168 = vmatprep.subr.bf16.mxu0 0
  %5169 = vmatpush1.bf16.msra.mxu0 %v4914
  %5170 = vmatprep.subr.bf16.mxu0 0
  %5171 = vmatpush1.bf16.msra.mxu0 %v4989
  %5172 = vmatprep.subr.bf16.mxu0 0
  %5173 = vmatpush1.bf16.msra.mxu0 %v4990
  %5174 = vmatprep.subr.bf16.mxu0 0
  %5175 = vmatpush1.bf16.msra.mxu0 %v4991
  %5176 = vmatprep.subr.bf16.mxu0 0
  %5177 = vmatpush1.bf16.msra.mxu0 %v4992
  %5178 = vmatprep.mubr.bf16.mxu0 %v5096
  %5179 = vmatmul.mubr.bf16.gmra.mrb[0].mxu0 %v5095
  %v5180 = vpop.f32.mrb[0].mxu0
  %v5181 = vadd.f32 %v5140, %v5180
  %v5182 = vpop.f32.mrb[0].mxu0
  %v5183 = vpop.f32.mrb[0].mxu0
  %v5184 = vadd.f32 %v5143, %v5183
  %v5185 = vpop.f32.mrb[0].mxu0
  %5186 = vdwg.mxu0
  %5187 = vmatprep.subr.bf16.mxu0 0
  %5188 = vmatpush1.bf16.msra.mxu0 %v5067
  %5189 = vmatprep.subr.bf16.mxu0 0
  %5190 = vmatpush1.bf16.msra.mxu0 %v5068
  %5191 = vmatprep.subr.bf16.mxu0 0
  %5192 = vmatpush1.bf16.msra.mxu0 %v5069
  %5193 = vmatprep.subr.bf16.mxu0 0
  %5194 = vmatpush1.bf16.msra.mxu0 %v5070
  %5195 = vmatprep.subr.bf16.mxu0 0
  %5196 = vmatpush1.bf16.msra.mxu0 0
  %5197 = vmatprep.subr.bf16.mxu0 0
  %5198 = vmatpush1.bf16.msra.mxu0 0
  %5199 = vmatprep.subr.bf16.mxu0 0
  %5200 = vmatpush1.bf16.msra.mxu0 0
  %5201 = vmatprep.subr.bf16.mxu0 0
  %5202 = vmatpush1.bf16.msra.mxu0 0
  %5203 = vmatprep.subr.bf16.mxu0 0
  %5204 = vmatpush1.bf16.msra.mxu0 0
  %5205 = vmatprep.subr.bf16.mxu0 0
  %5206 = vmatpush1.bf16.msra.mxu0 0
  %5207 = vmatprep.subr.bf16.mxu0 0
  %5208 = vmatpush1.bf16.msra.mxu0 0
  %5209 = vmatprep.subr.bf16.mxu0 0
  %5210 = vmatpush1.bf16.msra.mxu0 0
  %5211 = vmatprep.subr.bf16.mxu0 0
  %5212 = vmatpush1.bf16.msra.mxu0 0
  %5213 = vmatprep.subr.bf16.mxu0 0
  %5214 = vmatpush1.bf16.msra.mxu0 0
  %5215 = vmatprep.subr.bf16.mxu0 0
  %5216 = vmatpush1.bf16.msra.mxu0 0
  %5217 = vmatprep.subr.bf16.mxu0 0
  %5218 = vmatpush1.bf16.msra.mxu0 0
  %5219 = vmatprep.mubr.bf16.mxu0 0
  %5220 = vmatmul.mubr.bf16.gmra.mrb[0].mxu0 %v5103
  %v5221 = vpop.f32.mrb[0].mxu0
  %v5222 = vadd.f32 %v5181, %v5221
  %v5223 = vpop.f32.mrb[0].mxu0
  %v5224 = vpop.f32.mrb[0].mxu0
  %v5225 = vadd.f32 %v5184, %v5224
  %v5226 = vpop.f32.mrb[0].mxu0
  %5227 = vdwg.mxu0
  %v5228 = vld [vmem:[%s15] sm:$0xff]
  %v5229 = vld [vmem:[%s15 + $0x8] sm:$0xff]
  %v5231 = vsel %vm1621, %v5228, 0
  %v5234 = vsel %vm1621, %v5229, 0
  %5236 = vmatprep.subr.mxu0 0.0
  %5237 = vmatpush1.msra.mxu0 %v5222
  %5238 = vmatprep.subr.mxu0 0.0
  %5239 = vmatpush1.msra.mxu0 %v5225
  %5240 = vmatprep.subr.mxu0 0.0
  %5241 = vmatpush1.msra.mxu0 0.0
  %5242 = vmatprep.subr.mxu0 0.0
  %5243 = vmatpush1.msra.mxu0 0.0
  %5244 = vmatprep.subr.mxu0 0.0
  %5245 = vmatpush1.msra.mxu0 0.0
  %5246 = vmatprep.subr.mxu0 0.0
  %5247 = vmatpush1.msra.mxu0 0.0
  %5248 = vmatprep.subr.mxu0 0.0
  %5249 = vmatpush1.msra.mxu0 0.0
  %5250 = vmatprep.subr.mxu0 0.0
  %5251 = vmatpush1.msra.mxu0 0.0
  %5252 = vmatprep.subr.mxu0 0.0
  %5253 = vmatpush1.msra.mxu0 0.0
  %5254 = vmatprep.subr.mxu0 0.0
  %5255 = vmatpush1.msra.mxu0 0.0
  %5256 = vmatprep.subr.mxu0 0.0
  %5257 = vmatpush1.msra.mxu0 0.0
  %5258 = vmatprep.subr.mxu0 0.0
  %5259 = vmatpush1.msra.mxu0 0.0
  %5260 = vmatprep.subr.mxu0 0.0
  %5261 = vmatpush1.msra.mxu0 0.0
  %5262 = vmatprep.subr.mxu0 0.0
  %5263 = vmatpush1.msra.mxu0 0.0
  %5264 = vmatprep.subr.mxu0 0.0
  %5265 = vmatpush1.msra.mxu0 0.0
  %5266 = vmatprep.subr.mxu0 0.0
  %5267 = vmatpush1.msra.mxu0 0.0
  %5268 = vmatprep.subr.mxu0 0.0
  %5269 = vmatpush1.msra.mxu0 0.0
  %5270 = vmatprep.subr.mxu0 0.0
  %5271 = vmatpush1.msra.mxu0 0.0
  %5272 = vmatprep.subr.mxu0 0.0
  %5273 = vmatpush1.msra.mxu0 0.0
  %5274 = vmatprep.subr.mxu0 0.0
  %5275 = vmatpush1.msra.mxu0 0.0
  %5276 = vmatprep.subr.mxu0 0.0
  %5277 = vmatpush1.msra.mxu0 0.0
  %5278 = vmatprep.subr.mxu0 0.0
  %5279 = vmatpush1.msra.mxu0 0.0
  %5280 = vmatprep.subr.mxu0 0.0
  %5281 = vmatpush1.msra.mxu0 0.0
  %5282 = vmatprep.subr.mxu0 0.0
  %5283 = vmatpush1.msra.mxu0 0.0
  %5284 = vmatprep.subr.mxu0 0.0
  %5285 = vmatpush1.msra.mxu0 0.0
  %5286 = vmatprep.subr.mxu0 0.0
  %5287 = vmatpush1.msra.mxu0 0.0
  %5288 = vmatprep.subr.mxu0 0.0
  %5289 = vmatpush1.msra.mxu0 0.0
  %5290 = vmatprep.subr.mxu0 0.0
  %5291 = vmatpush1.msra.mxu0 0.0
  %5292 = vmatprep.subr.mxu0 0.0
  %5293 = vmatpush1.msra.mxu0 0.0
  %5294 = vmatprep.subr.mxu0 0.0
  %5295 = vmatpush1.msra.mxu0 0.0
  %5296 = vmatprep.subr.mxu0 0.0
  %5297 = vmatpush1.msra.mxu0 0.0
  %5298 = vmatprep.subr.mxu0 0.0
  %5299 = vmatpush1.msra.mxu0 0.0
  %5300 = vmatprep.mubr.f32.mxu0 0.0
  %5301 = vmatmul.mubr.f32.gmra.mrb[0].mxu0 %v5231
  %v5302 = vpop.f32.mrb[0].mxu0
  %v5303 = vadd.f32 0.0, %v5302
  %v5304 = vpop.f32.mrb[0].mxu0
  %5305 = vmatprep.mubr.f32.mxu0 0.0
  %5306 = vmatmul.mubr.f32.gmra.mrb[0].mxu0 %v5234
  %v5307 = vpop.f32.mrb[0].mxu0
  %v5308 = vadd.f32 0.0, %v5307
  %v5309 = vpop.f32.mrb[0].mxu0
  %5310 = vdwg.mxu0
  %v5311 = vsel %vm1701, %v5303, 0.0
  %5312 = vadd.xlane.f32.xlu0 %v5311
  %v5313 = vpop.xlane.xlu0 %5312
  %v5314 = vsel %vm1701, %v5308, 0.0
  %5315 = vadd.xlane.f32.xlu0 %v5314
  %v5316 = vpop.xlane.xlu0 %5315
  %v5317 = vrcp.pop 64.0
  %v5318 = vmul.f32 %v5313, %v5317
  %v5319 = vmul.f32 %v5316, %v5317
  %v5320 = vsub.f32 %v5222, %v5318
  %v5321 = vsub.f32 %v5225, %v5319
  %v5322 = vmul.f32 %v5320, %v5320
  %v5323 = vmul.f32 %v5321, %v5321
  %5324 = vmatprep.subr.mxu0 0.0
  %5325 = vmatpush1.msra.mxu0 %v5322
  %5326 = vmatprep.subr.mxu0 0.0
  %5327 = vmatpush1.msra.mxu0 %v5323
  %5328 = vmatprep.subr.mxu0 0.0
  %5329 = vmatpush1.msra.mxu0 0.0
  %5330 = vmatprep.subr.mxu0 0.0
  %5331 = vmatpush1.msra.mxu0 0.0
  %5332 = vmatprep.subr.mxu0 0.0
  %5333 = vmatpush1.msra.mxu0 0.0
  %5334 = vmatprep.subr.mxu0 0.0
  %5335 = vmatpush1.msra.mxu0 0.0
  %5336 = vmatprep.subr.mxu0 0.0
  %5337 = vmatpush1.msra.mxu0 0.0
  %5338 = vmatprep.subr.mxu0 0.0
  %5339 = vmatpush1.msra.mxu0 0.0
  %5340 = vmatprep.subr.mxu0 0.0
  %5341 = vmatpush1.msra.mxu0 0.0
  %5342 = vmatprep.subr.mxu0 0.0
  %5343 = vmatpush1.msra.mxu0 0.0
  %5344 = vmatprep.subr.mxu0 0.0
  %5345 = vmatpush1.msra.mxu0 0.0
  %5346 = vmatprep.subr.mxu0 0.0
  %5347 = vmatpush1.msra.mxu0 0.0
  %5348 = vmatprep.subr.mxu0 0.0
  %5349 = vmatpush1.msra.mxu0 0.0
  %5350 = vmatprep.subr.mxu0 0.0
  %5351 = vmatpush1.msra.mxu0 0.0
  %5352 = vmatprep.subr.mxu0 0.0
  %5353 = vmatpush1.msra.mxu0 0.0
  %5354 = vmatprep.subr.mxu0 0.0
  %5355 = vmatpush1.msra.mxu0 0.0
  %5356 = vmatprep.subr.mxu0 0.0
  %5357 = vmatpush1.msra.mxu0 0.0
  %5358 = vmatprep.subr.mxu0 0.0
  %5359 = vmatpush1.msra.mxu0 0.0
  %5360 = vmatprep.subr.mxu0 0.0
  %5361 = vmatpush1.msra.mxu0 0.0
  %5362 = vmatprep.subr.mxu0 0.0
  %5363 = vmatpush1.msra.mxu0 0.0
  %5364 = vmatprep.subr.mxu0 0.0
  %5365 = vmatpush1.msra.mxu0 0.0
  %5366 = vmatprep.subr.mxu0 0.0
  %5367 = vmatpush1.msra.mxu0 0.0
  %5368 = vmatprep.subr.mxu0 0.0
  %5369 = vmatpush1.msra.mxu0 0.0
  %5370 = vmatprep.subr.mxu0 0.0
  %5371 = vmatpush1.msra.mxu0 0.0
  %5372 = vmatprep.subr.mxu0 0.0
  %5373 = vmatpush1.msra.mxu0 0.0
  %5374 = vmatprep.subr.mxu0 0.0
  %5375 = vmatpush1.msra.mxu0 0.0
  %5376 = vmatprep.subr.mxu0 0.0
  %5377 = vmatpush1.msra.mxu0 0.0
  %5378 = vmatprep.subr.mxu0 0.0
  %5379 = vmatpush1.msra.mxu0 0.0
  %5380 = vmatprep.subr.mxu0 0.0
  %5381 = vmatpush1.msra.mxu0 0.0
  %5382 = vmatprep.subr.mxu0 0.0
  %5383 = vmatpush1.msra.mxu0 0.0
  %5384 = vmatprep.subr.mxu0 0.0
  %5385 = vmatpush1.msra.mxu0 0.0
  %5386 = vmatprep.subr.mxu0 0.0
  %5387 = vmatpush1.msra.mxu0 0.0
  %5388 = vmatprep.mubr.f32.mxu0 0.0
  %5389 = vmatmul.mubr.f32.gmra.mrb[0].mxu0 %v5231
  %v5390 = vpop.f32.mrb[0].mxu0
  %v5391 = vadd.f32 0.0, %v5390
  %v5392 = vpop.f32.mrb[0].mxu0
  %5393 = vmatprep.mubr.f32.mxu0 0.0
  %5394 = vmatmul.mubr.f32.gmra.mrb[0].mxu0 %v5234
  %v5395 = vpop.f32.mrb[0].mxu0
  %v5396 = vadd.f32 0.0, %v5395
  %v5397 = vpop.f32.mrb[0].mxu0
  %5398 = vdwg.mxu0
  %v5399 = vsel %vm1701, %v5391, 0.0
  %5400 = vadd.xlane.f32.xlu0 %v5399
  %v5401 = vpop.xlane.xlu0 %5400
  %v5402 = vsel %vm1701, %v5396, 0.0
  %5403 = vadd.xlane.f32.xlu0 %v5402
  %v5404 = vpop.xlane.xlu0 %5403
  %v5405 = vmul.f32 %v5401, %v5317
  %v5406 = vmul.f32 %v5404, %v5317
  %v5407 = vld [vmem:[%s16] sm:$0xff]
  %v5408 = vld [vmem:[%s16 + $0x8] sm:$0xff]
  %v5409 = vadd.f32 %v5405, 1e-05
  %v5410 = vadd.f32 %v5406, 1e-05
  %v5411 = vrsqrt.pop %v5409
  %v5412 = vrsqrt.pop %v5410
  %v5413 = vmul.f32 %v5407, %v5411
  %v5414 = vmul.f32 %v5408, %v5412
  %5416 = vset.pattern.permute.xlu0 0
  %5417 = vperm.xlu0 %5416, %v5413
  %v5418 = vpop.permute.xlu0 %5417
  %5421 = vset.pattern.permute.xlu0 0
  %5422 = vperm.xlu0 %5421, %v5414
  %v5423 = vpop.permute.xlu0 %5422
  %v5425 = vmul.f32 %v5320, %v5418
  %v5426 = vmul.f32 %v5321, %v5423
  %5428 = vset.pattern.permute.xlu0 1
  %5429 = vperm.xlu0 %5428, %v5407
  %v5430 = vpop.permute.xlu0 %5429
  %5433 = vset.pattern.permute.xlu0 1
  %5434 = vperm.xlu0 %5433, %v5408
  %v5435 = vpop.permute.xlu0 %5434
  %v5437 = vadd.f32 %v5425, %v5430
  %v5438 = vadd.f32 %v5426, %v5435
  %v5439 = vmax.f32 %v5437, 0.0
  %v5440 = vmax.f32 %v5438, 0.0
  %v5441 = vpack.c.bf16 %v5440, %v5439
  %v5442 = vld [vmem:[%s18] sm:$0xff]
  %v5443 = vld [vmem:[%s18 + $0x8] sm:$0xff]
  %v5444 = vld [vmem:[%s18 + $0x10] sm:$0xff]
  %v5445 = vld [vmem:[%s18 + $0x18] sm:$0xff]
  %v5446 = vld [vmem:[%s18 + $0x20] sm:$0xff]
  %v5447 = vld [vmem:[%s18 + $0x28] sm:$0xff]
  %v5448 = vld [vmem:[%s18 + $0x30] sm:$0xff]
  %v5449 = vld [vmem:[%s18 + $0x38] sm:$0xff]
  %v5458 = vunpack.c.l.b16 %v5442
  %v5459 = vunpack.c.h.b16 %v5442
  %v5460 = vunpack.c.l.b16 %v5443
  %v5461 = vunpack.c.h.b16 %v5443
  %v5462 = vunpack.c.l.b16 %v5444
  %v5463 = vunpack.c.h.b16 %v5444
  %v5464 = vunpack.c.l.b16 %v5445
  %v5465 = vunpack.c.h.b16 %v5445
  %v5466 = vunpack.c.l.b16 %v5446
  %v5467 = vunpack.c.h.b16 %v5446
  %v5468 = vunpack.c.l.b16 %v5447
  %v5469 = vunpack.c.h.b16 %v5447
  %v5470 = vunpack.c.l.b16 %v5448
  %v5471 = vunpack.c.h.b16 %v5448
  %v5472 = vunpack.c.l.b16 %v5449
  %v5473 = vunpack.c.h.b16 %v5449
  %v5474 = vpack.c.b16 %v5460, %v5458
  %v5475 = vpack.c.b16 %v5461, %v5459
  %v5476 = vpack.c.b16 %v5464, %v5462
  %v5477 = vpack.c.b16 %v5465, %v5463
  %v5478 = vpack.c.b16 %v5468, %v5466
  %v5479 = vpack.c.b16 %v5469, %v5467
  %v5480 = vpack.c.b16 %v5472, %v5470
  %v5481 = vpack.c.b16 %v5473, %v5471
  %v5491 = vsel %vm1701, %v5441, 0
  %5493 = vmatprep.subr.bf16.mxu0 %v5475
  %5494 = vmatpush1.bf16.msra.mxu0 %v5474
  %5495 = vmatprep.subr.bf16.mxu0 %v5477
  %5496 = vmatpush1.bf16.msra.mxu0 %v5476
  %5497 = vmatprep.subr.bf16.mxu0 %v5479
  %5498 = vmatpush1.bf16.msra.mxu0 %v5478
  %5499 = vmatprep.subr.bf16.mxu0 %v5481
  %5500 = vmatpush1.bf16.msra.mxu0 %v5480
  %5501 = vmatprep.subr.bf16.mxu0 0
  %5502 = vmatpush1.bf16.msra.mxu0 0
  %5503 = vmatprep.subr.bf16.mxu0 0
  %5504 = vmatpush1.bf16.msra.mxu0 0
  %5505 = vmatprep.subr.bf16.mxu0 0
  %5506 = vmatpush1.bf16.msra.mxu0 0
  %5507 = vmatprep.subr.bf16.mxu0 0
  %5508 = vmatpush1.bf16.msra.mxu0 0
  %5509 = vmatprep.subr.bf16.mxu0 0
  %5510 = vmatpush1.bf16.msra.mxu0 0
  %5511 = vmatprep.subr.bf16.mxu0 0
  %5512 = vmatpush1.bf16.msra.mxu0 0
  %5513 = vmatprep.subr.bf16.mxu0 0
  %5514 = vmatpush1.bf16.msra.mxu0 0
  %5515 = vmatprep.subr.bf16.mxu0 0
  %5516 = vmatpush1.bf16.msra.mxu0 0
  %5517 = vmatprep.subr.bf16.mxu0 0
  %5518 = vmatpush1.bf16.msra.mxu0 0
  %5519 = vmatprep.subr.bf16.mxu0 0
  %5520 = vmatpush1.bf16.msra.mxu0 0
  %5521 = vmatprep.subr.bf16.mxu0 0
  %5522 = vmatpush1.bf16.msra.mxu0 0
  %5523 = vmatprep.subr.bf16.mxu0 0
  %5524 = vmatpush1.bf16.msra.mxu0 0
  %5525 = vmatprep.mubr.bf16.mxu0 0
  %5526 = vmatmul.mubr.bf16.gmra.mrb[0].mxu0 %v1703
  %v5527 = vpop.f32.mrb[0].mxu0
  %v5528 = vadd.f32 0.0, %v5527
  %v5529 = vpop.f32.mrb[0].mxu0
  %v5530 = vadd.f32 0.0, %v5529
  %v5531 = vpop.f32.mrb[0].mxu0
  %v5532 = vadd.f32 0.0, %v5531
  %v5533 = vpop.f32.mrb[0].mxu0
  %v5534 = vadd.f32 0.0, %v5533
  %5535 = vmatprep.mubr.bf16.mxu0 0
  %5536 = vmatmul.mubr.bf16.gmra.mrb[0].mxu0 %v5491
  %v5537 = vpop.f32.mrb[0].mxu0
  %v5538 = vadd.f32 0.0, %v5537
  %v5539 = vpop.f32.mrb[0].mxu0
  %v5540 = vadd.f32 0.0, %v5539
  %v5541 = vpop.f32.mrb[0].mxu0
  %v5542 = vadd.f32 0.0, %v5541
  %v5543 = vpop.f32.mrb[0].mxu0
  %v5544 = vadd.f32 0.0, %v5543
  %5545 = vdwg.mxu0
  %v5546 = vpack.c.bf16 %v5532, %v5528
  %v5547 = vpack.c.bf16 %v5534, %v5530
  %v5548 = vpack.c.bf16 %v5542, %v5538
  %v5549 = vpack.c.bf16 %v5544, %v5540
  %s5550 = scalar_lea.vmem %s18, 64
  %v5551 = vld [vmem:[%s5550] sm:$0xff]
  %v5552 = vld [vmem:[%s5550 + $0x8] sm:$0xff]
  %v5553 = vld [vmem:[%s5550 + $0x10] sm:$0xff]
  %v5554 = vld [vmem:[%s5550 + $0x18] sm:$0xff]
  %v5555 = vld [vmem:[%s5550 + $0x20] sm:$0xff]
  %v5556 = vld [vmem:[%s5550 + $0x28] sm:$0xff]
  %v5557 = vld [vmem:[%s5550 + $0x30] sm:$0xff]
  %v5558 = vld [vmem:[%s5550 + $0x38] sm:$0xff]
  %v5567 = vunpack.c.l.b16 %v5551
  %v5568 = vunpack.c.h.b16 %v5551
  %v5569 = vunpack.c.l.b16 %v5552
  %v5570 = vunpack.c.h.b16 %v5552
  %v5571 = vunpack.c.l.b16 %v5553
  %v5572 = vunpack.c.h.b16 %v5553
  %v5573 = vunpack.c.l.b16 %v5554
  %v5574 = vunpack.c.h.b16 %v5554
  %v5575 = vunpack.c.l.b16 %v5555
  %v5576 = vunpack.c.h.b16 %v5555
  %v5577 = vunpack.c.l.b16 %v5556
  %v5578 = vunpack.c.h.b16 %v5556
  %v5579 = vunpack.c.l.b16 %v5557
  %v5580 = vunpack.c.h.b16 %v5557
  %v5581 = vunpack.c.l.b16 %v5558
  %v5582 = vunpack.c.h.b16 %v5558
  %v5583 = vpack.c.b16 %v5569, %v5567
  %v5584 = vpack.c.b16 %v5570, %v5568
  %v5585 = vpack.c.b16 %v5573, %v5571
  %v5586 = vpack.c.b16 %v5574, %v5572
  %v5587 = vpack.c.b16 %v5577, %v5575
  %v5588 = vpack.c.b16 %v5578, %v5576
  %v5589 = vpack.c.b16 %v5581, %v5579
  %v5590 = vpack.c.b16 %v5582, %v5580
  %5599 = vmatprep.subr.bf16.mxu0 %v5584
  %5600 = vmatpush1.bf16.msra.mxu0 %v5583
  %5601 = vmatprep.subr.bf16.mxu0 %v5586
  %5602 = vmatpush1.bf16.msra.mxu0 %v5585
  %5603 = vmatprep.subr.bf16.mxu0 %v5588
  %5604 = vmatpush1.bf16.msra.mxu0 %v5587
  %5605 = vmatprep.subr.bf16.mxu0 %v5590
  %5606 = vmatpush1.bf16.msra.mxu0 %v5589
  %5607 = vmatprep.subr.bf16.mxu0 0
  %5608 = vmatpush1.bf16.msra.mxu0 0
  %5609 = vmatprep.subr.bf16.mxu0 0
  %5610 = vmatpush1.bf16.msra.mxu0 0
  %5611 = vmatprep.subr.bf16.mxu0 0
  %5612 = vmatpush1.bf16.msra.mxu0 0
  %5613 = vmatprep.subr.bf16.mxu0 0
  %5614 = vmatpush1.bf16.msra.mxu0 0
  %5615 = vmatprep.subr.bf16.mxu0 0
  %5616 = vmatpush1.bf16.msra.mxu0 0
  %5617 = vmatprep.subr.bf16.mxu0 0
  %5618 = vmatpush1.bf16.msra.mxu0 0
  %5619 = vmatprep.subr.bf16.mxu0 0
  %5620 = vmatpush1.bf16.msra.mxu0 0
  %5621 = vmatprep.subr.bf16.mxu0 0
  %5622 = vmatpush1.bf16.msra.mxu0 0
  %5623 = vmatprep.subr.bf16.mxu0 0
  %5624 = vmatpush1.bf16.msra.mxu0 0
  %5625 = vmatprep.subr.bf16.mxu0 0
  %5626 = vmatpush1.bf16.msra.mxu0 0
  %5627 = vmatprep.subr.bf16.mxu0 0
  %5628 = vmatpush1.bf16.msra.mxu0 0
  %5629 = vmatprep.subr.bf16.mxu0 0
  %5630 = vmatpush1.bf16.msra.mxu0 0
  %5631 = vmatprep.mubr.bf16.mxu0 0
  %5632 = vmatmul.mubr.bf16.gmra.mrb[0].mxu0 %v1703
  %v5633 = vpop.f32.mrb[0].mxu0
  %v5634 = vadd.f32 0.0, %v5633
  %v5635 = vpop.f32.mrb[0].mxu0
  %v5636 = vadd.f32 0.0, %v5635
  %v5637 = vpop.f32.mrb[0].mxu0
  %v5638 = vadd.f32 0.0, %v5637
  %v5639 = vpop.f32.mrb[0].mxu0
  %v5640 = vadd.f32 0.0, %v5639
  %5641 = vmatprep.mubr.bf16.mxu0 0
  %5642 = vmatmul.mubr.bf16.gmra.mrb[0].mxu0 %v5491
  %v5643 = vpop.f32.mrb[0].mxu0
  %v5644 = vadd.f32 0.0, %v5643
  %v5645 = vpop.f32.mrb[0].mxu0
  %v5646 = vadd.f32 0.0, %v5645
  %v5647 = vpop.f32.mrb[0].mxu0
  %v5648 = vadd.f32 0.0, %v5647
  %v5649 = vpop.f32.mrb[0].mxu0
  %v5650 = vadd.f32 0.0, %v5649
  %5651 = vdwg.mxu0
  %v5652 = vpack.c.bf16 %v5638, %v5634
  %v5653 = vpack.c.bf16 %v5640, %v5636
  %v5654 = vpack.c.bf16 %v5648, %v5644
  %v5655 = vpack.c.bf16 %v5650, %v5646
  %s5656 = scalar_lea.vmem %s18, 128
  %v5657 = vld [vmem:[%s5656] sm:$0xff]
  %v5658 = vld [vmem:[%s5656 + $0x8] sm:$0xff]
  %v5659 = vld [vmem:[%s5656 + $0x10] sm:$0xff]
  %v5660 = vld [vmem:[%s5656 + $0x18] sm:$0xff]
  %v5661 = vld [vmem:[%s5656 + $0x20] sm:$0xff]
  %v5662 = vld [vmem:[%s5656 + $0x28] sm:$0xff]
  %v5663 = vld [vmem:[%s5656 + $0x30] sm:$0xff]
  %v5664 = vld [vmem:[%s5656 + $0x38] sm:$0xff]
  %v5673 = vunpack.c.l.b16 %v5657
  %v5674 = vunpack.c.h.b16 %v5657
  %v5675 = vunpack.c.l.b16 %v5658
  %v5676 = vunpack.c.h.b16 %v5658
  %v5677 = vunpack.c.l.b16 %v5659
  %v5678 = vunpack.c.h.b16 %v5659
  %v5679 = vunpack.c.l.b16 %v5660
  %v5680 = vunpack.c.h.b16 %v5660
  %v5681 = vunpack.c.l.b16 %v5661
  %v5682 = vunpack.c.h.b16 %v5661
  %v5683 = vunpack.c.l.b16 %v5662
  %v5684 = vunpack.c.h.b16 %v5662
  %v5685 = vunpack.c.l.b16 %v5663
  %v5686 = vunpack.c.h.b16 %v5663
  %v5687 = vunpack.c.l.b16 %v5664
  %v5688 = vunpack.c.h.b16 %v5664
  %v5689 = vpack.c.b16 %v5675, %v5673
  %v5690 = vpack.c.b16 %v5676, %v5674
  %v5691 = vpack.c.b16 %v5679, %v5677
  %v5692 = vpack.c.b16 %v5680, %v5678
  %v5693 = vpack.c.b16 %v5683, %v5681
  %v5694 = vpack.c.b16 %v5684, %v5682
  %v5695 = vpack.c.b16 %v5687, %v5685
  %v5696 = vpack.c.b16 %v5688, %v5686
  %5705 = vmatprep.subr.bf16.mxu0 %v5690
  %5706 = vmatpush1.bf16.msra.mxu0 %v5689
  %5707 = vmatprep.subr.bf16.mxu0 %v5692
  %5708 = vmatpush1.bf16.msra.mxu0 %v5691
  %5709 = vmatprep.subr.bf16.mxu0 %v5694
  %5710 = vmatpush1.bf16.msra.mxu0 %v5693
  %5711 = vmatprep.subr.bf16.mxu0 %v5696
  %5712 = vmatpush1.bf16.msra.mxu0 %v5695
  %5713 = vmatprep.subr.bf16.mxu0 0
  %5714 = vmatpush1.bf16.msra.mxu0 0
  %5715 = vmatprep.subr.bf16.mxu0 0
  %5716 = vmatpush1.bf16.msra.mxu0 0
  %5717 = vmatprep.subr.bf16.mxu0 0
  %5718 = vmatpush1.bf16.msra.mxu0 0
  %5719 = vmatprep.subr.bf16.mxu0 0
  %5720 = vmatpush1.bf16.msra.mxu0 0
  %5721 = vmatprep.subr.bf16.mxu0 0
  %5722 = vmatpush1.bf16.msra.mxu0 0
  %5723 = vmatprep.subr.bf16.mxu0 0
  %5724 = vmatpush1.bf16.msra.mxu0 0
  %5725 = vmatprep.subr.bf16.mxu0 0
  %5726 = vmatpush1.bf16.msra.mxu0 0
  %5727 = vmatprep.subr.bf16.mxu0 0
  %5728 = vmatpush1.bf16.msra.mxu0 0
  %5729 = vmatprep.subr.bf16.mxu0 0
  %5730 = vmatpush1.bf16.msra.mxu0 0
  %5731 = vmatprep.subr.bf16.mxu0 0
  %5732 = vmatpush1.bf16.msra.mxu0 0
  %5733 = vmatprep.subr.bf16.mxu0 0
  %5734 = vmatpush1.bf16.msra.mxu0 0
  %5735 = vmatprep.subr.bf16.mxu0 0
  %5736 = vmatpush1.bf16.msra.mxu0 0
  %5737 = vmatprep.mubr.bf16.mxu0 0
  %5738 = vmatmul.mubr.bf16.gmra.mrb[0].mxu0 %v1703
  %v5739 = vpop.f32.mrb[0].mxu0
  %v5740 = vadd.f32 0.0, %v5739
  %v5741 = vpop.f32.mrb[0].mxu0
  %v5742 = vadd.f32 0.0, %v5741
  %v5743 = vpop.f32.mrb[0].mxu0
  %v5744 = vadd.f32 0.0, %v5743
  %v5745 = vpop.f32.mrb[0].mxu0
  %v5746 = vadd.f32 0.0, %v5745
  %5747 = vmatprep.mubr.bf16.mxu0 0
  %5748 = vmatmul.mubr.bf16.gmra.mrb[0].mxu0 %v5491
  %v5749 = vpop.f32.mrb[0].mxu0
  %v5750 = vadd.f32 0.0, %v5749
  %v5751 = vpop.f32.mrb[0].mxu0
  %v5752 = vadd.f32 0.0, %v5751
  %v5753 = vpop.f32.mrb[0].mxu0
  %v5754 = vadd.f32 0.0, %v5753
  %v5755 = vpop.f32.mrb[0].mxu0
  %v5756 = vadd.f32 0.0, %v5755
  %5757 = vdwg.mxu0
  %v5758 = vpack.c.bf16 %v5744, %v5740
  %v5759 = vpack.c.bf16 %v5746, %v5742
  %v5760 = vpack.c.bf16 %v5754, %v5750
  %v5761 = vpack.c.bf16 %v5756, %v5752
  %s5762 = scalar_lea.vmem %s18, 192
  %v5763 = vld [vmem:[%s5762] sm:$0xff]
  %v5764 = vld [vmem:[%s5762 + $0x8] sm:$0xff]
  %v5765 = vld [vmem:[%s5762 + $0x10] sm:$0xff]
  %v5766 = vld [vmem:[%s5762 + $0x18] sm:$0xff]
  %v5767 = vld [vmem:[%s5762 + $0x20] sm:$0xff]
  %v5768 = vld [vmem:[%s5762 + $0x28] sm:$0xff]
  %v5769 = vld [vmem:[%s5762 + $0x30] sm:$0xff]
  %v5770 = vld [vmem:[%s5762 + $0x38] sm:$0xff]
  %v5779 = vunpack.c.l.b16 %v5763
  %v5780 = vunpack.c.h.b16 %v5763
  %v5781 = vunpack.c.l.b16 %v5764
  %v5782 = vunpack.c.h.b16 %v5764
  %v5783 = vunpack.c.l.b16 %v5765
  %v5784 = vunpack.c.h.b16 %v5765
  %v5785 = vunpack.c.l.b16 %v5766
  %v5786 = vunpack.c.h.b16 %v5766
  %v5787 = vunpack.c.l.b16 %v5767
  %v5788 = vunpack.c.h.b16 %v5767
  %v5789 = vunpack.c.l.b16 %v5768
  %v5790 = vunpack.c.h.b16 %v5768
  %v5791 = vunpack.c.l.b16 %v5769
  %v5792 = vunpack.c.h.b16 %v5769
  %v5793 = vunpack.c.l.b16 %v5770
  %v5794 = vunpack.c.h.b16 %v5770
  %v5795 = vpack.c.b16 %v5781, %v5779
  %v5796 = vpack.c.b16 %v5782, %v5780
  %v5797 = vpack.c.b16 %v5785, %v5783
  %v5798 = vpack.c.b16 %v5786, %v5784
  %v5799 = vpack.c.b16 %v5789, %v5787
  %v5800 = vpack.c.b16 %v5790, %v5788
  %v5801 = vpack.c.b16 %v5793, %v5791
  %v5802 = vpack.c.b16 %v5794, %v5792
  %5811 = vmatprep.subr.bf16.mxu0 %v5796
  %5812 = vmatpush1.bf16.msra.mxu0 %v5795
  %5813 = vmatprep.subr.bf16.mxu0 %v5798
  %5814 = vmatpush1.bf16.msra.mxu0 %v5797
  %5815 = vmatprep.subr.bf16.mxu0 %v5800
  %5816 = vmatpush1.bf16.msra.mxu0 %v5799
  %5817 = vmatprep.subr.bf16.mxu0 %v5802
  %5818 = vmatpush1.bf16.msra.mxu0 %v5801
  %5819 = vmatprep.subr.bf16.mxu0 0
  %5820 = vmatpush1.bf16.msra.mxu0 0
  %5821 = vmatprep.subr.bf16.mxu0 0
  %5822 = vmatpush1.bf16.msra.mxu0 0
  %5823 = vmatprep.subr.bf16.mxu0 0
  %5824 = vmatpush1.bf16.msra.mxu0 0
  %5825 = vmatprep.subr.bf16.mxu0 0
  %5826 = vmatpush1.bf16.msra.mxu0 0
  %5827 = vmatprep.subr.bf16.mxu0 0
  %5828 = vmatpush1.bf16.msra.mxu0 0
  %5829 = vmatprep.subr.bf16.mxu0 0
  %5830 = vmatpush1.bf16.msra.mxu0 0
  %5831 = vmatprep.subr.bf16.mxu0 0
  %5832 = vmatpush1.bf16.msra.mxu0 0
  %5833 = vmatprep.subr.bf16.mxu0 0
  %5834 = vmatpush1.bf16.msra.mxu0 0
  %5835 = vmatprep.subr.bf16.mxu0 0
  %5836 = vmatpush1.bf16.msra.mxu0 0
  %5837 = vmatprep.subr.bf16.mxu0 0
  %5838 = vmatpush1.bf16.msra.mxu0 0
  %5839 = vmatprep.subr.bf16.mxu0 0
  %5840 = vmatpush1.bf16.msra.mxu0 0
  %5841 = vmatprep.subr.bf16.mxu0 0
  %5842 = vmatpush1.bf16.msra.mxu0 0
  %5843 = vmatprep.mubr.bf16.mxu0 0
  %5844 = vmatmul.mubr.bf16.gmra.mrb[0].mxu0 %v1703
  %v5845 = vpop.f32.mrb[0].mxu0
  %v5846 = vadd.f32 0.0, %v5845
  %v5847 = vpop.f32.mrb[0].mxu0
  %v5848 = vadd.f32 0.0, %v5847
  %v5849 = vpop.f32.mrb[0].mxu0
  %v5850 = vadd.f32 0.0, %v5849
  %v5851 = vpop.f32.mrb[0].mxu0
  %v5852 = vadd.f32 0.0, %v5851
  %5853 = vmatprep.mubr.bf16.mxu0 0
  %5854 = vmatmul.mubr.bf16.gmra.mrb[0].mxu0 %v5491
  %v5855 = vpop.f32.mrb[0].mxu0
  %v5856 = vadd.f32 0.0, %v5855
  %v5857 = vpop.f32.mrb[0].mxu0
  %v5858 = vadd.f32 0.0, %v5857
  %v5859 = vpop.f32.mrb[0].mxu0
  %v5860 = vadd.f32 0.0, %v5859
  %v5861 = vpop.f32.mrb[0].mxu0
  %v5862 = vadd.f32 0.0, %v5861
  %5863 = vdwg.mxu0
  %v5864 = vpack.c.bf16 %v5850, %v5846
  %v5865 = vpack.c.bf16 %v5852, %v5848
  %v5866 = vpack.c.bf16 %v5860, %v5856
  %v5867 = vpack.c.bf16 %v5862, %v5858
  %s5868 = scalar_lea.vmem %s18, 256
  %v5869 = vld [vmem:[%s5868] sm:$0xff]
  %v5870 = vld [vmem:[%s5868 + $0x8] sm:$0xff]
  %v5871 = vld [vmem:[%s5868 + $0x10] sm:$0xff]
  %v5872 = vld [vmem:[%s5868 + $0x18] sm:$0xff]
  %v5873 = vld [vmem:[%s5868 + $0x20] sm:$0xff]
  %v5874 = vld [vmem:[%s5868 + $0x28] sm:$0xff]
  %v5875 = vld [vmem:[%s5868 + $0x30] sm:$0xff]
  %v5876 = vld [vmem:[%s5868 + $0x38] sm:$0xff]
  %v5885 = vunpack.c.l.b16 %v5869
  %v5886 = vunpack.c.h.b16 %v5869
  %v5887 = vunpack.c.l.b16 %v5870
  %v5888 = vunpack.c.h.b16 %v5870
  %v5889 = vunpack.c.l.b16 %v5871
  %v5890 = vunpack.c.h.b16 %v5871
  %v5891 = vunpack.c.l.b16 %v5872
  %v5892 = vunpack.c.h.b16 %v5872
  %v5893 = vunpack.c.l.b16 %v5873
  %v5894 = vunpack.c.h.b16 %v5873
  %v5895 = vunpack.c.l.b16 %v5874
  %v5896 = vunpack.c.h.b16 %v5874
  %v5897 = vunpack.c.l.b16 %v5875
  %v5898 = vunpack.c.h.b16 %v5875
  %v5899 = vunpack.c.l.b16 %v5876
  %v5900 = vunpack.c.h.b16 %v5876
  %v5901 = vpack.c.b16 %v5887, %v5885
  %v5902 = vpack.c.b16 %v5888, %v5886
  %v5903 = vpack.c.b16 %v5891, %v5889
  %v5904 = vpack.c.b16 %v5892, %v5890
  %v5905 = vpack.c.b16 %v5895, %v5893
  %v5906 = vpack.c.b16 %v5896, %v5894
  %v5907 = vpack.c.b16 %v5899, %v5897
  %v5908 = vpack.c.b16 %v5900, %v5898
  %5917 = vmatprep.subr.bf16.mxu0 %v5902
  %5918 = vmatpush1.bf16.msra.mxu0 %v5901
  %5919 = vmatprep.subr.bf16.mxu0 %v5904
  %5920 = vmatpush1.bf16.msra.mxu0 %v5903
  %5921 = vmatprep.subr.bf16.mxu0 %v5906
  %5922 = vmatpush1.bf16.msra.mxu0 %v5905
  %5923 = vmatprep.subr.bf16.mxu0 %v5908
  %5924 = vmatpush1.bf16.msra.mxu0 %v5907
  %5925 = vmatprep.subr.bf16.mxu0 0
  %5926 = vmatpush1.bf16.msra.mxu0 0
  %5927 = vmatprep.subr.bf16.mxu0 0
  %5928 = vmatpush1.bf16.msra.mxu0 0
  %5929 = vmatprep.subr.bf16.mxu0 0
  %5930 = vmatpush1.bf16.msra.mxu0 0
  %5931 = vmatprep.subr.bf16.mxu0 0
  %5932 = vmatpush1.bf16.msra.mxu0 0
  %5933 = vmatprep.subr.bf16.mxu0 0
  %5934 = vmatpush1.bf16.msra.mxu0 0
  %5935 = vmatprep.subr.bf16.mxu0 0
  %5936 = vmatpush1.bf16.msra.mxu0 0
  %5937 = vmatprep.subr.bf16.mxu0 0
  %5938 = vmatpush1.bf16.msra.mxu0 0
  %5939 = vmatprep.subr.bf16.mxu0 0
  %5940 = vmatpush1.bf16.msra.mxu0 0
  %5941 = vmatprep.subr.bf16.mxu0 0
  %5942 = vmatpush1.bf16.msra.mxu0 0
  %5943 = vmatprep.subr.bf16.mxu0 0
  %5944 = vmatpush1.bf16.msra.mxu0 0
  %5945 = vmatprep.subr.bf16.mxu0 0
  %5946 = vmatpush1.bf16.msra.mxu0 0
  %5947 = vmatprep.subr.bf16.mxu0 0
  %5948 = vmatpush1.bf16.msra.mxu0 0
  %5949 = vmatprep.mubr.bf16.mxu0 0
  %5950 = vmatmul.mubr.bf16.gmra.mrb[0].mxu0 %v1703
  %v5951 = vpop.f32.mrb[0].mxu0
  %v5952 = vadd.f32 0.0, %v5951
  %v5953 = vpop.f32.mrb[0].mxu0
  %v5954 = vadd.f32 0.0, %v5953
  %v5955 = vpop.f32.mrb[0].mxu0
  %v5956 = vadd.f32 0.0, %v5955
  %v5957 = vpop.f32.mrb[0].mxu0
  %v5958 = vadd.f32 0.0, %v5957
  %5959 = vmatprep.mubr.bf16.mxu0 0
  %5960 = vmatmul.mubr.bf16.gmra.mrb[0].mxu0 %v5491
  %v5961 = vpop.f32.mrb[0].mxu0
  %v5962 = vadd.f32 0.0, %v5961
  %v5963 = vpop.f32.mrb[0].mxu0
  %v5964 = vadd.f32 0.0, %v5963
  %v5965 = vpop.f32.mrb[0].mxu0
  %v5966 = vadd.f32 0.0, %v5965
  %v5967 = vpop.f32.mrb[0].mxu0
  %v5968 = vadd.f32 0.0, %v5967
  %5969 = vdwg.mxu0
  %v5970 = vpack.c.bf16 %v5956, %v5952
  %v5971 = vpack.c.bf16 %v5958, %v5954
  %v5972 = vpack.c.bf16 %v5966, %v5962
  %v5973 = vpack.c.bf16 %v5968, %v5964
  %s5974 = scalar_lea.vmem %s18, 320
  %v5975 = vld [vmem:[%s5974] sm:$0xff]
  %v5976 = vld [vmem:[%s5974 + $0x8] sm:$0xff]
  %v5977 = vld [vmem:[%s5974 + $0x10] sm:$0xff]
  %v5978 = vld [vmem:[%s5974 + $0x18] sm:$0xff]
  %v5979 = vld [vmem:[%s5974 + $0x20] sm:$0xff]
  %v5980 = vld [vmem:[%s5974 + $0x28] sm:$0xff]
  %v5981 = vld [vmem:[%s5974 + $0x30] sm:$0xff]
  %v5982 = vld [vmem:[%s5974 + $0x38] sm:$0xff]
  %v5991 = vunpack.c.l.b16 %v5975
  %v5992 = vunpack.c.h.b16 %v5975
  %v5993 = vunpack.c.l.b16 %v5976
  %v5994 = vunpack.c.h.b16 %v5976
  %v5995 = vunpack.c.l.b16 %v5977
  %v5996 = vunpack.c.h.b16 %v5977
  %v5997 = vunpack.c.l.b16 %v5978
  %v5998 = vunpack.c.h.b16 %v5978
  %v5999 = vunpack.c.l.b16 %v5979
  %v6000 = vunpack.c.h.b16 %v5979
  %v6001 = vunpack.c.l.b16 %v5980
  %v6002 = vunpack.c.h.b16 %v5980
  %v6003 = vunpack.c.l.b16 %v5981
  %v6004 = vunpack.c.h.b16 %v5981
  %v6005 = vunpack.c.l.b16 %v5982
  %v6006 = vunpack.c.h.b16 %v5982
  %v6007 = vpack.c.b16 %v5993, %v5991
  %v6008 = vpack.c.b16 %v5994, %v5992
  %v6009 = vpack.c.b16 %v5997, %v5995
  %v6010 = vpack.c.b16 %v5998, %v5996
  %v6011 = vpack.c.b16 %v6001, %v5999
  %v6012 = vpack.c.b16 %v6002, %v6000
  %v6013 = vpack.c.b16 %v6005, %v6003
  %v6014 = vpack.c.b16 %v6006, %v6004
  %6023 = vmatprep.subr.bf16.mxu0 %v6008
  %6024 = vmatpush1.bf16.msra.mxu0 %v6007
  %6025 = vmatprep.subr.bf16.mxu0 %v6010
  %6026 = vmatpush1.bf16.msra.mxu0 %v6009
  %6027 = vmatprep.subr.bf16.mxu0 %v6012
  %6028 = vmatpush1.bf16.msra.mxu0 %v6011
  %6029 = vmatprep.subr.bf16.mxu0 %v6014
  %6030 = vmatpush1.bf16.msra.mxu0 %v6013
  %6031 = vmatprep.subr.bf16.mxu0 0
  %6032 = vmatpush1.bf16.msra.mxu0 0
  %6033 = vmatprep.subr.bf16.mxu0 0
  %6034 = vmatpush1.bf16.msra.mxu0 0
  %6035 = vmatprep.subr.bf16.mxu0 0
  %6036 = vmatpush1.bf16.msra.mxu0 0
  %6037 = vmatprep.subr.bf16.mxu0 0
  %6038 = vmatpush1.bf16.msra.mxu0 0
  %6039 = vmatprep.subr.bf16.mxu0 0
  %6040 = vmatpush1.bf16.msra.mxu0 0
  %6041 = vmatprep.subr.bf16.mxu0 0
  %6042 = vmatpush1.bf16.msra.mxu0 0
  %6043 = vmatprep.subr.bf16.mxu0 0
  %6044 = vmatpush1.bf16.msra.mxu0 0
  %6045 = vmatprep.subr.bf16.mxu0 0
  %6046 = vmatpush1.bf16.msra.mxu0 0
  %6047 = vmatprep.subr.bf16.mxu0 0
  %6048 = vmatpush1.bf16.msra.mxu0 0
  %6049 = vmatprep.subr.bf16.mxu0 0
  %6050 = vmatpush1.bf16.msra.mxu0 0
  %6051 = vmatprep.subr.bf16.mxu0 0
  %6052 = vmatpush1.bf16.msra.mxu0 0
  %6053 = vmatprep.subr.bf16.mxu0 0
  %6054 = vmatpush1.bf16.msra.mxu0 0
  %6055 = vmatprep.mubr.bf16.mxu0 0
  %6056 = vmatmul.mubr.bf16.gmra.mrb[0].mxu0 %v1703
  %v6057 = vpop.f32.mrb[0].mxu0
  %v6058 = vadd.f32 0.0, %v6057
  %v6059 = vpop.f32.mrb[0].mxu0
  %v6060 = vadd.f32 0.0, %v6059
  %v6061 = vpop.f32.mrb[0].mxu0
  %v6062 = vadd.f32 0.0, %v6061
  %v6063 = vpop.f32.mrb[0].mxu0
  %v6064 = vadd.f32 0.0, %v6063
  %6065 = vmatprep.mubr.bf16.mxu0 0
  %6066 = vmatmul.mubr.bf16.gmra.mrb[0].mxu0 %v5491
  %v6067 = vpop.f32.mrb[0].mxu0
  %v6068 = vadd.f32 0.0, %v6067
  %v6069 = vpop.f32.mrb[0].mxu0
  %v6070 = vadd.f32 0.0, %v6069
  %v6071 = vpop.f32.mrb[0].mxu0
  %v6072 = vadd.f32 0.0, %v6071
  %v6073 = vpop.f32.mrb[0].mxu0
  %v6074 = vadd.f32 0.0, %v6073
  %6075 = vdwg.mxu0
  %v6076 = vpack.c.bf16 %v6062, %v6058
  %v6077 = vpack.c.bf16 %v6064, %v6060
  %v6078 = vpack.c.bf16 %v6072, %v6068
  %v6079 = vpack.c.bf16 %v6074, %v6070
  %s6080 = scalar_lea.vmem %s18, 384
  %v6081 = vld [vmem:[%s6080] sm:$0xff]
  %v6082 = vld [vmem:[%s6080 + $0x8] sm:$0xff]
  %v6083 = vld [vmem:[%s6080 + $0x10] sm:$0xff]
  %v6084 = vld [vmem:[%s6080 + $0x18] sm:$0xff]
  %v6085 = vld [vmem:[%s6080 + $0x20] sm:$0xff]
  %v6086 = vld [vmem:[%s6080 + $0x28] sm:$0xff]
  %v6087 = vld [vmem:[%s6080 + $0x30] sm:$0xff]
  %v6088 = vld [vmem:[%s6080 + $0x38] sm:$0xff]
  %v6097 = vunpack.c.l.b16 %v6081
  %v6098 = vunpack.c.h.b16 %v6081
  %v6099 = vunpack.c.l.b16 %v6082
  %v6100 = vunpack.c.h.b16 %v6082
  %v6101 = vunpack.c.l.b16 %v6083
  %v6102 = vunpack.c.h.b16 %v6083
  %v6103 = vunpack.c.l.b16 %v6084
  %v6104 = vunpack.c.h.b16 %v6084
  %v6105 = vunpack.c.l.b16 %v6085
  %v6106 = vunpack.c.h.b16 %v6085
  %v6107 = vunpack.c.l.b16 %v6086
  %v6108 = vunpack.c.h.b16 %v6086
  %v6109 = vunpack.c.l.b16 %v6087
  %v6110 = vunpack.c.h.b16 %v6087
  %v6111 = vunpack.c.l.b16 %v6088
  %v6112 = vunpack.c.h.b16 %v6088
  %v6113 = vpack.c.b16 %v6099, %v6097
  %v6114 = vpack.c.b16 %v6100, %v6098
  %v6115 = vpack.c.b16 %v6103, %v6101
  %v6116 = vpack.c.b16 %v6104, %v6102
  %v6117 = vpack.c.b16 %v6107, %v6105
  %v6118 = vpack.c.b16 %v6108, %v6106
  %v6119 = vpack.c.b16 %v6111, %v6109
  %v6120 = vpack.c.b16 %v6112, %v6110
  %6129 = vmatprep.subr.bf16.mxu0 %v6114
  %6130 = vmatpush1.bf16.msra.mxu0 %v6113
  %6131 = vmatprep.subr.bf16.mxu0 %v6116
  %6132 = vmatpush1.bf16.msra.mxu0 %v6115
  %6133 = vmatprep.subr.bf16.mxu0 %v6118
  %6134 = vmatpush1.bf16.msra.mxu0 %v6117
  %6135 = vmatprep.subr.bf16.mxu0 %v6120
  %6136 = vmatpush1.bf16.msra.mxu0 %v6119
  %6137 = vmatprep.subr.bf16.mxu0 0
  %6138 = vmatpush1.bf16.msra.mxu0 0
  %6139 = vmatprep.subr.bf16.mxu0 0
  %6140 = vmatpush1.bf16.msra.mxu0 0
  %6141 = vmatprep.subr.bf16.mxu0 0
  %6142 = vmatpush1.bf16.msra.mxu0 0
  %6143 = vmatprep.subr.bf16.mxu0 0
  %6144 = vmatpush1.bf16.msra.mxu0 0
  %6145 = vmatprep.subr.bf16.mxu0 0
  %6146 = vmatpush1.bf16.msra.mxu0 0
  %6147 = vmatprep.subr.bf16.mxu0 0
  %6148 = vmatpush1.bf16.msra.mxu0 0
  %6149 = vmatprep.subr.bf16.mxu0 0
  %6150 = vmatpush1.bf16.msra.mxu0 0
  %6151 = vmatprep.subr.bf16.mxu0 0
  %6152 = vmatpush1.bf16.msra.mxu0 0
  %6153 = vmatprep.subr.bf16.mxu0 0
  %6154 = vmatpush1.bf16.msra.mxu0 0
  %6155 = vmatprep.subr.bf16.mxu0 0
  %6156 = vmatpush1.bf16.msra.mxu0 0
  %6157 = vmatprep.subr.bf16.mxu0 0
  %6158 = vmatpush1.bf16.msra.mxu0 0
  %6159 = vmatprep.subr.bf16.mxu0 0
  %6160 = vmatpush1.bf16.msra.mxu0 0
  %6161 = vmatprep.mubr.bf16.mxu0 0
  %6162 = vmatmul.mubr.bf16.gmra.mrb[0].mxu0 %v1703
  %v6163 = vpop.f32.mrb[0].mxu0
  %v6164 = vadd.f32 0.0, %v6163
  %v6165 = vpop.f32.mrb[0].mxu0
  %v6166 = vadd.f32 0.0, %v6165
  %v6167 = vpop.f32.mrb[0].mxu0
  %v6168 = vadd.f32 0.0, %v6167
  %v6169 = vpop.f32.mrb[0].mxu0
  %v6170 = vadd.f32 0.0, %v6169
  %6171 = vmatprep.mubr.bf16.mxu0 0
  %6172 = vmatmul.mubr.bf16.gmra.mrb[0].mxu0 %v5491
  %v6173 = vpop.f32.mrb[0].mxu0
  %v6174 = vadd.f32 0.0, %v6173
  %v6175 = vpop.f32.mrb[0].mxu0
  %v6176 = vadd.f32 0.0, %v6175
  %v6177 = vpop.f32.mrb[0].mxu0
  %v6178 = vadd.f32 0.0, %v6177
  %v6179 = vpop.f32.mrb[0].mxu0
  %v6180 = vadd.f32 0.0, %v6179
  %6181 = vdwg.mxu0
  %v6182 = vpack.c.bf16 %v6168, %v6164
  %v6183 = vpack.c.bf16 %v6170, %v6166
  %v6184 = vpack.c.bf16 %v6178, %v6174
  %v6185 = vpack.c.bf16 %v6180, %v6176
  %s6186 = scalar_lea.vmem %s18, 448
  %v6187 = vld [vmem:[%s6186] sm:$0xff]
  %v6188 = vld [vmem:[%s6186 + $0x8] sm:$0xff]
  %v6189 = vld [vmem:[%s6186 + $0x10] sm:$0xff]
  %v6190 = vld [vmem:[%s6186 + $0x18] sm:$0xff]
  %v6191 = vld [vmem:[%s6186 + $0x20] sm:$0xff]
  %v6192 = vld [vmem:[%s6186 + $0x28] sm:$0xff]
  %v6193 = vld [vmem:[%s6186 + $0x30] sm:$0xff]
  %v6194 = vld [vmem:[%s6186 + $0x38] sm:$0xff]
  %v6203 = vunpack.c.l.b16 %v6187
  %v6204 = vunpack.c.h.b16 %v6187
  %v6205 = vunpack.c.l.b16 %v6188
  %v6206 = vunpack.c.h.b16 %v6188
  %v6207 = vunpack.c.l.b16 %v6189
  %v6208 = vunpack.c.h.b16 %v6189
  %v6209 = vunpack.c.l.b16 %v6190
  %v6210 = vunpack.c.h.b16 %v6190
  %v6211 = vunpack.c.l.b16 %v6191
  %v6212 = vunpack.c.h.b16 %v6191
  %v6213 = vunpack.c.l.b16 %v6192
  %v6214 = vunpack.c.h.b16 %v6192
  %v6215 = vunpack.c.l.b16 %v6193
  %v6216 = vunpack.c.h.b16 %v6193
  %v6217 = vunpack.c.l.b16 %v6194
  %v6218 = vunpack.c.h.b16 %v6194
  %v6219 = vpack.c.b16 %v6205, %v6203
  %v6220 = vpack.c.b16 %v6206, %v6204
  %v6221 = vpack.c.b16 %v6209, %v6207
  %v6222 = vpack.c.b16 %v6210, %v6208
  %v6223 = vpack.c.b16 %v6213, %v6211
  %v6224 = vpack.c.b16 %v6214, %v6212
  %v6225 = vpack.c.b16 %v6217, %v6215
  %v6226 = vpack.c.b16 %v6218, %v6216
  %6235 = vmatprep.subr.bf16.mxu0 %v6220
  %6236 = vmatpush1.bf16.msra.mxu0 %v6219
  %6237 = vmatprep.subr.bf16.mxu0 %v6222
  %6238 = vmatpush1.bf16.msra.mxu0 %v6221
  %6239 = vmatprep.subr.bf16.mxu0 %v6224
  %6240 = vmatpush1.bf16.msra.mxu0 %v6223
  %6241 = vmatprep.subr.bf16.mxu0 %v6226
  %6242 = vmatpush1.bf16.msra.mxu0 %v6225
  %6243 = vmatprep.subr.bf16.mxu0 0
  %6244 = vmatpush1.bf16.msra.mxu0 0
  %6245 = vmatprep.subr.bf16.mxu0 0
  %6246 = vmatpush1.bf16.msra.mxu0 0
  %6247 = vmatprep.subr.bf16.mxu0 0
  %6248 = vmatpush1.bf16.msra.mxu0 0
  %6249 = vmatprep.subr.bf16.mxu0 0
  %6250 = vmatpush1.bf16.msra.mxu0 0
  %6251 = vmatprep.subr.bf16.mxu0 0
  %6252 = vmatpush1.bf16.msra.mxu0 0
  %6253 = vmatprep.subr.bf16.mxu0 0
  %6254 = vmatpush1.bf16.msra.mxu0 0
  %6255 = vmatprep.subr.bf16.mxu0 0
  %6256 = vmatpush1.bf16.msra.mxu0 0
  %6257 = vmatprep.subr.bf16.mxu0 0
  %6258 = vmatpush1.bf16.msra.mxu0 0
  %6259 = vmatprep.subr.bf16.mxu0 0
  %6260 = vmatpush1.bf16.msra.mxu0 0
  %6261 = vmatprep.subr.bf16.mxu0 0
  %6262 = vmatpush1.bf16.msra.mxu0 0
  %6263 = vmatprep.subr.bf16.mxu0 0
  %6264 = vmatpush1.bf16.msra.mxu0 0
  %6265 = vmatprep.subr.bf16.mxu0 0
  %6266 = vmatpush1.bf16.msra.mxu0 0
  %6267 = vmatprep.mubr.bf16.mxu0 0
  %6268 = vmatmul.mubr.bf16.gmra.mrb[0].mxu0 %v1703
  %v6269 = vpop.f32.mrb[0].mxu0
  %v6270 = vadd.f32 0.0, %v6269
  %v6271 = vpop.f32.mrb[0].mxu0
  %v6272 = vadd.f32 0.0, %v6271
  %v6273 = vpop.f32.mrb[0].mxu0
  %v6274 = vadd.f32 0.0, %v6273
  %v6275 = vpop.f32.mrb[0].mxu0
  %v6276 = vadd.f32 0.0, %v6275
  %6277 = vmatprep.mubr.bf16.mxu0 0
  %6278 = vmatmul.mubr.bf16.gmra.mrb[0].mxu0 %v5491
  %v6279 = vpop.f32.mrb[0].mxu0
  %v6280 = vadd.f32 0.0, %v6279
  %v6281 = vpop.f32.mrb[0].mxu0
  %v6282 = vadd.f32 0.0, %v6281
  %v6283 = vpop.f32.mrb[0].mxu0
  %v6284 = vadd.f32 0.0, %v6283
  %v6285 = vpop.f32.mrb[0].mxu0
  %v6286 = vadd.f32 0.0, %v6285
  %6287 = vdwg.mxu0
  %v6288 = vpack.c.bf16 %v6274, %v6270
  %v6289 = vpack.c.bf16 %v6276, %v6272
  %v6290 = vpack.c.bf16 %v6284, %v6280
  %v6291 = vpack.c.bf16 %v6286, %v6282
  %s6292 = scalar_lea.vmem %s18, 512
  %v6293 = vld [vmem:[%s6292] sm:$0xff]
  %v6294 = vld [vmem:[%s6292 + $0x8] sm:$0xff]
  %v6295 = vld [vmem:[%s6292 + $0x10] sm:$0xff]
  %v6296 = vld [vmem:[%s6292 + $0x18] sm:$0xff]
  %v6297 = vld [vmem:[%s6292 + $0x20] sm:$0xff]
  %v6298 = vld [vmem:[%s6292 + $0x28] sm:$0xff]
  %v6299 = vld [vmem:[%s6292 + $0x30] sm:$0xff]
  %v6300 = vld [vmem:[%s6292 + $0x38] sm:$0xff]
  %v6309 = vunpack.c.l.b16 %v6293
  %v6310 = vunpack.c.h.b16 %v6293
  %v6311 = vunpack.c.l.b16 %v6294
  %v6312 = vunpack.c.h.b16 %v6294
  %v6313 = vunpack.c.l.b16 %v6295
  %v6314 = vunpack.c.h.b16 %v6295
  %v6315 = vunpack.c.l.b16 %v6296
  %v6316 = vunpack.c.h.b16 %v6296
  %v6317 = vunpack.c.l.b16 %v6297
  %v6318 = vunpack.c.h.b16 %v6297
  %v6319 = vunpack.c.l.b16 %v6298
  %v6320 = vunpack.c.h.b16 %v6298
  %v6321 = vunpack.c.l.b16 %v6299
  %v6322 = vunpack.c.h.b16 %v6299
  %v6323 = vunpack.c.l.b16 %v6300
  %v6324 = vunpack.c.h.b16 %v6300
  %v6325 = vpack.c.b16 %v6311, %v6309
  %v6326 = vpack.c.b16 %v6312, %v6310
  %v6327 = vpack.c.b16 %v6315, %v6313
  %v6328 = vpack.c.b16 %v6316, %v6314
  %v6329 = vpack.c.b16 %v6319, %v6317
  %v6330 = vpack.c.b16 %v6320, %v6318
  %v6331 = vpack.c.b16 %v6323, %v6321
  %v6332 = vpack.c.b16 %v6324, %v6322
  %6341 = vmatprep.subr.bf16.mxu0 %v6326
  %6342 = vmatpush1.bf16.msra.mxu0 %v6325
  %6343 = vmatprep.subr.bf16.mxu0 %v6328
  %6344 = vmatpush1.bf16.msra.mxu0 %v6327
  %6345 = vmatprep.subr.bf16.mxu0 %v6330
  %6346 = vmatpush1.bf16.msra.mxu0 %v6329
  %6347 = vmatprep.subr.bf16.mxu0 %v6332
  %6348 = vmatpush1.bf16.msra.mxu0 %v6331
  %6349 = vmatprep.subr.bf16.mxu0 0
  %6350 = vmatpush1.bf16.msra.mxu0 0
  %6351 = vmatprep.subr.bf16.mxu0 0
  %6352 = vmatpush1.bf16.msra.mxu0 0
  %6353 = vmatprep.subr.bf16.mxu0 0
  %6354 = vmatpush1.bf16.msra.mxu0 0
  %6355 = vmatprep.subr.bf16.mxu0 0
  %6356 = vmatpush1.bf16.msra.mxu0 0
  %6357 = vmatprep.subr.bf16.mxu0 0
  %6358 = vmatpush1.bf16.msra.mxu0 0
  %6359 = vmatprep.subr.bf16.mxu0 0
  %6360 = vmatpush1.bf16.msra.mxu0 0
  %6361 = vmatprep.subr.bf16.mxu0 0
  %6362 = vmatpush1.bf16.msra.mxu0 0
  %6363 = vmatprep.subr.bf16.mxu0 0
  %6364 = vmatpush1.bf16.msra.mxu0 0
  %6365 = vmatprep.subr.bf16.mxu0 0
  %6366 = vmatpush1.bf16.msra.mxu0 0
  %6367 = vmatprep.subr.bf16.mxu0 0
  %6368 = vmatpush1.bf16.msra.mxu0 0
  %6369 = vmatprep.subr.bf16.mxu0 0
  %6370 = vmatpush1.bf16.msra.mxu0 0
  %6371 = vmatprep.subr.bf16.mxu0 0
  %6372 = vmatpush1.bf16.msra.mxu0 0
  %6373 = vmatprep.mubr.bf16.mxu0 0
  %6374 = vmatmul.mubr.bf16.gmra.mrb[0].mxu0 %v1703
  %v6375 = vpop.f32.mrb[0].mxu0
  %v6376 = vadd.f32 0.0, %v6375
  %v6377 = vpop.f32.mrb[0].mxu0
  %v6378 = vadd.f32 0.0, %v6377
  %v6379 = vpop.f32.mrb[0].mxu0
  %v6380 = vadd.f32 0.0, %v6379
  %v6381 = vpop.f32.mrb[0].mxu0
  %v6382 = vadd.f32 0.0, %v6381
  %6383 = vmatprep.mubr.bf16.mxu0 0
  %6384 = vmatmul.mubr.bf16.gmra.mrb[0].mxu0 %v5491
  %v6385 = vpop.f32.mrb[0].mxu0
  %v6386 = vadd.f32 0.0, %v6385
  %v6387 = vpop.f32.mrb[0].mxu0
  %v6388 = vadd.f32 0.0, %v6387
  %v6389 = vpop.f32.mrb[0].mxu0
  %v6390 = vadd.f32 0.0, %v6389
  %v6391 = vpop.f32.mrb[0].mxu0
  %v6392 = vadd.f32 0.0, %v6391
  %6393 = vdwg.mxu0
  %v6394 = vpack.c.bf16 %v6380, %v6376
  %v6395 = vpack.c.bf16 %v6382, %v6378
  %v6396 = vpack.c.bf16 %v6390, %v6386
  %v6397 = vpack.c.bf16 %v6392, %v6388
  %v6398 = vld [vmem:[%s17] sm:$0xff]
  %v6399 = vld [vmem:[%s17 + $0x8] sm:$0xf]
  %v6400 = vld [vmem:[%s19] sm:$0xff]
  %6402 = vset.pattern.permute.xlu0 0
  %6403 = vperm.xlu0 %6402, %v6400
  %v6404 = vpop.permute.xlu0 %6403
  %v6408 = vunpack.c.l.b16 %v6398
  %v6409 = vunpack.c.h.b16 %v6398
  %v6410 = vunpack.c.l.b16 %v6399
  %v6411 = vpack.c.b16 %v6408, %v6408
  %v6412 = vpack.c.b16 %v6409, %v6409
  %v6413 = vpack.c.b16 %v6410, %v6410
  %v6417 = vsel %vm2428, %v6413, 0
  %6419 = vmatprep.subr.bf16.mxu0 %v5547
  %6420 = vmatpush1.bf16.msra.mxu0 %v5546
  %6421 = vmatprep.subr.bf16.mxu0 %v5549
  %6422 = vmatpush1.bf16.msra.mxu0 %v5548
  %6423 = vmatprep.subr.bf16.mxu0 %v5653
  %6424 = vmatpush1.bf16.msra.mxu0 %v5652
  %6425 = vmatprep.subr.bf16.mxu0 %v5655
  %6426 = vmatpush1.bf16.msra.mxu0 %v5654
  %6427 = vmatprep.subr.bf16.mxu0 %v5759
  %6428 = vmatpush1.bf16.msra.mxu0 %v5758
  %6429 = vmatprep.subr.bf16.mxu0 %v5761
  %6430 = vmatpush1.bf16.msra.mxu0 %v5760
  %6431 = vmatprep.subr.bf16.mxu0 %v5865
  %6432 = vmatpush1.bf16.msra.mxu0 %v5864
  %6433 = vmatprep.subr.bf16.mxu0 %v5867
  %6434 = vmatpush1.bf16.msra.mxu0 %v5866
  %6435 = vmatprep.subr.bf16.mxu0 %v5971
  %6436 = vmatpush1.bf16.msra.mxu0 %v5970
  %6437 = vmatprep.subr.bf16.mxu0 %v5973
  %6438 = vmatpush1.bf16.msra.mxu0 %v5972
  %6439 = vmatprep.subr.bf16.mxu0 %v6077
  %6440 = vmatpush1.bf16.msra.mxu0 %v6076
  %6441 = vmatprep.subr.bf16.mxu0 %v6079
  %6442 = vmatpush1.bf16.msra.mxu0 %v6078
  %6443 = vmatprep.subr.bf16.mxu0 %v6183
  %6444 = vmatpush1.bf16.msra.mxu0 %v6182
  %6445 = vmatprep.subr.bf16.mxu0 %v6185
  %6446 = vmatpush1.bf16.msra.mxu0 %v6184
  %6447 = vmatprep.subr.bf16.mxu0 %v6289
  %6448 = vmatpush1.bf16.msra.mxu0 %v6288
  %6449 = vmatprep.subr.bf16.mxu0 %v6291
  %6450 = vmatpush1.bf16.msra.mxu0 %v6290
  %6451 = vmatprep.mubr.bf16.mxu0 %v6412
  %6452 = vmatmul.mubr.bf16.gmra.mrb[0].mxu0 %v6411
  %v6453 = vpop.f32.mrb[0].mxu0
  %v6454 = vadd.f32 %v6404, %v6453
  %v6455 = vpop.f32.mrb[0].mxu0
  %v6456 = vadd.f32 %v6404, %v6455
  %v6457 = vpop.f32.mrb[0].mxu0
  %v6458 = vpop.f32.mrb[0].mxu0
  %6459 = vdwg.mxu0
  %6460 = vmatprep.subr.bf16.mxu0 %v6395
  %6461 = vmatpush1.bf16.msra.mxu0 %v6394
  %6462 = vmatprep.subr.bf16.mxu0 %v6397
  %6463 = vmatpush1.bf16.msra.mxu0 %v6396
  %6464 = vmatprep.subr.bf16.mxu0 0
  %6465 = vmatpush1.bf16.msra.mxu0 0
  %6466 = vmatprep.subr.bf16.mxu0 0
  %6467 = vmatpush1.bf16.msra.mxu0 0
  %6468 = vmatprep.subr.bf16.mxu0 0
  %6469 = vmatpush1.bf16.msra.mxu0 0
  %6470 = vmatprep.subr.bf16.mxu0 0
  %6471 = vmatpush1.bf16.msra.mxu0 0
  %6472 = vmatprep.subr.bf16.mxu0 0
  %6473 = vmatpush1.bf16.msra.mxu0 0
  %6474 = vmatprep.subr.bf16.mxu0 0
  %6475 = vmatpush1.bf16.msra.mxu0 0
  %6476 = vmatprep.subr.bf16.mxu0 0
  %6477 = vmatpush1.bf16.msra.mxu0 0
  %6478 = vmatprep.subr.bf16.mxu0 0
  %6479 = vmatpush1.bf16.msra.mxu0 0
  %6480 = vmatprep.subr.bf16.mxu0 0
  %6481 = vmatpush1.bf16.msra.mxu0 0
  %6482 = vmatprep.subr.bf16.mxu0 0
  %6483 = vmatpush1.bf16.msra.mxu0 0
  %6484 = vmatprep.subr.bf16.mxu0 0
  %6485 = vmatpush1.bf16.msra.mxu0 0
  %6486 = vmatprep.subr.bf16.mxu0 0
  %6487 = vmatpush1.bf16.msra.mxu0 0
  %6488 = vmatprep.subr.bf16.mxu0 0
  %6489 = vmatpush1.bf16.msra.mxu0 0
  %6490 = vmatprep.subr.bf16.mxu0 0
  %6491 = vmatpush1.bf16.msra.mxu0 0
  %6492 = vmatprep.mubr.bf16.mxu0 0
  %6493 = vmatmul.mubr.bf16.gmra.mrb[0].mxu0 %v6417
  %v6494 = vpop.f32.mrb[0].mxu0
  %v6495 = vadd.f32 %v6454, %v6494
  %v6496 = vpop.f32.mrb[0].mxu0
  %v6497 = vadd.f32 %v6456, %v6496
  %v6498 = vpop.f32.mrb[0].mxu0
  %v6499 = vpop.f32.mrb[0].mxu0
  %6500 = vdwg.mxu0
  %v6501 = vtanh.pop %v6495
  %v6502 = vtanh.pop %v6497
  %6503 = vst [vmem:[%s20] sm:$0xff] %v6501
  %6504 = vst [vmem:[%s20 + $0x8] sm:$0xff] %v6502
  // Predicated region
  $region82: #{seg_v7_forward_3level.1} parent=0 // pred_check
    _
  $region83: #{seg_v7_forward_3level.1} parent=0 // pred_check_branch
    %6506 = sbr.rel (0) target = $region85
  $region84: #{seg_v7_forward_3level.1} parent=0 // pred_region
    _
  $region85: #{seg_v7_forward_3level.1} parent=0 // pred_fallthru
    _
  // Predicated region
  $region86: #{seg_v7_forward_3level.1} parent=0 // pred_check
    _
  $region87: #{seg_v7_forward_3level.1} parent=0 // pred_check_branch
    %6508 = sbr.rel (0) target = $region89
  $region88: #{seg_v7_forward_3level.1} parent=0 // pred_region
    _
  $region89: #{seg_v7_forward_3level.1} parent=0 // pred_fallthru
    _

</llo_original>
